<compile_context>
chip_gen: v7x
topology: tpu7x:2x2x1
jax: 0.10.0
libtpu: 0.0.40
codegen_flags: <defaults>
</compile_context>

<pallas_src>
import functools
import math

import jax
import jax.numpy as jnp
from jax import lax
from jax.experimental import pallas as pl
from jax.experimental.pallas import tpu as pltpu

# ----------------------------- hyper-parameters -----------------------------
VOCAB_SRC = 40
VOCAB_TGT = 40
PAD_IDX = 0
EMBED_DIM = 32
FF_DIM = 64
NUM_HEADS = 4
NUM_LAYERS = 2
EPS_LS = 0.1          # label smoothing in the reference forward
LN_EPS = 1e-5
NEG_INF = -1e9


def _detect_multi_core():
    # v7x has 2 TensorCores per chip -> run the two independent stacks on
    # separate cores (grid=(2,) "parallel").  Single-core chips use the fused
    # single-launch kernel.  Detection failures fall back to the fused path.
    try:
        kind = jax.devices()[0].device_kind.lower()
    except Exception:
        return False
    return "v7" in kind


_USE_SPLIT = _detect_multi_core()


def layer_norm(x, g, b):
    mu = jnp.mean(x, axis=-1, keepdims=True)
    var = jnp.mean((x - mu) ** 2, axis=-1, keepdims=True)
    return (x - mu) * lax.rsqrt(var + LN_EPS) * g + b


# ======================= shared in-kernel building blocks ====================
def _stack_body(x, mask, wq, wk, wv, wo, w1, w2, battn, b1, lnp):
    """Post-LN transformer encoder stack, NUM_LAYERS statically unrolled.

    x: (B, T1, D) f32; mask: (B, T1) f32 (1.0 = padded key).
    wq/wk/wv/wo: (L, D, D) bf16; w1: (L, D, FF) bf16; w2: (L, FF, D) bf16;
    battn: (L, 4, D) f32 [bq, bk, bv, bo]; b1: (L, FF) f32;
    lnp: (L, 5, D) f32 [b2, ln1_g, ln1_b, ln2_g, ln2_b].
    """
    B, T1, D = x.shape
    H = NUM_HEADS
    Dh = D // H
    scale = Dh ** -0.5
    f32 = jnp.float32
    bf16 = jnp.bfloat16

    bias = (mask * NEG_INF)[:, None, :]                       # (B, 1, T1), hoisted
    # Lane-aligned 0/1 head masks: no sub-vreg lane slicing, no concat.
    lane = lax.broadcasted_iota(jnp.int32, (1, D), 1)
    hmask = [((lane >= hh * Dh) & (lane < (hh + 1) * Dh)).astype(bf16)
             for hh in range(H)]

    h = x
    for l in range(NUM_LAYERS):                               # static unroll
        hf = h.reshape(B * T1, D)                             # free retile (T1 % 8 == 0)
        hb = hf.astype(bf16)
        q = jnp.dot(hb, wq[l], preferred_element_type=f32) + battn[l, 0]
        k = jnp.dot(hb, wk[l], preferred_element_type=f32) + battn[l, 1]
        v = jnp.dot(hb, wv[l], preferred_element_type=f32) + battn[l, 2]
        q3 = q.reshape(B, T1, D).astype(bf16)
        k3 = k.reshape(B, T1, D).astype(bf16)
        v3 = v.reshape(B, T1, D).astype(bf16)

        ctx = jnp.zeros((B, T1, D), f32)
        for hh in range(H):
            kh = k3 * hmask[hh]                               # zero other heads' lanes
            vh = v3 * hmask[hh]
            logits = jnp.einsum('bqd,bkd->bqk', q3, kh,
                                preferred_element_type=f32) * scale + bias
            m = jnp.max(logits, axis=-1, keepdims=True)
            p = jnp.exp(logits - m)                           # masked keys -> exactly 0
            p = p * pl.reciprocal(jnp.sum(p, axis=-1, keepdims=True), approx=True)
            ctx = ctx + jnp.einsum('bqk,bkd->bqd', p.astype(bf16), vh,
                                   preferred_element_type=f32)

        attn_out = jnp.dot(ctx.reshape(B * T1, D).astype(bf16), wo[l],
                           preferred_element_type=f32) + battn[l, 3]
        h1 = layer_norm(hf + attn_out, lnp[l, 1], lnp[l, 2])          # post-LN
        ff = jnp.maximum(jnp.dot(h1.astype(bf16), w1[l],
                                 preferred_element_type=f32) + b1[l], 0.0)
        ff = jnp.dot(ff.astype(bf16), w2[l],
                     preferred_element_type=f32) + lnp[l, 0]          # + fc2 bias
        h = layer_norm(h1 + ff, lnp[l, 3], lnp[l, 4]).reshape(B, T1, D)
    return h


def _pool(full, emb_full, mask, wpq, wpk, wpv, bp):
    """Single-head absorber-query attention pooling (f32 path).

    full/emb_full: (B, T1, D) f32 (row 0 = absorber; emb_full row 0 / pads = 0);
    mask: (B, T1) f32 (1.0 = padded key).  Returns (state (B,D), pooled (B,D)).
    """
    B, T1, D = full.shape
    f32 = jnp.float32
    state = full[:, 0, :]                                             # (B, D)
    q0 = (jnp.dot(state, wpq, preferred_element_type=f32) + bp[0]) * (D ** -0.5)
    flat = full.reshape(B * T1, D)
    k = (jnp.dot(flat, wpk, preferred_element_type=f32) + bp[1]).reshape(B, T1, D)
    v = (jnp.dot(flat, wpv, preferred_element_type=f32) + bp[2]).reshape(B, T1, D)

    # Mask absorber (key index 0) and padded keys; attention only over tokens.
    col = lax.broadcasted_iota(jnp.int32, (B, T1), 1)
    pmask = jnp.where(col == 0, 1.0, mask)
    logits = jnp.einsum('bqd,bkd->bqk', q0.reshape(B, 1, D), k,
                        preferred_element_type=f32) + (pmask * NEG_INF)[:, None, :]
    m = jnp.max(logits, axis=-1, keepdims=True)
    p = jnp.exp(logits - m)
    attn = p * pl.reciprocal(jnp.sum(p, axis=-1, keepdims=True), approx=True)
    pooled = jnp.einsum('bqk,bkd->bqd', attn, v + emb_full,
                        preferred_element_type=f32).reshape(B, D)
    return state, pooled


def _head(src_state, src_pool, tgt_pool, scw, scb, btw, btb, blw, blb):
    """Scorer + baseline + label-smoothed NLL + accuracy (all f32)."""
    f32 = jnp.float32
    scored = jnp.dot(src_pool, scw, preferred_element_type=f32) + scb    # (B, D)
    scores = lax.dot_general(scored, tgt_pool, (((1,), (1,)), ((), ())),
                             preferred_element_type=f32)                  # (B, B)
    B = scores.shape[0]

    hbl = jnp.tanh(jnp.dot(src_state, btw, preferred_element_type=f32) + btb)
    baseline = jnp.dot(hbl, blw, preferred_element_type=f32) + blb        # (B, 1)
    baseline_mse = jnp.mean((baseline - jnp.mean(scores, axis=1, keepdims=True)) ** 2)

    # log-softmax + label-smoothed NLL with gold = arange(B) (eps_i = eps / B)
    mmax = jnp.max(scores, axis=-1, keepdims=True)
    lse = mmax + jnp.log(jnp.sum(jnp.exp(scores - mmax), axis=-1, keepdims=True))
    log_probs = scores - lse
    col = lax.broadcasted_iota(jnp.int32, (B, B), 1)
    row = lax.broadcasted_iota(jnp.int32, (B, B), 0)
    diag = col == row
    nll = -jnp.sum(jnp.where(diag, log_probs, 0.0), axis=-1, keepdims=True)
    smooth = -jnp.sum(log_probs, axis=-1, keepdims=True)
    loss_i = (1.0 - EPS_LS) * nll + (EPS_LS / B) * smooth
    loss = jnp.mean(loss_i) + baseline_mse

    # accuracy: pred = first argmax index (matches torch.max tie-breaking)
    row_max = jnp.max(log_probs, axis=-1, keepdims=True)
    pred = jnp.min(jnp.where(log_probs >= row_max, col, B), axis=-1, keepdims=True)
    gold = lax.broadcasted_iota(jnp.int32, (B, 1), 0)
    acc = jnp.sum((pred == gold).astype(f32)) / B
    return loss, acc


def _write_scalars(out_ref, loss, acc):
    # lane-dense (1, 128) output: loss at [0, 0], acc at [0, 1]
    lane = lax.broadcasted_iota(jnp.int32, (1, 128), 1)
    out_ref[...] = jnp.where(lane == 0, loss, jnp.where(lane == 1, acc, 0.0))


# ========================= fused single-launch kernel ========================
def _ranker_fused_kernel(x_ref, embf_ref, mask_ref,
                         wq_ref, wk_ref, wv_ref, wo_ref, w1_ref, w2_ref,
                         battn_ref, b1_ref, lnp_ref,
                         pwq_ref, pwk_ref, pwv_ref, pb_ref,
                         scw_ref, scb_ref, btw_ref, btb_ref, blw_ref, blb_ref,
                         out_ref):
    sp = []
    for s in range(2):                                    # 0 = src stack, 1 = tgt stack
        h = _stack_body(x_ref[s], mask_ref[s],
                        wq_ref[s], wk_ref[s], wv_ref[s], wo_ref[s],
                        w1_ref[s], w2_ref[s], battn_ref[s], b1_ref[s], lnp_ref[s])
        sp.append(_pool(h, embf_ref[s], mask_ref[s],
                        pwq_ref[s], pwk_ref[s], pwv_ref[s], pb_ref[s]))
    loss, acc = _head(sp[0][0], sp[0][1], sp[1][1],
                      scw_ref[...], scb_ref[...], btw_ref[...], btb_ref[...],
                      blw_ref[...], blb_ref[...])
    _write_scalars(out_ref, loss, acc)


# ================== v7x split: stacks kernel (grid parallel) =================
def _ranker_stacks_kernel(x_ref, embf_ref, mask_ref,
                          wq_ref, wk_ref, wv_ref, wo_ref, w1_ref, w2_ref,
                          battn_ref, b1_ref, lnp_ref,
                          pwq_ref, pwk_ref, pwv_ref, pb_ref,
                          sp_ref):
    h = _stack_body(x_ref[0], mask_ref[0],
                    wq_ref[0], wk_ref[0], wv_ref[0], wo_ref[0],
                    w1_ref[0], w2_ref[0], battn_ref[0], b1_ref[0], lnp_ref[0])
    state, pooled = _pool(h, embf_ref[0], mask_ref[0],
                          pwq_ref[0], pwk_ref[0], pwv_ref[0], pb_ref[0])
    sp_ref[0, 0] = state
    sp_ref[0, 1] = pooled


def _ranker_head_kernel(sp_ref, scw_ref, scb_ref, btw_ref, btb_ref,
                        blw_ref, blb_ref, out_ref):
    loss, acc = _head(sp_ref[0, 0], sp_ref[0, 1], sp_ref[1, 1],
                      scw_ref[...], scb_ref[...], btw_ref[...], btb_ref[...],
                      blw_ref[...], blb_ref[...])
    _write_scalars(out_ref, loss, acc)


# ================================= wrappers ==================================
def _ranker_fused_call(x, embf, mask, stack_list, pool_list, head_list):
    args = [x, embf, mask, *stack_list, *pool_list, *head_list]
    vmem = pl.BlockSpec(memory_space=pltpu.MemorySpace.VMEM)
    return pl.pallas_call(
        _ranker_fused_kernel,
        out_shape=jax.ShapeDtypeStruct((1, 128), jnp.float32),
        in_specs=[vmem] * len(args),
        out_specs=vmem,
    )(*args)


def _lead_block_spec(arr):
    bshape = (1,) + tuple(arr.shape[1:])
    nrest = arr.ndim - 1
    return pl.BlockSpec(bshape, lambda i, _n=nrest: (i,) + (0,) * _n)


def _ranker_split_call(x, embf, mask, stack_list, pool_list, head_list):
    B = x.shape[1]
    per_stack_args = [x, embf, mask, *stack_list, *pool_list]
    in_specs = [_lead_block_spec(a) for a in per_stack_args]
    sp = pl.pallas_call(
        _ranker_stacks_kernel,
        out_shape=jax.ShapeDtypeStruct((2, 2, B, EMBED_DIM), jnp.float32),
        grid=(2,),
        in_specs=in_specs,
        out_specs=pl.BlockSpec((1, 2, B, EMBED_DIM), lambda i: (i, 0, 0, 0)),
        compiler_params=pltpu.CompilerParams(
            dimension_semantics=("parallel",)),
    )(*per_stack_args)

    vmem = pl.BlockSpec(memory_space=pltpu.MemorySpace.VMEM)
    head_args = [sp, *head_list]
    return pl.pallas_call(
        _ranker_head_kernel,
        out_shape=jax.ShapeDtypeStruct((1, 128), jnp.float32),
        in_specs=[vmem] * len(head_args),
        out_specs=vmem,
    )(*head_args)


# ================================ glue (JAX) =================================
def sinusoidal_positions(T, D):
    # fairseq-style sinusoidal table; positions = arange(T)
    half = D // 2
    freq = jnp.exp(jnp.arange(half, dtype=jnp.float32) *
                   (-(math.log(10000.0) / (half - 1))))
    ang = jnp.arange(T, dtype=jnp.float32)[:, None] * freq[None, :]
    pe = jnp.concatenate([jnp.sin(ang), jnp.cos(ang)], axis=-1)
    if D % 2 == 1:
        pe = jnp.concatenate([pe, jnp.zeros((T, 1), jnp.float32)], axis=-1)
    return pe  # (T, D)


def ranker_forward(src_tokens, tgt_tokens, params, use_split=None):
    # src_tokens / tgt_tokens: (seq_len, batch) int32 (PyTorch convention)
    if use_split is None:
        use_split = _USE_SPLIT
    D = EMBED_DIM
    embed_scale = math.sqrt(D)

    def embed(tokens, table, g, b):
        T, _ = tokens.shape
        tok_bt = tokens.T                                            # (B, T)
        emb = table[tok_bt] * embed_scale + sinusoidal_positions(T, D)[None]
        emb = layer_norm(emb, g, b)                                  # (B, T, D)
        pad = (tok_bt == PAD_IDX).astype(jnp.float32)                # (B, T)
        return emb, pad

    src_emb, src_pad = embed(src_tokens, params['embed_src'],
                             params['ln_src_g'], params['ln_src_b'])
    tgt_emb, tgt_pad = embed(tgt_tokens, params['embed_tgt'],
                             params['ln_tgt_g'], params['ln_tgt_b'])
    B = src_emb.shape[0]
    # pad (absorber + tokens) up to a multiple of 8 (common length for stacking)
    T1p = ((max(src_emb.shape[1], tgt_emb.shape[1]) + 1 + 7) // 8) * 8

    def build(emb, pad, absorber):
        T = emb.shape[1]
        padn = T1p - 1 - T
        absx = jnp.broadcast_to((embed_scale * absorber)[None, None, :], (B, 1, D))
        xs = [absx, emb]
        ms = [jnp.zeros((B, 1), jnp.float32), pad]
        es = [jnp.zeros((B, 1, D), jnp.float32), emb]
        if padn:
            xs.append(jnp.zeros((B, padn, D), jnp.float32))
            ms.append(jnp.ones((B, padn), jnp.float32))     # padded keys are masked
            es.append(jnp.zeros((B, padn, D), jnp.float32))
        return (jnp.concatenate(xs, 1), jnp.concatenate(ms, 1),
                jnp.concatenate(es, 1))

    xs_, ms_, es_ = build(src_emb, src_pad, params['absorber_src'])
    xt_, mt_, et_ = build(tgt_emb, tgt_pad, params['absorber_tgt'])
    x = jnp.stack([xs_, xt_])        # (2, B, T1p, D)
    mask = jnp.stack([ms_, mt_])     # (2, B, T1p)
    embf = jnp.stack([es_, et_])     # (2, B, T1p, D)

    stack_list = [params[k] for k in
                  ('wq', 'wk', 'wv', 'wo', 'w1', 'w2', 'battn', 'b1', 'lnp')]
    pool_list = [params[k] for k in ('pool_wq', 'pool_wk', 'pool_wv', 'pool_b')]
    head_list = [params[k] for k in
                 ('scorer_w', 'scorer_b', 'bt_w', 'bt_b', 'bls_w', 'bls_b')]

    if use_split:
        out = _ranker_split_call(x, embf, mask, stack_list, pool_list, head_list)
    else:
        out = _ranker_fused_call(x, embf, mask, stack_list, pool_list, head_list)
    return out[0, 0], out[0, 1]


# ============================ deterministic init =============================
def init_params(key):
    it = iter(jax.random.split(key, 128))
    D, FF, L = EMBED_DIM, FF_DIM, NUM_LAYERS

    def xavier(fan_in, fan_out):     # generated directly in (in, out) layout
        a = math.sqrt(6.0 / (fan_in + fan_out))
        return jax.random.uniform(next(it), (fan_in, fan_out), jnp.float32,
                                  minval=-a, maxval=a)

    def normal(shape, std):
        return jax.random.normal(next(it), shape, jnp.float32) * std

    def stack_weights():
        def per_layer(gen):
            return jnp.stack([gen() for _ in range(L)])
        return dict(
            wq=per_layer(lambda: xavier(D, D)), wk=per_layer(lambda: xavier(D, D)),
            wv=per_layer(lambda: xavier(D, D)), wo=per_layer(lambda: xavier(D, D)),
            w1=per_layer(lambda: xavier(D, FF)), w2=per_layer(lambda: xavier(FF, D)),
            battn=jnp.zeros((L, 4, D), jnp.float32),       # [bq, bk, bv, bo]
            b1=jnp.zeros((L, FF), jnp.float32),
            lnp=jnp.stack([jnp.stack([jnp.zeros((D,), jnp.float32),   # b2 (fc2 bias)
                                      jnp.ones((D,), jnp.float32),    # ln1 gamma
                                      jnp.zeros((D,), jnp.float32),   # ln1 beta
                                      jnp.ones((D,), jnp.float32),    # ln2 gamma
                                      jnp.zeros((D,), jnp.float32)])  # ln2 beta
                           for _ in range(L)]))

    src_sw, tgt_sw = stack_weights(), stack_weights()

    def cat(name, dtype=None):
        a = jnp.stack([src_sw[name], tgt_sw[name]])
        return a.astype(dtype) if dtype is not None else a

    return dict(
        embed_src=normal((VOCAB_SRC, D), D ** -0.5).at[PAD_IDX].set(0.0),
        embed_tgt=normal((VOCAB_TGT, D), D ** -0.5).at[PAD_IDX].set(0.0),
        ln_src_g=jnp.ones((D,)), ln_src_b=jnp.zeros((D,)),
        ln_tgt_g=jnp.ones((D,)), ln_tgt_b=jnp.zeros((D,)),
        absorber_src=normal((D,), D ** -0.5),
        absorber_tgt=normal((D,), D ** -0.5),
        # transformer stacks, leading dim 2 = [src, tgt]; weights stored bf16
        wq=cat('wq', jnp.bfloat16), wk=cat('wk', jnp.bfloat16),
        wv=cat('wv', jnp.bfloat16), wo=cat('wo', jnp.bfloat16),
        w1=cat('w1', jnp.bfloat16), w2=cat('w2', jnp.bfloat16),
        battn=cat('battn'), b1=cat('b1'), lnp=cat('lnp'),
        # single-head pooling attentions (src, tgt), f32
        pool_wq=jnp.stack([xavier(D, D), xavier(D, D)]),
        pool_wk=jnp.stack([xavier(D, D), xavier(D, D)]),
        pool_wv=jnp.stack([xavier(D, D), xavier(D, D)]),
        pool_b=jnp.zeros((2, 3, D), jnp.float32),
        # ranker head (baseline_scorer zero-init per reset_parameters)
        scorer_w=xavier(D, D), scorer_b=jnp.zeros((1, D), jnp.float32),
        bt_w=xavier(D, D), bt_b=jnp.zeros((1, D), jnp.float32),
        bls_w=jnp.zeros((D, 1), jnp.float32), bls_b=jnp.zeros((1, 1), jnp.float32),
    )


# =================================== main ====================================
if __name__ == "__main__":
    key = jax.random.PRNGKey(0)
    kp, kd1, kd2 = jax.random.split(key, 3)
    params = init_params(kp)

    B, Ts, Tt = 2, 8, 6
    src_tokens = jax.random.randint(kd1, (Ts, B), 1, VOCAB_SRC, dtype=jnp.int32)
    tgt_tokens = jax.random.randint(kd2, (Tt, B), 1, VOCAB_TGT, dtype=jnp.int32)
    # add trailing padding to exercise the key-padding masks
    src_tokens = src_tokens.at[Ts - 2:, 1].set(PAD_IDX)
    tgt_tokens = tgt_tokens.at[Tt - 1:, 0].set(PAD_IDX)

    # Default production path is selected by _USE_SPLIT (split on v7x, fused on
    # single-core chips).  Exercise BOTH paths here and cross-check parity.
    fwd_fused = jax.jit(functools.partial(ranker_forward, use_split=False))
    fwd_split = jax.jit(functools.partial(ranker_forward, use_split=True))

    loss_f, acc_f = fwd_fused(src_tokens, tgt_tokens, params)
    loss_s, acc_s = fwd_split(src_tokens, tgt_tokens, params)
    jax.block_until_ready((loss_f, acc_f, loss_s, acc_s))

    lf, af = float(loss_f), float(acc_f)
    ls, asp = float(loss_s), float(acc_s)
    assert math.isfinite(lf) and math.isfinite(ls), (lf, ls)
    assert abs(lf - ls) < 5e-3, (lf, ls)
    assert abs(af - asp) < 0.25, (af, asp)
    print("KERNEL_OK")
</pallas_src>

<mosaic_0001>
module attributes {stable_mosaic.version = 11 : i64} {
  func.func @_ranker_fused_kernel(%arg0: memref<2x2x16x32xf32, #tpu.memory_space<vmem>>, %arg1: memref<2x2x16x32xf32, #tpu.memory_space<vmem>>, %arg2: memref<2x2x16xf32, #tpu.memory_space<vmem>>, %arg3: memref<2x2x32x32xbf16, #tpu.memory_space<vmem>>, %arg4: memref<2x2x32x32xbf16, #tpu.memory_space<vmem>>, %arg5: memref<2x2x32x32xbf16, #tpu.memory_space<vmem>>, %arg6: memref<2x2x32x32xbf16, #tpu.memory_space<vmem>>, %arg7: memref<2x2x32x64xbf16, #tpu.memory_space<vmem>>, %arg8: memref<2x2x64x32xbf16, #tpu.memory_space<vmem>>, %arg9: memref<2x2x4x32xf32, #tpu.memory_space<vmem>>, %arg10: memref<2x2x64xf32, #tpu.memory_space<vmem>>, %arg11: memref<2x2x5x32xf32, #tpu.memory_space<vmem>>, %arg12: memref<2x32x32xf32, #tpu.memory_space<vmem>>, %arg13: memref<2x32x32xf32, #tpu.memory_space<vmem>>, %arg14: memref<2x32x32xf32, #tpu.memory_space<vmem>>, %arg15: memref<2x3x32xf32, #tpu.memory_space<vmem>>, %arg16: memref<32x32xf32, #tpu.memory_space<vmem>>, %arg17: memref<1x32xf32, #tpu.memory_space<vmem>>, %arg18: memref<32x32xf32, #tpu.memory_space<vmem>>, %arg19: memref<1x32xf32, #tpu.memory_space<vmem>>, %arg20: memref<32x1xf32, #tpu.memory_space<vmem>>, %arg21: memref<1x1xf32, #tpu.memory_space<vmem>>, %arg22: memref<1x128xf32, #tpu.memory_space<vmem>>) attributes {dimension_semantics = [], scalar_prefetch = 0 : i64, scratch_operands = 0 : i64, tpu.core_type = #tpu.core_type<tc>} {
    %c0 = arith.constant 0 : index
    %c0_0 = arith.constant 0 : index
    %c0_1 = arith.constant 0 : index
    %c0_2 = arith.constant 0 : index
    %0 = vector.load %arg0[%c0, %c0_0, %c0_1, %c0_2] : memref<2x2x16x32xf32, #tpu.memory_space<vmem>>, vector<1x2x16x32xf32>
    %1 = vector.shape_cast %0 : vector<1x2x16x32xf32> to vector<2x16x32xf32>
    %c0_3 = arith.constant 0 : index
    %c0_4 = arith.constant 0 : index
    %c0_5 = arith.constant 0 : index
    %2 = vector.load %arg2[%c0_3, %c0_4, %c0_5] : memref<2x2x16xf32, #tpu.memory_space<vmem>>, vector<1x2x16xf32>
    %3 = vector.shape_cast %2 : vector<1x2x16xf32> to vector<2x16xf32>
    %c0_6 = arith.constant 0 : index
    %c0_7 = arith.constant 0 : index
    %c0_8 = arith.constant 0 : index
    %c0_9 = arith.constant 0 : index
    %4 = vector.load %arg3[%c0_6, %c0_7, %c0_8, %c0_9] : memref<2x2x32x32xbf16, #tpu.memory_space<vmem>>, vector<1x2x32x32xbf16>
    %5 = vector.shape_cast %4 : vector<1x2x32x32xbf16> to vector<2x32x32xbf16>
    %c0_10 = arith.constant 0 : index
    %c0_11 = arith.constant 0 : index
    %c0_12 = arith.constant 0 : index
    %c0_13 = arith.constant 0 : index
    %6 = vector.load %arg4[%c0_10, %c0_11, %c0_12, %c0_13] : memref<2x2x32x32xbf16, #tpu.memory_space<vmem>>, vector<1x2x32x32xbf16>
    %7 = vector.shape_cast %6 : vector<1x2x32x32xbf16> to vector<2x32x32xbf16>
    %c0_14 = arith.constant 0 : index
    %c0_15 = arith.constant 0 : index
    %c0_16 = arith.constant 0 : index
    %c0_17 = arith.constant 0 : index
    %8 = vector.load %arg5[%c0_14, %c0_15, %c0_16, %c0_17] : memref<2x2x32x32xbf16, #tpu.memory_space<vmem>>, vector<1x2x32x32xbf16>
    %9 = vector.shape_cast %8 : vector<1x2x32x32xbf16> to vector<2x32x32xbf16>
    %c0_18 = arith.constant 0 : index
    %c0_19 = arith.constant 0 : index
    %c0_20 = arith.constant 0 : index
    %c0_21 = arith.constant 0 : index
    %10 = vector.load %arg6[%c0_18, %c0_19, %c0_20, %c0_21] : memref<2x2x32x32xbf16, #tpu.memory_space<vmem>>, vector<1x2x32x32xbf16>
    %11 = vector.shape_cast %10 : vector<1x2x32x32xbf16> to vector<2x32x32xbf16>
    %c0_22 = arith.constant 0 : index
    %c0_23 = arith.constant 0 : index
    %c0_24 = arith.constant 0 : index
    %c0_25 = arith.constant 0 : index
    %12 = vector.load %arg7[%c0_22, %c0_23, %c0_24, %c0_25] : memref<2x2x32x64xbf16, #tpu.memory_space<vmem>>, vector<1x2x32x64xbf16>
    %13 = vector.shape_cast %12 : vector<1x2x32x64xbf16> to vector<2x32x64xbf16>
    %c0_26 = arith.constant 0 : index
    %c0_27 = arith.constant 0 : index
    %c0_28 = arith.constant 0 : index
    %c0_29 = arith.constant 0 : index
    %14 = vector.load %arg8[%c0_26, %c0_27, %c0_28, %c0_29] : memref<2x2x64x32xbf16, #tpu.memory_space<vmem>>, vector<1x2x64x32xbf16>
    %15 = vector.shape_cast %14 : vector<1x2x64x32xbf16> to vector<2x64x32xbf16>
    %c0_30 = arith.constant 0 : index
    %c0_31 = arith.constant 0 : index
    %c0_32 = arith.constant 0 : index
    %c0_33 = arith.constant 0 : index
    %16 = vector.load %arg9[%c0_30, %c0_31, %c0_32, %c0_33] : memref<2x2x4x32xf32, #tpu.memory_space<vmem>>, vector<1x2x4x32xf32>
    %17 = vector.shape_cast %16 : vector<1x2x4x32xf32> to vector<2x4x32xf32>
    %c0_34 = arith.constant 0 : index
    %c0_35 = arith.constant 0 : index
    %c0_36 = arith.constant 0 : index
    %18 = vector.load %arg10[%c0_34, %c0_35, %c0_36] : memref<2x2x64xf32, #tpu.memory_space<vmem>>, vector<1x2x64xf32>
    %19 = vector.shape_cast %18 : vector<1x2x64xf32> to vector<2x64xf32>
    %c0_37 = arith.constant 0 : index
    %c0_38 = arith.constant 0 : index
    %c0_39 = arith.constant 0 : index
    %c0_40 = arith.constant 0 : index
    %20 = vector.load %arg11[%c0_37, %c0_38, %c0_39, %c0_40] : memref<2x2x5x32xf32, #tpu.memory_space<vmem>>, vector<1x2x5x32xf32>
    %21 = vector.shape_cast %20 : vector<1x2x5x32xf32> to vector<2x5x32xf32>
    %cst = arith.constant -1.000000e+09 : f32
    %22 = vector.broadcast %cst : f32 to vector<2x16xf32>
    %23 = arith.mulf %3, %22 : vector<2x16xf32>
    %24 = vector.shape_cast %23 : vector<2x16xf32> to vector<2x1x16xf32>
    %25 = tpu.iota {dimensions = array<i32: 1>} : vector<1x32xi32>
    %c0_i32 = arith.constant 0 : i32
    %26 = vector.broadcast %c0_i32 : i32 to vector<1x32xi32>
    %27 = arith.cmpi sge, %25, %26 : vector<1x32xi32>
    %c8_i32 = arith.constant 8 : i32
    %28 = vector.broadcast %c8_i32 : i32 to vector<1x32xi32>
    %29 = arith.cmpi slt, %25, %28 : vector<1x32xi32>
    %30 = arith.andi %27, %29 : vector<1x32xi1>
    %31 = arith.extui %30 : vector<1x32xi1> to vector<1x32xi32>
    %32 = arith.sitofp %31 : vector<1x32xi32> to vector<1x32xf32>
    %33 = arith.truncf %32 : vector<1x32xf32> to vector<1x32xbf16>
    %c8_i32_41 = arith.constant 8 : i32
    %34 = vector.broadcast %c8_i32_41 : i32 to vector<1x32xi32>
    %35 = arith.cmpi sge, %25, %34 : vector<1x32xi32>
    %c16_i32 = arith.constant 16 : i32
    %36 = vector.broadcast %c16_i32 : i32 to vector<1x32xi32>
    %37 = arith.cmpi slt, %25, %36 : vector<1x32xi32>
    %38 = arith.andi %35, %37 : vector<1x32xi1>
    %39 = arith.extui %38 : vector<1x32xi1> to vector<1x32xi32>
    %40 = arith.sitofp %39 : vector<1x32xi32> to vector<1x32xf32>
    %41 = arith.truncf %40 : vector<1x32xf32> to vector<1x32xbf16>
    %c16_i32_42 = arith.constant 16 : i32
    %42 = vector.broadcast %c16_i32_42 : i32 to vector<1x32xi32>
    %43 = arith.cmpi sge, %25, %42 : vector<1x32xi32>
    %c24_i32 = arith.constant 24 : i32
    %44 = vector.broadcast %c24_i32 : i32 to vector<1x32xi32>
    %45 = arith.cmpi slt, %25, %44 : vector<1x32xi32>
    %46 = arith.andi %43, %45 : vector<1x32xi1>
    %47 = arith.extui %46 : vector<1x32xi1> to vector<1x32xi32>
    %48 = arith.sitofp %47 : vector<1x32xi32> to vector<1x32xf32>
    %49 = arith.truncf %48 : vector<1x32xf32> to vector<1x32xbf16>
    %c24_i32_43 = arith.constant 24 : i32
    %50 = vector.broadcast %c24_i32_43 : i32 to vector<1x32xi32>
    %51 = arith.cmpi sge, %25, %50 : vector<1x32xi32>
    %c32_i32 = arith.constant 32 : i32
    %52 = vector.broadcast %c32_i32 : i32 to vector<1x32xi32>
    %53 = arith.cmpi slt, %25, %52 : vector<1x32xi32>
    %54 = arith.andi %51, %53 : vector<1x32xi1>
    %55 = arith.extui %54 : vector<1x32xi1> to vector<1x32xi32>
    %56 = arith.sitofp %55 : vector<1x32xi32> to vector<1x32xf32>
    %57 = arith.truncf %56 : vector<1x32xf32> to vector<1x32xbf16>
    %58 = vector.shape_cast %1 : vector<2x16x32xf32> to vector<32x32xf32>
    %59 = arith.truncf %58 : vector<32x32xf32> to vector<32x32xbf16>
    %60 = vector.extract_strided_slice %5 {offsets = [0, 0, 0], sizes = [1, 32, 32], strides = [1, 1, 1]} : vector<2x32x32xbf16> to vector<1x32x32xbf16>
    %61 = vector.shape_cast %60 : vector<1x32x32xbf16> to vector<32x32xbf16>
    %cst_44 = arith.constant dense<0.000000e+00> : vector<32x32xf32>
    %62 = tpu.matmul %59, %61, %cst_44 {dimension_numbers = #tpu.dot_dimension_numbers<[1], [0], [0], [1], [0, 0, 1, 1], [], []>} : vector<32x32xbf16>, vector<32x32xbf16>, vector<32x32xf32> -> vector<32x32xf32>
    %63 = vector.extract_strided_slice %17 {offsets = [0, 0, 0], sizes = [1, 1, 32], strides = [1, 1, 1]} : vector<2x4x32xf32> to vector<1x1x32xf32>
    %64 = vector.shape_cast %63 : vector<1x1x32xf32> to vector<32xf32>
    %65 = vector.shape_cast %64 : vector<32xf32> to vector<1x32xf32>
    %66 = vector.broadcast %65 : vector<1x32xf32> to vector<32x32xf32>
    %67 = arith.addf %62, %66 : vector<32x32xf32>
    %68 = vector.extract_strided_slice %7 {offsets = [0, 0, 0], sizes = [1, 32, 32], strides = [1, 1, 1]} : vector<2x32x32xbf16> to vector<1x32x32xbf16>
    %69 = vector.shape_cast %68 : vector<1x32x32xbf16> to vector<32x32xbf16>
    %cst_45 = arith.constant dense<0.000000e+00> : vector<32x32xf32>
    %70 = tpu.matmul %59, %69, %cst_45 {dimension_numbers = #tpu.dot_dimension_numbers<[1], [0], [0], [1], [0, 0, 1, 1], [], []>} : vector<32x32xbf16>, vector<32x32xbf16>, vector<32x32xf32> -> vector<32x32xf32>
    %71 = vector.extract_strided_slice %17 {offsets = [0, 1, 0], sizes = [1, 1, 32], strides = [1, 1, 1]} : vector<2x4x32xf32> to vector<1x1x32xf32>
    %72 = vector.shape_cast %71 : vector<1x1x32xf32> to vector<32xf32>
    %73 = vector.shape_cast %72 : vector<32xf32> to vector<1x32xf32>
    %74 = vector.broadcast %73 : vector<1x32xf32> to vector<32x32xf32>
    %75 = arith.addf %70, %74 : vector<32x32xf32>
    %76 = vector.extract_strided_slice %9 {offsets = [0, 0, 0], sizes = [1, 32, 32], strides = [1, 1, 1]} : vector<2x32x32xbf16> to vector<1x32x32xbf16>
    %77 = vector.shape_cast %76 : vector<1x32x32xbf16> to vector<32x32xbf16>
    %cst_46 = arith.constant dense<0.000000e+00> : vector<32x32xf32>
    %78 = tpu.matmul %59, %77, %cst_46 {dimension_numbers = #tpu.dot_dimension_numbers<[1], [0], [0], [1], [0, 0, 1, 1], [], []>} : vector<32x32xbf16>, vector<32x32xbf16>, vector<32x32xf32> -> vector<32x32xf32>
    %79 = vector.extract_strided_slice %17 {offsets = [0, 2, 0], sizes = [1, 1, 32], strides = [1, 1, 1]} : vector<2x4x32xf32> to vector<1x1x32xf32>
    %80 = vector.shape_cast %79 : vector<1x1x32xf32> to vector<32xf32>
    %81 = vector.shape_cast %80 : vector<32xf32> to vector<1x32xf32>
    %82 = vector.broadcast %81 : vector<1x32xf32> to vector<32x32xf32>
    %83 = arith.addf %78, %82 : vector<32x32xf32>
    %84 = vector.shape_cast %67 : vector<32x32xf32> to vector<2x16x32xf32>
    %85 = arith.truncf %84 : vector<2x16x32xf32> to vector<2x16x32xbf16>
    %86 = vector.shape_cast %75 : vector<32x32xf32> to vector<2x16x32xf32>
    %87 = arith.truncf %86 : vector<2x16x32xf32> to vector<2x16x32xbf16>
    %88 = vector.shape_cast %83 : vector<32x32xf32> to vector<2x16x32xf32>
    %89 = arith.truncf %88 : vector<2x16x32xf32> to vector<2x16x32xbf16>
    %cst_47 = arith.constant 0.000000e+00 : f32
    %90 = vector.broadcast %cst_47 : f32 to vector<2x16x32xf32>
    %91 = vector.shape_cast %33 : vector<1x32xbf16> to vector<1x1x32xbf16>
    %92 = vector.broadcast %91 : vector<1x1x32xbf16> to vector<2x16x32xbf16>
    %93 = arith.mulf %87, %92 : vector<2x16x32xbf16>
    %94 = vector.shape_cast %33 : vector<1x32xbf16> to vector<1x1x32xbf16>
    %95 = vector.broadcast %94 : vector<1x1x32xbf16> to vector<2x16x32xbf16>
    %96 = arith.mulf %89, %95 : vector<2x16x32xbf16>
    "tpu.trace_start"() <{level = 10 : i32, message = "bqd,bkd->bqk"}> : () -> ()
    %cst_48 = arith.constant dense<0.000000e+00> : vector<2x16x16xf32>
    %97 = tpu.matmul %85, %93, %cst_48 {dimension_numbers = #tpu.dot_dimension_numbers<[2], [2], [1], [1], [0, 0, 0, 1, 1, 1], [0], [0]>} : vector<2x16x32xbf16>, vector<2x16x32xbf16>, vector<2x16x16xf32> -> vector<2x16x16xf32>
    "tpu.trace_stop"() : () -> ()
    %cst_49 = arith.constant 0.353553385 : f32
    %98 = vector.broadcast %cst_49 : f32 to vector<2x16x16xf32>
    %99 = arith.mulf %97, %98 : vector<2x16x16xf32>
    %100 = vector.broadcast %24 : vector<2x1x16xf32> to vector<2x16x16xf32>
    %101 = arith.addf %99, %100 : vector<2x16x16xf32>
    %cst_50 = arith.constant dense<0xFF800000> : vector<2x16xf32>
    %102 = vector.multi_reduction <maximumf>, %101, %cst_50 [2] : vector<2x16x16xf32> to vector<2x16xf32>
    %103 = vector.shape_cast %102 : vector<2x16xf32> to vector<2x16x1xf32>
    %104 = vector.broadcast %103 : vector<2x16x1xf32> to vector<2x16x16xf32>
    %105 = arith.subf %101, %104 : vector<2x16x16xf32>
    %106 = math.exp %105 : vector<2x16x16xf32>
    %cst_51 = arith.constant dense<0.000000e+00> : vector<2x16xf32>
    %107 = vector.multi_reduction <add>, %106, %cst_51 [2] : vector<2x16x16xf32> to vector<2x16xf32>
    %108 = vector.shape_cast %107 : vector<2x16xf32> to vector<2x16x1xf32>
    %109 = tpu.reciprocal %108 {approx = true} : vector<2x16x1xf32> -> vector<2x16x1xf32>
    %110 = vector.broadcast %109 : vector<2x16x1xf32> to vector<2x16x16xf32>
    %111 = arith.mulf %106, %110 : vector<2x16x16xf32>
    %112 = arith.truncf %111 : vector<2x16x16xf32> to vector<2x16x16xbf16>
    "tpu.trace_start"() <{level = 10 : i32, message = "bqk,bkd->bqd"}> : () -> ()
    %cst_52 = arith.constant dense<0.000000e+00> : vector<2x16x32xf32>
    %113 = tpu.matmul %112, %96, %cst_52 {dimension_numbers = #tpu.dot_dimension_numbers<[2], [1], [1], [2], [0, 0, 0, 1, 1, 2], [0], [0]>} : vector<2x16x16xbf16>, vector<2x16x32xbf16>, vector<2x16x32xf32> -> vector<2x16x32xf32>
    "tpu.trace_stop"() : () -> ()
    %114 = arith.addf %90, %113 : vector<2x16x32xf32>
    %115 = vector.shape_cast %41 : vector<1x32xbf16> to vector<1x1x32xbf16>
    %116 = vector.broadcast %115 : vector<1x1x32xbf16> to vector<2x16x32xbf16>
    %117 = arith.mulf %87, %116 : vector<2x16x32xbf16>
    %118 = vector.shape_cast %41 : vector<1x32xbf16> to vector<1x1x32xbf16>
    %119 = vector.broadcast %118 : vector<1x1x32xbf16> to vector<2x16x32xbf16>
    %120 = arith.mulf %89, %119 : vector<2x16x32xbf16>
    "tpu.trace_start"() <{level = 10 : i32, message = "bqd,bkd->bqk"}> : () -> ()
    %cst_53 = arith.constant dense<0.000000e+00> : vector<2x16x16xf32>
    %121 = tpu.matmul %85, %117, %cst_53 {dimension_numbers = #tpu.dot_dimension_numbers<[2], [2], [1], [1], [0, 0, 0, 1, 1, 1], [0], [0]>} : vector<2x16x32xbf16>, vector<2x16x32xbf16>, vector<2x16x16xf32> -> vector<2x16x16xf32>
    "tpu.trace_stop"() : () -> ()
    %cst_54 = arith.constant 0.353553385 : f32
    %122 = vector.broadcast %cst_54 : f32 to vector<2x16x16xf32>
    %123 = arith.mulf %121, %122 : vector<2x16x16xf32>
    %124 = vector.broadcast %24 : vector<2x1x16xf32> to vector<2x16x16xf32>
    %125 = arith.addf %123, %124 : vector<2x16x16xf32>
    %cst_55 = arith.constant dense<0xFF800000> : vector<2x16xf32>
    %126 = vector.multi_reduction <maximumf>, %125, %cst_55 [2] : vector<2x16x16xf32> to vector<2x16xf32>
    %127 = vector.shape_cast %126 : vector<2x16xf32> to vector<2x16x1xf32>
    %128 = vector.broadcast %127 : vector<2x16x1xf32> to vector<2x16x16xf32>
    %129 = arith.subf %125, %128 : vector<2x16x16xf32>
    %130 = math.exp %129 : vector<2x16x16xf32>
    %cst_56 = arith.constant dense<0.000000e+00> : vector<2x16xf32>
    %131 = vector.multi_reduction <add>, %130, %cst_56 [2] : vector<2x16x16xf32> to vector<2x16xf32>
    %132 = vector.shape_cast %131 : vector<2x16xf32> to vector<2x16x1xf32>
    %133 = tpu.reciprocal %132 {approx = true} : vector<2x16x1xf32> -> vector<2x16x1xf32>
    %134 = vector.broadcast %133 : vector<2x16x1xf32> to vector<2x16x16xf32>
    %135 = arith.mulf %130, %134 : vector<2x16x16xf32>
    %136 = arith.truncf %135 : vector<2x16x16xf32> to vector<2x16x16xbf16>
    "tpu.trace_start"() <{level = 10 : i32, message = "bqk,bkd->bqd"}> : () -> ()
    %cst_57 = arith.constant dense<0.000000e+00> : vector<2x16x32xf32>
    %137 = tpu.matmul %136, %120, %cst_57 {dimension_numbers = #tpu.dot_dimension_numbers<[2], [1], [1], [2], [0, 0, 0, 1, 1, 2], [0], [0]>} : vector<2x16x16xbf16>, vector<2x16x32xbf16>, vector<2x16x32xf32> -> vector<2x16x32xf32>
    "tpu.trace_stop"() : () -> ()
    %138 = arith.addf %114, %137 : vector<2x16x32xf32>
    %139 = vector.shape_cast %49 : vector<1x32xbf16> to vector<1x1x32xbf16>
    %140 = vector.broadcast %139 : vector<1x1x32xbf16> to vector<2x16x32xbf16>
    %141 = arith.mulf %87, %140 : vector<2x16x32xbf16>
    %142 = vector.shape_cast %49 : vector<1x32xbf16> to vector<1x1x32xbf16>
    %143 = vector.broadcast %142 : vector<1x1x32xbf16> to vector<2x16x32xbf16>
    %144 = arith.mulf %89, %143 : vector<2x16x32xbf16>
    "tpu.trace_start"() <{level = 10 : i32, message = "bqd,bkd->bqk"}> : () -> ()
    %cst_58 = arith.constant dense<0.000000e+00> : vector<2x16x16xf32>
    %145 = tpu.matmul %85, %141, %cst_58 {dimension_numbers = #tpu.dot_dimension_numbers<[2], [2], [1], [1], [0, 0, 0, 1, 1, 1], [0], [0]>} : vector<2x16x32xbf16>, vector<2x16x32xbf16>, vector<2x16x16xf32> -> vector<2x16x16xf32>
    "tpu.trace_stop"() : () -> ()
    %cst_59 = arith.constant 0.353553385 : f32
    %146 = vector.broadcast %cst_59 : f32 to vector<2x16x16xf32>
    %147 = arith.mulf %145, %146 : vector<2x16x16xf32>
    %148 = vector.broadcast %24 : vector<2x1x16xf32> to vector<2x16x16xf32>
    %149 = arith.addf %147, %148 : vector<2x16x16xf32>
    %cst_60 = arith.constant dense<0xFF800000> : vector<2x16xf32>
    %150 = vector.multi_reduction <maximumf>, %149, %cst_60 [2] : vector<2x16x16xf32> to vector<2x16xf32>
    %151 = vector.shape_cast %150 : vector<2x16xf32> to vector<2x16x1xf32>
    %152 = vector.broadcast %151 : vector<2x16x1xf32> to vector<2x16x16xf32>
    %153 = arith.subf %149, %152 : vector<2x16x16xf32>
    %154 = math.exp %153 : vector<2x16x16xf32>
    %cst_61 = arith.constant dense<0.000000e+00> : vector<2x16xf32>
    %155 = vector.multi_reduction <add>, %154, %cst_61 [2] : vector<2x16x16xf32> to vector<2x16xf32>
    %156 = vector.shape_cast %155 : vector<2x16xf32> to vector<2x16x1xf32>
    %157 = tpu.reciprocal %156 {approx = true} : vector<2x16x1xf32> -> vector<2x16x1xf32>
    %158 = vector.broadcast %157 : vector<2x16x1xf32> to vector<2x16x16xf32>
    %159 = arith.mulf %154, %158 : vector<2x16x16xf32>
    %160 = arith.truncf %159 : vector<2x16x16xf32> to vector<2x16x16xbf16>
    "tpu.trace_start"() <{level = 10 : i32, message = "bqk,bkd->bqd"}> : () -> ()
    %cst_62 = arith.constant dense<0.000000e+00> : vector<2x16x32xf32>
    %161 = tpu.matmul %160, %144, %cst_62 {dimension_numbers = #tpu.dot_dimension_numbers<[2], [1], [1], [2], [0, 0, 0, 1, 1, 2], [0], [0]>} : vector<2x16x16xbf16>, vector<2x16x32xbf16>, vector<2x16x32xf32> -> vector<2x16x32xf32>
    "tpu.trace_stop"() : () -> ()
    %162 = arith.addf %138, %161 : vector<2x16x32xf32>
    %163 = vector.shape_cast %57 : vector<1x32xbf16> to vector<1x1x32xbf16>
    %164 = vector.broadcast %163 : vector<1x1x32xbf16> to vector<2x16x32xbf16>
    %165 = arith.mulf %87, %164 : vector<2x16x32xbf16>
    %166 = vector.shape_cast %57 : vector<1x32xbf16> to vector<1x1x32xbf16>
    %167 = vector.broadcast %166 : vector<1x1x32xbf16> to vector<2x16x32xbf16>
    %168 = arith.mulf %89, %167 : vector<2x16x32xbf16>
    "tpu.trace_start"() <{level = 10 : i32, message = "bqd,bkd->bqk"}> : () -> ()
    %cst_63 = arith.constant dense<0.000000e+00> : vector<2x16x16xf32>
    %169 = tpu.matmul %85, %165, %cst_63 {dimension_numbers = #tpu.dot_dimension_numbers<[2], [2], [1], [1], [0, 0, 0, 1, 1, 1], [0], [0]>} : vector<2x16x32xbf16>, vector<2x16x32xbf16>, vector<2x16x16xf32> -> vector<2x16x16xf32>
    "tpu.trace_stop"() : () -> ()
    %cst_64 = arith.constant 0.353553385 : f32
    %170 = vector.broadcast %cst_64 : f32 to vector<2x16x16xf32>
    %171 = arith.mulf %169, %170 : vector<2x16x16xf32>
    %172 = vector.broadcast %24 : vector<2x1x16xf32> to vector<2x16x16xf32>
    %173 = arith.addf %171, %172 : vector<2x16x16xf32>
    %cst_65 = arith.constant dense<0xFF800000> : vector<2x16xf32>
    %174 = vector.multi_reduction <maximumf>, %173, %cst_65 [2] : vector<2x16x16xf32> to vector<2x16xf32>
    %175 = vector.shape_cast %174 : vector<2x16xf32> to vector<2x16x1xf32>
    %176 = vector.broadcast %175 : vector<2x16x1xf32> to vector<2x16x16xf32>
    %177 = arith.subf %173, %176 : vector<2x16x16xf32>
    %178 = math.exp %177 : vector<2x16x16xf32>
    %cst_66 = arith.constant dense<0.000000e+00> : vector<2x16xf32>
    %179 = vector.multi_reduction <add>, %178, %cst_66 [2] : vector<2x16x16xf32> to vector<2x16xf32>
    %180 = vector.shape_cast %179 : vector<2x16xf32> to vector<2x16x1xf32>
    %181 = tpu.reciprocal %180 {approx = true} : vector<2x16x1xf32> -> vector<2x16x1xf32>
    %182 = vector.broadcast %181 : vector<2x16x1xf32> to vector<2x16x16xf32>
    %183 = arith.mulf %178, %182 : vector<2x16x16xf32>
    %184 = arith.truncf %183 : vector<2x16x16xf32> to vector<2x16x16xbf16>
    "tpu.trace_start"() <{level = 10 : i32, message = "bqk,bkd->bqd"}> : () -> ()
    %cst_67 = arith.constant dense<0.000000e+00> : vector<2x16x32xf32>
    %185 = tpu.matmul %184, %168, %cst_67 {dimension_numbers = #tpu.dot_dimension_numbers<[2], [1], [1], [2], [0, 0, 0, 1, 1, 2], [0], [0]>} : vector<2x16x16xbf16>, vector<2x16x32xbf16>, vector<2x16x32xf32> -> vector<2x16x32xf32>
    "tpu.trace_stop"() : () -> ()
    %186 = arith.addf %162, %185 : vector<2x16x32xf32>
    %187 = vector.shape_cast %186 : vector<2x16x32xf32> to vector<32x32xf32>
    %188 = arith.truncf %187 : vector<32x32xf32> to vector<32x32xbf16>
    %189 = vector.extract_strided_slice %11 {offsets = [0, 0, 0], sizes = [1, 32, 32], strides = [1, 1, 1]} : vector<2x32x32xbf16> to vector<1x32x32xbf16>
    %190 = vector.shape_cast %189 : vector<1x32x32xbf16> to vector<32x32xbf16>
    %cst_68 = arith.constant dense<0.000000e+00> : vector<32x32xf32>
    %191 = tpu.matmul %188, %190, %cst_68 {dimension_numbers = #tpu.dot_dimension_numbers<[1], [0], [0], [1], [0, 0, 1, 1], [], []>} : vector<32x32xbf16>, vector<32x32xbf16>, vector<32x32xf32> -> vector<32x32xf32>
    %192 = vector.extract_strided_slice %17 {offsets = [0, 3, 0], sizes = [1, 1, 32], strides = [1, 1, 1]} : vector<2x4x32xf32> to vector<1x1x32xf32>
    %193 = vector.shape_cast %192 : vector<1x1x32xf32> to vector<32xf32>
    %194 = vector.shape_cast %193 : vector<32xf32> to vector<1x32xf32>
    %195 = vector.broadcast %194 : vector<1x32xf32> to vector<32x32xf32>
    %196 = arith.addf %191, %195 : vector<32x32xf32>
    %197 = arith.addf %58, %196 : vector<32x32xf32>
    %198 = vector.extract_strided_slice %21 {offsets = [0, 1, 0], sizes = [1, 1, 32], strides = [1, 1, 1]} : vector<2x5x32xf32> to vector<1x1x32xf32>
    %199 = vector.shape_cast %198 : vector<1x1x32xf32> to vector<32xf32>
    %200 = vector.extract_strided_slice %21 {offsets = [0, 2, 0], sizes = [1, 1, 32], strides = [1, 1, 1]} : vector<2x5x32xf32> to vector<1x1x32xf32>
    %201 = vector.shape_cast %200 : vector<1x1x32xf32> to vector<32xf32>
    %cst_69 = arith.constant dense<0.000000e+00> : vector<32xf32>
    %202 = vector.multi_reduction <add>, %197, %cst_69 [1] : vector<32x32xf32> to vector<32xf32>
    %203 = vector.shape_cast %202 : vector<32xf32> to vector<32x1xf32>
    %cst_70 = arith.constant 3.200000e+01 : f32
    %204 = vector.broadcast %cst_70 : f32 to vector<32x1xf32>
    %205 = arith.divf %203, %204 : vector<32x1xf32>
    %206 = vector.broadcast %205 : vector<32x1xf32> to vector<32x32xf32>
    %207 = arith.subf %197, %206 : vector<32x32xf32>
    %208 = arith.mulf %207, %207 : vector<32x32xf32>
    %cst_71 = arith.constant dense<0.000000e+00> : vector<32xf32>
    %209 = vector.multi_reduction <add>, %208, %cst_71 [1] : vector<32x32xf32> to vector<32xf32>
    %210 = vector.shape_cast %209 : vector<32xf32> to vector<32x1xf32>
    %cst_72 = arith.constant 3.200000e+01 : f32
    %211 = vector.broadcast %cst_72 : f32 to vector<32x1xf32>
    %212 = arith.divf %210, %211 : vector<32x1xf32>
    %213 = vector.broadcast %205 : vector<32x1xf32> to vector<32x32xf32>
    %214 = arith.subf %197, %213 : vector<32x32xf32>
    %cst_73 = arith.constant 9.99999974E-6 : f32
    %215 = vector.broadcast %cst_73 : f32 to vector<32x1xf32>
    %216 = arith.addf %212, %215 : vector<32x1xf32>
    %217 = math.rsqrt %216 : vector<32x1xf32>
    %218 = vector.broadcast %217 : vector<32x1xf32> to vector<32x32xf32>
    %219 = arith.mulf %214, %218 : vector<32x32xf32>
    %220 = vector.shape_cast %199 : vector<32xf32> to vector<1x32xf32>
    %221 = vector.broadcast %220 : vector<1x32xf32> to vector<32x32xf32>
    %222 = arith.mulf %219, %221 : vector<32x32xf32>
    %223 = vector.shape_cast %201 : vector<32xf32> to vector<1x32xf32>
    %224 = vector.broadcast %223 : vector<1x32xf32> to vector<32x32xf32>
    %225 = arith.addf %222, %224 : vector<32x32xf32>
    %226 = arith.truncf %225 : vector<32x32xf32> to vector<32x32xbf16>
    %227 = vector.extract_strided_slice %13 {offsets = [0, 0, 0], sizes = [1, 32, 64], strides = [1, 1, 1]} : vector<2x32x64xbf16> to vector<1x32x64xbf16>
    %228 = vector.shape_cast %227 : vector<1x32x64xbf16> to vector<32x64xbf16>
    %cst_74 = arith.constant dense<0.000000e+00> : vector<32x64xf32>
    %229 = tpu.matmul %226, %228, %cst_74 {dimension_numbers = #tpu.dot_dimension_numbers<[1], [0], [0], [1], [0, 0, 1, 1], [], []>} : vector<32x32xbf16>, vector<32x64xbf16>, vector<32x64xf32> -> vector<32x64xf32>
    %230 = vector.extract_strided_slice %19 {offsets = [0, 0], sizes = [1, 64], strides = [1, 1]} : vector<2x64xf32> to vector<1x64xf32>
    %231 = vector.shape_cast %230 : vector<1x64xf32> to vector<64xf32>
    %232 = vector.shape_cast %231 : vector<64xf32> to vector<1x64xf32>
    %233 = vector.broadcast %232 : vector<1x64xf32> to vector<32x64xf32>
    %234 = arith.addf %229, %233 : vector<32x64xf32>
    %cst_75 = arith.constant 0.000000e+00 : f32
    %235 = vector.broadcast %cst_75 : f32 to vector<32x64xf32>
    %236 = arith.maximumf %234, %235 : vector<32x64xf32>
    %237 = arith.truncf %236 : vector<32x64xf32> to vector<32x64xbf16>
    %238 = vector.extract_strided_slice %15 {offsets = [0, 0, 0], sizes = [1, 64, 32], strides = [1, 1, 1]} : vector<2x64x32xbf16> to vector<1x64x32xbf16>
    %239 = vector.shape_cast %238 : vector<1x64x32xbf16> to vector<64x32xbf16>
    %cst_76 = arith.constant dense<0.000000e+00> : vector<32x32xf32>
    %240 = tpu.matmul %237, %239, %cst_76 {dimension_numbers = #tpu.dot_dimension_numbers<[1], [0], [0], [1], [0, 0, 1, 1], [], []>} : vector<32x64xbf16>, vector<64x32xbf16>, vector<32x32xf32> -> vector<32x32xf32>
    %241 = vector.extract_strided_slice %21 {offsets = [0, 0, 0], sizes = [1, 1, 32], strides = [1, 1, 1]} : vector<2x5x32xf32> to vector<1x1x32xf32>
    %242 = vector.shape_cast %241 : vector<1x1x32xf32> to vector<32xf32>
    %243 = vector.shape_cast %242 : vector<32xf32> to vector<1x32xf32>
    %244 = vector.broadcast %243 : vector<1x32xf32> to vector<32x32xf32>
    %245 = arith.addf %240, %244 : vector<32x32xf32>
    %246 = arith.addf %225, %245 : vector<32x32xf32>
    %247 = vector.extract_strided_slice %21 {offsets = [0, 3, 0], sizes = [1, 1, 32], strides = [1, 1, 1]} : vector<2x5x32xf32> to vector<1x1x32xf32>
    %248 = vector.shape_cast %247 : vector<1x1x32xf32> to vector<32xf32>
    %249 = vector.extract_strided_slice %21 {offsets = [0, 4, 0], sizes = [1, 1, 32], strides = [1, 1, 1]} : vector<2x5x32xf32> to vector<1x1x32xf32>
    %250 = vector.shape_cast %249 : vector<1x1x32xf32> to vector<32xf32>
    %cst_77 = arith.constant dense<0.000000e+00> : vector<32xf32>
    %251 = vector.multi_reduction <add>, %246, %cst_77 [1] : vector<32x32xf32> to vector<32xf32>
    %252 = vector.shape_cast %251 : vector<32xf32> to vector<32x1xf32>
    %cst_78 = arith.constant 3.200000e+01 : f32
    %253 = vector.broadcast %cst_78 : f32 to vector<32x1xf32>
    %254 = arith.divf %252, %253 : vector<32x1xf32>
    %255 = vector.broadcast %254 : vector<32x1xf32> to vector<32x32xf32>
    %256 = arith.subf %246, %255 : vector<32x32xf32>
    %257 = arith.mulf %256, %256 : vector<32x32xf32>
    %cst_79 = arith.constant dense<0.000000e+00> : vector<32xf32>
    %258 = vector.multi_reduction <add>, %257, %cst_79 [1] : vector<32x32xf32> to vector<32xf32>
    %259 = vector.shape_cast %258 : vector<32xf32> to vector<32x1xf32>
    %cst_80 = arith.constant 3.200000e+01 : f32
    %260 = vector.broadcast %cst_80 : f32 to vector<32x1xf32>
    %261 = arith.divf %259, %260 : vector<32x1xf32>
    %262 = vector.broadcast %254 : vector<32x1xf32> to vector<32x32xf32>
    %263 = arith.subf %246, %262 : vector<32x32xf32>
    %cst_81 = arith.constant 9.99999974E-6 : f32
    %264 = vector.broadcast %cst_81 : f32 to vector<32x1xf32>
    %265 = arith.addf %261, %264 : vector<32x1xf32>
    %266 = math.rsqrt %265 : vector<32x1xf32>
    %267 = vector.broadcast %266 : vector<32x1xf32> to vector<32x32xf32>
    %268 = arith.mulf %263, %267 : vector<32x32xf32>
    %269 = vector.shape_cast %248 : vector<32xf32> to vector<1x32xf32>
    %270 = vector.broadcast %269 : vector<1x32xf32> to vector<32x32xf32>
    %271 = arith.mulf %268, %270 : vector<32x32xf32>
    %272 = vector.shape_cast %250 : vector<32xf32> to vector<1x32xf32>
    %273 = vector.broadcast %272 : vector<1x32xf32> to vector<32x32xf32>
    %274 = arith.addf %271, %273 : vector<32x32xf32>
    %275 = vector.shape_cast %274 : vector<32x32xf32> to vector<2x16x32xf32>
    %276 = vector.shape_cast %275 : vector<2x16x32xf32> to vector<32x32xf32>
    %277 = arith.truncf %276 : vector<32x32xf32> to vector<32x32xbf16>
    %278 = vector.extract_strided_slice %5 {offsets = [1, 0, 0], sizes = [1, 32, 32], strides = [1, 1, 1]} : vector<2x32x32xbf16> to vector<1x32x32xbf16>
    %279 = vector.shape_cast %278 : vector<1x32x32xbf16> to vector<32x32xbf16>
    %cst_82 = arith.constant dense<0.000000e+00> : vector<32x32xf32>
    %280 = tpu.matmul %277, %279, %cst_82 {dimension_numbers = #tpu.dot_dimension_numbers<[1], [0], [0], [1], [0, 0, 1, 1], [], []>} : vector<32x32xbf16>, vector<32x32xbf16>, vector<32x32xf32> -> vector<32x32xf32>
    %281 = vector.extract_strided_slice %17 {offsets = [1, 0, 0], sizes = [1, 1, 32], strides = [1, 1, 1]} : vector<2x4x32xf32> to vector<1x1x32xf32>
    %282 = vector.shape_cast %281 : vector<1x1x32xf32> to vector<32xf32>
    %283 = vector.shape_cast %282 : vector<32xf32> to vector<1x32xf32>
    %284 = vector.broadcast %283 : vector<1x32xf32> to vector<32x32xf32>
    %285 = arith.addf %280, %284 : vector<32x32xf32>
    %286 = vector.extract_strided_slice %7 {offsets = [1, 0, 0], sizes = [1, 32, 32], strides = [1, 1, 1]} : vector<2x32x32xbf16> to vector<1x32x32xbf16>
    %287 = vector.shape_cast %286 : vector<1x32x32xbf16> to vector<32x32xbf16>
    %cst_83 = arith.constant dense<0.000000e+00> : vector<32x32xf32>
    %288 = tpu.matmul %277, %287, %cst_83 {dimension_numbers = #tpu.dot_dimension_numbers<[1], [0], [0], [1], [0, 0, 1, 1], [], []>} : vector<32x32xbf16>, vector<32x32xbf16>, vector<32x32xf32> -> vector<32x32xf32>
    %289 = vector.extract_strided_slice %17 {offsets = [1, 1, 0], sizes = [1, 1, 32], strides = [1, 1, 1]} : vector<2x4x32xf32> to vector<1x1x32xf32>
    %290 = vector.shape_cast %289 : vector<1x1x32xf32> to vector<32xf32>
    %291 = vector.shape_cast %290 : vector<32xf32> to vector<1x32xf32>
    %292 = vector.broadcast %291 : vector<1x32xf32> to vector<32x32xf32>
    %293 = arith.addf %288, %292 : vector<32x32xf32>
    %294 = vector.extract_strided_slice %9 {offsets = [1, 0, 0], sizes = [1, 32, 32], strides = [1, 1, 1]} : vector<2x32x32xbf16> to vector<1x32x32xbf16>
    %295 = vector.shape_cast %294 : vector<1x32x32xbf16> to vector<32x32xbf16>
    %cst_84 = arith.constant dense<0.000000e+00> : vector<32x32xf32>
    %296 = tpu.matmul %277, %295, %cst_84 {dimension_numbers = #tpu.dot_dimension_numbers<[1], [0], [0], [1], [0, 0, 1, 1], [], []>} : vector<32x32xbf16>, vector<32x32xbf16>, vector<32x32xf32> -> vector<32x32xf32>
    %297 = vector.extract_strided_slice %17 {offsets = [1, 2, 0], sizes = [1, 1, 32], strides = [1, 1, 1]} : vector<2x4x32xf32> to vector<1x1x32xf32>
    %298 = vector.shape_cast %297 : vector<1x1x32xf32> to vector<32xf32>
    %299 = vector.shape_cast %298 : vector<32xf32> to vector<1x32xf32>
    %300 = vector.broadcast %299 : vector<1x32xf32> to vector<32x32xf32>
    %301 = arith.addf %296, %300 : vector<32x32xf32>
    %302 = vector.shape_cast %285 : vector<32x32xf32> to vector<2x16x32xf32>
    %303 = arith.truncf %302 : vector<2x16x32xf32> to vector<2x16x32xbf16>
    %304 = vector.shape_cast %293 : vector<32x32xf32> to vector<2x16x32xf32>
    %305 = arith.truncf %304 : vector<2x16x32xf32> to vector<2x16x32xbf16>
    %306 = vector.shape_cast %301 : vector<32x32xf32> to vector<2x16x32xf32>
    %307 = arith.truncf %306 : vector<2x16x32xf32> to vector<2x16x32xbf16>
    %cst_85 = arith.constant 0.000000e+00 : f32
    %308 = vector.broadcast %cst_85 : f32 to vector<2x16x32xf32>
    %309 = vector.shape_cast %33 : vector<1x32xbf16> to vector<1x1x32xbf16>
    %310 = vector.broadcast %309 : vector<1x1x32xbf16> to vector<2x16x32xbf16>
    %311 = arith.mulf %305, %310 : vector<2x16x32xbf16>
    %312 = vector.shape_cast %33 : vector<1x32xbf16> to vector<1x1x32xbf16>
    %313 = vector.broadcast %312 : vector<1x1x32xbf16> to vector<2x16x32xbf16>
    %314 = arith.mulf %307, %313 : vector<2x16x32xbf16>
    "tpu.trace_start"() <{level = 10 : i32, message = "bqd,bkd->bqk"}> : () -> ()
    %cst_86 = arith.constant dense<0.000000e+00> : vector<2x16x16xf32>
    %315 = tpu.matmul %303, %311, %cst_86 {dimension_numbers = #tpu.dot_dimension_numbers<[2], [2], [1], [1], [0, 0, 0, 1, 1, 1], [0], [0]>} : vector<2x16x32xbf16>, vector<2x16x32xbf16>, vector<2x16x16xf32> -> vector<2x16x16xf32>
    "tpu.trace_stop"() : () -> ()
    %cst_87 = arith.constant 0.353553385 : f32
    %316 = vector.broadcast %cst_87 : f32 to vector<2x16x16xf32>
    %317 = arith.mulf %315, %316 : vector<2x16x16xf32>
    %318 = vector.broadcast %24 : vector<2x1x16xf32> to vector<2x16x16xf32>
    %319 = arith.addf %317, %318 : vector<2x16x16xf32>
    %cst_88 = arith.constant dense<0xFF800000> : vector<2x16xf32>
    %320 = vector.multi_reduction <maximumf>, %319, %cst_88 [2] : vector<2x16x16xf32> to vector<2x16xf32>
    %321 = vector.shape_cast %320 : vector<2x16xf32> to vector<2x16x1xf32>
    %322 = vector.broadcast %321 : vector<2x16x1xf32> to vector<2x16x16xf32>
    %323 = arith.subf %319, %322 : vector<2x16x16xf32>
    %324 = math.exp %323 : vector<2x16x16xf32>
    %cst_89 = arith.constant dense<0.000000e+00> : vector<2x16xf32>
    %325 = vector.multi_reduction <add>, %324, %cst_89 [2] : vector<2x16x16xf32> to vector<2x16xf32>
    %326 = vector.shape_cast %325 : vector<2x16xf32> to vector<2x16x1xf32>
    %327 = tpu.reciprocal %326 {approx = true} : vector<2x16x1xf32> -> vector<2x16x1xf32>
    %328 = vector.broadcast %327 : vector<2x16x1xf32> to vector<2x16x16xf32>
    %329 = arith.mulf %324, %328 : vector<2x16x16xf32>
    %330 = arith.truncf %329 : vector<2x16x16xf32> to vector<2x16x16xbf16>
    "tpu.trace_start"() <{level = 10 : i32, message = "bqk,bkd->bqd"}> : () -> ()
    %cst_90 = arith.constant dense<0.000000e+00> : vector<2x16x32xf32>
    %331 = tpu.matmul %330, %314, %cst_90 {dimension_numbers = #tpu.dot_dimension_numbers<[2], [1], [1], [2], [0, 0, 0, 1, 1, 2], [0], [0]>} : vector<2x16x16xbf16>, vector<2x16x32xbf16>, vector<2x16x32xf32> -> vector<2x16x32xf32>
    "tpu.trace_stop"() : () -> ()
    %332 = arith.addf %308, %331 : vector<2x16x32xf32>
    %333 = vector.shape_cast %41 : vector<1x32xbf16> to vector<1x1x32xbf16>
    %334 = vector.broadcast %333 : vector<1x1x32xbf16> to vector<2x16x32xbf16>
    %335 = arith.mulf %305, %334 : vector<2x16x32xbf16>
    %336 = vector.shape_cast %41 : vector<1x32xbf16> to vector<1x1x32xbf16>
    %337 = vector.broadcast %336 : vector<1x1x32xbf16> to vector<2x16x32xbf16>
    %338 = arith.mulf %307, %337 : vector<2x16x32xbf16>
    "tpu.trace_start"() <{level = 10 : i32, message = "bqd,bkd->bqk"}> : () -> ()
    %cst_91 = arith.constant dense<0.000000e+00> : vector<2x16x16xf32>
    %339 = tpu.matmul %303, %335, %cst_91 {dimension_numbers = #tpu.dot_dimension_numbers<[2], [2], [1], [1], [0, 0, 0, 1, 1, 1], [0], [0]>} : vector<2x16x32xbf16>, vector<2x16x32xbf16>, vector<2x16x16xf32> -> vector<2x16x16xf32>
    "tpu.trace_stop"() : () -> ()
    %cst_92 = arith.constant 0.353553385 : f32
    %340 = vector.broadcast %cst_92 : f32 to vector<2x16x16xf32>
    %341 = arith.mulf %339, %340 : vector<2x16x16xf32>
    %342 = vector.broadcast %24 : vector<2x1x16xf32> to vector<2x16x16xf32>
    %343 = arith.addf %341, %342 : vector<2x16x16xf32>
    %cst_93 = arith.constant dense<0xFF800000> : vector<2x16xf32>
    %344 = vector.multi_reduction <maximumf>, %343, %cst_93 [2] : vector<2x16x16xf32> to vector<2x16xf32>
    %345 = vector.shape_cast %344 : vector<2x16xf32> to vector<2x16x1xf32>
    %346 = vector.broadcast %345 : vector<2x16x1xf32> to vector<2x16x16xf32>
    %347 = arith.subf %343, %346 : vector<2x16x16xf32>
    %348 = math.exp %347 : vector<2x16x16xf32>
    %cst_94 = arith.constant dense<0.000000e+00> : vector<2x16xf32>
    %349 = vector.multi_reduction <add>, %348, %cst_94 [2] : vector<2x16x16xf32> to vector<2x16xf32>
    %350 = vector.shape_cast %349 : vector<2x16xf32> to vector<2x16x1xf32>
    %351 = tpu.reciprocal %350 {approx = true} : vector<2x16x1xf32> -> vector<2x16x1xf32>
    %352 = vector.broadcast %351 : vector<2x16x1xf32> to vector<2x16x16xf32>
    %353 = arith.mulf %348, %352 : vector<2x16x16xf32>
    %354 = arith.truncf %353 : vector<2x16x16xf32> to vector<2x16x16xbf16>
    "tpu.trace_start"() <{level = 10 : i32, message = "bqk,bkd->bqd"}> : () -> ()
    %cst_95 = arith.constant dense<0.000000e+00> : vector<2x16x32xf32>
    %355 = tpu.matmul %354, %338, %cst_95 {dimension_numbers = #tpu.dot_dimension_numbers<[2], [1], [1], [2], [0, 0, 0, 1, 1, 2], [0], [0]>} : vector<2x16x16xbf16>, vector<2x16x32xbf16>, vector<2x16x32xf32> -> vector<2x16x32xf32>
    "tpu.trace_stop"() : () -> ()
    %356 = arith.addf %332, %355 : vector<2x16x32xf32>
    %357 = vector.shape_cast %49 : vector<1x32xbf16> to vector<1x1x32xbf16>
    %358 = vector.broadcast %357 : vector<1x1x32xbf16> to vector<2x16x32xbf16>
    %359 = arith.mulf %305, %358 : vector<2x16x32xbf16>
    %360 = vector.shape_cast %49 : vector<1x32xbf16> to vector<1x1x32xbf16>
    %361 = vector.broadcast %360 : vector<1x1x32xbf16> to vector<2x16x32xbf16>
    %362 = arith.mulf %307, %361 : vector<2x16x32xbf16>
    "tpu.trace_start"() <{level = 10 : i32, message = "bqd,bkd->bqk"}> : () -> ()
    %cst_96 = arith.constant dense<0.000000e+00> : vector<2x16x16xf32>
    %363 = tpu.matmul %303, %359, %cst_96 {dimension_numbers = #tpu.dot_dimension_numbers<[2], [2], [1], [1], [0, 0, 0, 1, 1, 1], [0], [0]>} : vector<2x16x32xbf16>, vector<2x16x32xbf16>, vector<2x16x16xf32> -> vector<2x16x16xf32>
    "tpu.trace_stop"() : () -> ()
    %cst_97 = arith.constant 0.353553385 : f32
    %364 = vector.broadcast %cst_97 : f32 to vector<2x16x16xf32>
    %365 = arith.mulf %363, %364 : vector<2x16x16xf32>
    %366 = vector.broadcast %24 : vector<2x1x16xf32> to vector<2x16x16xf32>
    %367 = arith.addf %365, %366 : vector<2x16x16xf32>
    %cst_98 = arith.constant dense<0xFF800000> : vector<2x16xf32>
    %368 = vector.multi_reduction <maximumf>, %367, %cst_98 [2] : vector<2x16x16xf32> to vector<2x16xf32>
    %369 = vector.shape_cast %368 : vector<2x16xf32> to vector<2x16x1xf32>
    %370 = vector.broadcast %369 : vector<2x16x1xf32> to vector<2x16x16xf32>
    %371 = arith.subf %367, %370 : vector<2x16x16xf32>
    %372 = math.exp %371 : vector<2x16x16xf32>
    %cst_99 = arith.constant dense<0.000000e+00> : vector<2x16xf32>
    %373 = vector.multi_reduction <add>, %372, %cst_99 [2] : vector<2x16x16xf32> to vector<2x16xf32>
    %374 = vector.shape_cast %373 : vector<2x16xf32> to vector<2x16x1xf32>
    %375 = tpu.reciprocal %374 {approx = true} : vector<2x16x1xf32> -> vector<2x16x1xf32>
    %376 = vector.broadcast %375 : vector<2x16x1xf32> to vector<2x16x16xf32>
    %377 = arith.mulf %372, %376 : vector<2x16x16xf32>
    %378 = arith.truncf %377 : vector<2x16x16xf32> to vector<2x16x16xbf16>
    "tpu.trace_start"() <{level = 10 : i32, message = "bqk,bkd->bqd"}> : () -> ()
    %cst_100 = arith.constant dense<0.000000e+00> : vector<2x16x32xf32>
    %379 = tpu.matmul %378, %362, %cst_100 {dimension_numbers = #tpu.dot_dimension_numbers<[2], [1], [1], [2], [0, 0, 0, 1, 1, 2], [0], [0]>} : vector<2x16x16xbf16>, vector<2x16x32xbf16>, vector<2x16x32xf32> -> vector<2x16x32xf32>
    "tpu.trace_stop"() : () -> ()
    %380 = arith.addf %356, %379 : vector<2x16x32xf32>
    %381 = vector.shape_cast %57 : vector<1x32xbf16> to vector<1x1x32xbf16>
    %382 = vector.broadcast %381 : vector<1x1x32xbf16> to vector<2x16x32xbf16>
    %383 = arith.mulf %305, %382 : vector<2x16x32xbf16>
    %384 = vector.shape_cast %57 : vector<1x32xbf16> to vector<1x1x32xbf16>
    %385 = vector.broadcast %384 : vector<1x1x32xbf16> to vector<2x16x32xbf16>
    %386 = arith.mulf %307, %385 : vector<2x16x32xbf16>
    "tpu.trace_start"() <{level = 10 : i32, message = "bqd,bkd->bqk"}> : () -> ()
    %cst_101 = arith.constant dense<0.000000e+00> : vector<2x16x16xf32>
    %387 = tpu.matmul %303, %383, %cst_101 {dimension_numbers = #tpu.dot_dimension_numbers<[2], [2], [1], [1], [0, 0, 0, 1, 1, 1], [0], [0]>} : vector<2x16x32xbf16>, vector<2x16x32xbf16>, vector<2x16x16xf32> -> vector<2x16x16xf32>
    "tpu.trace_stop"() : () -> ()
    %cst_102 = arith.constant 0.353553385 : f32
    %388 = vector.broadcast %cst_102 : f32 to vector<2x16x16xf32>
    %389 = arith.mulf %387, %388 : vector<2x16x16xf32>
    %390 = vector.broadcast %24 : vector<2x1x16xf32> to vector<2x16x16xf32>
    %391 = arith.addf %389, %390 : vector<2x16x16xf32>
    %cst_103 = arith.constant dense<0xFF800000> : vector<2x16xf32>
    %392 = vector.multi_reduction <maximumf>, %391, %cst_103 [2] : vector<2x16x16xf32> to vector<2x16xf32>
    %393 = vector.shape_cast %392 : vector<2x16xf32> to vector<2x16x1xf32>
    %394 = vector.broadcast %393 : vector<2x16x1xf32> to vector<2x16x16xf32>
    %395 = arith.subf %391, %394 : vector<2x16x16xf32>
    %396 = math.exp %395 : vector<2x16x16xf32>
    %cst_104 = arith.constant dense<0.000000e+00> : vector<2x16xf32>
    %397 = vector.multi_reduction <add>, %396, %cst_104 [2] : vector<2x16x16xf32> to vector<2x16xf32>
    %398 = vector.shape_cast %397 : vector<2x16xf32> to vector<2x16x1xf32>
    %399 = tpu.reciprocal %398 {approx = true} : vector<2x16x1xf32> -> vector<2x16x1xf32>
    %400 = vector.broadcast %399 : vector<2x16x1xf32> to vector<2x16x16xf32>
    %401 = arith.mulf %396, %400 : vector<2x16x16xf32>
    %402 = arith.truncf %401 : vector<2x16x16xf32> to vector<2x16x16xbf16>
    "tpu.trace_start"() <{level = 10 : i32, message = "bqk,bkd->bqd"}> : () -> ()
    %cst_105 = arith.constant dense<0.000000e+00> : vector<2x16x32xf32>
    %403 = tpu.matmul %402, %386, %cst_105 {dimension_numbers = #tpu.dot_dimension_numbers<[2], [1], [1], [2], [0, 0, 0, 1, 1, 2], [0], [0]>} : vector<2x16x16xbf16>, vector<2x16x32xbf16>, vector<2x16x32xf32> -> vector<2x16x32xf32>
    "tpu.trace_stop"() : () -> ()
    %404 = arith.addf %380, %403 : vector<2x16x32xf32>
    %405 = vector.shape_cast %404 : vector<2x16x32xf32> to vector<32x32xf32>
    %406 = arith.truncf %405 : vector<32x32xf32> to vector<32x32xbf16>
    %407 = vector.extract_strided_slice %11 {offsets = [1, 0, 0], sizes = [1, 32, 32], strides = [1, 1, 1]} : vector<2x32x32xbf16> to vector<1x32x32xbf16>
    %408 = vector.shape_cast %407 : vector<1x32x32xbf16> to vector<32x32xbf16>
    %cst_106 = arith.constant dense<0.000000e+00> : vector<32x32xf32>
    %409 = tpu.matmul %406, %408, %cst_106 {dimension_numbers = #tpu.dot_dimension_numbers<[1], [0], [0], [1], [0, 0, 1, 1], [], []>} : vector<32x32xbf16>, vector<32x32xbf16>, vector<32x32xf32> -> vector<32x32xf32>
    %410 = vector.extract_strided_slice %17 {offsets = [1, 3, 0], sizes = [1, 1, 32], strides = [1, 1, 1]} : vector<2x4x32xf32> to vector<1x1x32xf32>
    %411 = vector.shape_cast %410 : vector<1x1x32xf32> to vector<32xf32>
    %412 = vector.shape_cast %411 : vector<32xf32> to vector<1x32xf32>
    %413 = vector.broadcast %412 : vector<1x32xf32> to vector<32x32xf32>
    %414 = arith.addf %409, %413 : vector<32x32xf32>
    %415 = arith.addf %276, %414 : vector<32x32xf32>
    %416 = vector.extract_strided_slice %21 {offsets = [1, 1, 0], sizes = [1, 1, 32], strides = [1, 1, 1]} : vector<2x5x32xf32> to vector<1x1x32xf32>
    %417 = vector.shape_cast %416 : vector<1x1x32xf32> to vector<32xf32>
    %418 = vector.extract_strided_slice %21 {offsets = [1, 2, 0], sizes = [1, 1, 32], strides = [1, 1, 1]} : vector<2x5x32xf32> to vector<1x1x32xf32>
    %419 = vector.shape_cast %418 : vector<1x1x32xf32> to vector<32xf32>
    %cst_107 = arith.constant dense<0.000000e+00> : vector<32xf32>
    %420 = vector.multi_reduction <add>, %415, %cst_107 [1] : vector<32x32xf32> to vector<32xf32>
    %421 = vector.shape_cast %420 : vector<32xf32> to vector<32x1xf32>
    %cst_108 = arith.constant 3.200000e+01 : f32
    %422 = vector.broadcast %cst_108 : f32 to vector<32x1xf32>
    %423 = arith.divf %421, %422 : vector<32x1xf32>
    %424 = vector.broadcast %423 : vector<32x1xf32> to vector<32x32xf32>
    %425 = arith.subf %415, %424 : vector<32x32xf32>
    %426 = arith.mulf %425, %425 : vector<32x32xf32>
    %cst_109 = arith.constant dense<0.000000e+00> : vector<32xf32>
    %427 = vector.multi_reduction <add>, %426, %cst_109 [1] : vector<32x32xf32> to vector<32xf32>
    %428 = vector.shape_cast %427 : vector<32xf32> to vector<32x1xf32>
    %cst_110 = arith.constant 3.200000e+01 : f32
    %429 = vector.broadcast %cst_110 : f32 to vector<32x1xf32>
    %430 = arith.divf %428, %429 : vector<32x1xf32>
    %431 = vector.broadcast %423 : vector<32x1xf32> to vector<32x32xf32>
    %432 = arith.subf %415, %431 : vector<32x32xf32>
    %cst_111 = arith.constant 9.99999974E-6 : f32
    %433 = vector.broadcast %cst_111 : f32 to vector<32x1xf32>
    %434 = arith.addf %430, %433 : vector<32x1xf32>
    %435 = math.rsqrt %434 : vector<32x1xf32>
    %436 = vector.broadcast %435 : vector<32x1xf32> to vector<32x32xf32>
    %437 = arith.mulf %432, %436 : vector<32x32xf32>
    %438 = vector.shape_cast %417 : vector<32xf32> to vector<1x32xf32>
    %439 = vector.broadcast %438 : vector<1x32xf32> to vector<32x32xf32>
    %440 = arith.mulf %437, %439 : vector<32x32xf32>
    %441 = vector.shape_cast %419 : vector<32xf32> to vector<1x32xf32>
    %442 = vector.broadcast %441 : vector<1x32xf32> to vector<32x32xf32>
    %443 = arith.addf %440, %442 : vector<32x32xf32>
    %444 = arith.truncf %443 : vector<32x32xf32> to vector<32x32xbf16>
    %445 = vector.extract_strided_slice %13 {offsets = [1, 0, 0], sizes = [1, 32, 64], strides = [1, 1, 1]} : vector<2x32x64xbf16> to vector<1x32x64xbf16>
    %446 = vector.shape_cast %445 : vector<1x32x64xbf16> to vector<32x64xbf16>
    %cst_112 = arith.constant dense<0.000000e+00> : vector<32x64xf32>
    %447 = tpu.matmul %444, %446, %cst_112 {dimension_numbers = #tpu.dot_dimension_numbers<[1], [0], [0], [1], [0, 0, 1, 1], [], []>} : vector<32x32xbf16>, vector<32x64xbf16>, vector<32x64xf32> -> vector<32x64xf32>
    %448 = vector.extract_strided_slice %19 {offsets = [1, 0], sizes = [1, 64], strides = [1, 1]} : vector<2x64xf32> to vector<1x64xf32>
    %449 = vector.shape_cast %448 : vector<1x64xf32> to vector<64xf32>
    %450 = vector.shape_cast %449 : vector<64xf32> to vector<1x64xf32>
    %451 = vector.broadcast %450 : vector<1x64xf32> to vector<32x64xf32>
    %452 = arith.addf %447, %451 : vector<32x64xf32>
    %cst_113 = arith.constant 0.000000e+00 : f32
    %453 = vector.broadcast %cst_113 : f32 to vector<32x64xf32>
    %454 = arith.maximumf %452, %453 : vector<32x64xf32>
    %455 = arith.truncf %454 : vector<32x64xf32> to vector<32x64xbf16>
    %456 = vector.extract_strided_slice %15 {offsets = [1, 0, 0], sizes = [1, 64, 32], strides = [1, 1, 1]} : vector<2x64x32xbf16> to vector<1x64x32xbf16>
    %457 = vector.shape_cast %456 : vector<1x64x32xbf16> to vector<64x32xbf16>
    %cst_114 = arith.constant dense<0.000000e+00> : vector<32x32xf32>
    %458 = tpu.matmul %455, %457, %cst_114 {dimension_numbers = #tpu.dot_dimension_numbers<[1], [0], [0], [1], [0, 0, 1, 1], [], []>} : vector<32x64xbf16>, vector<64x32xbf16>, vector<32x32xf32> -> vector<32x32xf32>
    %459 = vector.extract_strided_slice %21 {offsets = [1, 0, 0], sizes = [1, 1, 32], strides = [1, 1, 1]} : vector<2x5x32xf32> to vector<1x1x32xf32>
    %460 = vector.shape_cast %459 : vector<1x1x32xf32> to vector<32xf32>
    %461 = vector.shape_cast %460 : vector<32xf32> to vector<1x32xf32>
    %462 = vector.broadcast %461 : vector<1x32xf32> to vector<32x32xf32>
    %463 = arith.addf %458, %462 : vector<32x32xf32>
    %464 = arith.addf %443, %463 : vector<32x32xf32>
    %465 = vector.extract_strided_slice %21 {offsets = [1, 3, 0], sizes = [1, 1, 32], strides = [1, 1, 1]} : vector<2x5x32xf32> to vector<1x1x32xf32>
    %466 = vector.shape_cast %465 : vector<1x1x32xf32> to vector<32xf32>
    %467 = vector.extract_strided_slice %21 {offsets = [1, 4, 0], sizes = [1, 1, 32], strides = [1, 1, 1]} : vector<2x5x32xf32> to vector<1x1x32xf32>
    %468 = vector.shape_cast %467 : vector<1x1x32xf32> to vector<32xf32>
    %cst_115 = arith.constant dense<0.000000e+00> : vector<32xf32>
    %469 = vector.multi_reduction <add>, %464, %cst_115 [1] : vector<32x32xf32> to vector<32xf32>
    %470 = vector.shape_cast %469 : vector<32xf32> to vector<32x1xf32>
    %cst_116 = arith.constant 3.200000e+01 : f32
    %471 = vector.broadcast %cst_116 : f32 to vector<32x1xf32>
    %472 = arith.divf %470, %471 : vector<32x1xf32>
    %473 = vector.broadcast %472 : vector<32x1xf32> to vector<32x32xf32>
    %474 = arith.subf %464, %473 : vector<32x32xf32>
    %475 = arith.mulf %474, %474 : vector<32x32xf32>
    %cst_117 = arith.constant dense<0.000000e+00> : vector<32xf32>
    %476 = vector.multi_reduction <add>, %475, %cst_117 [1] : vector<32x32xf32> to vector<32xf32>
    %477 = vector.shape_cast %476 : vector<32xf32> to vector<32x1xf32>
    %cst_118 = arith.constant 3.200000e+01 : f32
    %478 = vector.broadcast %cst_118 : f32 to vector<32x1xf32>
    %479 = arith.divf %477, %478 : vector<32x1xf32>
    %480 = vector.broadcast %472 : vector<32x1xf32> to vector<32x32xf32>
    %481 = arith.subf %464, %480 : vector<32x32xf32>
    %cst_119 = arith.constant 9.99999974E-6 : f32
    %482 = vector.broadcast %cst_119 : f32 to vector<32x1xf32>
    %483 = arith.addf %479, %482 : vector<32x1xf32>
    %484 = math.rsqrt %483 : vector<32x1xf32>
    %485 = vector.broadcast %484 : vector<32x1xf32> to vector<32x32xf32>
    %486 = arith.mulf %481, %485 : vector<32x32xf32>
    %487 = vector.shape_cast %466 : vector<32xf32> to vector<1x32xf32>
    %488 = vector.broadcast %487 : vector<1x32xf32> to vector<32x32xf32>
    %489 = arith.mulf %486, %488 : vector<32x32xf32>
    %490 = vector.shape_cast %468 : vector<32xf32> to vector<1x32xf32>
    %491 = vector.broadcast %490 : vector<1x32xf32> to vector<32x32xf32>
    %492 = arith.addf %489, %491 : vector<32x32xf32>
    %493 = vector.shape_cast %492 : vector<32x32xf32> to vector<2x16x32xf32>
    %c0_120 = arith.constant 0 : index
    %c0_121 = arith.constant 0 : index
    %c0_122 = arith.constant 0 : index
    %c0_123 = arith.constant 0 : index
    %494 = vector.load %arg1[%c0_120, %c0_121, %c0_122, %c0_123] : memref<2x2x16x32xf32, #tpu.memory_space<vmem>>, vector<1x2x16x32xf32>
    %495 = vector.shape_cast %494 : vector<1x2x16x32xf32> to vector<2x16x32xf32>
    %c0_124 = arith.constant 0 : index
    %c0_125 = arith.constant 0 : index
    %c0_126 = arith.constant 0 : index
    %496 = vector.load %arg2[%c0_124, %c0_125, %c0_126] : memref<2x2x16xf32, #tpu.memory_space<vmem>>, vector<1x2x16xf32>
    %497 = vector.shape_cast %496 : vector<1x2x16xf32> to vector<2x16xf32>
    %c0_127 = arith.constant 0 : index
    %c0_128 = arith.constant 0 : index
    %c0_129 = arith.constant 0 : index
    %498 = vector.load %arg12[%c0_127, %c0_128, %c0_129] : memref<2x32x32xf32, #tpu.memory_space<vmem>>, vector<1x32x32xf32>
    %499 = vector.shape_cast %498 : vector<1x32x32xf32> to vector<32x32xf32>
    %c0_130 = arith.constant 0 : index
    %c0_131 = arith.constant 0 : index
    %c0_132 = arith.constant 0 : index
    %500 = vector.load %arg13[%c0_130, %c0_131, %c0_132] : memref<2x32x32xf32, #tpu.memory_space<vmem>>, vector<1x32x32xf32>
    %501 = vector.shape_cast %500 : vector<1x32x32xf32> to vector<32x32xf32>
    %c0_133 = arith.constant 0 : index
    %c0_134 = arith.constant 0 : index
    %c0_135 = arith.constant 0 : index
    %502 = vector.load %arg14[%c0_133, %c0_134, %c0_135] : memref<2x32x32xf32, #tpu.memory_space<vmem>>, vector<1x32x32xf32>
    %503 = vector.shape_cast %502 : vector<1x32x32xf32> to vector<32x32xf32>
    %c0_136 = arith.constant 0 : index
    %c0_137 = arith.constant 0 : index
    %c0_138 = arith.constant 0 : index
    %504 = vector.load %arg15[%c0_136, %c0_137, %c0_138] : memref<2x3x32xf32, #tpu.memory_space<vmem>>, vector<1x3x32xf32>
    %505 = vector.shape_cast %504 : vector<1x3x32xf32> to vector<3x32xf32>
    %506 = vector.extract_strided_slice %493 {offsets = [0, 0, 0], sizes = [2, 1, 32], strides = [1, 1, 1]} : vector<2x16x32xf32> to vector<2x1x32xf32>
    %507 = vector.shape_cast %506 : vector<2x1x32xf32> to vector<2x32xf32>
    %cst_139 = arith.constant dense<0.000000e+00> : vector<2x32xf32>
    %508 = tpu.matmul %507, %499, %cst_139 {dimension_numbers = #tpu.dot_dimension_numbers<[1], [0], [0], [1], [0, 0, 1, 1], [], []>} : vector<2x32xf32>, vector<32x32xf32>, vector<2x32xf32> -> vector<2x32xf32>
    %509 = vector.extract_strided_slice %505 {offsets = [0, 0], sizes = [1, 32], strides = [1, 1]} : vector<3x32xf32> to vector<1x32xf32>
    %510 = vector.shape_cast %509 : vector<1x32xf32> to vector<32xf32>
    %511 = vector.shape_cast %510 : vector<32xf32> to vector<1x32xf32>
    %512 = vector.broadcast %511 : vector<1x32xf32> to vector<2x32xf32>
    %513 = arith.addf %508, %512 : vector<2x32xf32>
    %cst_140 = arith.constant 0.176776692 : f32
    %514 = vector.broadcast %cst_140 : f32 to vector<2x32xf32>
    %515 = arith.mulf %513, %514 : vector<2x32xf32>
    %516 = vector.shape_cast %493 : vector<2x16x32xf32> to vector<32x32xf32>
    %cst_141 = arith.constant dense<0.000000e+00> : vector<32x32xf32>
    %517 = tpu.matmul %516, %501, %cst_141 {dimension_numbers = #tpu.dot_dimension_numbers<[1], [0], [0], [1], [0, 0, 1, 1], [], []>} : vector<32x32xf32>, vector<32x32xf32>, vector<32x32xf32> -> vector<32x32xf32>
    %518 = vector.extract_strided_slice %505 {offsets = [1, 0], sizes = [1, 32], strides = [1, 1]} : vector<3x32xf32> to vector<1x32xf32>
    %519 = vector.shape_cast %518 : vector<1x32xf32> to vector<32xf32>
    %520 = vector.shape_cast %519 : vector<32xf32> to vector<1x32xf32>
    %521 = vector.broadcast %520 : vector<1x32xf32> to vector<32x32xf32>
    %522 = arith.addf %517, %521 : vector<32x32xf32>
    %523 = vector.shape_cast %522 : vector<32x32xf32> to vector<2x16x32xf32>
    %cst_142 = arith.constant dense<0.000000e+00> : vector<32x32xf32>
    %524 = tpu.matmul %516, %503, %cst_142 {dimension_numbers = #tpu.dot_dimension_numbers<[1], [0], [0], [1], [0, 0, 1, 1], [], []>} : vector<32x32xf32>, vector<32x32xf32>, vector<32x32xf32> -> vector<32x32xf32>
    %525 = vector.extract_strided_slice %505 {offsets = [2, 0], sizes = [1, 32], strides = [1, 1]} : vector<3x32xf32> to vector<1x32xf32>
    %526 = vector.shape_cast %525 : vector<1x32xf32> to vector<32xf32>
    %527 = vector.shape_cast %526 : vector<32xf32> to vector<1x32xf32>
    %528 = vector.broadcast %527 : vector<1x32xf32> to vector<32x32xf32>
    %529 = arith.addf %524, %528 : vector<32x32xf32>
    %530 = vector.shape_cast %529 : vector<32x32xf32> to vector<2x16x32xf32>
    %531 = tpu.iota {dimensions = array<i32: 1>} : vector<2x16xi32>
    %c0_i32_143 = arith.constant 0 : i32
    %532 = vector.broadcast %c0_i32_143 : i32 to vector<2x16xi32>
    %533 = arith.cmpi eq, %531, %532 : vector<2x16xi32>
    %cst_144 = arith.constant 1.000000e+00 : f32
    %534 = vector.broadcast %cst_144 : f32 to vector<2x16xf32>
    %535 = arith.select %533, %534, %497 : vector<2x16xi1>, vector<2x16xf32>
    %536 = vector.shape_cast %515 : vector<2x32xf32> to vector<2x1x32xf32>
    "tpu.trace_start"() <{level = 10 : i32, message = "bqd,bkd->bqk"}> : () -> ()
    %cst_145 = arith.constant dense<0.000000e+00> : vector<2x1x16xf32>
    %537 = tpu.matmul %536, %523, %cst_145 {dimension_numbers = #tpu.dot_dimension_numbers<[2], [2], [1], [1], [0, 0, 0, 1, 1, 1], [0], [0]>} : vector<2x1x32xf32>, vector<2x16x32xf32>, vector<2x1x16xf32> -> vector<2x1x16xf32>
    "tpu.trace_stop"() : () -> ()
    %cst_146 = arith.constant -1.000000e+09 : f32
    %538 = vector.broadcast %cst_146 : f32 to vector<2x16xf32>
    %539 = arith.mulf %535, %538 : vector<2x16xf32>
    %540 = vector.shape_cast %539 : vector<2x16xf32> to vector<2x1x16xf32>
    %541 = arith.addf %537, %540 : vector<2x1x16xf32>
    %cst_147 = arith.constant dense<0xFF800000> : vector<2x1xf32>
    %542 = vector.multi_reduction <maximumf>, %541, %cst_147 [2] : vector<2x1x16xf32> to vector<2x1xf32>
    %543 = vector.shape_cast %542 : vector<2x1xf32> to vector<2x1x1xf32>
    %544 = vector.broadcast %543 : vector<2x1x1xf32> to vector<2x1x16xf32>
    %545 = arith.subf %541, %544 : vector<2x1x16xf32>
    %546 = math.exp %545 : vector<2x1x16xf32>
    %cst_148 = arith.constant dense<0.000000e+00> : vector<2x1xf32>
    %547 = vector.multi_reduction <add>, %546, %cst_148 [2] : vector<2x1x16xf32> to vector<2x1xf32>
    %548 = vector.shape_cast %547 : vector<2x1xf32> to vector<2x1x1xf32>
    %549 = tpu.reciprocal %548 {approx = true} : vector<2x1x1xf32> -> vector<2x1x1xf32>
    %550 = vector.broadcast %549 : vector<2x1x1xf32> to vector<2x1x16xf32>
    %551 = arith.mulf %546, %550 : vector<2x1x16xf32>
    %552 = arith.addf %530, %495 : vector<2x16x32xf32>
    "tpu.trace_start"() <{level = 10 : i32, message = "bqk,bkd->bqd"}> : () -> ()
    %cst_149 = arith.constant dense<0.000000e+00> : vector<2x1x32xf32>
    %553 = tpu.matmul %551, %552, %cst_149 {dimension_numbers = #tpu.dot_dimension_numbers<[2], [1], [1], [2], [0, 0, 0, 1, 1, 2], [0], [0]>} : vector<2x1x16xf32>, vector<2x16x32xf32>, vector<2x1x32xf32> -> vector<2x1x32xf32>
    "tpu.trace_stop"() : () -> ()
    %554 = vector.shape_cast %553 : vector<2x1x32xf32> to vector<2x32xf32>
    %c1 = arith.constant 1 : index
    %c0_150 = arith.constant 0 : index
    %c0_151 = arith.constant 0 : index
    %c0_152 = arith.constant 0 : index
    %555 = vector.load %arg0[%c1, %c0_150, %c0_151, %c0_152] : memref<2x2x16x32xf32, #tpu.memory_space<vmem>>, vector<1x2x16x32xf32>
    %556 = vector.shape_cast %555 : vector<1x2x16x32xf32> to vector<2x16x32xf32>
    %c1_153 = arith.constant 1 : index
    %c0_154 = arith.constant 0 : index
    %c0_155 = arith.constant 0 : index
    %557 = vector.load %arg2[%c1_153, %c0_154, %c0_155] : memref<2x2x16xf32, #tpu.memory_space<vmem>>, vector<1x2x16xf32>
    %558 = vector.shape_cast %557 : vector<1x2x16xf32> to vector<2x16xf32>
    %c1_156 = arith.constant 1 : index
    %c0_157 = arith.constant 0 : index
    %c0_158 = arith.constant 0 : index
    %c0_159 = arith.constant 0 : index
    %559 = vector.load %arg3[%c1_156, %c0_157, %c0_158, %c0_159] : memref<2x2x32x32xbf16, #tpu.memory_space<vmem>>, vector<1x2x32x32xbf16>
    %560 = vector.shape_cast %559 : vector<1x2x32x32xbf16> to vector<2x32x32xbf16>
    %c1_160 = arith.constant 1 : index
    %c0_161 = arith.constant 0 : index
    %c0_162 = arith.constant 0 : index
    %c0_163 = arith.constant 0 : index
    %561 = vector.load %arg4[%c1_160, %c0_161, %c0_162, %c0_163] : memref<2x2x32x32xbf16, #tpu.memory_space<vmem>>, vector<1x2x32x32xbf16>
    %562 = vector.shape_cast %561 : vector<1x2x32x32xbf16> to vector<2x32x32xbf16>
    %c1_164 = arith.constant 1 : index
    %c0_165 = arith.constant 0 : index
    %c0_166 = arith.constant 0 : index
    %c0_167 = arith.constant 0 : index
    %563 = vector.load %arg5[%c1_164, %c0_165, %c0_166, %c0_167] : memref<2x2x32x32xbf16, #tpu.memory_space<vmem>>, vector<1x2x32x32xbf16>
    %564 = vector.shape_cast %563 : vector<1x2x32x32xbf16> to vector<2x32x32xbf16>
    %c1_168 = arith.constant 1 : index
    %c0_169 = arith.constant 0 : index
    %c0_170 = arith.constant 0 : index
    %c0_171 = arith.constant 0 : index
    %565 = vector.load %arg6[%c1_168, %c0_169, %c0_170, %c0_171] : memref<2x2x32x32xbf16, #tpu.memory_space<vmem>>, vector<1x2x32x32xbf16>
    %566 = vector.shape_cast %565 : vector<1x2x32x32xbf16> to vector<2x32x32xbf16>
    %c1_172 = arith.constant 1 : index
    %c0_173 = arith.constant 0 : index
    %c0_174 = arith.constant 0 : index
    %c0_175 = arith.constant 0 : index
    %567 = vector.load %arg7[%c1_172, %c0_173, %c0_174, %c0_175] : memref<2x2x32x64xbf16, #tpu.memory_space<vmem>>, vector<1x2x32x64xbf16>
    %568 = vector.shape_cast %567 : vector<1x2x32x64xbf16> to vector<2x32x64xbf16>
    %c1_176 = arith.constant 1 : index
    %c0_177 = arith.constant 0 : index
    %c0_178 = arith.constant 0 : index
    %c0_179 = arith.constant 0 : index
    %569 = vector.load %arg8[%c1_176, %c0_177, %c0_178, %c0_179] : memref<2x2x64x32xbf16, #tpu.memory_space<vmem>>, vector<1x2x64x32xbf16>
    %570 = vector.shape_cast %569 : vector<1x2x64x32xbf16> to vector<2x64x32xbf16>
    %c1_180 = arith.constant 1 : index
    %c0_181 = arith.constant 0 : index
    %c0_182 = arith.constant 0 : index
    %c0_183 = arith.constant 0 : index
    %571 = vector.load %arg9[%c1_180, %c0_181, %c0_182, %c0_183] : memref<2x2x4x32xf32, #tpu.memory_space<vmem>>, vector<1x2x4x32xf32>
    %572 = vector.shape_cast %571 : vector<1x2x4x32xf32> to vector<2x4x32xf32>
    %c1_184 = arith.constant 1 : index
    %c0_185 = arith.constant 0 : index
    %c0_186 = arith.constant 0 : index
    %573 = vector.load %arg10[%c1_184, %c0_185, %c0_186] : memref<2x2x64xf32, #tpu.memory_space<vmem>>, vector<1x2x64xf32>
    %574 = vector.shape_cast %573 : vector<1x2x64xf32> to vector<2x64xf32>
    %c1_187 = arith.constant 1 : index
    %c0_188 = arith.constant 0 : index
    %c0_189 = arith.constant 0 : index
    %c0_190 = arith.constant 0 : index
    %575 = vector.load %arg11[%c1_187, %c0_188, %c0_189, %c0_190] : memref<2x2x5x32xf32, #tpu.memory_space<vmem>>, vector<1x2x5x32xf32>
    %576 = vector.shape_cast %575 : vector<1x2x5x32xf32> to vector<2x5x32xf32>
    %cst_191 = arith.constant -1.000000e+09 : f32
    %577 = vector.broadcast %cst_191 : f32 to vector<2x16xf32>
    %578 = arith.mulf %558, %577 : vector<2x16xf32>
    %579 = vector.shape_cast %578 : vector<2x16xf32> to vector<2x1x16xf32>
    %580 = tpu.iota {dimensions = array<i32: 1>} : vector<1x32xi32>
    %c0_i32_192 = arith.constant 0 : i32
    %581 = vector.broadcast %c0_i32_192 : i32 to vector<1x32xi32>
    %582 = arith.cmpi sge, %580, %581 : vector<1x32xi32>
    %c8_i32_193 = arith.constant 8 : i32
    %583 = vector.broadcast %c8_i32_193 : i32 to vector<1x32xi32>
    %584 = arith.cmpi slt, %580, %583 : vector<1x32xi32>
    %585 = arith.andi %582, %584 : vector<1x32xi1>
    %586 = arith.extui %585 : vector<1x32xi1> to vector<1x32xi32>
    %587 = arith.sitofp %586 : vector<1x32xi32> to vector<1x32xf32>
    %588 = arith.truncf %587 : vector<1x32xf32> to vector<1x32xbf16>
    %c8_i32_194 = arith.constant 8 : i32
    %589 = vector.broadcast %c8_i32_194 : i32 to vector<1x32xi32>
    %590 = arith.cmpi sge, %580, %589 : vector<1x32xi32>
    %c16_i32_195 = arith.constant 16 : i32
    %591 = vector.broadcast %c16_i32_195 : i32 to vector<1x32xi32>
    %592 = arith.cmpi slt, %580, %591 : vector<1x32xi32>
    %593 = arith.andi %590, %592 : vector<1x32xi1>
    %594 = arith.extui %593 : vector<1x32xi1> to vector<1x32xi32>
    %595 = arith.sitofp %594 : vector<1x32xi32> to vector<1x32xf32>
    %596 = arith.truncf %595 : vector<1x32xf32> to vector<1x32xbf16>
    %c16_i32_196 = arith.constant 16 : i32
    %597 = vector.broadcast %c16_i32_196 : i32 to vector<1x32xi32>
    %598 = arith.cmpi sge, %580, %597 : vector<1x32xi32>
    %c24_i32_197 = arith.constant 24 : i32
    %599 = vector.broadcast %c24_i32_197 : i32 to vector<1x32xi32>
    %600 = arith.cmpi slt, %580, %599 : vector<1x32xi32>
    %601 = arith.andi %598, %600 : vector<1x32xi1>
    %602 = arith.extui %601 : vector<1x32xi1> to vector<1x32xi32>
    %603 = arith.sitofp %602 : vector<1x32xi32> to vector<1x32xf32>
    %604 = arith.truncf %603 : vector<1x32xf32> to vector<1x32xbf16>
    %c24_i32_198 = arith.constant 24 : i32
    %605 = vector.broadcast %c24_i32_198 : i32 to vector<1x32xi32>
    %606 = arith.cmpi sge, %580, %605 : vector<1x32xi32>
    %c32_i32_199 = arith.constant 32 : i32
    %607 = vector.broadcast %c32_i32_199 : i32 to vector<1x32xi32>
    %608 = arith.cmpi slt, %580, %607 : vector<1x32xi32>
    %609 = arith.andi %606, %608 : vector<1x32xi1>
    %610 = arith.extui %609 : vector<1x32xi1> to vector<1x32xi32>
    %611 = arith.sitofp %610 : vector<1x32xi32> to vector<1x32xf32>
    %612 = arith.truncf %611 : vector<1x32xf32> to vector<1x32xbf16>
    %613 = vector.shape_cast %556 : vector<2x16x32xf32> to vector<32x32xf32>
    %614 = arith.truncf %613 : vector<32x32xf32> to vector<32x32xbf16>
    %615 = vector.extract_strided_slice %560 {offsets = [0, 0, 0], sizes = [1, 32, 32], strides = [1, 1, 1]} : vector<2x32x32xbf16> to vector<1x32x32xbf16>
    %616 = vector.shape_cast %615 : vector<1x32x32xbf16> to vector<32x32xbf16>
    %cst_200 = arith.constant dense<0.000000e+00> : vector<32x32xf32>
    %617 = tpu.matmul %614, %616, %cst_200 {dimension_numbers = #tpu.dot_dimension_numbers<[1], [0], [0], [1], [0, 0, 1, 1], [], []>} : vector<32x32xbf16>, vector<32x32xbf16>, vector<32x32xf32> -> vector<32x32xf32>
    %618 = vector.extract_strided_slice %572 {offsets = [0, 0, 0], sizes = [1, 1, 32], strides = [1, 1, 1]} : vector<2x4x32xf32> to vector<1x1x32xf32>
    %619 = vector.shape_cast %618 : vector<1x1x32xf32> to vector<32xf32>
    %620 = vector.shape_cast %619 : vector<32xf32> to vector<1x32xf32>
    %621 = vector.broadcast %620 : vector<1x32xf32> to vector<32x32xf32>
    %622 = arith.addf %617, %621 : vector<32x32xf32>
    %623 = vector.extract_strided_slice %562 {offsets = [0, 0, 0], sizes = [1, 32, 32], strides = [1, 1, 1]} : vector<2x32x32xbf16> to vector<1x32x32xbf16>
    %624 = vector.shape_cast %623 : vector<1x32x32xbf16> to vector<32x32xbf16>
    %cst_201 = arith.constant dense<0.000000e+00> : vector<32x32xf32>
    %625 = tpu.matmul %614, %624, %cst_201 {dimension_numbers = #tpu.dot_dimension_numbers<[1], [0], [0], [1], [0, 0, 1, 1], [], []>} : vector<32x32xbf16>, vector<32x32xbf16>, vector<32x32xf32> -> vector<32x32xf32>
    %626 = vector.extract_strided_slice %572 {offsets = [0, 1, 0], sizes = [1, 1, 32], strides = [1, 1, 1]} : vector<2x4x32xf32> to vector<1x1x32xf32>
    %627 = vector.shape_cast %626 : vector<1x1x32xf32> to vector<32xf32>
    %628 = vector.shape_cast %627 : vector<32xf32> to vector<1x32xf32>
    %629 = vector.broadcast %628 : vector<1x32xf32> to vector<32x32xf32>
    %630 = arith.addf %625, %629 : vector<32x32xf32>
    %631 = vector.extract_strided_slice %564 {offsets = [0, 0, 0], sizes = [1, 32, 32], strides = [1, 1, 1]} : vector<2x32x32xbf16> to vector<1x32x32xbf16>
    %632 = vector.shape_cast %631 : vector<1x32x32xbf16> to vector<32x32xbf16>
    %cst_202 = arith.constant dense<0.000000e+00> : vector<32x32xf32>
    %633 = tpu.matmul %614, %632, %cst_202 {dimension_numbers = #tpu.dot_dimension_numbers<[1], [0], [0], [1], [0, 0, 1, 1], [], []>} : vector<32x32xbf16>, vector<32x32xbf16>, vector<32x32xf32> -> vector<32x32xf32>
    %634 = vector.extract_strided_slice %572 {offsets = [0, 2, 0], sizes = [1, 1, 32], strides = [1, 1, 1]} : vector<2x4x32xf32> to vector<1x1x32xf32>
    %635 = vector.shape_cast %634 : vector<1x1x32xf32> to vector<32xf32>
    %636 = vector.shape_cast %635 : vector<32xf32> to vector<1x32xf32>
    %637 = vector.broadcast %636 : vector<1x32xf32> to vector<32x32xf32>
    %638 = arith.addf %633, %637 : vector<32x32xf32>
    %639 = vector.shape_cast %622 : vector<32x32xf32> to vector<2x16x32xf32>
    %640 = arith.truncf %639 : vector<2x16x32xf32> to vector<2x16x32xbf16>
    %641 = vector.shape_cast %630 : vector<32x32xf32> to vector<2x16x32xf32>
    %642 = arith.truncf %641 : vector<2x16x32xf32> to vector<2x16x32xbf16>
    %643 = vector.shape_cast %638 : vector<32x32xf32> to vector<2x16x32xf32>
    %644 = arith.truncf %643 : vector<2x16x32xf32> to vector<2x16x32xbf16>
    %cst_203 = arith.constant 0.000000e+00 : f32
    %645 = vector.broadcast %cst_203 : f32 to vector<2x16x32xf32>
    %646 = vector.shape_cast %588 : vector<1x32xbf16> to vector<1x1x32xbf16>
    %647 = vector.broadcast %646 : vector<1x1x32xbf16> to vector<2x16x32xbf16>
    %648 = arith.mulf %642, %647 : vector<2x16x32xbf16>
    %649 = vector.shape_cast %588 : vector<1x32xbf16> to vector<1x1x32xbf16>
    %650 = vector.broadcast %649 : vector<1x1x32xbf16> to vector<2x16x32xbf16>
    %651 = arith.mulf %644, %650 : vector<2x16x32xbf16>
    "tpu.trace_start"() <{level = 10 : i32, message = "bqd,bkd->bqk"}> : () -> ()
    %cst_204 = arith.constant dense<0.000000e+00> : vector<2x16x16xf32>
    %652 = tpu.matmul %640, %648, %cst_204 {dimension_numbers = #tpu.dot_dimension_numbers<[2], [2], [1], [1], [0, 0, 0, 1, 1, 1], [0], [0]>} : vector<2x16x32xbf16>, vector<2x16x32xbf16>, vector<2x16x16xf32> -> vector<2x16x16xf32>
    "tpu.trace_stop"() : () -> ()
    %cst_205 = arith.constant 0.353553385 : f32
    %653 = vector.broadcast %cst_205 : f32 to vector<2x16x16xf32>
    %654 = arith.mulf %652, %653 : vector<2x16x16xf32>
    %655 = vector.broadcast %579 : vector<2x1x16xf32> to vector<2x16x16xf32>
    %656 = arith.addf %654, %655 : vector<2x16x16xf32>
    %cst_206 = arith.constant dense<0xFF800000> : vector<2x16xf32>
    %657 = vector.multi_reduction <maximumf>, %656, %cst_206 [2] : vector<2x16x16xf32> to vector<2x16xf32>
    %658 = vector.shape_cast %657 : vector<2x16xf32> to vector<2x16x1xf32>
    %659 = vector.broadcast %658 : vector<2x16x1xf32> to vector<2x16x16xf32>
    %660 = arith.subf %656, %659 : vector<2x16x16xf32>
    %661 = math.exp %660 : vector<2x16x16xf32>
    %cst_207 = arith.constant dense<0.000000e+00> : vector<2x16xf32>
    %662 = vector.multi_reduction <add>, %661, %cst_207 [2] : vector<2x16x16xf32> to vector<2x16xf32>
    %663 = vector.shape_cast %662 : vector<2x16xf32> to vector<2x16x1xf32>
    %664 = tpu.reciprocal %663 {approx = true} : vector<2x16x1xf32> -> vector<2x16x1xf32>
    %665 = vector.broadcast %664 : vector<2x16x1xf32> to vector<2x16x16xf32>
    %666 = arith.mulf %661, %665 : vector<2x16x16xf32>
    %667 = arith.truncf %666 : vector<2x16x16xf32> to vector<2x16x16xbf16>
    "tpu.trace_start"() <{level = 10 : i32, message = "bqk,bkd->bqd"}> : () -> ()
    %cst_208 = arith.constant dense<0.000000e+00> : vector<2x16x32xf32>
    %668 = tpu.matmul %667, %651, %cst_208 {dimension_numbers = #tpu.dot_dimension_numbers<[2], [1], [1], [2], [0, 0, 0, 1, 1, 2], [0], [0]>} : vector<2x16x16xbf16>, vector<2x16x32xbf16>, vector<2x16x32xf32> -> vector<2x16x32xf32>
    "tpu.trace_stop"() : () -> ()
    %669 = arith.addf %645, %668 : vector<2x16x32xf32>
    %670 = vector.shape_cast %596 : vector<1x32xbf16> to vector<1x1x32xbf16>
    %671 = vector.broadcast %670 : vector<1x1x32xbf16> to vector<2x16x32xbf16>
    %672 = arith.mulf %642, %671 : vector<2x16x32xbf16>
    %673 = vector.shape_cast %596 : vector<1x32xbf16> to vector<1x1x32xbf16>
    %674 = vector.broadcast %673 : vector<1x1x32xbf16> to vector<2x16x32xbf16>
    %675 = arith.mulf %644, %674 : vector<2x16x32xbf16>
    "tpu.trace_start"() <{level = 10 : i32, message = "bqd,bkd->bqk"}> : () -> ()
    %cst_209 = arith.constant dense<0.000000e+00> : vector<2x16x16xf32>
    %676 = tpu.matmul %640, %672, %cst_209 {dimension_numbers = #tpu.dot_dimension_numbers<[2], [2], [1], [1], [0, 0, 0, 1, 1, 1], [0], [0]>} : vector<2x16x32xbf16>, vector<2x16x32xbf16>, vector<2x16x16xf32> -> vector<2x16x16xf32>
    "tpu.trace_stop"() : () -> ()
    %cst_210 = arith.constant 0.353553385 : f32
    %677 = vector.broadcast %cst_210 : f32 to vector<2x16x16xf32>
    %678 = arith.mulf %676, %677 : vector<2x16x16xf32>
    %679 = vector.broadcast %579 : vector<2x1x16xf32> to vector<2x16x16xf32>
    %680 = arith.addf %678, %679 : vector<2x16x16xf32>
    %cst_211 = arith.constant dense<0xFF800000> : vector<2x16xf32>
    %681 = vector.multi_reduction <maximumf>, %680, %cst_211 [2] : vector<2x16x16xf32> to vector<2x16xf32>
    %682 = vector.shape_cast %681 : vector<2x16xf32> to vector<2x16x1xf32>
    %683 = vector.broadcast %682 : vector<2x16x1xf32> to vector<2x16x16xf32>
    %684 = arith.subf %680, %683 : vector<2x16x16xf32>
    %685 = math.exp %684 : vector<2x16x16xf32>
    %cst_212 = arith.constant dense<0.000000e+00> : vector<2x16xf32>
    %686 = vector.multi_reduction <add>, %685, %cst_212 [2] : vector<2x16x16xf32> to vector<2x16xf32>
    %687 = vector.shape_cast %686 : vector<2x16xf32> to vector<2x16x1xf32>
    %688 = tpu.reciprocal %687 {approx = true} : vector<2x16x1xf32> -> vector<2x16x1xf32>
    %689 = vector.broadcast %688 : vector<2x16x1xf32> to vector<2x16x16xf32>
    %690 = arith.mulf %685, %689 : vector<2x16x16xf32>
    %691 = arith.truncf %690 : vector<2x16x16xf32> to vector<2x16x16xbf16>
    "tpu.trace_start"() <{level = 10 : i32, message = "bqk,bkd->bqd"}> : () -> ()
    %cst_213 = arith.constant dense<0.000000e+00> : vector<2x16x32xf32>
    %692 = tpu.matmul %691, %675, %cst_213 {dimension_numbers = #tpu.dot_dimension_numbers<[2], [1], [1], [2], [0, 0, 0, 1, 1, 2], [0], [0]>} : vector<2x16x16xbf16>, vector<2x16x32xbf16>, vector<2x16x32xf32> -> vector<2x16x32xf32>
    "tpu.trace_stop"() : () -> ()
    %693 = arith.addf %669, %692 : vector<2x16x32xf32>
    %694 = vector.shape_cast %604 : vector<1x32xbf16> to vector<1x1x32xbf16>
    %695 = vector.broadcast %694 : vector<1x1x32xbf16> to vector<2x16x32xbf16>
    %696 = arith.mulf %642, %695 : vector<2x16x32xbf16>
    %697 = vector.shape_cast %604 : vector<1x32xbf16> to vector<1x1x32xbf16>
    %698 = vector.broadcast %697 : vector<1x1x32xbf16> to vector<2x16x32xbf16>
    %699 = arith.mulf %644, %698 : vector<2x16x32xbf16>
    "tpu.trace_start"() <{level = 10 : i32, message = "bqd,bkd->bqk"}> : () -> ()
    %cst_214 = arith.constant dense<0.000000e+00> : vector<2x16x16xf32>
    %700 = tpu.matmul %640, %696, %cst_214 {dimension_numbers = #tpu.dot_dimension_numbers<[2], [2], [1], [1], [0, 0, 0, 1, 1, 1], [0], [0]>} : vector<2x16x32xbf16>, vector<2x16x32xbf16>, vector<2x16x16xf32> -> vector<2x16x16xf32>
    "tpu.trace_stop"() : () -> ()
    %cst_215 = arith.constant 0.353553385 : f32
    %701 = vector.broadcast %cst_215 : f32 to vector<2x16x16xf32>
    %702 = arith.mulf %700, %701 : vector<2x16x16xf32>
    %703 = vector.broadcast %579 : vector<2x1x16xf32> to vector<2x16x16xf32>
    %704 = arith.addf %702, %703 : vector<2x16x16xf32>
    %cst_216 = arith.constant dense<0xFF800000> : vector<2x16xf32>
    %705 = vector.multi_reduction <maximumf>, %704, %cst_216 [2] : vector<2x16x16xf32> to vector<2x16xf32>
    %706 = vector.shape_cast %705 : vector<2x16xf32> to vector<2x16x1xf32>
    %707 = vector.broadcast %706 : vector<2x16x1xf32> to vector<2x16x16xf32>
    %708 = arith.subf %704, %707 : vector<2x16x16xf32>
    %709 = math.exp %708 : vector<2x16x16xf32>
    %cst_217 = arith.constant dense<0.000000e+00> : vector<2x16xf32>
    %710 = vector.multi_reduction <add>, %709, %cst_217 [2] : vector<2x16x16xf32> to vector<2x16xf32>
    %711 = vector.shape_cast %710 : vector<2x16xf32> to vector<2x16x1xf32>
    %712 = tpu.reciprocal %711 {approx = true} : vector<2x16x1xf32> -> vector<2x16x1xf32>
    %713 = vector.broadcast %712 : vector<2x16x1xf32> to vector<2x16x16xf32>
    %714 = arith.mulf %709, %713 : vector<2x16x16xf32>
    %715 = arith.truncf %714 : vector<2x16x16xf32> to vector<2x16x16xbf16>
    "tpu.trace_start"() <{level = 10 : i32, message = "bqk,bkd->bqd"}> : () -> ()
    %cst_218 = arith.constant dense<0.000000e+00> : vector<2x16x32xf32>
    %716 = tpu.matmul %715, %699, %cst_218 {dimension_numbers = #tpu.dot_dimension_numbers<[2], [1], [1], [2], [0, 0, 0, 1, 1, 2], [0], [0]>} : vector<2x16x16xbf16>, vector<2x16x32xbf16>, vector<2x16x32xf32> -> vector<2x16x32xf32>
    "tpu.trace_stop"() : () -> ()
    %717 = arith.addf %693, %716 : vector<2x16x32xf32>
    %718 = vector.shape_cast %612 : vector<1x32xbf16> to vector<1x1x32xbf16>
    %719 = vector.broadcast %718 : vector<1x1x32xbf16> to vector<2x16x32xbf16>
    %720 = arith.mulf %642, %719 : vector<2x16x32xbf16>
    %721 = vector.shape_cast %612 : vector<1x32xbf16> to vector<1x1x32xbf16>
    %722 = vector.broadcast %721 : vector<1x1x32xbf16> to vector<2x16x32xbf16>
    %723 = arith.mulf %644, %722 : vector<2x16x32xbf16>
    "tpu.trace_start"() <{level = 10 : i32, message = "bqd,bkd->bqk"}> : () -> ()
    %cst_219 = arith.constant dense<0.000000e+00> : vector<2x16x16xf32>
    %724 = tpu.matmul %640, %720, %cst_219 {dimension_numbers = #tpu.dot_dimension_numbers<[2], [2], [1], [1], [0, 0, 0, 1, 1, 1], [0], [0]>} : vector<2x16x32xbf16>, vector<2x16x32xbf16>, vector<2x16x16xf32> -> vector<2x16x16xf32>
    "tpu.trace_stop"() : () -> ()
    %cst_220 = arith.constant 0.353553385 : f32
    %725 = vector.broadcast %cst_220 : f32 to vector<2x16x16xf32>
    %726 = arith.mulf %724, %725 : vector<2x16x16xf32>
    %727 = vector.broadcast %579 : vector<2x1x16xf32> to vector<2x16x16xf32>
    %728 = arith.addf %726, %727 : vector<2x16x16xf32>
    %cst_221 = arith.constant dense<0xFF800000> : vector<2x16xf32>
    %729 = vector.multi_reduction <maximumf>, %728, %cst_221 [2] : vector<2x16x16xf32> to vector<2x16xf32>
    %730 = vector.shape_cast %729 : vector<2x16xf32> to vector<2x16x1xf32>
    %731 = vector.broadcast %730 : vector<2x16x1xf32> to vector<2x16x16xf32>
    %732 = arith.subf %728, %731 : vector<2x16x16xf32>
    %733 = math.exp %732 : vector<2x16x16xf32>
    %cst_222 = arith.constant dense<0.000000e+00> : vector<2x16xf32>
    %734 = vector.multi_reduction <add>, %733, %cst_222 [2] : vector<2x16x16xf32> to vector<2x16xf32>
    %735 = vector.shape_cast %734 : vector<2x16xf32> to vector<2x16x1xf32>
    %736 = tpu.reciprocal %735 {approx = true} : vector<2x16x1xf32> -> vector<2x16x1xf32>
    %737 = vector.broadcast %736 : vector<2x16x1xf32> to vector<2x16x16xf32>
    %738 = arith.mulf %733, %737 : vector<2x16x16xf32>
    %739 = arith.truncf %738 : vector<2x16x16xf32> to vector<2x16x16xbf16>
    "tpu.trace_start"() <{level = 10 : i32, message = "bqk,bkd->bqd"}> : () -> ()
    %cst_223 = arith.constant dense<0.000000e+00> : vector<2x16x32xf32>
    %740 = tpu.matmul %739, %723, %cst_223 {dimension_numbers = #tpu.dot_dimension_numbers<[2], [1], [1], [2], [0, 0, 0, 1, 1, 2], [0], [0]>} : vector<2x16x16xbf16>, vector<2x16x32xbf16>, vector<2x16x32xf32> -> vector<2x16x32xf32>
    "tpu.trace_stop"() : () -> ()
    %741 = arith.addf %717, %740 : vector<2x16x32xf32>
    %742 = vector.shape_cast %741 : vector<2x16x32xf32> to vector<32x32xf32>
    %743 = arith.truncf %742 : vector<32x32xf32> to vector<32x32xbf16>
    %744 = vector.extract_strided_slice %566 {offsets = [0, 0, 0], sizes = [1, 32, 32], strides = [1, 1, 1]} : vector<2x32x32xbf16> to vector<1x32x32xbf16>
    %745 = vector.shape_cast %744 : vector<1x32x32xbf16> to vector<32x32xbf16>
    %cst_224 = arith.constant dense<0.000000e+00> : vector<32x32xf32>
    %746 = tpu.matmul %743, %745, %cst_224 {dimension_numbers = #tpu.dot_dimension_numbers<[1], [0], [0], [1], [0, 0, 1, 1], [], []>} : vector<32x32xbf16>, vector<32x32xbf16>, vector<32x32xf32> -> vector<32x32xf32>
    %747 = vector.extract_strided_slice %572 {offsets = [0, 3, 0], sizes = [1, 1, 32], strides = [1, 1, 1]} : vector<2x4x32xf32> to vector<1x1x32xf32>
    %748 = vector.shape_cast %747 : vector<1x1x32xf32> to vector<32xf32>
    %749 = vector.shape_cast %748 : vector<32xf32> to vector<1x32xf32>
    %750 = vector.broadcast %749 : vector<1x32xf32> to vector<32x32xf32>
    %751 = arith.addf %746, %750 : vector<32x32xf32>
    %752 = arith.addf %613, %751 : vector<32x32xf32>
    %753 = vector.extract_strided_slice %576 {offsets = [0, 1, 0], sizes = [1, 1, 32], strides = [1, 1, 1]} : vector<2x5x32xf32> to vector<1x1x32xf32>
    %754 = vector.shape_cast %753 : vector<1x1x32xf32> to vector<32xf32>
    %755 = vector.extract_strided_slice %576 {offsets = [0, 2, 0], sizes = [1, 1, 32], strides = [1, 1, 1]} : vector<2x5x32xf32> to vector<1x1x32xf32>
    %756 = vector.shape_cast %755 : vector<1x1x32xf32> to vector<32xf32>
    %cst_225 = arith.constant dense<0.000000e+00> : vector<32xf32>
    %757 = vector.multi_reduction <add>, %752, %cst_225 [1] : vector<32x32xf32> to vector<32xf32>
    %758 = vector.shape_cast %757 : vector<32xf32> to vector<32x1xf32>
    %cst_226 = arith.constant 3.200000e+01 : f32
    %759 = vector.broadcast %cst_226 : f32 to vector<32x1xf32>
    %760 = arith.divf %758, %759 : vector<32x1xf32>
    %761 = vector.broadcast %760 : vector<32x1xf32> to vector<32x32xf32>
    %762 = arith.subf %752, %761 : vector<32x32xf32>
    %763 = arith.mulf %762, %762 : vector<32x32xf32>
    %cst_227 = arith.constant dense<0.000000e+00> : vector<32xf32>
    %764 = vector.multi_reduction <add>, %763, %cst_227 [1] : vector<32x32xf32> to vector<32xf32>
    %765 = vector.shape_cast %764 : vector<32xf32> to vector<32x1xf32>
    %cst_228 = arith.constant 3.200000e+01 : f32
    %766 = vector.broadcast %cst_228 : f32 to vector<32x1xf32>
    %767 = arith.divf %765, %766 : vector<32x1xf32>
    %768 = vector.broadcast %760 : vector<32x1xf32> to vector<32x32xf32>
    %769 = arith.subf %752, %768 : vector<32x32xf32>
    %cst_229 = arith.constant 9.99999974E-6 : f32
    %770 = vector.broadcast %cst_229 : f32 to vector<32x1xf32>
    %771 = arith.addf %767, %770 : vector<32x1xf32>
    %772 = math.rsqrt %771 : vector<32x1xf32>
    %773 = vector.broadcast %772 : vector<32x1xf32> to vector<32x32xf32>
    %774 = arith.mulf %769, %773 : vector<32x32xf32>
    %775 = vector.shape_cast %754 : vector<32xf32> to vector<1x32xf32>
    %776 = vector.broadcast %775 : vector<1x32xf32> to vector<32x32xf32>
    %777 = arith.mulf %774, %776 : vector<32x32xf32>
    %778 = vector.shape_cast %756 : vector<32xf32> to vector<1x32xf32>
    %779 = vector.broadcast %778 : vector<1x32xf32> to vector<32x32xf32>
    %780 = arith.addf %777, %779 : vector<32x32xf32>
    %781 = arith.truncf %780 : vector<32x32xf32> to vector<32x32xbf16>
    %782 = vector.extract_strided_slice %568 {offsets = [0, 0, 0], sizes = [1, 32, 64], strides = [1, 1, 1]} : vector<2x32x64xbf16> to vector<1x32x64xbf16>
    %783 = vector.shape_cast %782 : vector<1x32x64xbf16> to vector<32x64xbf16>
    %cst_230 = arith.constant dense<0.000000e+00> : vector<32x64xf32>
    %784 = tpu.matmul %781, %783, %cst_230 {dimension_numbers = #tpu.dot_dimension_numbers<[1], [0], [0], [1], [0, 0, 1, 1], [], []>} : vector<32x32xbf16>, vector<32x64xbf16>, vector<32x64xf32> -> vector<32x64xf32>
    %785 = vector.extract_strided_slice %574 {offsets = [0, 0], sizes = [1, 64], strides = [1, 1]} : vector<2x64xf32> to vector<1x64xf32>
    %786 = vector.shape_cast %785 : vector<1x64xf32> to vector<64xf32>
    %787 = vector.shape_cast %786 : vector<64xf32> to vector<1x64xf32>
    %788 = vector.broadcast %787 : vector<1x64xf32> to vector<32x64xf32>
    %789 = arith.addf %784, %788 : vector<32x64xf32>
    %cst_231 = arith.constant 0.000000e+00 : f32
    %790 = vector.broadcast %cst_231 : f32 to vector<32x64xf32>
    %791 = arith.maximumf %789, %790 : vector<32x64xf32>
    %792 = arith.truncf %791 : vector<32x64xf32> to vector<32x64xbf16>
    %793 = vector.extract_strided_slice %570 {offsets = [0, 0, 0], sizes = [1, 64, 32], strides = [1, 1, 1]} : vector<2x64x32xbf16> to vector<1x64x32xbf16>
    %794 = vector.shape_cast %793 : vector<1x64x32xbf16> to vector<64x32xbf16>
    %cst_232 = arith.constant dense<0.000000e+00> : vector<32x32xf32>
    %795 = tpu.matmul %792, %794, %cst_232 {dimension_numbers = #tpu.dot_dimension_numbers<[1], [0], [0], [1], [0, 0, 1, 1], [], []>} : vector<32x64xbf16>, vector<64x32xbf16>, vector<32x32xf32> -> vector<32x32xf32>
    %796 = vector.extract_strided_slice %576 {offsets = [0, 0, 0], sizes = [1, 1, 32], strides = [1, 1, 1]} : vector<2x5x32xf32> to vector<1x1x32xf32>
    %797 = vector.shape_cast %796 : vector<1x1x32xf32> to vector<32xf32>
    %798 = vector.shape_cast %797 : vector<32xf32> to vector<1x32xf32>
    %799 = vector.broadcast %798 : vector<1x32xf32> to vector<32x32xf32>
    %800 = arith.addf %795, %799 : vector<32x32xf32>
    %801 = arith.addf %780, %800 : vector<32x32xf32>
    %802 = vector.extract_strided_slice %576 {offsets = [0, 3, 0], sizes = [1, 1, 32], strides = [1, 1, 1]} : vector<2x5x32xf32> to vector<1x1x32xf32>
    %803 = vector.shape_cast %802 : vector<1x1x32xf32> to vector<32xf32>
    %804 = vector.extract_strided_slice %576 {offsets = [0, 4, 0], sizes = [1, 1, 32], strides = [1, 1, 1]} : vector<2x5x32xf32> to vector<1x1x32xf32>
    %805 = vector.shape_cast %804 : vector<1x1x32xf32> to vector<32xf32>
    %cst_233 = arith.constant dense<0.000000e+00> : vector<32xf32>
    %806 = vector.multi_reduction <add>, %801, %cst_233 [1] : vector<32x32xf32> to vector<32xf32>
    %807 = vector.shape_cast %806 : vector<32xf32> to vector<32x1xf32>
    %cst_234 = arith.constant 3.200000e+01 : f32
    %808 = vector.broadcast %cst_234 : f32 to vector<32x1xf32>
    %809 = arith.divf %807, %808 : vector<32x1xf32>
    %810 = vector.broadcast %809 : vector<32x1xf32> to vector<32x32xf32>
    %811 = arith.subf %801, %810 : vector<32x32xf32>
    %812 = arith.mulf %811, %811 : vector<32x32xf32>
    %cst_235 = arith.constant dense<0.000000e+00> : vector<32xf32>
    %813 = vector.multi_reduction <add>, %812, %cst_235 [1] : vector<32x32xf32> to vector<32xf32>
    %814 = vector.shape_cast %813 : vector<32xf32> to vector<32x1xf32>
    %cst_236 = arith.constant 3.200000e+01 : f32
    %815 = vector.broadcast %cst_236 : f32 to vector<32x1xf32>
    %816 = arith.divf %814, %815 : vector<32x1xf32>
    %817 = vector.broadcast %809 : vector<32x1xf32> to vector<32x32xf32>
    %818 = arith.subf %801, %817 : vector<32x32xf32>
    %cst_237 = arith.constant 9.99999974E-6 : f32
    %819 = vector.broadcast %cst_237 : f32 to vector<32x1xf32>
    %820 = arith.addf %816, %819 : vector<32x1xf32>
    %821 = math.rsqrt %820 : vector<32x1xf32>
    %822 = vector.broadcast %821 : vector<32x1xf32> to vector<32x32xf32>
    %823 = arith.mulf %818, %822 : vector<32x32xf32>
    %824 = vector.shape_cast %803 : vector<32xf32> to vector<1x32xf32>
    %825 = vector.broadcast %824 : vector<1x32xf32> to vector<32x32xf32>
    %826 = arith.mulf %823, %825 : vector<32x32xf32>
    %827 = vector.shape_cast %805 : vector<32xf32> to vector<1x32xf32>
    %828 = vector.broadcast %827 : vector<1x32xf32> to vector<32x32xf32>
    %829 = arith.addf %826, %828 : vector<32x32xf32>
    %830 = vector.shape_cast %829 : vector<32x32xf32> to vector<2x16x32xf32>
    %831 = vector.shape_cast %830 : vector<2x16x32xf32> to vector<32x32xf32>
    %832 = arith.truncf %831 : vector<32x32xf32> to vector<32x32xbf16>
    %833 = vector.extract_strided_slice %560 {offsets = [1, 0, 0], sizes = [1, 32, 32], strides = [1, 1, 1]} : vector<2x32x32xbf16> to vector<1x32x32xbf16>
    %834 = vector.shape_cast %833 : vector<1x32x32xbf16> to vector<32x32xbf16>
    %cst_238 = arith.constant dense<0.000000e+00> : vector<32x32xf32>
    %835 = tpu.matmul %832, %834, %cst_238 {dimension_numbers = #tpu.dot_dimension_numbers<[1], [0], [0], [1], [0, 0, 1, 1], [], []>} : vector<32x32xbf16>, vector<32x32xbf16>, vector<32x32xf32> -> vector<32x32xf32>
    %836 = vector.extract_strided_slice %572 {offsets = [1, 0, 0], sizes = [1, 1, 32], strides = [1, 1, 1]} : vector<2x4x32xf32> to vector<1x1x32xf32>
    %837 = vector.shape_cast %836 : vector<1x1x32xf32> to vector<32xf32>
    %838 = vector.shape_cast %837 : vector<32xf32> to vector<1x32xf32>
    %839 = vector.broadcast %838 : vector<1x32xf32> to vector<32x32xf32>
    %840 = arith.addf %835, %839 : vector<32x32xf32>
    %841 = vector.extract_strided_slice %562 {offsets = [1, 0, 0], sizes = [1, 32, 32], strides = [1, 1, 1]} : vector<2x32x32xbf16> to vector<1x32x32xbf16>
    %842 = vector.shape_cast %841 : vector<1x32x32xbf16> to vector<32x32xbf16>
    %cst_239 = arith.constant dense<0.000000e+00> : vector<32x32xf32>
    %843 = tpu.matmul %832, %842, %cst_239 {dimension_numbers = #tpu.dot_dimension_numbers<[1], [0], [0], [1], [0, 0, 1, 1], [], []>} : vector<32x32xbf16>, vector<32x32xbf16>, vector<32x32xf32> -> vector<32x32xf32>
    %844 = vector.extract_strided_slice %572 {offsets = [1, 1, 0], sizes = [1, 1, 32], strides = [1, 1, 1]} : vector<2x4x32xf32> to vector<1x1x32xf32>
    %845 = vector.shape_cast %844 : vector<1x1x32xf32> to vector<32xf32>
    %846 = vector.shape_cast %845 : vector<32xf32> to vector<1x32xf32>
    %847 = vector.broadcast %846 : vector<1x32xf32> to vector<32x32xf32>
    %848 = arith.addf %843, %847 : vector<32x32xf32>
    %849 = vector.extract_strided_slice %564 {offsets = [1, 0, 0], sizes = [1, 32, 32], strides = [1, 1, 1]} : vector<2x32x32xbf16> to vector<1x32x32xbf16>
    %850 = vector.shape_cast %849 : vector<1x32x32xbf16> to vector<32x32xbf16>
    %cst_240 = arith.constant dense<0.000000e+00> : vector<32x32xf32>
    %851 = tpu.matmul %832, %850, %cst_240 {dimension_numbers = #tpu.dot_dimension_numbers<[1], [0], [0], [1], [0, 0, 1, 1], [], []>} : vector<32x32xbf16>, vector<32x32xbf16>, vector<32x32xf32> -> vector<32x32xf32>
    %852 = vector.extract_strided_slice %572 {offsets = [1, 2, 0], sizes = [1, 1, 32], strides = [1, 1, 1]} : vector<2x4x32xf32> to vector<1x1x32xf32>
    %853 = vector.shape_cast %852 : vector<1x1x32xf32> to vector<32xf32>
    %854 = vector.shape_cast %853 : vector<32xf32> to vector<1x32xf32>
    %855 = vector.broadcast %854 : vector<1x32xf32> to vector<32x32xf32>
    %856 = arith.addf %851, %855 : vector<32x32xf32>
    %857 = vector.shape_cast %840 : vector<32x32xf32> to vector<2x16x32xf32>
    %858 = arith.truncf %857 : vector<2x16x32xf32> to vector<2x16x32xbf16>
    %859 = vector.shape_cast %848 : vector<32x32xf32> to vector<2x16x32xf32>
    %860 = arith.truncf %859 : vector<2x16x32xf32> to vector<2x16x32xbf16>
    %861 = vector.shape_cast %856 : vector<32x32xf32> to vector<2x16x32xf32>
    %862 = arith.truncf %861 : vector<2x16x32xf32> to vector<2x16x32xbf16>
    %cst_241 = arith.constant 0.000000e+00 : f32
    %863 = vector.broadcast %cst_241 : f32 to vector<2x16x32xf32>
    %864 = vector.shape_cast %588 : vector<1x32xbf16> to vector<1x1x32xbf16>
    %865 = vector.broadcast %864 : vector<1x1x32xbf16> to vector<2x16x32xbf16>
    %866 = arith.mulf %860, %865 : vector<2x16x32xbf16>
    %867 = vector.shape_cast %588 : vector<1x32xbf16> to vector<1x1x32xbf16>
    %868 = vector.broadcast %867 : vector<1x1x32xbf16> to vector<2x16x32xbf16>
    %869 = arith.mulf %862, %868 : vector<2x16x32xbf16>
    "tpu.trace_start"() <{level = 10 : i32, message = "bqd,bkd->bqk"}> : () -> ()
    %cst_242 = arith.constant dense<0.000000e+00> : vector<2x16x16xf32>
    %870 = tpu.matmul %858, %866, %cst_242 {dimension_numbers = #tpu.dot_dimension_numbers<[2], [2], [1], [1], [0, 0, 0, 1, 1, 1], [0], [0]>} : vector<2x16x32xbf16>, vector<2x16x32xbf16>, vector<2x16x16xf32> -> vector<2x16x16xf32>
    "tpu.trace_stop"() : () -> ()
    %cst_243 = arith.constant 0.353553385 : f32
    %871 = vector.broadcast %cst_243 : f32 to vector<2x16x16xf32>
    %872 = arith.mulf %870, %871 : vector<2x16x16xf32>
    %873 = vector.broadcast %579 : vector<2x1x16xf32> to vector<2x16x16xf32>
    %874 = arith.addf %872, %873 : vector<2x16x16xf32>
    %cst_244 = arith.constant dense<0xFF800000> : vector<2x16xf32>
    %875 = vector.multi_reduction <maximumf>, %874, %cst_244 [2] : vector<2x16x16xf32> to vector<2x16xf32>
    %876 = vector.shape_cast %875 : vector<2x16xf32> to vector<2x16x1xf32>
    %877 = vector.broadcast %876 : vector<2x16x1xf32> to vector<2x16x16xf32>
    %878 = arith.subf %874, %877 : vector<2x16x16xf32>
    %879 = math.exp %878 : vector<2x16x16xf32>
    %cst_245 = arith.constant dense<0.000000e+00> : vector<2x16xf32>
    %880 = vector.multi_reduction <add>, %879, %cst_245 [2] : vector<2x16x16xf32> to vector<2x16xf32>
    %881 = vector.shape_cast %880 : vector<2x16xf32> to vector<2x16x1xf32>
    %882 = tpu.reciprocal %881 {approx = true} : vector<2x16x1xf32> -> vector<2x16x1xf32>
    %883 = vector.broadcast %882 : vector<2x16x1xf32> to vector<2x16x16xf32>
    %884 = arith.mulf %879, %883 : vector<2x16x16xf32>
    %885 = arith.truncf %884 : vector<2x16x16xf32> to vector<2x16x16xbf16>
    "tpu.trace_start"() <{level = 10 : i32, message = "bqk,bkd->bqd"}> : () -> ()
    %cst_246 = arith.constant dense<0.000000e+00> : vector<2x16x32xf32>
    %886 = tpu.matmul %885, %869, %cst_246 {dimension_numbers = #tpu.dot_dimension_numbers<[2], [1], [1], [2], [0, 0, 0, 1, 1, 2], [0], [0]>} : vector<2x16x16xbf16>, vector<2x16x32xbf16>, vector<2x16x32xf32> -> vector<2x16x32xf32>
    "tpu.trace_stop"() : () -> ()
    %887 = arith.addf %863, %886 : vector<2x16x32xf32>
    %888 = vector.shape_cast %596 : vector<1x32xbf16> to vector<1x1x32xbf16>
    %889 = vector.broadcast %888 : vector<1x1x32xbf16> to vector<2x16x32xbf16>
    %890 = arith.mulf %860, %889 : vector<2x16x32xbf16>
    %891 = vector.shape_cast %596 : vector<1x32xbf16> to vector<1x1x32xbf16>
    %892 = vector.broadcast %891 : vector<1x1x32xbf16> to vector<2x16x32xbf16>
    %893 = arith.mulf %862, %892 : vector<2x16x32xbf16>
    "tpu.trace_start"() <{level = 10 : i32, message = "bqd,bkd->bqk"}> : () -> ()
    %cst_247 = arith.constant dense<0.000000e+00> : vector<2x16x16xf32>
    %894 = tpu.matmul %858, %890, %cst_247 {dimension_numbers = #tpu.dot_dimension_numbers<[2], [2], [1], [1], [0, 0, 0, 1, 1, 1], [0], [0]>} : vector<2x16x32xbf16>, vector<2x16x32xbf16>, vector<2x16x16xf32> -> vector<2x16x16xf32>
    "tpu.trace_stop"() : () -> ()
    %cst_248 = arith.constant 0.353553385 : f32
    %895 = vector.broadcast %cst_248 : f32 to vector<2x16x16xf32>
    %896 = arith.mulf %894, %895 : vector<2x16x16xf32>
    %897 = vector.broadcast %579 : vector<2x1x16xf32> to vector<2x16x16xf32>
    %898 = arith.addf %896, %897 : vector<2x16x16xf32>
    %cst_249 = arith.constant dense<0xFF800000> : vector<2x16xf32>
    %899 = vector.multi_reduction <maximumf>, %898, %cst_249 [2] : vector<2x16x16xf32> to vector<2x16xf32>
    %900 = vector.shape_cast %899 : vector<2x16xf32> to vector<2x16x1xf32>
    %901 = vector.broadcast %900 : vector<2x16x1xf32> to vector<2x16x16xf32>
    %902 = arith.subf %898, %901 : vector<2x16x16xf32>
    %903 = math.exp %902 : vector<2x16x16xf32>
    %cst_250 = arith.constant dense<0.000000e+00> : vector<2x16xf32>
    %904 = vector.multi_reduction <add>, %903, %cst_250 [2] : vector<2x16x16xf32> to vector<2x16xf32>
    %905 = vector.shape_cast %904 : vector<2x16xf32> to vector<2x16x1xf32>
    %906 = tpu.reciprocal %905 {approx = true} : vector<2x16x1xf32> -> vector<2x16x1xf32>
    %907 = vector.broadcast %906 : vector<2x16x1xf32> to vector<2x16x16xf32>
    %908 = arith.mulf %903, %907 : vector<2x16x16xf32>
    %909 = arith.truncf %908 : vector<2x16x16xf32> to vector<2x16x16xbf16>
    "tpu.trace_start"() <{level = 10 : i32, message = "bqk,bkd->bqd"}> : () -> ()
    %cst_251 = arith.constant dense<0.000000e+00> : vector<2x16x32xf32>
    %910 = tpu.matmul %909, %893, %cst_251 {dimension_numbers = #tpu.dot_dimension_numbers<[2], [1], [1], [2], [0, 0, 0, 1, 1, 2], [0], [0]>} : vector<2x16x16xbf16>, vector<2x16x32xbf16>, vector<2x16x32xf32> -> vector<2x16x32xf32>
    "tpu.trace_stop"() : () -> ()
    %911 = arith.addf %887, %910 : vector<2x16x32xf32>
    %912 = vector.shape_cast %604 : vector<1x32xbf16> to vector<1x1x32xbf16>
    %913 = vector.broadcast %912 : vector<1x1x32xbf16> to vector<2x16x32xbf16>
    %914 = arith.mulf %860, %913 : vector<2x16x32xbf16>
    %915 = vector.shape_cast %604 : vector<1x32xbf16> to vector<1x1x32xbf16>
    %916 = vector.broadcast %915 : vector<1x1x32xbf16> to vector<2x16x32xbf16>
    %917 = arith.mulf %862, %916 : vector<2x16x32xbf16>
    "tpu.trace_start"() <{level = 10 : i32, message = "bqd,bkd->bqk"}> : () -> ()
    %cst_252 = arith.constant dense<0.000000e+00> : vector<2x16x16xf32>
    %918 = tpu.matmul %858, %914, %cst_252 {dimension_numbers = #tpu.dot_dimension_numbers<[2], [2], [1], [1], [0, 0, 0, 1, 1, 1], [0], [0]>} : vector<2x16x32xbf16>, vector<2x16x32xbf16>, vector<2x16x16xf32> -> vector<2x16x16xf32>
    "tpu.trace_stop"() : () -> ()
    %cst_253 = arith.constant 0.353553385 : f32
    %919 = vector.broadcast %cst_253 : f32 to vector<2x16x16xf32>
    %920 = arith.mulf %918, %919 : vector<2x16x16xf32>
    %921 = vector.broadcast %579 : vector<2x1x16xf32> to vector<2x16x16xf32>
    %922 = arith.addf %920, %921 : vector<2x16x16xf32>
    %cst_254 = arith.constant dense<0xFF800000> : vector<2x16xf32>
    %923 = vector.multi_reduction <maximumf>, %922, %cst_254 [2] : vector<2x16x16xf32> to vector<2x16xf32>
    %924 = vector.shape_cast %923 : vector<2x16xf32> to vector<2x16x1xf32>
    %925 = vector.broadcast %924 : vector<2x16x1xf32> to vector<2x16x16xf32>
    %926 = arith.subf %922, %925 : vector<2x16x16xf32>
    %927 = math.exp %926 : vector<2x16x16xf32>
    %cst_255 = arith.constant dense<0.000000e+00> : vector<2x16xf32>
    %928 = vector.multi_reduction <add>, %927, %cst_255 [2] : vector<2x16x16xf32> to vector<2x16xf32>
    %929 = vector.shape_cast %928 : vector<2x16xf32> to vector<2x16x1xf32>
    %930 = tpu.reciprocal %929 {approx = true} : vector<2x16x1xf32> -> vector<2x16x1xf32>
    %931 = vector.broadcast %930 : vector<2x16x1xf32> to vector<2x16x16xf32>
    %932 = arith.mulf %927, %931 : vector<2x16x16xf32>
    %933 = arith.truncf %932 : vector<2x16x16xf32> to vector<2x16x16xbf16>
    "tpu.trace_start"() <{level = 10 : i32, message = "bqk,bkd->bqd"}> : () -> ()
    %cst_256 = arith.constant dense<0.000000e+00> : vector<2x16x32xf32>
    %934 = tpu.matmul %933, %917, %cst_256 {dimension_numbers = #tpu.dot_dimension_numbers<[2], [1], [1], [2], [0, 0, 0, 1, 1, 2], [0], [0]>} : vector<2x16x16xbf16>, vector<2x16x32xbf16>, vector<2x16x32xf32> -> vector<2x16x32xf32>
    "tpu.trace_stop"() : () -> ()
    %935 = arith.addf %911, %934 : vector<2x16x32xf32>
    %936 = vector.shape_cast %612 : vector<1x32xbf16> to vector<1x1x32xbf16>
    %937 = vector.broadcast %936 : vector<1x1x32xbf16> to vector<2x16x32xbf16>
    %938 = arith.mulf %860, %937 : vector<2x16x32xbf16>
    %939 = vector.shape_cast %612 : vector<1x32xbf16> to vector<1x1x32xbf16>
    %940 = vector.broadcast %939 : vector<1x1x32xbf16> to vector<2x16x32xbf16>
    %941 = arith.mulf %862, %940 : vector<2x16x32xbf16>
    "tpu.trace_start"() <{level = 10 : i32, message = "bqd,bkd->bqk"}> : () -> ()
    %cst_257 = arith.constant dense<0.000000e+00> : vector<2x16x16xf32>
    %942 = tpu.matmul %858, %938, %cst_257 {dimension_numbers = #tpu.dot_dimension_numbers<[2], [2], [1], [1], [0, 0, 0, 1, 1, 1], [0], [0]>} : vector<2x16x32xbf16>, vector<2x16x32xbf16>, vector<2x16x16xf32> -> vector<2x16x16xf32>
    "tpu.trace_stop"() : () -> ()
    %cst_258 = arith.constant 0.353553385 : f32
    %943 = vector.broadcast %cst_258 : f32 to vector<2x16x16xf32>
    %944 = arith.mulf %942, %943 : vector<2x16x16xf32>
    %945 = vector.broadcast %579 : vector<2x1x16xf32> to vector<2x16x16xf32>
    %946 = arith.addf %944, %945 : vector<2x16x16xf32>
    %cst_259 = arith.constant dense<0xFF800000> : vector<2x16xf32>
    %947 = vector.multi_reduction <maximumf>, %946, %cst_259 [2] : vector<2x16x16xf32> to vector<2x16xf32>
    %948 = vector.shape_cast %947 : vector<2x16xf32> to vector<2x16x1xf32>
    %949 = vector.broadcast %948 : vector<2x16x1xf32> to vector<2x16x16xf32>
    %950 = arith.subf %946, %949 : vector<2x16x16xf32>
    %951 = math.exp %950 : vector<2x16x16xf32>
    %cst_260 = arith.constant dense<0.000000e+00> : vector<2x16xf32>
    %952 = vector.multi_reduction <add>, %951, %cst_260 [2] : vector<2x16x16xf32> to vector<2x16xf32>
    %953 = vector.shape_cast %952 : vector<2x16xf32> to vector<2x16x1xf32>
    %954 = tpu.reciprocal %953 {approx = true} : vector<2x16x1xf32> -> vector<2x16x1xf32>
    %955 = vector.broadcast %954 : vector<2x16x1xf32> to vector<2x16x16xf32>
    %956 = arith.mulf %951, %955 : vector<2x16x16xf32>
    %957 = arith.truncf %956 : vector<2x16x16xf32> to vector<2x16x16xbf16>
    "tpu.trace_start"() <{level = 10 : i32, message = "bqk,bkd->bqd"}> : () -> ()
    %cst_261 = arith.constant dense<0.000000e+00> : vector<2x16x32xf32>
    %958 = tpu.matmul %957, %941, %cst_261 {dimension_numbers = #tpu.dot_dimension_numbers<[2], [1], [1], [2], [0, 0, 0, 1, 1, 2], [0], [0]>} : vector<2x16x16xbf16>, vector<2x16x32xbf16>, vector<2x16x32xf32> -> vector<2x16x32xf32>
    "tpu.trace_stop"() : () -> ()
    %959 = arith.addf %935, %958 : vector<2x16x32xf32>
    %960 = vector.shape_cast %959 : vector<2x16x32xf32> to vector<32x32xf32>
    %961 = arith.truncf %960 : vector<32x32xf32> to vector<32x32xbf16>
    %962 = vector.extract_strided_slice %566 {offsets = [1, 0, 0], sizes = [1, 32, 32], strides = [1, 1, 1]} : vector<2x32x32xbf16> to vector<1x32x32xbf16>
    %963 = vector.shape_cast %962 : vector<1x32x32xbf16> to vector<32x32xbf16>
    %cst_262 = arith.constant dense<0.000000e+00> : vector<32x32xf32>
    %964 = tpu.matmul %961, %963, %cst_262 {dimension_numbers = #tpu.dot_dimension_numbers<[1], [0], [0], [1], [0, 0, 1, 1], [], []>} : vector<32x32xbf16>, vector<32x32xbf16>, vector<32x32xf32> -> vector<32x32xf32>
    %965 = vector.extract_strided_slice %572 {offsets = [1, 3, 0], sizes = [1, 1, 32], strides = [1, 1, 1]} : vector<2x4x32xf32> to vector<1x1x32xf32>
    %966 = vector.shape_cast %965 : vector<1x1x32xf32> to vector<32xf32>
    %967 = vector.shape_cast %966 : vector<32xf32> to vector<1x32xf32>
    %968 = vector.broadcast %967 : vector<1x32xf32> to vector<32x32xf32>
    %969 = arith.addf %964, %968 : vector<32x32xf32>
    %970 = arith.addf %831, %969 : vector<32x32xf32>
    %971 = vector.extract_strided_slice %576 {offsets = [1, 1, 0], sizes = [1, 1, 32], strides = [1, 1, 1]} : vector<2x5x32xf32> to vector<1x1x32xf32>
    %972 = vector.shape_cast %971 : vector<1x1x32xf32> to vector<32xf32>
    %973 = vector.extract_strided_slice %576 {offsets = [1, 2, 0], sizes = [1, 1, 32], strides = [1, 1, 1]} : vector<2x5x32xf32> to vector<1x1x32xf32>
    %974 = vector.shape_cast %973 : vector<1x1x32xf32> to vector<32xf32>
    %cst_263 = arith.constant dense<0.000000e+00> : vector<32xf32>
    %975 = vector.multi_reduction <add>, %970, %cst_263 [1] : vector<32x32xf32> to vector<32xf32>
    %976 = vector.shape_cast %975 : vector<32xf32> to vector<32x1xf32>
    %cst_264 = arith.constant 3.200000e+01 : f32
    %977 = vector.broadcast %cst_264 : f32 to vector<32x1xf32>
    %978 = arith.divf %976, %977 : vector<32x1xf32>
    %979 = vector.broadcast %978 : vector<32x1xf32> to vector<32x32xf32>
    %980 = arith.subf %970, %979 : vector<32x32xf32>
    %981 = arith.mulf %980, %980 : vector<32x32xf32>
    %cst_265 = arith.constant dense<0.000000e+00> : vector<32xf32>
    %982 = vector.multi_reduction <add>, %981, %cst_265 [1] : vector<32x32xf32> to vector<32xf32>
    %983 = vector.shape_cast %982 : vector<32xf32> to vector<32x1xf32>
    %cst_266 = arith.constant 3.200000e+01 : f32
    %984 = vector.broadcast %cst_266 : f32 to vector<32x1xf32>
    %985 = arith.divf %983, %984 : vector<32x1xf32>
    %986 = vector.broadcast %978 : vector<32x1xf32> to vector<32x32xf32>
    %987 = arith.subf %970, %986 : vector<32x32xf32>
    %cst_267 = arith.constant 9.99999974E-6 : f32
    %988 = vector.broadcast %cst_267 : f32 to vector<32x1xf32>
    %989 = arith.addf %985, %988 : vector<32x1xf32>
    %990 = math.rsqrt %989 : vector<32x1xf32>
    %991 = vector.broadcast %990 : vector<32x1xf32> to vector<32x32xf32>
    %992 = arith.mulf %987, %991 : vector<32x32xf32>
    %993 = vector.shape_cast %972 : vector<32xf32> to vector<1x32xf32>
    %994 = vector.broadcast %993 : vector<1x32xf32> to vector<32x32xf32>
    %995 = arith.mulf %992, %994 : vector<32x32xf32>
    %996 = vector.shape_cast %974 : vector<32xf32> to vector<1x32xf32>
    %997 = vector.broadcast %996 : vector<1x32xf32> to vector<32x32xf32>
    %998 = arith.addf %995, %997 : vector<32x32xf32>
    %999 = arith.truncf %998 : vector<32x32xf32> to vector<32x32xbf16>
    %1000 = vector.extract_strided_slice %568 {offsets = [1, 0, 0], sizes = [1, 32, 64], strides = [1, 1, 1]} : vector<2x32x64xbf16> to vector<1x32x64xbf16>
    %1001 = vector.shape_cast %1000 : vector<1x32x64xbf16> to vector<32x64xbf16>
    %cst_268 = arith.constant dense<0.000000e+00> : vector<32x64xf32>
    %1002 = tpu.matmul %999, %1001, %cst_268 {dimension_numbers = #tpu.dot_dimension_numbers<[1], [0], [0], [1], [0, 0, 1, 1], [], []>} : vector<32x32xbf16>, vector<32x64xbf16>, vector<32x64xf32> -> vector<32x64xf32>
    %1003 = vector.extract_strided_slice %574 {offsets = [1, 0], sizes = [1, 64], strides = [1, 1]} : vector<2x64xf32> to vector<1x64xf32>
    %1004 = vector.shape_cast %1003 : vector<1x64xf32> to vector<64xf32>
    %1005 = vector.shape_cast %1004 : vector<64xf32> to vector<1x64xf32>
    %1006 = vector.broadcast %1005 : vector<1x64xf32> to vector<32x64xf32>
    %1007 = arith.addf %1002, %1006 : vector<32x64xf32>
    %cst_269 = arith.constant 0.000000e+00 : f32
    %1008 = vector.broadcast %cst_269 : f32 to vector<32x64xf32>
    %1009 = arith.maximumf %1007, %1008 : vector<32x64xf32>
    %1010 = arith.truncf %1009 : vector<32x64xf32> to vector<32x64xbf16>
    %1011 = vector.extract_strided_slice %570 {offsets = [1, 0, 0], sizes = [1, 64, 32], strides = [1, 1, 1]} : vector<2x64x32xbf16> to vector<1x64x32xbf16>
    %1012 = vector.shape_cast %1011 : vector<1x64x32xbf16> to vector<64x32xbf16>
    %cst_270 = arith.constant dense<0.000000e+00> : vector<32x32xf32>
    %1013 = tpu.matmul %1010, %1012, %cst_270 {dimension_numbers = #tpu.dot_dimension_numbers<[1], [0], [0], [1], [0, 0, 1, 1], [], []>} : vector<32x64xbf16>, vector<64x32xbf16>, vector<32x32xf32> -> vector<32x32xf32>
    %1014 = vector.extract_strided_slice %576 {offsets = [1, 0, 0], sizes = [1, 1, 32], strides = [1, 1, 1]} : vector<2x5x32xf32> to vector<1x1x32xf32>
    %1015 = vector.shape_cast %1014 : vector<1x1x32xf32> to vector<32xf32>
    %1016 = vector.shape_cast %1015 : vector<32xf32> to vector<1x32xf32>
    %1017 = vector.broadcast %1016 : vector<1x32xf32> to vector<32x32xf32>
    %1018 = arith.addf %1013, %1017 : vector<32x32xf32>
    %1019 = arith.addf %998, %1018 : vector<32x32xf32>
    %1020 = vector.extract_strided_slice %576 {offsets = [1, 3, 0], sizes = [1, 1, 32], strides = [1, 1, 1]} : vector<2x5x32xf32> to vector<1x1x32xf32>
    %1021 = vector.shape_cast %1020 : vector<1x1x32xf32> to vector<32xf32>
    %1022 = vector.extract_strided_slice %576 {offsets = [1, 4, 0], sizes = [1, 1, 32], strides = [1, 1, 1]} : vector<2x5x32xf32> to vector<1x1x32xf32>
    %1023 = vector.shape_cast %1022 : vector<1x1x32xf32> to vector<32xf32>
    %cst_271 = arith.constant dense<0.000000e+00> : vector<32xf32>
    %1024 = vector.multi_reduction <add>, %1019, %cst_271 [1] : vector<32x32xf32> to vector<32xf32>
    %1025 = vector.shape_cast %1024 : vector<32xf32> to vector<32x1xf32>
    %cst_272 = arith.constant 3.200000e+01 : f32
    %1026 = vector.broadcast %cst_272 : f32 to vector<32x1xf32>
    %1027 = arith.divf %1025, %1026 : vector<32x1xf32>
    %1028 = vector.broadcast %1027 : vector<32x1xf32> to vector<32x32xf32>
    %1029 = arith.subf %1019, %1028 : vector<32x32xf32>
    %1030 = arith.mulf %1029, %1029 : vector<32x32xf32>
    %cst_273 = arith.constant dense<0.000000e+00> : vector<32xf32>
    %1031 = vector.multi_reduction <add>, %1030, %cst_273 [1] : vector<32x32xf32> to vector<32xf32>
    %1032 = vector.shape_cast %1031 : vector<32xf32> to vector<32x1xf32>
    %cst_274 = arith.constant 3.200000e+01 : f32
    %1033 = vector.broadcast %cst_274 : f32 to vector<32x1xf32>
    %1034 = arith.divf %1032, %1033 : vector<32x1xf32>
    %1035 = vector.broadcast %1027 : vector<32x1xf32> to vector<32x32xf32>
    %1036 = arith.subf %1019, %1035 : vector<32x32xf32>
    %cst_275 = arith.constant 9.99999974E-6 : f32
    %1037 = vector.broadcast %cst_275 : f32 to vector<32x1xf32>
    %1038 = arith.addf %1034, %1037 : vector<32x1xf32>
    %1039 = math.rsqrt %1038 : vector<32x1xf32>
    %1040 = vector.broadcast %1039 : vector<32x1xf32> to vector<32x32xf32>
    %1041 = arith.mulf %1036, %1040 : vector<32x32xf32>
    %1042 = vector.shape_cast %1021 : vector<32xf32> to vector<1x32xf32>
    %1043 = vector.broadcast %1042 : vector<1x32xf32> to vector<32x32xf32>
    %1044 = arith.mulf %1041, %1043 : vector<32x32xf32>
    %1045 = vector.shape_cast %1023 : vector<32xf32> to vector<1x32xf32>
    %1046 = vector.broadcast %1045 : vector<1x32xf32> to vector<32x32xf32>
    %1047 = arith.addf %1044, %1046 : vector<32x32xf32>
    %1048 = vector.shape_cast %1047 : vector<32x32xf32> to vector<2x16x32xf32>
    %c1_276 = arith.constant 1 : index
    %c0_277 = arith.constant 0 : index
    %c0_278 = arith.constant 0 : index
    %c0_279 = arith.constant 0 : index
    %1049 = vector.load %arg1[%c1_276, %c0_277, %c0_278, %c0_279] : memref<2x2x16x32xf32, #tpu.memory_space<vmem>>, vector<1x2x16x32xf32>
    %1050 = vector.shape_cast %1049 : vector<1x2x16x32xf32> to vector<2x16x32xf32>
    %c1_280 = arith.constant 1 : index
    %c0_281 = arith.constant 0 : index
    %c0_282 = arith.constant 0 : index
    %1051 = vector.load %arg2[%c1_280, %c0_281, %c0_282] : memref<2x2x16xf32, #tpu.memory_space<vmem>>, vector<1x2x16xf32>
    %1052 = vector.shape_cast %1051 : vector<1x2x16xf32> to vector<2x16xf32>
    %c1_283 = arith.constant 1 : index
    %c0_284 = arith.constant 0 : index
    %c0_285 = arith.constant 0 : index
    %1053 = vector.load %arg12[%c1_283, %c0_284, %c0_285] : memref<2x32x32xf32, #tpu.memory_space<vmem>>, vector<1x32x32xf32>
    %1054 = vector.shape_cast %1053 : vector<1x32x32xf32> to vector<32x32xf32>
    %c1_286 = arith.constant 1 : index
    %c0_287 = arith.constant 0 : index
    %c0_288 = arith.constant 0 : index
    %1055 = vector.load %arg13[%c1_286, %c0_287, %c0_288] : memref<2x32x32xf32, #tpu.memory_space<vmem>>, vector<1x32x32xf32>
    %1056 = vector.shape_cast %1055 : vector<1x32x32xf32> to vector<32x32xf32>
    %c1_289 = arith.constant 1 : index
    %c0_290 = arith.constant 0 : index
    %c0_291 = arith.constant 0 : index
    %1057 = vector.load %arg14[%c1_289, %c0_290, %c0_291] : memref<2x32x32xf32, #tpu.memory_space<vmem>>, vector<1x32x32xf32>
    %1058 = vector.shape_cast %1057 : vector<1x32x32xf32> to vector<32x32xf32>
    %c1_292 = arith.constant 1 : index
    %c0_293 = arith.constant 0 : index
    %c0_294 = arith.constant 0 : index
    %1059 = vector.load %arg15[%c1_292, %c0_293, %c0_294] : memref<2x3x32xf32, #tpu.memory_space<vmem>>, vector<1x3x32xf32>
    %1060 = vector.shape_cast %1059 : vector<1x3x32xf32> to vector<3x32xf32>
    %1061 = vector.extract_strided_slice %1048 {offsets = [0, 0, 0], sizes = [2, 1, 32], strides = [1, 1, 1]} : vector<2x16x32xf32> to vector<2x1x32xf32>
    %1062 = vector.shape_cast %1061 : vector<2x1x32xf32> to vector<2x32xf32>
    %cst_295 = arith.constant dense<0.000000e+00> : vector<2x32xf32>
    %1063 = tpu.matmul %1062, %1054, %cst_295 {dimension_numbers = #tpu.dot_dimension_numbers<[1], [0], [0], [1], [0, 0, 1, 1], [], []>} : vector<2x32xf32>, vector<32x32xf32>, vector<2x32xf32> -> vector<2x32xf32>
    %1064 = vector.extract_strided_slice %1060 {offsets = [0, 0], sizes = [1, 32], strides = [1, 1]} : vector<3x32xf32> to vector<1x32xf32>
    %1065 = vector.shape_cast %1064 : vector<1x32xf32> to vector<32xf32>
    %1066 = vector.shape_cast %1065 : vector<32xf32> to vector<1x32xf32>
    %1067 = vector.broadcast %1066 : vector<1x32xf32> to vector<2x32xf32>
    %1068 = arith.addf %1063, %1067 : vector<2x32xf32>
    %cst_296 = arith.constant 0.176776692 : f32
    %1069 = vector.broadcast %cst_296 : f32 to vector<2x32xf32>
    %1070 = arith.mulf %1068, %1069 : vector<2x32xf32>
    %1071 = vector.shape_cast %1048 : vector<2x16x32xf32> to vector<32x32xf32>
    %cst_297 = arith.constant dense<0.000000e+00> : vector<32x32xf32>
    %1072 = tpu.matmul %1071, %1056, %cst_297 {dimension_numbers = #tpu.dot_dimension_numbers<[1], [0], [0], [1], [0, 0, 1, 1], [], []>} : vector<32x32xf32>, vector<32x32xf32>, vector<32x32xf32> -> vector<32x32xf32>
    %1073 = vector.extract_strided_slice %1060 {offsets = [1, 0], sizes = [1, 32], strides = [1, 1]} : vector<3x32xf32> to vector<1x32xf32>
    %1074 = vector.shape_cast %1073 : vector<1x32xf32> to vector<32xf32>
    %1075 = vector.shape_cast %1074 : vector<32xf32> to vector<1x32xf32>
    %1076 = vector.broadcast %1075 : vector<1x32xf32> to vector<32x32xf32>
    %1077 = arith.addf %1072, %1076 : vector<32x32xf32>
    %1078 = vector.shape_cast %1077 : vector<32x32xf32> to vector<2x16x32xf32>
    %cst_298 = arith.constant dense<0.000000e+00> : vector<32x32xf32>
    %1079 = tpu.matmul %1071, %1058, %cst_298 {dimension_numbers = #tpu.dot_dimension_numbers<[1], [0], [0], [1], [0, 0, 1, 1], [], []>} : vector<32x32xf32>, vector<32x32xf32>, vector<32x32xf32> -> vector<32x32xf32>
    %1080 = vector.extract_strided_slice %1060 {offsets = [2, 0], sizes = [1, 32], strides = [1, 1]} : vector<3x32xf32> to vector<1x32xf32>
    %1081 = vector.shape_cast %1080 : vector<1x32xf32> to vector<32xf32>
    %1082 = vector.shape_cast %1081 : vector<32xf32> to vector<1x32xf32>
    %1083 = vector.broadcast %1082 : vector<1x32xf32> to vector<32x32xf32>
    %1084 = arith.addf %1079, %1083 : vector<32x32xf32>
    %1085 = vector.shape_cast %1084 : vector<32x32xf32> to vector<2x16x32xf32>
    %1086 = tpu.iota {dimensions = array<i32: 1>} : vector<2x16xi32>
    %c0_i32_299 = arith.constant 0 : i32
    %1087 = vector.broadcast %c0_i32_299 : i32 to vector<2x16xi32>
    %1088 = arith.cmpi eq, %1086, %1087 : vector<2x16xi32>
    %cst_300 = arith.constant 1.000000e+00 : f32
    %1089 = vector.broadcast %cst_300 : f32 to vector<2x16xf32>
    %1090 = arith.select %1088, %1089, %1052 : vector<2x16xi1>, vector<2x16xf32>
    %1091 = vector.shape_cast %1070 : vector<2x32xf32> to vector<2x1x32xf32>
    "tpu.trace_start"() <{level = 10 : i32, message = "bqd,bkd->bqk"}> : () -> ()
    %cst_301 = arith.constant dense<0.000000e+00> : vector<2x1x16xf32>
    %1092 = tpu.matmul %1091, %1078, %cst_301 {dimension_numbers = #tpu.dot_dimension_numbers<[2], [2], [1], [1], [0, 0, 0, 1, 1, 1], [0], [0]>} : vector<2x1x32xf32>, vector<2x16x32xf32>, vector<2x1x16xf32> -> vector<2x1x16xf32>
    "tpu.trace_stop"() : () -> ()
    %cst_302 = arith.constant -1.000000e+09 : f32
    %1093 = vector.broadcast %cst_302 : f32 to vector<2x16xf32>
    %1094 = arith.mulf %1090, %1093 : vector<2x16xf32>
    %1095 = vector.shape_cast %1094 : vector<2x16xf32> to vector<2x1x16xf32>
    %1096 = arith.addf %1092, %1095 : vector<2x1x16xf32>
    %cst_303 = arith.constant dense<0xFF800000> : vector<2x1xf32>
    %1097 = vector.multi_reduction <maximumf>, %1096, %cst_303 [2] : vector<2x1x16xf32> to vector<2x1xf32>
    %1098 = vector.shape_cast %1097 : vector<2x1xf32> to vector<2x1x1xf32>
    %1099 = vector.broadcast %1098 : vector<2x1x1xf32> to vector<2x1x16xf32>
    %1100 = arith.subf %1096, %1099 : vector<2x1x16xf32>
    %1101 = math.exp %1100 : vector<2x1x16xf32>
    %cst_304 = arith.constant dense<0.000000e+00> : vector<2x1xf32>
    %1102 = vector.multi_reduction <add>, %1101, %cst_304 [2] : vector<2x1x16xf32> to vector<2x1xf32>
    %1103 = vector.shape_cast %1102 : vector<2x1xf32> to vector<2x1x1xf32>
    %1104 = tpu.reciprocal %1103 {approx = true} : vector<2x1x1xf32> -> vector<2x1x1xf32>
    %1105 = vector.broadcast %1104 : vector<2x1x1xf32> to vector<2x1x16xf32>
    %1106 = arith.mulf %1101, %1105 : vector<2x1x16xf32>
    %1107 = arith.addf %1085, %1050 : vector<2x16x32xf32>
    "tpu.trace_start"() <{level = 10 : i32, message = "bqk,bkd->bqd"}> : () -> ()
    %cst_305 = arith.constant dense<0.000000e+00> : vector<2x1x32xf32>
    %1108 = tpu.matmul %1106, %1107, %cst_305 {dimension_numbers = #tpu.dot_dimension_numbers<[2], [1], [1], [2], [0, 0, 0, 1, 1, 2], [0], [0]>} : vector<2x1x16xf32>, vector<2x16x32xf32>, vector<2x1x32xf32> -> vector<2x1x32xf32>
    "tpu.trace_stop"() : () -> ()
    %1109 = vector.shape_cast %1108 : vector<2x1x32xf32> to vector<2x32xf32>
    %c0_306 = arith.constant 0 : index
    %c0_307 = arith.constant 0 : index
    %1110 = vector.load %arg16[%c0_306, %c0_307] : memref<32x32xf32, #tpu.memory_space<vmem>>, vector<32x32xf32>
    %c0_308 = arith.constant 0 : index
    %c0_309 = arith.constant 0 : index
    %1111 = vector.load %arg17[%c0_308, %c0_309] : memref<1x32xf32, #tpu.memory_space<vmem>>, vector<1x32xf32>
    %c0_310 = arith.constant 0 : index
    %c0_311 = arith.constant 0 : index
    %1112 = vector.load %arg18[%c0_310, %c0_311] : memref<32x32xf32, #tpu.memory_space<vmem>>, vector<32x32xf32>
    %c0_312 = arith.constant 0 : index
    %c0_313 = arith.constant 0 : index
    %1113 = vector.load %arg19[%c0_312, %c0_313] : memref<1x32xf32, #tpu.memory_space<vmem>>, vector<1x32xf32>
    %c0_314 = arith.constant 0 : index
    %c0_315 = arith.constant 0 : index
    %1114 = vector.load %arg20[%c0_314, %c0_315] : memref<32x1xf32, #tpu.memory_space<vmem>>, vector<32x1xf32>
    %c0_316 = arith.constant 0 : index
    %c0_317 = arith.constant 0 : index
    %1115 = vector.load %arg21[%c0_316, %c0_317] : memref<1x1xf32, #tpu.memory_space<vmem>>, vector<1x1xf32>
    %cst_318 = arith.constant dense<0.000000e+00> : vector<2x32xf32>
    %1116 = tpu.matmul %554, %1110, %cst_318 {dimension_numbers = #tpu.dot_dimension_numbers<[1], [0], [0], [1], [0, 0, 1, 1], [], []>} : vector<2x32xf32>, vector<32x32xf32>, vector<2x32xf32> -> vector<2x32xf32>
    %1117 = vector.broadcast %1111 : vector<1x32xf32> to vector<2x32xf32>
    %1118 = arith.addf %1116, %1117 : vector<2x32xf32>
    %cst_319 = arith.constant dense<0.000000e+00> : vector<2x2xf32>
    %1119 = tpu.matmul %1118, %1109, %cst_319 {dimension_numbers = #tpu.dot_dimension_numbers<[1], [1], [0], [0], [0, 0, 1, 0], [], []>} : vector<2x32xf32>, vector<2x32xf32>, vector<2x2xf32> -> vector<2x2xf32>
    %cst_320 = arith.constant dense<0.000000e+00> : vector<2x32xf32>
    %1120 = tpu.matmul %507, %1112, %cst_320 {dimension_numbers = #tpu.dot_dimension_numbers<[1], [0], [0], [1], [0, 0, 1, 1], [], []>} : vector<2x32xf32>, vector<32x32xf32>, vector<2x32xf32> -> vector<2x32xf32>
    %1121 = vector.broadcast %1113 : vector<1x32xf32> to vector<2x32xf32>
    %1122 = arith.addf %1120, %1121 : vector<2x32xf32>
    %1123 = math.tanh %1122 : vector<2x32xf32>
    %cst_321 = arith.constant dense<0.000000e+00> : vector<2x1xf32>
    %1124 = tpu.matmul %1123, %1114, %cst_321 {dimension_numbers = #tpu.dot_dimension_numbers<[1], [0], [0], [1], [0, 0, 1, 1], [], []>} : vector<2x32xf32>, vector<32x1xf32>, vector<2x1xf32> -> vector<2x1xf32>
    %1125 = vector.broadcast %1115 : vector<1x1xf32> to vector<2x1xf32>
    %1126 = arith.addf %1124, %1125 : vector<2x1xf32>
    %cst_322 = arith.constant dense<0.000000e+00> : vector<2xf32>
    %1127 = vector.multi_reduction <add>, %1119, %cst_322 [1] : vector<2x2xf32> to vector<2xf32>
    %1128 = vector.shape_cast %1127 : vector<2xf32> to vector<2x1xf32>
    %cst_323 = arith.constant 2.000000e+00 : f32
    %1129 = vector.broadcast %cst_323 : f32 to vector<2x1xf32>
    %1130 = arith.divf %1128, %1129 : vector<2x1xf32>
    %1131 = arith.subf %1126, %1130 : vector<2x1xf32>
    %1132 = arith.mulf %1131, %1131 : vector<2x1xf32>
    %1133 = vector.shape_cast %1132 : vector<2x1xf32> to vector<1x2x1xf32>
    %cst_324 = arith.constant dense<0.000000e+00> : vector<1xf32>
    %1134 = vector.multi_reduction <add>, %1133, %cst_324 [1, 2] : vector<1x2x1xf32> to vector<1xf32>
    %1135 = vector.shape_cast %1134 : vector<1xf32> to vector<1x1x1xf32>
    %1136 = vector.extract %1135[0, 0, 0] : f32 from vector<1x1x1xf32>
    %cst_325 = arith.constant 2.000000e+00 : f32
    %1137 = arith.divf %1136, %cst_325 : f32
    %cst_326 = arith.constant dense<0xFF800000> : vector<2xf32>
    %1138 = vector.multi_reduction <maximumf>, %1119, %cst_326 [1] : vector<2x2xf32> to vector<2xf32>
    %1139 = vector.shape_cast %1138 : vector<2xf32> to vector<2x1xf32>
    %1140 = vector.broadcast %1139 : vector<2x1xf32> to vector<2x2xf32>
    %1141 = arith.subf %1119, %1140 : vector<2x2xf32>
    %1142 = math.exp %1141 : vector<2x2xf32>
    %cst_327 = arith.constant dense<0.000000e+00> : vector<2xf32>
    %1143 = vector.multi_reduction <add>, %1142, %cst_327 [1] : vector<2x2xf32> to vector<2xf32>
    %1144 = vector.shape_cast %1143 : vector<2xf32> to vector<2x1xf32>
    %1145 = math.log %1144 : vector<2x1xf32>
    %1146 = arith.addf %1139, %1145 : vector<2x1xf32>
    %1147 = vector.broadcast %1146 : vector<2x1xf32> to vector<2x2xf32>
    %1148 = arith.subf %1119, %1147 : vector<2x2xf32>
    %1149 = tpu.iota {dimensions = array<i32: 1>} : vector<2x2xi32>
    %1150 = tpu.iota {dimensions = array<i32: 0>} : vector<2x2xi32>
    %1151 = arith.cmpi eq, %1149, %1150 : vector<2x2xi32>
    %cst_328 = arith.constant 0.000000e+00 : f32
    %1152 = vector.broadcast %cst_328 : f32 to vector<2x2xf32>
    %1153 = arith.select %1151, %1148, %1152 : vector<2x2xi1>, vector<2x2xf32>
    %cst_329 = arith.constant dense<0.000000e+00> : vector<2xf32>
    %1154 = vector.multi_reduction <add>, %1153, %cst_329 [1] : vector<2x2xf32> to vector<2xf32>
    %1155 = vector.shape_cast %1154 : vector<2xf32> to vector<2x1xf32>
    %cst_330 = arith.constant 0.000000e+00 : f32
    %1156 = vector.broadcast %cst_330 : f32 to vector<2x1xf32>
    %1157 = arith.subf %1156, %1155 : vector<2x1xf32>
    %cst_331 = arith.constant dense<0.000000e+00> : vector<2xf32>
    %1158 = vector.multi_reduction <add>, %1148, %cst_331 [1] : vector<2x2xf32> to vector<2xf32>
    %1159 = vector.shape_cast %1158 : vector<2xf32> to vector<2x1xf32>
    %cst_332 = arith.constant 0.000000e+00 : f32
    %1160 = vector.broadcast %cst_332 : f32 to vector<2x1xf32>
    %1161 = arith.subf %1160, %1159 : vector<2x1xf32>
    %cst_333 = arith.constant 0.899999976 : f32
    %1162 = vector.broadcast %cst_333 : f32 to vector<2x1xf32>
    %1163 = arith.mulf %1162, %1157 : vector<2x1xf32>
    %cst_334 = arith.constant 5.000000e-02 : f32
    %1164 = vector.broadcast %cst_334 : f32 to vector<2x1xf32>
    %1165 = arith.mulf %1164, %1161 : vector<2x1xf32>
    %1166 = arith.addf %1163, %1165 : vector<2x1xf32>
    %1167 = vector.shape_cast %1166 : vector<2x1xf32> to vector<1x2x1xf32>
    %cst_335 = arith.constant dense<0.000000e+00> : vector<1xf32>
    %1168 = vector.multi_reduction <add>, %1167, %cst_335 [1, 2] : vector<1x2x1xf32> to vector<1xf32>
    %1169 = vector.shape_cast %1168 : vector<1xf32> to vector<1x1x1xf32>
    %1170 = vector.extract %1169[0, 0, 0] : f32 from vector<1x1x1xf32>
    %cst_336 = arith.constant 2.000000e+00 : f32
    %1171 = arith.divf %1170, %cst_336 : f32
    %1172 = arith.addf %1171, %1137 : f32
    %cst_337 = arith.constant dense<0xFF800000> : vector<2xf32>
    %1173 = vector.multi_reduction <maximumf>, %1148, %cst_337 [1] : vector<2x2xf32> to vector<2xf32>
    %1174 = vector.shape_cast %1173 : vector<2xf32> to vector<2x1xf32>
    %1175 = vector.broadcast %1174 : vector<2x1xf32> to vector<2x2xf32>
    %1176 = arith.cmpf oge, %1148, %1175 : vector<2x2xf32>
    %c2_i32 = arith.constant 2 : i32
    %1177 = vector.broadcast %c2_i32 : i32 to vector<2x2xi32>
    %1178 = arith.select %1176, %1149, %1177 : vector<2x2xi1>, vector<2x2xi32>
    %cst_338 = arith.constant dense<2147483647> : vector<2xi32>
    %1179 = vector.multi_reduction <minsi>, %1178, %cst_338 [1] : vector<2x2xi32> to vector<2xi32>
    %1180 = vector.shape_cast %1179 : vector<2xi32> to vector<2x1xi32>
    %1181 = tpu.iota {dimensions = array<i32: 0>} : vector<2x1xi32>
    %1182 = arith.cmpi eq, %1180, %1181 : vector<2x1xi32>
    %1183 = arith.extui %1182 : vector<2x1xi1> to vector<2x1xi32>
    %1184 = arith.sitofp %1183 : vector<2x1xi32> to vector<2x1xf32>
    %1185 = vector.shape_cast %1184 : vector<2x1xf32> to vector<1x2x1xf32>
    %cst_339 = arith.constant dense<0.000000e+00> : vector<1xf32>
    %1186 = vector.multi_reduction <add>, %1185, %cst_339 [1, 2] : vector<1x2x1xf32> to vector<1xf32>
    %1187 = vector.shape_cast %1186 : vector<1xf32> to vector<1x1x1xf32>
    %1188 = vector.extract %1187[0, 0, 0] : f32 from vector<1x1x1xf32>
    %cst_340 = arith.constant 2.000000e+00 : f32
    %1189 = arith.divf %1188, %cst_340 : f32
    %1190 = tpu.iota {dimensions = array<i32: 1>} : vector<1x128xi32>
    %c0_i32_341 = arith.constant 0 : i32
    %1191 = vector.broadcast %c0_i32_341 : i32 to vector<1x128xi32>
    %1192 = arith.cmpi eq, %1190, %1191 : vector<1x128xi32>
    %c1_i32 = arith.constant 1 : i32
    %1193 = vector.broadcast %c1_i32 : i32 to vector<1x128xi32>
    %1194 = arith.cmpi eq, %1190, %1193 : vector<1x128xi32>
    %cst_342 = arith.constant 0.000000e+00 : f32
    %1195 = vector.broadcast %1189 : f32 to vector<1x128xf32>
    %1196 = vector.broadcast %cst_342 : f32 to vector<1x128xf32>
    %1197 = arith.select %1194, %1195, %1196 : vector<1x128xi1>, vector<1x128xf32>
    %1198 = vector.broadcast %1172 : f32 to vector<1x128xf32>
    %1199 = arith.select %1192, %1198, %1197 : vector<1x128xi1>, vector<1x128xf32>
    %c0_343 = arith.constant 0 : index
    %c0_344 = arith.constant 0 : index
    %1200 = vector.load %arg22[%c0_343, %c0_344] : memref<1x128xf32, #tpu.memory_space<vmem>>, vector<1x128xf32>
    tpu.vector_store %arg22[%c0_343, %c0_344], %1199 {strides = array<i32>} : memref<1x128xf32, #tpu.memory_space<vmem>>, vector<1x128xf32>,
    return
  }
}

</mosaic_0001>

<llo_original>
// kernel: ranker_forward.1
$region0: #{ranker_forward.1}
  #allocation0 [shape = 'u32[]', space=smem, size = 0x4, offset = 0x4, fixed_abs, tag = 'smem constant byte address 0x4 - core index']
  #allocation1 [shape = 'u32[144,128]{1,0:T(1,128)}', space=vmem, size = 0x12000, scoped, tag = 'internal scratch']
  #allocation2 [shape = 'f32[1,1]{1,0:T(1,128)S(1)}', space=vmem, size = 0x200, scoped, tag = 'scoped memory for ranker_forward.1']
  %s0 = inlined_call_operand.vmem [shape: f32[2,2,16,32], index: 0, kind: input, shape index: {}]
  %s1 = inlined_call_operand.vmem [shape: f32[2,2,16,32], index: 1, kind: input, shape index: {}]
  %s2 = inlined_call_operand.vmem [shape: f32[2,2,16], index: 2, kind: input, shape index: {}]
  %s3 = inlined_call_operand.vmem [shape: bf16[2,2,32,32], index: 3, kind: input, shape index: {}]
  %s4 = inlined_call_operand.vmem [shape: bf16[2,2,32,32], index: 4, kind: input, shape index: {}]
  %s5 = inlined_call_operand.vmem [shape: bf16[2,2,32,32], index: 5, kind: input, shape index: {}]
  %s6 = inlined_call_operand.vmem [shape: bf16[2,2,32,32], index: 6, kind: input, shape index: {}]
  %s7 = inlined_call_operand.vmem [shape: bf16[2,2,32,64], index: 7, kind: input, shape index: {}]
  %s8 = inlined_call_operand.vmem [shape: bf16[2,2,64,32], index: 8, kind: input, shape index: {}]
  %s9 = inlined_call_operand.vmem [shape: f32[2,2,4,32], index: 9, kind: input, shape index: {}]
  %s10 = inlined_call_operand.vmem [shape: f32[2,2,64], index: 10, kind: input, shape index: {}]
  %s11 = inlined_call_operand.vmem [shape: f32[2,2,5,32], index: 11, kind: input, shape index: {}]
  %s12 = inlined_call_operand.vmem [shape: f32[2,32,32], index: 12, kind: input, shape index: {}]
  %s13 = inlined_call_operand.vmem [shape: f32[2,32,32], index: 13, kind: input, shape index: {}]
  %s14 = inlined_call_operand.vmem [shape: f32[2,32,32], index: 14, kind: input, shape index: {}]
  %s15 = inlined_call_operand.vmem [shape: f32[2,3,32], index: 15, kind: input, shape index: {}]
  %s16 = inlined_call_operand.vmem [shape: f32[32,32], index: 16, kind: input, shape index: {}]
  %s17 = inlined_call_operand.vmem [shape: f32[1,32], index: 17, kind: input, shape index: {}]
  %s18 = inlined_call_operand.vmem [shape: f32[32,32], index: 18, kind: input, shape index: {}]
  %s19 = inlined_call_operand.vmem [shape: f32[1,32], index: 19, kind: input, shape index: {}]
  %s20 = inlined_call_operand.vmem [shape: f32[32,1], index: 20, kind: input, shape index: {}]
  %s21 = inlined_call_operand.<no memory space> [shape: f32[1,1], index: 21, kind: input, shape index: {}]
  %s22 = inlined_call_operand.vmem [shape: f32[1,128], index: 22, kind: output, shape index: {}]
  %s23 = sld [smem:[#allocation0]]
  $region98: #{ranker_forward.1} parent=0
    _
  %s25 = ssub.s32 1, %s23
  %s26 = scalar_select 0, %s25, %s23
  %v27 = vstv %s21
  %28 = vst [vmem:[#allocation2] sm:$0x1] %v27
  // Predicated region
  $region2: #{ranker_forward.1} parent=0 // pred_check
    _
  $region3: #{ranker_forward.1} parent=0 // pred_check_branch
    %30 = sbr.rel (0) target = $region5
  $region4: #{ranker_forward.1} parent=0 // pred_region
    _
  $region5: #{ranker_forward.1} parent=0 // pred_fallthru
    _
  // Predicated region
  $region6: #{ranker_forward.1} parent=0 // pred_check
    _
  $region7: #{ranker_forward.1} parent=0 // pred_check_branch
    %32 = sbr.rel (0) target = $region9
  $region8: #{ranker_forward.1} parent=0 // pred_region
    _
  $region9: #{ranker_forward.1} parent=0 // pred_fallthru
    _
  // Predicated region
  $region10: #{ranker_forward.1} parent=0 // pred_check
    _
  $region11: #{ranker_forward.1} parent=0 // pred_check_branch
    %34 = sbr.rel (0) target = $region13
  $region12: #{ranker_forward.1} parent=0 // pred_region
    _
  $region13: #{ranker_forward.1} parent=0 // pred_fallthru
    _
  // Predicated region
  $region14: #{ranker_forward.1} parent=0 // pred_check
    _
  $region15: #{ranker_forward.1} parent=0 // pred_check_branch
    %36 = sbr.rel (0) target = $region17
  $region16: #{ranker_forward.1} parent=0 // pred_region
    _
  $region17: #{ranker_forward.1} parent=0 // pred_fallthru
    _
  // Predicated region
  $region18: #{ranker_forward.1} parent=0 // pred_check
    _
  $region19: #{ranker_forward.1} parent=0 // pred_check_branch
    %38 = sbr.rel (0) target = $region21
  $region20: #{ranker_forward.1} parent=0 // pred_region
    _
  $region21: #{ranker_forward.1} parent=0 // pred_fallthru
    _
  // Predicated region
  $region22: #{ranker_forward.1} parent=0 // pred_check
    _
  $region23: #{ranker_forward.1} parent=0 // pred_check_branch
    %40 = sbr.rel (0) target = $region25
  $region24: #{ranker_forward.1} parent=0 // pred_region
    _
  $region25: #{ranker_forward.1} parent=0 // pred_fallthru
    _
  // Predicated region
  $region26: #{ranker_forward.1} parent=0 // pred_check
    _
  $region27: #{ranker_forward.1} parent=0 // pred_check_branch
    %42 = sbr.rel (0) target = $region29
  $region28: #{ranker_forward.1} parent=0 // pred_region
    _
  $region29: #{ranker_forward.1} parent=0 // pred_fallthru
    _
  // Predicated region
  $region30: #{ranker_forward.1} parent=0 // pred_check
    _
  $region31: #{ranker_forward.1} parent=0 // pred_check_branch
    %44 = sbr.rel (0) target = $region33
  $region32: #{ranker_forward.1} parent=0 // pred_region
    _
  $region33: #{ranker_forward.1} parent=0 // pred_fallthru
    _
  // Predicated region
  $region34: #{ranker_forward.1} parent=0 // pred_check
    _
  $region35: #{ranker_forward.1} parent=0 // pred_check_branch
    %46 = sbr.rel (0) target = $region37
  $region36: #{ranker_forward.1} parent=0 // pred_region
    _
  $region37: #{ranker_forward.1} parent=0 // pred_fallthru
    _
  // Predicated region
  $region38: #{ranker_forward.1} parent=0 // pred_check
    _
  $region39: #{ranker_forward.1} parent=0 // pred_check_branch
    %48 = sbr.rel (0) target = $region41
  $region40: #{ranker_forward.1} parent=0 // pred_region
    _
  $region41: #{ranker_forward.1} parent=0 // pred_fallthru
    _
  // Predicated region
  $region42: #{ranker_forward.1} parent=0 // pred_check
    _
  $region43: #{ranker_forward.1} parent=0 // pred_check_branch
    %50 = sbr.rel (0) target = $region45
  $region44: #{ranker_forward.1} parent=0 // pred_region
    _
  $region45: #{ranker_forward.1} parent=0 // pred_fallthru
    _
  // Predicated region
  $region46: #{ranker_forward.1} parent=0 // pred_check
    _
  $region47: #{ranker_forward.1} parent=0 // pred_check_branch
    %52 = sbr.rel (0) target = $region49
  $region48: #{ranker_forward.1} parent=0 // pred_region
    _
  $region49: #{ranker_forward.1} parent=0 // pred_fallthru
    _
  // Predicated region
  $region50: #{ranker_forward.1} parent=0 // pred_check
    _
  $region51: #{ranker_forward.1} parent=0 // pred_check_branch
    %54 = sbr.rel (0) target = $region53
  $region52: #{ranker_forward.1} parent=0 // pred_region
    _
  $region53: #{ranker_forward.1} parent=0 // pred_fallthru
    _
  // Predicated region
  $region54: #{ranker_forward.1} parent=0 // pred_check
    _
  $region55: #{ranker_forward.1} parent=0 // pred_check_branch
    %56 = sbr.rel (0) target = $region57
  $region56: #{ranker_forward.1} parent=0 // pred_region
    _
  $region57: #{ranker_forward.1} parent=0 // pred_fallthru
    _
  // Predicated region
  $region58: #{ranker_forward.1} parent=0 // pred_check
    _
  $region59: #{ranker_forward.1} parent=0 // pred_check_branch
    %58 = sbr.rel (0) target = $region61
  $region60: #{ranker_forward.1} parent=0 // pred_region
    _
  $region61: #{ranker_forward.1} parent=0 // pred_fallthru
    _
  // Predicated region
  $region62: #{ranker_forward.1} parent=0 // pred_check
    _
  $region63: #{ranker_forward.1} parent=0 // pred_check_branch
    %60 = sbr.rel (0) target = $region65
  $region64: #{ranker_forward.1} parent=0 // pred_region
    _
  $region65: #{ranker_forward.1} parent=0 // pred_fallthru
    _
  // Predicated region
  $region66: #{ranker_forward.1} parent=0 // pred_check
    _
  $region67: #{ranker_forward.1} parent=0 // pred_check_branch
    %62 = sbr.rel (0) target = $region69
  $region68: #{ranker_forward.1} parent=0 // pred_region
    _
  $region69: #{ranker_forward.1} parent=0 // pred_fallthru
    _
  // Predicated region
  $region70: #{ranker_forward.1} parent=0 // pred_check
    _
  $region71: #{ranker_forward.1} parent=0 // pred_check_branch
    %64 = sbr.rel (0) target = $region73
  $region72: #{ranker_forward.1} parent=0 // pred_region
    _
  $region73: #{ranker_forward.1} parent=0 // pred_fallthru
    _
  // Predicated region
  $region74: #{ranker_forward.1} parent=0 // pred_check
    _
  $region75: #{ranker_forward.1} parent=0 // pred_check_branch
    %66 = sbr.rel (0) target = $region77
  $region76: #{ranker_forward.1} parent=0 // pred_region
    _
  $region77: #{ranker_forward.1} parent=0 // pred_fallthru
    _
  // Predicated region
  $region78: #{ranker_forward.1} parent=0 // pred_check
    _
  $region79: #{ranker_forward.1} parent=0 // pred_check_branch
    %68 = sbr.rel (0) target = $region81
  $region80: #{ranker_forward.1} parent=0 // pred_region
    _
  $region81: #{ranker_forward.1} parent=0 // pred_fallthru
    _
  // Predicated region
  $region82: #{ranker_forward.1} parent=0 // pred_check
    _
  $region83: #{ranker_forward.1} parent=0 // pred_check_branch
    %70 = sbr.rel (0) target = $region85
  $region84: #{ranker_forward.1} parent=0 // pred_region
    _
  $region85: #{ranker_forward.1} parent=0 // pred_fallthru
    _
  // Predicated region
  $region86: #{ranker_forward.1} parent=0 // pred_check
    _
  $region87: #{ranker_forward.1} parent=0 // pred_check_branch
    %72 = sbr.rel (0) target = $region89
  $region88: #{ranker_forward.1} parent=0 // pred_region
    _
  $region89: #{ranker_forward.1} parent=0 // pred_fallthru
    _
  %v74 = vld [vmem:[%s0] sm:$0xff]
  %v75 = vld [vmem:[%s0 + $0x8] sm:$0xff]
  %v76 = vld [vmem:[%s0 + $0x10] sm:$0xff]
  %v77 = vld [vmem:[%s0 + $0x18] sm:$0xff]
  %v78 = vld [vmem:[%s2] sm:$0x3]
  %v79 = vld [vmem:[%s3] sm:$0xf]
  %v80 = vld [vmem:[%s3 + $0x4] sm:$0xf]
  %v81 = vld [vmem:[%s3 + $0x8] sm:$0xf]
  %v82 = vld [vmem:[%s3 + $0xc] sm:$0xf]
  %v83 = vld [vmem:[%s3 + $0x10] sm:$0xf]
  %v84 = vld [vmem:[%s3 + $0x14] sm:$0xf]
  %v85 = vld [vmem:[%s3 + $0x18] sm:$0xf]
  %v86 = vld [vmem:[%s3 + $0x1c] sm:$0xf]
  %v87 = vld [vmem:[%s4] sm:$0xf]
  %v88 = vld [vmem:[%s4 + $0x4] sm:$0xf]
  %v89 = vld [vmem:[%s4 + $0x8] sm:$0xf]
  %v90 = vld [vmem:[%s4 + $0xc] sm:$0xf]
  %v91 = vld [vmem:[%s4 + $0x10] sm:$0xf]
  %v92 = vld [vmem:[%s4 + $0x14] sm:$0xf]
  %v93 = vld [vmem:[%s4 + $0x18] sm:$0xf]
  %v94 = vld [vmem:[%s4 + $0x1c] sm:$0xf]
  %v95 = vld [vmem:[%s5] sm:$0xf]
  %v96 = vld [vmem:[%s5 + $0x4] sm:$0xf]
  %v97 = vld [vmem:[%s5 + $0x8] sm:$0xf]
  %v98 = vld [vmem:[%s5 + $0xc] sm:$0xf]
  %v99 = vld [vmem:[%s5 + $0x10] sm:$0xf]
  %v100 = vld [vmem:[%s5 + $0x14] sm:$0xf]
  %v101 = vld [vmem:[%s5 + $0x18] sm:$0xf]
  %v102 = vld [vmem:[%s5 + $0x1c] sm:$0xf]
  %v103 = vld [vmem:[%s6] sm:$0xf]
  %v104 = vld [vmem:[%s6 + $0x4] sm:$0xf]
  %v105 = vld [vmem:[%s6 + $0x8] sm:$0xf]
  %v106 = vld [vmem:[%s6 + $0xc] sm:$0xf]
  %v107 = vld [vmem:[%s6 + $0x10] sm:$0xf]
  %v108 = vld [vmem:[%s6 + $0x14] sm:$0xf]
  %v109 = vld [vmem:[%s6 + $0x18] sm:$0xf]
  %v110 = vld [vmem:[%s6 + $0x1c] sm:$0xf]
  %v111 = vld [vmem:[%s7] sm:$0xf]
  %v112 = vld [vmem:[%s7 + $0x4] sm:$0xf]
  %v113 = vld [vmem:[%s7 + $0x8] sm:$0xf]
  %v114 = vld [vmem:[%s7 + $0xc] sm:$0xf]
  %v115 = vld [vmem:[%s7 + $0x10] sm:$0xf]
  %v116 = vld [vmem:[%s7 + $0x14] sm:$0xf]
  %v117 = vld [vmem:[%s7 + $0x18] sm:$0xf]
  %v118 = vld [vmem:[%s7 + $0x1c] sm:$0xf]
  %v119 = vld [vmem:[%s8] sm:$0xf]
  %v120 = vld [vmem:[%s8 + $0x4] sm:$0xf]
  %v121 = vld [vmem:[%s8 + $0x8] sm:$0xf]
  %v122 = vld [vmem:[%s8 + $0xc] sm:$0xf]
  %v123 = vld [vmem:[%s8 + $0x10] sm:$0xf]
  %v124 = vld [vmem:[%s8 + $0x14] sm:$0xf]
  %v125 = vld [vmem:[%s8 + $0x18] sm:$0xf]
  %v126 = vld [vmem:[%s8 + $0x1c] sm:$0xf]
  %v127 = vld [vmem:[%s8 + $0x20] sm:$0xf]
  %v128 = vld [vmem:[%s8 + $0x24] sm:$0xf]
  %v129 = vld [vmem:[%s8 + $0x28] sm:$0xf]
  %v130 = vld [vmem:[%s8 + $0x2c] sm:$0xf]
  %v131 = vld [vmem:[%s8 + $0x30] sm:$0xf]
  %v132 = vld [vmem:[%s8 + $0x34] sm:$0xf]
  %v133 = vld [vmem:[%s8 + $0x38] sm:$0xf]
  %v134 = vld [vmem:[%s8 + $0x3c] sm:$0xf]
  %v135 = vld [vmem:[%s9] sm:$0xf]
  %v136 = vld [vmem:[%s9 + $0x4] sm:$0xf]
  %v137 = vld [vmem:[%s10] sm:$0x3]
  %v138 = vld [vmem:[%s11] sm:$0x1f]
  %v139 = vld [vmem:[%s11 + $0x8] sm:$0x1f]
  %v140 = vmul.f32 %v78, -1e+09
  %v143 = vunpack.c.l.s4 1966171168
  %v144 = vunpack.c.0.s8 %v143
  %v145 = vlaneseq
  %v146 = vshrl.u32 %v145, 7
  %v147 = vsub.s32 %v144, %v146
  %v148 = vrot.slane %v140, %v147
  %v149 = vcombine.high %v148, %v148
  %v151 = vunpack.c.l.s4 1966171168
  %v152 = vunpack.c.0.s8 %v151
  %v153 = vlaneseq
  %v154 = vshrl.u32 %v153, 7
  %v155 = vsub.s32 %v152, %v154
  %v156 = vrot.slane %v148, %v155
  %v158 = vunpack.c.l.s4 1966171168
  %v159 = vunpack.c.0.s8 %v158
  %v160 = vlaneseq
  %v161 = vshrl.u32 %v160, 7
  %v162 = vsub.s32 %v159, %v161
  %v163 = vrot.slane %v149, %v162
  %v164 = vlaneseq
  %v165 = vand.u32 %v164, 127
  %vm166 = vcmp.ge.s32.totalorder %v165, 0
  %vm167 = vcmp.lt.s32.totalorder %v165, 8
  %vm168 = vmand %vm166, %vm167
  %v169 = vsel %vm168, 1, 0
  %v170 = vcvt.s32.f32 %v169
  %v171 = vpack.c.bf16 %v170, %v170
  %vm172 = vcmp.ge.s32.totalorder %v165, 8
  %vm173 = vcmp.lt.s32.totalorder %v165, 16
  %vm174 = vmand %vm172, %vm173
  %v175 = vsel %vm174, 1, 0
  %v176 = vcvt.s32.f32 %v175
  %v177 = vpack.c.bf16 %v176, %v176
  %vm178 = vcmp.ge.s32.totalorder %v165, 16
  %vm179 = vcmp.lt.s32.totalorder %v165, 24
  %vm180 = vmand %vm178, %vm179
  %v181 = vsel %vm180, 1, 0
  %v182 = vcvt.s32.f32 %v181
  %v183 = vpack.c.bf16 %v182, %v182
  %vm184 = vcmp.ge.s32.totalorder %v165, 24
  %vm185 = vcmp.lt.s32.totalorder %v165, 32
  %vm186 = vmand %vm184, %vm185
  %v187 = vsel %vm186, 1, 0
  %v188 = vcvt.s32.f32 %v187
  %v189 = vpack.c.bf16 %v188, %v188
  %v190 = vpack.c.bf16 %v75, %v74
  %v191 = vpack.c.bf16 %v77, %v76
  %v192 = vlaneseq
  %v193 = vshrl.u32 %v192, 7
  %v194 = vsub.s32 0, %v193
  %v195 = vrot.slane %v135, %v194
  %v200 = vunpack.c.l.b16 %v79
  %v201 = vunpack.c.l.b16 %v80
  %v202 = vunpack.c.l.b16 %v81
  %v203 = vunpack.c.l.b16 %v82
  %v204 = vpack.c.b16 %v201, %v200
  %v205 = vpack.c.b16 %v203, %v202
  %vm208 = vcmask 261120
  %v210 = vsel %vm208, %v190, 0
  %v213 = vsel %vm208, %v191, 0
  %215 = vmatprep.subr.bf16.mxu0 0
  %216 = vmatpush1.bf16.msra.mxu0 %v204
  %217 = vmatprep.subr.bf16.mxu0 0
  %218 = vmatpush1.bf16.msra.mxu0 %v205
  %219 = vmatprep.subr.bf16.mxu0 0
  %220 = vmatpush1.bf16.msra.mxu0 0
  %221 = vmatprep.subr.bf16.mxu0 0
  %222 = vmatpush1.bf16.msra.mxu0 0
  %223 = vmatprep.subr.bf16.mxu0 0
  %224 = vmatpush1.bf16.msra.mxu0 0
  %225 = vmatprep.subr.bf16.mxu0 0
  %226 = vmatpush1.bf16.msra.mxu0 0
  %227 = vmatprep.subr.bf16.mxu0 0
  %228 = vmatpush1.bf16.msra.mxu0 0
  %229 = vmatprep.subr.bf16.mxu0 0
  %230 = vmatpush1.bf16.msra.mxu0 0
  %231 = vmatprep.subr.bf16.mxu0 0
  %232 = vmatpush1.bf16.msra.mxu0 0
  %233 = vmatprep.subr.bf16.mxu0 0
  %234 = vmatpush1.bf16.msra.mxu0 0
  %235 = vmatprep.subr.bf16.mxu0 0
  %236 = vmatpush1.bf16.msra.mxu0 0
  %237 = vmatprep.subr.bf16.mxu0 0
  %238 = vmatpush1.bf16.msra.mxu0 0
  %239 = vmatprep.subr.bf16.mxu0 0
  %240 = vmatpush1.bf16.msra.mxu0 0
  %241 = vmatprep.subr.bf16.mxu0 0
  %242 = vmatpush1.bf16.msra.mxu0 0
  %243 = vmatprep.subr.bf16.mxu0 0
  %244 = vmatpush1.bf16.msra.mxu0 0
  %245 = vmatprep.subr.bf16.mxu0 0
  %246 = vmatpush1.bf16.msra.mxu0 0
  %247 = vmatprep.mubr.bf16.mxu0 0
  %248 = vmatmul.mubr.bf16.gmra.mrb[0].mxu0 %v210
  %v249 = vpop.f32.mrb[0].mxu0
  %v250 = vadd.f32 %v195, %v249
  %v251 = vpop.f32.mrb[0].mxu0
  %v252 = vpop.f32.mrb[0].mxu0
  %v253 = vadd.f32 %v195, %v252
  %v254 = vpop.f32.mrb[0].mxu0
  %255 = vmatprep.mubr.bf16.mxu0 0
  %256 = vmatmul.mubr.bf16.gmra.mrb[0].mxu0 %v213
  %v257 = vpop.f32.mrb[0].mxu0
  %v258 = vadd.f32 %v195, %v257
  %v259 = vpop.f32.mrb[0].mxu0
  %v260 = vpop.f32.mrb[0].mxu0
  %v261 = vadd.f32 %v195, %v260
  %v262 = vpop.f32.mrb[0].mxu0
  %263 = vdwg.mxu0
  %v264 = vlaneseq
  %v265 = vshrl.u32 %v264, 7
  %v266 = vsub.s32 1, %v265
  %v267 = vrot.slane %v135, %v266
  %v272 = vunpack.c.l.b16 %v87
  %v273 = vunpack.c.l.b16 %v88
  %v274 = vunpack.c.l.b16 %v89
  %v275 = vunpack.c.l.b16 %v90
  %v276 = vpack.c.b16 %v273, %v272
  %v277 = vpack.c.b16 %v275, %v274
  %280 = vmatprep.subr.bf16.mxu0 0
  %281 = vmatpush1.bf16.msra.mxu0 %v276
  %282 = vmatprep.subr.bf16.mxu0 0
  %283 = vmatpush1.bf16.msra.mxu0 %v277
  %284 = vmatprep.subr.bf16.mxu0 0
  %285 = vmatpush1.bf16.msra.mxu0 0
  %286 = vmatprep.subr.bf16.mxu0 0
  %287 = vmatpush1.bf16.msra.mxu0 0
  %288 = vmatprep.subr.bf16.mxu0 0
  %289 = vmatpush1.bf16.msra.mxu0 0
  %290 = vmatprep.subr.bf16.mxu0 0
  %291 = vmatpush1.bf16.msra.mxu0 0
  %292 = vmatprep.subr.bf16.mxu0 0
  %293 = vmatpush1.bf16.msra.mxu0 0
  %294 = vmatprep.subr.bf16.mxu0 0
  %295 = vmatpush1.bf16.msra.mxu0 0
  %296 = vmatprep.subr.bf16.mxu0 0
  %297 = vmatpush1.bf16.msra.mxu0 0
  %298 = vmatprep.subr.bf16.mxu0 0
  %299 = vmatpush1.bf16.msra.mxu0 0
  %300 = vmatprep.subr.bf16.mxu0 0
  %301 = vmatpush1.bf16.msra.mxu0 0
  %302 = vmatprep.subr.bf16.mxu0 0
  %303 = vmatpush1.bf16.msra.mxu0 0
  %304 = vmatprep.subr.bf16.mxu0 0
  %305 = vmatpush1.bf16.msra.mxu0 0
  %306 = vmatprep.subr.bf16.mxu0 0
  %307 = vmatpush1.bf16.msra.mxu0 0
  %308 = vmatprep.subr.bf16.mxu0 0
  %309 = vmatpush1.bf16.msra.mxu0 0
  %310 = vmatprep.subr.bf16.mxu0 0
  %311 = vmatpush1.bf16.msra.mxu0 0
  %312 = vmatprep.mubr.bf16.mxu0 0
  %313 = vmatmul.mubr.bf16.gmra.mrb[0].mxu0 %v210
  %v314 = vpop.f32.mrb[0].mxu0
  %v315 = vadd.f32 %v267, %v314
  %v316 = vpop.f32.mrb[0].mxu0
  %v317 = vpop.f32.mrb[0].mxu0
  %v318 = vadd.f32 %v267, %v317
  %v319 = vpop.f32.mrb[0].mxu0
  %320 = vmatprep.mubr.bf16.mxu0 0
  %321 = vmatmul.mubr.bf16.gmra.mrb[0].mxu0 %v213
  %v322 = vpop.f32.mrb[0].mxu0
  %v323 = vadd.f32 %v267, %v322
  %v324 = vpop.f32.mrb[0].mxu0
  %v325 = vpop.f32.mrb[0].mxu0
  %v326 = vadd.f32 %v267, %v325
  %v327 = vpop.f32.mrb[0].mxu0
  %328 = vdwg.mxu0
  %v329 = vlaneseq
  %v330 = vshrl.u32 %v329, 7
  %v331 = vsub.s32 2, %v330
  %v332 = vrot.slane %v135, %v331
  %v337 = vunpack.c.l.b16 %v95
  %v338 = vunpack.c.l.b16 %v96
  %v339 = vunpack.c.l.b16 %v97
  %v340 = vunpack.c.l.b16 %v98
  %v341 = vpack.c.b16 %v338, %v337
  %v342 = vpack.c.b16 %v340, %v339
  %345 = vmatprep.subr.bf16.mxu0 0
  %346 = vmatpush1.bf16.msra.mxu0 %v341
  %347 = vmatprep.subr.bf16.mxu0 0
  %348 = vmatpush1.bf16.msra.mxu0 %v342
  %349 = vmatprep.subr.bf16.mxu0 0
  %350 = vmatpush1.bf16.msra.mxu0 0
  %351 = vmatprep.subr.bf16.mxu0 0
  %352 = vmatpush1.bf16.msra.mxu0 0
  %353 = vmatprep.subr.bf16.mxu0 0
  %354 = vmatpush1.bf16.msra.mxu0 0
  %355 = vmatprep.subr.bf16.mxu0 0
  %356 = vmatpush1.bf16.msra.mxu0 0
  %357 = vmatprep.subr.bf16.mxu0 0
  %358 = vmatpush1.bf16.msra.mxu0 0
  %359 = vmatprep.subr.bf16.mxu0 0
  %360 = vmatpush1.bf16.msra.mxu0 0
  %361 = vmatprep.subr.bf16.mxu0 0
  %362 = vmatpush1.bf16.msra.mxu0 0
  %363 = vmatprep.subr.bf16.mxu0 0
  %364 = vmatpush1.bf16.msra.mxu0 0
  %365 = vmatprep.subr.bf16.mxu0 0
  %366 = vmatpush1.bf16.msra.mxu0 0
  %367 = vmatprep.subr.bf16.mxu0 0
  %368 = vmatpush1.bf16.msra.mxu0 0
  %369 = vmatprep.subr.bf16.mxu0 0
  %370 = vmatpush1.bf16.msra.mxu0 0
  %371 = vmatprep.subr.bf16.mxu0 0
  %372 = vmatpush1.bf16.msra.mxu0 0
  %373 = vmatprep.subr.bf16.mxu0 0
  %374 = vmatpush1.bf16.msra.mxu0 0
  %375 = vmatprep.subr.bf16.mxu0 0
  %376 = vmatpush1.bf16.msra.mxu0 0
  %377 = vmatprep.mubr.bf16.mxu0 0
  %378 = vmatmul.mubr.bf16.gmra.mrb[0].mxu0 %v210
  %v379 = vpop.f32.mrb[0].mxu0
  %v380 = vadd.f32 %v332, %v379
  %v381 = vpop.f32.mrb[0].mxu0
  %v382 = vpop.f32.mrb[0].mxu0
  %v383 = vadd.f32 %v332, %v382
  %v384 = vpop.f32.mrb[0].mxu0
  %385 = vmatprep.mubr.bf16.mxu0 0
  %386 = vmatmul.mubr.bf16.gmra.mrb[0].mxu0 %v213
  %v387 = vpop.f32.mrb[0].mxu0
  %v388 = vadd.f32 %v332, %v387
  %v389 = vpop.f32.mrb[0].mxu0
  %v390 = vpop.f32.mrb[0].mxu0
  %v391 = vadd.f32 %v332, %v390
  %v392 = vpop.f32.mrb[0].mxu0
  %393 = vdwg.mxu0
  %v394 = vpack.c.bf16 %v253, %v250
  %v395 = vpack.c.bf16 %v261, %v258
  %v396 = vpack.c.bf16 %v318, %v315
  %v397 = vpack.c.bf16 %v326, %v323
  %v398 = vpack.c.bf16 %v383, %v380
  %v399 = vpack.c.bf16 %v391, %v388
  %v400 = vmul.bf16 %v396, %v171
  %v401 = vmul.bf16 %v397, %v171
  %v402 = vmul.bf16 %v398, %v171
  %v403 = vmul.bf16 %v399, %v171
  %v405 = vsel %vm208, %v394, 0
  %v408 = vsel %vm208, %v400, 0
  %410 = vmatprep.subr.bf16.mxu0 0
  %411 = vmatpush1.bf16.xpose.msra.mxu0 %v408
  %412 = vmatprep.subr.bf16.mxu0 0
  %413 = vmatpush1.bf16.xpose.msra.mxu0 0
  %414 = vmatprep.subr.bf16.mxu0 0
  %415 = vmatpush1.bf16.xpose.msra.mxu0 0
  %416 = vmatprep.subr.bf16.mxu0 0
  %417 = vmatpush1.bf16.xpose.msra.mxu0 0
  %418 = vmatprep.subr.bf16.mxu0 0
  %419 = vmatpush1.bf16.xpose.msra.mxu0 0
  %420 = vmatprep.subr.bf16.mxu0 0
  %421 = vmatpush1.bf16.xpose.msra.mxu0 0
  %422 = vmatprep.subr.bf16.mxu0 0
  %423 = vmatpush1.bf16.xpose.msra.mxu0 0
  %424 = vmatprep.subr.bf16.mxu0 0
  %425 = vmatpush1.bf16.xpose.msra.mxu0 0
  %426 = vmatprep.subr.bf16.mxu0 0
  %427 = vmatpush1.bf16.xpose.msra.mxu0 0
  %428 = vmatprep.subr.bf16.mxu0 0
  %429 = vmatpush1.bf16.xpose.msra.mxu0 0
  %430 = vmatprep.subr.bf16.mxu0 0
  %431 = vmatpush1.bf16.xpose.msra.mxu0 0
  %432 = vmatprep.subr.bf16.mxu0 0
  %433 = vmatpush1.bf16.xpose.msra.mxu0 0
  %434 = vmatprep.subr.bf16.mxu0 0
  %435 = vmatpush1.bf16.xpose.msra.mxu0 0
  %436 = vmatprep.subr.bf16.mxu0 0
  %437 = vmatpush1.bf16.xpose.msra.mxu0 0
  %438 = vmatprep.subr.bf16.mxu0 0
  %439 = vmatpush1.bf16.xpose.msra.mxu0 0
  %440 = vmatprep.subr.bf16.mxu0 0
  %441 = vmatpush1.bf16.xpose.msra.mxu0 0
  %442 = vmatprep.mubr.bf16.mxu0 0
  %443 = vmatmul.mubr.bf16.gmra.mrb[0].mxu0 %v405
  %v444 = vpop.f32.mrb[0].mxu0
  %v445 = vadd.f32 0.0, %v444
  %v446 = vpop.f32.mrb[0].mxu0
  %v447 = vpop.f32.mrb[0].mxu0
  %v448 = vadd.f32 0.0, %v447
  %v449 = vpop.f32.mrb[0].mxu0
  %450 = vdwg.mxu0
  %v452 = vsel %vm208, %v395, 0
  %v455 = vsel %vm208, %v401, 0
  %457 = vmatprep.subr.bf16.mxu0 0
  %458 = vmatpush1.bf16.xpose.msra.mxu0 %v455
  %459 = vmatprep.subr.bf16.mxu0 0
  %460 = vmatpush1.bf16.xpose.msra.mxu0 0
  %461 = vmatprep.subr.bf16.mxu0 0
  %462 = vmatpush1.bf16.xpose.msra.mxu0 0
  %463 = vmatprep.subr.bf16.mxu0 0
  %464 = vmatpush1.bf16.xpose.msra.mxu0 0
  %465 = vmatprep.subr.bf16.mxu0 0
  %466 = vmatpush1.bf16.xpose.msra.mxu0 0
  %467 = vmatprep.subr.bf16.mxu0 0
  %468 = vmatpush1.bf16.xpose.msra.mxu0 0
  %469 = vmatprep.subr.bf16.mxu0 0
  %470 = vmatpush1.bf16.xpose.msra.mxu0 0
  %471 = vmatprep.subr.bf16.mxu0 0
  %472 = vmatpush1.bf16.xpose.msra.mxu0 0
  %473 = vmatprep.subr.bf16.mxu0 0
  %474 = vmatpush1.bf16.xpose.msra.mxu0 0
  %475 = vmatprep.subr.bf16.mxu0 0
  %476 = vmatpush1.bf16.xpose.msra.mxu0 0
  %477 = vmatprep.subr.bf16.mxu0 0
  %478 = vmatpush1.bf16.xpose.msra.mxu0 0
  %479 = vmatprep.subr.bf16.mxu0 0
  %480 = vmatpush1.bf16.xpose.msra.mxu0 0
  %481 = vmatprep.subr.bf16.mxu0 0
  %482 = vmatpush1.bf16.xpose.msra.mxu0 0
  %483 = vmatprep.subr.bf16.mxu0 0
  %484 = vmatpush1.bf16.xpose.msra.mxu0 0
  %485 = vmatprep.subr.bf16.mxu0 0
  %486 = vmatpush1.bf16.xpose.msra.mxu0 0
  %487 = vmatprep.subr.bf16.mxu0 0
  %488 = vmatpush1.bf16.xpose.msra.mxu0 0
  %489 = vmatprep.mubr.bf16.mxu0 0
  %490 = vmatmul.mubr.bf16.gmra.mrb[0].mxu0 %v452
  %v491 = vpop.f32.mrb[0].mxu0
  %v492 = vadd.f32 0.0, %v491
  %v493 = vpop.f32.mrb[0].mxu0
  %v494 = vpop.f32.mrb[0].mxu0
  %v495 = vadd.f32 0.0, %v494
  %v496 = vpop.f32.mrb[0].mxu0
  %497 = vdwg.mxu0
  %v498 = vmul.f32 %v445, 0.35355338
  %v499 = vmul.f32 %v448, 0.35355338
  %v500 = vmul.f32 %v492, 0.35355338
  %v501 = vmul.f32 %v495, 0.35355338
  %v502 = vlaneseq
  %v503 = vshrl.u32 %v502, 7
  %v504 = vsub.s32 0, %v503
  %v505 = vrot.slane %v156, %v504
  %v506 = vlaneseq
  %v507 = vshrl.u32 %v506, 7
  %v508 = vsub.s32 0, %v507
  %v509 = vrot.slane %v163, %v508
  %v512 = vadd.f32 %v498, %v505
  %v513 = vadd.f32 %v499, %v505
  %v514 = vadd.f32 %v500, %v509
  %v515 = vadd.f32 %v501, %v509
  %vm516 = vcmask 130048
  %v517 = vsel %vm516, %v512, -inf
  %518 = vmax.xlane.f32.xlu0 %v517
  %v519 = vpop.xlane.xlu0 %518
  %v520 = vsel %vm516, %v513, -inf
  %521 = vmax.xlane.f32.xlu0 %v520
  %v522 = vpop.xlane.xlu0 %521
  %v523 = vsel %vm516, %v514, -inf
  %524 = vmax.xlane.f32.xlu0 %v523
  %v525 = vpop.xlane.xlu0 %524
  %v526 = vsel %vm516, %v515, -inf
  %527 = vmax.xlane.f32.xlu0 %v526
  %v528 = vpop.xlane.xlu0 %527
  %v529 = vsub.f32 %v512, %v519
  %v530 = vsub.f32 %v513, %v522
  %v531 = vsub.f32 %v514, %v525
  %v532 = vsub.f32 %v515, %v528
  %v533 = vmul.f32 %v529, 1.442695
  %v534 = vpow.pop %v533
  %v535 = vmul.f32 %v530, 1.442695
  %v536 = vpow.pop %v535
  %v537 = vmul.f32 %v531, 1.442695
  %v538 = vpow.pop %v537
  %v539 = vmul.f32 %v532, 1.442695
  %v540 = vpow.pop %v539
  %v541 = vsel %vm516, %v534, 0.0
  %542 = vadd.xlane.f32.xlu0 %v541
  %v543 = vpop.xlane.xlu0 %542
  %v544 = vsel %vm516, %v536, 0.0
  %545 = vadd.xlane.f32.xlu0 %v544
  %v546 = vpop.xlane.xlu0 %545
  %v547 = vsel %vm516, %v538, 0.0
  %548 = vadd.xlane.f32.xlu0 %v547
  %v549 = vpop.xlane.xlu0 %548
  %v550 = vsel %vm516, %v540, 0.0
  %551 = vadd.xlane.f32.xlu0 %v550
  %v552 = vpop.xlane.xlu0 %551
  %v553 = vrcp.pop %v543
  %v554 = vrcp.pop %v546
  %v555 = vrcp.pop %v549
  %v556 = vrcp.pop %v552
  %v557 = vmul.f32 %v534, %v553
  %v558 = vmul.f32 %v536, %v554
  %v559 = vmul.f32 %v538, %v555
  %v560 = vmul.f32 %v540, %v556
  %v561 = vpack.c.bf16 %v558, %v557
  %v562 = vpack.c.bf16 %v560, %v559
  %v563 = vmul.bf16 %v396, %v177
  %v564 = vmul.bf16 %v397, %v177
  %v565 = vmul.bf16 %v398, %v177
  %v566 = vmul.bf16 %v399, %v177
  %v568 = vsel %vm208, %v563, 0
  %570 = vmatprep.subr.bf16.mxu0 0
  %571 = vmatpush1.bf16.xpose.msra.mxu0 %v568
  %572 = vmatprep.subr.bf16.mxu0 0
  %573 = vmatpush1.bf16.xpose.msra.mxu0 0
  %574 = vmatprep.subr.bf16.mxu0 0
  %575 = vmatpush1.bf16.xpose.msra.mxu0 0
  %576 = vmatprep.subr.bf16.mxu0 0
  %577 = vmatpush1.bf16.xpose.msra.mxu0 0
  %578 = vmatprep.subr.bf16.mxu0 0
  %579 = vmatpush1.bf16.xpose.msra.mxu0 0
  %580 = vmatprep.subr.bf16.mxu0 0
  %581 = vmatpush1.bf16.xpose.msra.mxu0 0
  %582 = vmatprep.subr.bf16.mxu0 0
  %583 = vmatpush1.bf16.xpose.msra.mxu0 0
  %584 = vmatprep.subr.bf16.mxu0 0
  %585 = vmatpush1.bf16.xpose.msra.mxu0 0
  %586 = vmatprep.subr.bf16.mxu0 0
  %587 = vmatpush1.bf16.xpose.msra.mxu0 0
  %588 = vmatprep.subr.bf16.mxu0 0
  %589 = vmatpush1.bf16.xpose.msra.mxu0 0
  %590 = vmatprep.subr.bf16.mxu0 0
  %591 = vmatpush1.bf16.xpose.msra.mxu0 0
  %592 = vmatprep.subr.bf16.mxu0 0
  %593 = vmatpush1.bf16.xpose.msra.mxu0 0
  %594 = vmatprep.subr.bf16.mxu0 0
  %595 = vmatpush1.bf16.xpose.msra.mxu0 0
  %596 = vmatprep.subr.bf16.mxu0 0
  %597 = vmatpush1.bf16.xpose.msra.mxu0 0
  %598 = vmatprep.subr.bf16.mxu0 0
  %599 = vmatpush1.bf16.xpose.msra.mxu0 0
  %600 = vmatprep.subr.bf16.mxu0 0
  %601 = vmatpush1.bf16.xpose.msra.mxu0 0
  %602 = vmatprep.mubr.bf16.mxu0 0
  %603 = vmatmul.mubr.bf16.gmra.mrb[0].mxu0 %v405
  %v604 = vpop.f32.mrb[0].mxu0
  %v605 = vadd.f32 0.0, %v604
  %v606 = vpop.f32.mrb[0].mxu0
  %v607 = vpop.f32.mrb[0].mxu0
  %v608 = vadd.f32 0.0, %v607
  %v609 = vpop.f32.mrb[0].mxu0
  %610 = vdwg.mxu0
  %v612 = vsel %vm208, %v564, 0
  %614 = vmatprep.subr.bf16.mxu0 0
  %615 = vmatpush1.bf16.xpose.msra.mxu0 %v612
  %616 = vmatprep.subr.bf16.mxu0 0
  %617 = vmatpush1.bf16.xpose.msra.mxu0 0
  %618 = vmatprep.subr.bf16.mxu0 0
  %619 = vmatpush1.bf16.xpose.msra.mxu0 0
  %620 = vmatprep.subr.bf16.mxu0 0
  %621 = vmatpush1.bf16.xpose.msra.mxu0 0
  %622 = vmatprep.subr.bf16.mxu0 0
  %623 = vmatpush1.bf16.xpose.msra.mxu0 0
  %624 = vmatprep.subr.bf16.mxu0 0
  %625 = vmatpush1.bf16.xpose.msra.mxu0 0
  %626 = vmatprep.subr.bf16.mxu0 0
  %627 = vmatpush1.bf16.xpose.msra.mxu0 0
  %628 = vmatprep.subr.bf16.mxu0 0
  %629 = vmatpush1.bf16.xpose.msra.mxu0 0
  %630 = vmatprep.subr.bf16.mxu0 0
  %631 = vmatpush1.bf16.xpose.msra.mxu0 0
  %632 = vmatprep.subr.bf16.mxu0 0
  %633 = vmatpush1.bf16.xpose.msra.mxu0 0
  %634 = vmatprep.subr.bf16.mxu0 0
  %635 = vmatpush1.bf16.xpose.msra.mxu0 0
  %636 = vmatprep.subr.bf16.mxu0 0
  %637 = vmatpush1.bf16.xpose.msra.mxu0 0
  %638 = vmatprep.subr.bf16.mxu0 0
  %639 = vmatpush1.bf16.xpose.msra.mxu0 0
  %640 = vmatprep.subr.bf16.mxu0 0
  %641 = vmatpush1.bf16.xpose.msra.mxu0 0
  %642 = vmatprep.subr.bf16.mxu0 0
  %643 = vmatpush1.bf16.xpose.msra.mxu0 0
  %644 = vmatprep.subr.bf16.mxu0 0
  %645 = vmatpush1.bf16.xpose.msra.mxu0 0
  %646 = vmatprep.mubr.bf16.mxu0 0
  %647 = vmatmul.mubr.bf16.gmra.mrb[0].mxu0 %v452
  %v648 = vpop.f32.mrb[0].mxu0
  %v649 = vadd.f32 0.0, %v648
  %v650 = vpop.f32.mrb[0].mxu0
  %v651 = vpop.f32.mrb[0].mxu0
  %v652 = vadd.f32 0.0, %v651
  %v653 = vpop.f32.mrb[0].mxu0
  %654 = vdwg.mxu0
  %v655 = vmul.f32 %v605, 0.35355338
  %v656 = vmul.f32 %v608, 0.35355338
  %v657 = vmul.f32 %v649, 0.35355338
  %v658 = vmul.f32 %v652, 0.35355338
  %v659 = vadd.f32 %v655, %v505
  %v660 = vadd.f32 %v656, %v505
  %v661 = vadd.f32 %v657, %v509
  %v662 = vadd.f32 %v658, %v509
  %v663 = vsel %vm516, %v659, -inf
  %664 = vmax.xlane.f32.xlu0 %v663
  %v665 = vpop.xlane.xlu0 %664
  %v666 = vsel %vm516, %v660, -inf
  %667 = vmax.xlane.f32.xlu0 %v666
  %v668 = vpop.xlane.xlu0 %667
  %v669 = vsel %vm516, %v661, -inf
  %670 = vmax.xlane.f32.xlu0 %v669
  %v671 = vpop.xlane.xlu0 %670
  %v672 = vsel %vm516, %v662, -inf
  %673 = vmax.xlane.f32.xlu0 %v672
  %v674 = vpop.xlane.xlu0 %673
  %v675 = vsub.f32 %v659, %v665
  %v676 = vsub.f32 %v660, %v668
  %v677 = vsub.f32 %v661, %v671
  %v678 = vsub.f32 %v662, %v674
  %v679 = vmul.f32 %v675, 1.442695
  %v680 = vpow.pop %v679
  %v681 = vmul.f32 %v676, 1.442695
  %v682 = vpow.pop %v681
  %v683 = vmul.f32 %v677, 1.442695
  %v684 = vpow.pop %v683
  %v685 = vmul.f32 %v678, 1.442695
  %v686 = vpow.pop %v685
  %v687 = vsel %vm516, %v680, 0.0
  %688 = vadd.xlane.f32.xlu0 %v687
  %v689 = vpop.xlane.xlu0 %688
  %v690 = vsel %vm516, %v682, 0.0
  %691 = vadd.xlane.f32.xlu0 %v690
  %v692 = vpop.xlane.xlu0 %691
  %v693 = vsel %vm516, %v684, 0.0
  %694 = vadd.xlane.f32.xlu0 %v693
  %v695 = vpop.xlane.xlu0 %694
  %v696 = vsel %vm516, %v686, 0.0
  %697 = vadd.xlane.f32.xlu0 %v696
  %v698 = vpop.xlane.xlu0 %697
  %v699 = vrcp.pop %v689
  %v700 = vrcp.pop %v692
  %v701 = vrcp.pop %v695
  %v702 = vrcp.pop %v698
  %v703 = vmul.f32 %v680, %v699
  %v704 = vmul.f32 %v682, %v700
  %v705 = vmul.f32 %v684, %v701
  %v706 = vmul.f32 %v686, %v702
  %v707 = vpack.c.bf16 %v704, %v703
  %v708 = vpack.c.bf16 %v706, %v705
  %v710 = vsel %vm516, %v707, 0
  %712 = vmatprep.subr.bf16.mxu0 0
  %713 = vmatpush1.bf16.msra.mxu0 %v565
  %714 = vmatprep.subr.bf16.mxu0 0
  %715 = vmatpush1.bf16.msra.mxu0 0
  %716 = vmatprep.subr.bf16.mxu0 0
  %717 = vmatpush1.bf16.msra.mxu0 0
  %718 = vmatprep.subr.bf16.mxu0 0
  %719 = vmatpush1.bf16.msra.mxu0 0
  %720 = vmatprep.subr.bf16.mxu0 0
  %721 = vmatpush1.bf16.msra.mxu0 0
  %722 = vmatprep.subr.bf16.mxu0 0
  %723 = vmatpush1.bf16.msra.mxu0 0
  %724 = vmatprep.subr.bf16.mxu0 0
  %725 = vmatpush1.bf16.msra.mxu0 0
  %726 = vmatprep.subr.bf16.mxu0 0
  %727 = vmatpush1.bf16.msra.mxu0 0
  %728 = vmatprep.subr.bf16.mxu0 0
  %729 = vmatpush1.bf16.msra.mxu0 0
  %730 = vmatprep.subr.bf16.mxu0 0
  %731 = vmatpush1.bf16.msra.mxu0 0
  %732 = vmatprep.subr.bf16.mxu0 0
  %733 = vmatpush1.bf16.msra.mxu0 0
  %734 = vmatprep.subr.bf16.mxu0 0
  %735 = vmatpush1.bf16.msra.mxu0 0
  %736 = vmatprep.subr.bf16.mxu0 0
  %737 = vmatpush1.bf16.msra.mxu0 0
  %738 = vmatprep.subr.bf16.mxu0 0
  %739 = vmatpush1.bf16.msra.mxu0 0
  %740 = vmatprep.subr.bf16.mxu0 0
  %741 = vmatpush1.bf16.msra.mxu0 0
  %742 = vmatprep.subr.bf16.mxu0 0
  %743 = vmatpush1.bf16.msra.mxu0 0
  %744 = vmatprep.mubr.bf16.mxu0 0
  %745 = vmatmul.mubr.bf16.gmra.mrb[0].mxu0 %v710
  %v746 = vpop.f32.mrb[0].mxu0
  %v747 = vadd.f32 0.0, %v746
  %v748 = vpop.f32.mrb[0].mxu0
  %v749 = vpop.f32.mrb[0].mxu0
  %v750 = vadd.f32 0.0, %v749
  %v751 = vpop.f32.mrb[0].mxu0
  %752 = vdwg.mxu0
  %v754 = vsel %vm516, %v708, 0
  %756 = vmatprep.subr.bf16.mxu0 0
  %757 = vmatpush1.bf16.msra.mxu0 %v566
  %758 = vmatprep.subr.bf16.mxu0 0
  %759 = vmatpush1.bf16.msra.mxu0 0
  %760 = vmatprep.subr.bf16.mxu0 0
  %761 = vmatpush1.bf16.msra.mxu0 0
  %762 = vmatprep.subr.bf16.mxu0 0
  %763 = vmatpush1.bf16.msra.mxu0 0
  %764 = vmatprep.subr.bf16.mxu0 0
  %765 = vmatpush1.bf16.msra.mxu0 0
  %766 = vmatprep.subr.bf16.mxu0 0
  %767 = vmatpush1.bf16.msra.mxu0 0
  %768 = vmatprep.subr.bf16.mxu0 0
  %769 = vmatpush1.bf16.msra.mxu0 0
  %770 = vmatprep.subr.bf16.mxu0 0
  %771 = vmatpush1.bf16.msra.mxu0 0
  %772 = vmatprep.subr.bf16.mxu0 0
  %773 = vmatpush1.bf16.msra.mxu0 0
  %774 = vmatprep.subr.bf16.mxu0 0
  %775 = vmatpush1.bf16.msra.mxu0 0
  %776 = vmatprep.subr.bf16.mxu0 0
  %777 = vmatpush1.bf16.msra.mxu0 0
  %778 = vmatprep.subr.bf16.mxu0 0
  %779 = vmatpush1.bf16.msra.mxu0 0
  %780 = vmatprep.subr.bf16.mxu0 0
  %781 = vmatpush1.bf16.msra.mxu0 0
  %782 = vmatprep.subr.bf16.mxu0 0
  %783 = vmatpush1.bf16.msra.mxu0 0
  %784 = vmatprep.subr.bf16.mxu0 0
  %785 = vmatpush1.bf16.msra.mxu0 0
  %786 = vmatprep.subr.bf16.mxu0 0
  %787 = vmatpush1.bf16.msra.mxu0 0
  %788 = vmatprep.mubr.bf16.mxu0 0
  %789 = vmatmul.mubr.bf16.gmra.mrb[0].mxu0 %v754
  %v790 = vpop.f32.mrb[0].mxu0
  %v791 = vadd.f32 0.0, %v790
  %v792 = vpop.f32.mrb[0].mxu0
  %v793 = vpop.f32.mrb[0].mxu0
  %v794 = vadd.f32 0.0, %v793
  %v795 = vpop.f32.mrb[0].mxu0
  %796 = vdwg.mxu0
  %v798 = vsel %vm516, %v561, 0
  %800 = vmatprep.subr.bf16.mxu0 0
  %801 = vmatpush1.bf16.msra.mxu0 %v402
  %802 = vmatprep.subr.bf16.mxu0 0
  %803 = vmatpush1.bf16.msra.mxu0 0
  %804 = vmatprep.subr.bf16.mxu0 0
  %805 = vmatpush1.bf16.msra.mxu0 0
  %806 = vmatprep.subr.bf16.mxu0 0
  %807 = vmatpush1.bf16.msra.mxu0 0
  %808 = vmatprep.subr.bf16.mxu0 0
  %809 = vmatpush1.bf16.msra.mxu0 0
  %810 = vmatprep.subr.bf16.mxu0 0
  %811 = vmatpush1.bf16.msra.mxu0 0
  %812 = vmatprep.subr.bf16.mxu0 0
  %813 = vmatpush1.bf16.msra.mxu0 0
  %814 = vmatprep.subr.bf16.mxu0 0
  %815 = vmatpush1.bf16.msra.mxu0 0
  %816 = vmatprep.subr.bf16.mxu0 0
  %817 = vmatpush1.bf16.msra.mxu0 0
  %818 = vmatprep.subr.bf16.mxu0 0
  %819 = vmatpush1.bf16.msra.mxu0 0
  %820 = vmatprep.subr.bf16.mxu0 0
  %821 = vmatpush1.bf16.msra.mxu0 0
  %822 = vmatprep.subr.bf16.mxu0 0
  %823 = vmatpush1.bf16.msra.mxu0 0
  %824 = vmatprep.subr.bf16.mxu0 0
  %825 = vmatpush1.bf16.msra.mxu0 0
  %826 = vmatprep.subr.bf16.mxu0 0
  %827 = vmatpush1.bf16.msra.mxu0 0
  %828 = vmatprep.subr.bf16.mxu0 0
  %829 = vmatpush1.bf16.msra.mxu0 0
  %830 = vmatprep.subr.bf16.mxu0 0
  %831 = vmatpush1.bf16.msra.mxu0 0
  %832 = vmatprep.mubr.bf16.mxu0 0
  %833 = vmatmul.mubr.bf16.gmra.mrb[0].mxu0 %v798
  %v834 = vpop.f32.mrb[0].mxu0
  %v835 = vadd.f32 %v747, %v834
  %v836 = vpop.f32.mrb[0].mxu0
  %v837 = vpop.f32.mrb[0].mxu0
  %v838 = vadd.f32 %v750, %v837
  %v839 = vpop.f32.mrb[0].mxu0
  %840 = vdwg.mxu0
  %v842 = vsel %vm516, %v562, 0
  %844 = vmatprep.subr.bf16.mxu0 0
  %845 = vmatpush1.bf16.msra.mxu0 %v403
  %846 = vmatprep.subr.bf16.mxu0 0
  %847 = vmatpush1.bf16.msra.mxu0 0
  %848 = vmatprep.subr.bf16.mxu0 0
  %849 = vmatpush1.bf16.msra.mxu0 0
  %850 = vmatprep.subr.bf16.mxu0 0
  %851 = vmatpush1.bf16.msra.mxu0 0
  %852 = vmatprep.subr.bf16.mxu0 0
  %853 = vmatpush1.bf16.msra.mxu0 0
  %854 = vmatprep.subr.bf16.mxu0 0
  %855 = vmatpush1.bf16.msra.mxu0 0
  %856 = vmatprep.subr.bf16.mxu0 0
  %857 = vmatpush1.bf16.msra.mxu0 0
  %858 = vmatprep.subr.bf16.mxu0 0
  %859 = vmatpush1.bf16.msra.mxu0 0
  %860 = vmatprep.subr.bf16.mxu0 0
  %861 = vmatpush1.bf16.msra.mxu0 0
  %862 = vmatprep.subr.bf16.mxu0 0
  %863 = vmatpush1.bf16.msra.mxu0 0
  %864 = vmatprep.subr.bf16.mxu0 0
  %865 = vmatpush1.bf16.msra.mxu0 0
  %866 = vmatprep.subr.bf16.mxu0 0
  %867 = vmatpush1.bf16.msra.mxu0 0
  %868 = vmatprep.subr.bf16.mxu0 0
  %869 = vmatpush1.bf16.msra.mxu0 0
  %870 = vmatprep.subr.bf16.mxu0 0
  %871 = vmatpush1.bf16.msra.mxu0 0
  %872 = vmatprep.subr.bf16.mxu0 0
  %873 = vmatpush1.bf16.msra.mxu0 0
  %874 = vmatprep.subr.bf16.mxu0 0
  %875 = vmatpush1.bf16.msra.mxu0 0
  %876 = vmatprep.mubr.bf16.mxu0 0
  %877 = vmatmul.mubr.bf16.gmra.mrb[0].mxu0 %v842
  %v878 = vpop.f32.mrb[0].mxu0
  %v879 = vadd.f32 %v791, %v878
  %v880 = vpop.f32.mrb[0].mxu0
  %v881 = vpop.f32.mrb[0].mxu0
  %v882 = vadd.f32 %v794, %v881
  %v883 = vpop.f32.mrb[0].mxu0
  %884 = vdwg.mxu0
  %v885 = vmul.bf16 %v396, %v183
  %v886 = vmul.bf16 %v397, %v183
  %v887 = vmul.bf16 %v398, %v183
  %v888 = vmul.bf16 %v399, %v183
  %v890 = vsel %vm208, %v885, 0
  %892 = vmatprep.subr.bf16.mxu0 0
  %893 = vmatpush1.bf16.xpose.msra.mxu0 %v890
  %894 = vmatprep.subr.bf16.mxu0 0
  %895 = vmatpush1.bf16.xpose.msra.mxu0 0
  %896 = vmatprep.subr.bf16.mxu0 0
  %897 = vmatpush1.bf16.xpose.msra.mxu0 0
  %898 = vmatprep.subr.bf16.mxu0 0
  %899 = vmatpush1.bf16.xpose.msra.mxu0 0
  %900 = vmatprep.subr.bf16.mxu0 0
  %901 = vmatpush1.bf16.xpose.msra.mxu0 0
  %902 = vmatprep.subr.bf16.mxu0 0
  %903 = vmatpush1.bf16.xpose.msra.mxu0 0
  %904 = vmatprep.subr.bf16.mxu0 0
  %905 = vmatpush1.bf16.xpose.msra.mxu0 0
  %906 = vmatprep.subr.bf16.mxu0 0
  %907 = vmatpush1.bf16.xpose.msra.mxu0 0
  %908 = vmatprep.subr.bf16.mxu0 0
  %909 = vmatpush1.bf16.xpose.msra.mxu0 0
  %910 = vmatprep.subr.bf16.mxu0 0
  %911 = vmatpush1.bf16.xpose.msra.mxu0 0
  %912 = vmatprep.subr.bf16.mxu0 0
  %913 = vmatpush1.bf16.xpose.msra.mxu0 0
  %914 = vmatprep.subr.bf16.mxu0 0
  %915 = vmatpush1.bf16.xpose.msra.mxu0 0
  %916 = vmatprep.subr.bf16.mxu0 0
  %917 = vmatpush1.bf16.xpose.msra.mxu0 0
  %918 = vmatprep.subr.bf16.mxu0 0
  %919 = vmatpush1.bf16.xpose.msra.mxu0 0
  %920 = vmatprep.subr.bf16.mxu0 0
  %921 = vmatpush1.bf16.xpose.msra.mxu0 0
  %922 = vmatprep.subr.bf16.mxu0 0
  %923 = vmatpush1.bf16.xpose.msra.mxu0 0
  %924 = vmatprep.mubr.bf16.mxu0 0
  %925 = vmatmul.mubr.bf16.gmra.mrb[0].mxu0 %v405
  %v926 = vpop.f32.mrb[0].mxu0
  %v927 = vadd.f32 0.0, %v926
  %v928 = vpop.f32.mrb[0].mxu0
  %v929 = vpop.f32.mrb[0].mxu0
  %v930 = vadd.f32 0.0, %v929
  %v931 = vpop.f32.mrb[0].mxu0
  %932 = vdwg.mxu0
  %v934 = vsel %vm208, %v886, 0
  %936 = vmatprep.subr.bf16.mxu0 0
  %937 = vmatpush1.bf16.xpose.msra.mxu0 %v934
  %938 = vmatprep.subr.bf16.mxu0 0
  %939 = vmatpush1.bf16.xpose.msra.mxu0 0
  %940 = vmatprep.subr.bf16.mxu0 0
  %941 = vmatpush1.bf16.xpose.msra.mxu0 0
  %942 = vmatprep.subr.bf16.mxu0 0
  %943 = vmatpush1.bf16.xpose.msra.mxu0 0
  %944 = vmatprep.subr.bf16.mxu0 0
  %945 = vmatpush1.bf16.xpose.msra.mxu0 0
  %946 = vmatprep.subr.bf16.mxu0 0
  %947 = vmatpush1.bf16.xpose.msra.mxu0 0
  %948 = vmatprep.subr.bf16.mxu0 0
  %949 = vmatpush1.bf16.xpose.msra.mxu0 0
  %950 = vmatprep.subr.bf16.mxu0 0
  %951 = vmatpush1.bf16.xpose.msra.mxu0 0
  %952 = vmatprep.subr.bf16.mxu0 0
  %953 = vmatpush1.bf16.xpose.msra.mxu0 0
  %954 = vmatprep.subr.bf16.mxu0 0
  %955 = vmatpush1.bf16.xpose.msra.mxu0 0
  %956 = vmatprep.subr.bf16.mxu0 0
  %957 = vmatpush1.bf16.xpose.msra.mxu0 0
  %958 = vmatprep.subr.bf16.mxu0 0
  %959 = vmatpush1.bf16.xpose.msra.mxu0 0
  %960 = vmatprep.subr.bf16.mxu0 0
  %961 = vmatpush1.bf16.xpose.msra.mxu0 0
  %962 = vmatprep.subr.bf16.mxu0 0
  %963 = vmatpush1.bf16.xpose.msra.mxu0 0
  %964 = vmatprep.subr.bf16.mxu0 0
  %965 = vmatpush1.bf16.xpose.msra.mxu0 0
  %966 = vmatprep.subr.bf16.mxu0 0
  %967 = vmatpush1.bf16.xpose.msra.mxu0 0
  %968 = vmatprep.mubr.bf16.mxu0 0
  %969 = vmatmul.mubr.bf16.gmra.mrb[0].mxu0 %v452
  %v970 = vpop.f32.mrb[0].mxu0
  %v971 = vadd.f32 0.0, %v970
  %v972 = vpop.f32.mrb[0].mxu0
  %v973 = vpop.f32.mrb[0].mxu0
  %v974 = vadd.f32 0.0, %v973
  %v975 = vpop.f32.mrb[0].mxu0
  %976 = vdwg.mxu0
  %v977 = vmul.f32 %v927, 0.35355338
  %v978 = vmul.f32 %v930, 0.35355338
  %v979 = vmul.f32 %v971, 0.35355338
  %v980 = vmul.f32 %v974, 0.35355338
  %v981 = vadd.f32 %v977, %v505
  %v982 = vadd.f32 %v978, %v505
  %v983 = vadd.f32 %v979, %v509
  %v984 = vadd.f32 %v980, %v509
  %v985 = vsel %vm516, %v981, -inf
  %986 = vmax.xlane.f32.xlu0 %v985
  %v987 = vpop.xlane.xlu0 %986
  %v988 = vsel %vm516, %v982, -inf
  %989 = vmax.xlane.f32.xlu0 %v988
  %v990 = vpop.xlane.xlu0 %989
  %v991 = vsel %vm516, %v983, -inf
  %992 = vmax.xlane.f32.xlu0 %v991
  %v993 = vpop.xlane.xlu0 %992
  %v994 = vsel %vm516, %v984, -inf
  %995 = vmax.xlane.f32.xlu0 %v994
  %v996 = vpop.xlane.xlu0 %995
  %v997 = vsub.f32 %v981, %v987
  %v998 = vsub.f32 %v982, %v990
  %v999 = vsub.f32 %v983, %v993
  %v1000 = vsub.f32 %v984, %v996
  %v1001 = vmul.f32 %v997, 1.442695
  %v1002 = vpow.pop %v1001
  %v1003 = vmul.f32 %v998, 1.442695
  %v1004 = vpow.pop %v1003
  %v1005 = vmul.f32 %v999, 1.442695
  %v1006 = vpow.pop %v1005
  %v1007 = vmul.f32 %v1000, 1.442695
  %v1008 = vpow.pop %v1007
  %v1009 = vsel %vm516, %v1002, 0.0
  %1010 = vadd.xlane.f32.xlu0 %v1009
  %v1011 = vpop.xlane.xlu0 %1010
  %v1012 = vsel %vm516, %v1004, 0.0
  %1013 = vadd.xlane.f32.xlu0 %v1012
  %v1014 = vpop.xlane.xlu0 %1013
  %v1015 = vsel %vm516, %v1006, 0.0
  %1016 = vadd.xlane.f32.xlu0 %v1015
  %v1017 = vpop.xlane.xlu0 %1016
  %v1018 = vsel %vm516, %v1008, 0.0
  %1019 = vadd.xlane.f32.xlu0 %v1018
  %v1020 = vpop.xlane.xlu0 %1019
  %v1021 = vrcp.pop %v1011
  %v1022 = vrcp.pop %v1014
  %v1023 = vrcp.pop %v1017
  %v1024 = vrcp.pop %v1020
  %v1025 = vmul.f32 %v1002, %v1021
  %v1026 = vmul.f32 %v1004, %v1022
  %v1027 = vmul.f32 %v1006, %v1023
  %v1028 = vmul.f32 %v1008, %v1024
  %v1029 = vpack.c.bf16 %v1026, %v1025
  %v1030 = vpack.c.bf16 %v1028, %v1027
  %v1032 = vsel %vm516, %v1029, 0
  %1034 = vmatprep.subr.bf16.mxu0 0
  %1035 = vmatpush1.bf16.msra.mxu0 %v887
  %1036 = vmatprep.subr.bf16.mxu0 0
  %1037 = vmatpush1.bf16.msra.mxu0 0
  %1038 = vmatprep.subr.bf16.mxu0 0
  %1039 = vmatpush1.bf16.msra.mxu0 0
  %1040 = vmatprep.subr.bf16.mxu0 0
  %1041 = vmatpush1.bf16.msra.mxu0 0
  %1042 = vmatprep.subr.bf16.mxu0 0
  %1043 = vmatpush1.bf16.msra.mxu0 0
  %1044 = vmatprep.subr.bf16.mxu0 0
  %1045 = vmatpush1.bf16.msra.mxu0 0
  %1046 = vmatprep.subr.bf16.mxu0 0
  %1047 = vmatpush1.bf16.msra.mxu0 0
  %1048 = vmatprep.subr.bf16.mxu0 0
  %1049 = vmatpush1.bf16.msra.mxu0 0
  %1050 = vmatprep.subr.bf16.mxu0 0
  %1051 = vmatpush1.bf16.msra.mxu0 0
  %1052 = vmatprep.subr.bf16.mxu0 0
  %1053 = vmatpush1.bf16.msra.mxu0 0
  %1054 = vmatprep.subr.bf16.mxu0 0
  %1055 = vmatpush1.bf16.msra.mxu0 0
  %1056 = vmatprep.subr.bf16.mxu0 0
  %1057 = vmatpush1.bf16.msra.mxu0 0
  %1058 = vmatprep.subr.bf16.mxu0 0
  %1059 = vmatpush1.bf16.msra.mxu0 0
  %1060 = vmatprep.subr.bf16.mxu0 0
  %1061 = vmatpush1.bf16.msra.mxu0 0
  %1062 = vmatprep.subr.bf16.mxu0 0
  %1063 = vmatpush1.bf16.msra.mxu0 0
  %1064 = vmatprep.subr.bf16.mxu0 0
  %1065 = vmatpush1.bf16.msra.mxu0 0
  %1066 = vmatprep.mubr.bf16.mxu0 0
  %1067 = vmatmul.mubr.bf16.gmra.mrb[0].mxu0 %v1032
  %v1068 = vpop.f32.mrb[0].mxu0
  %v1069 = vadd.f32 0.0, %v1068
  %v1070 = vpop.f32.mrb[0].mxu0
  %v1071 = vpop.f32.mrb[0].mxu0
  %v1072 = vadd.f32 0.0, %v1071
  %v1073 = vpop.f32.mrb[0].mxu0
  %1074 = vdwg.mxu0
  %v1076 = vsel %vm516, %v1030, 0
  %1078 = vmatprep.subr.bf16.mxu0 0
  %1079 = vmatpush1.bf16.msra.mxu0 %v888
  %1080 = vmatprep.subr.bf16.mxu0 0
  %1081 = vmatpush1.bf16.msra.mxu0 0
  %1082 = vmatprep.subr.bf16.mxu0 0
  %1083 = vmatpush1.bf16.msra.mxu0 0
  %1084 = vmatprep.subr.bf16.mxu0 0
  %1085 = vmatpush1.bf16.msra.mxu0 0
  %1086 = vmatprep.subr.bf16.mxu0 0
  %1087 = vmatpush1.bf16.msra.mxu0 0
  %1088 = vmatprep.subr.bf16.mxu0 0
  %1089 = vmatpush1.bf16.msra.mxu0 0
  %1090 = vmatprep.subr.bf16.mxu0 0
  %1091 = vmatpush1.bf16.msra.mxu0 0
  %1092 = vmatprep.subr.bf16.mxu0 0
  %1093 = vmatpush1.bf16.msra.mxu0 0
  %1094 = vmatprep.subr.bf16.mxu0 0
  %1095 = vmatpush1.bf16.msra.mxu0 0
  %1096 = vmatprep.subr.bf16.mxu0 0
  %1097 = vmatpush1.bf16.msra.mxu0 0
  %1098 = vmatprep.subr.bf16.mxu0 0
  %1099 = vmatpush1.bf16.msra.mxu0 0
  %1100 = vmatprep.subr.bf16.mxu0 0
  %1101 = vmatpush1.bf16.msra.mxu0 0
  %1102 = vmatprep.subr.bf16.mxu0 0
  %1103 = vmatpush1.bf16.msra.mxu0 0
  %1104 = vmatprep.subr.bf16.mxu0 0
  %1105 = vmatpush1.bf16.msra.mxu0 0
  %1106 = vmatprep.subr.bf16.mxu0 0
  %1107 = vmatpush1.bf16.msra.mxu0 0
  %1108 = vmatprep.subr.bf16.mxu0 0
  %1109 = vmatpush1.bf16.msra.mxu0 0
  %1110 = vmatprep.mubr.bf16.mxu0 0
  %1111 = vmatmul.mubr.bf16.gmra.mrb[0].mxu0 %v1076
  %v1112 = vpop.f32.mrb[0].mxu0
  %v1113 = vadd.f32 0.0, %v1112
  %v1114 = vpop.f32.mrb[0].mxu0
  %v1115 = vpop.f32.mrb[0].mxu0
  %v1116 = vadd.f32 0.0, %v1115
  %v1117 = vpop.f32.mrb[0].mxu0
  %1118 = vdwg.mxu0
  %v1119 = vadd.f32 %v835, %v1069
  %v1120 = vadd.f32 %v838, %v1072
  %v1121 = vadd.f32 %v879, %v1113
  %v1122 = vadd.f32 %v882, %v1116
  %v1123 = vmul.bf16 %v396, %v189
  %v1124 = vmul.bf16 %v397, %v189
  %v1125 = vmul.bf16 %v398, %v189
  %v1126 = vmul.bf16 %v399, %v189
  %v1128 = vsel %vm208, %v1123, 0
  %1130 = vmatprep.subr.bf16.mxu0 0
  %1131 = vmatpush1.bf16.xpose.msra.mxu0 %v1128
  %1132 = vmatprep.subr.bf16.mxu0 0
  %1133 = vmatpush1.bf16.xpose.msra.mxu0 0
  %1134 = vmatprep.subr.bf16.mxu0 0
  %1135 = vmatpush1.bf16.xpose.msra.mxu0 0
  %1136 = vmatprep.subr.bf16.mxu0 0
  %1137 = vmatpush1.bf16.xpose.msra.mxu0 0
  %1138 = vmatprep.subr.bf16.mxu0 0
  %1139 = vmatpush1.bf16.xpose.msra.mxu0 0
  %1140 = vmatprep.subr.bf16.mxu0 0
  %1141 = vmatpush1.bf16.xpose.msra.mxu0 0
  %1142 = vmatprep.subr.bf16.mxu0 0
  %1143 = vmatpush1.bf16.xpose.msra.mxu0 0
  %1144 = vmatprep.subr.bf16.mxu0 0
  %1145 = vmatpush1.bf16.xpose.msra.mxu0 0
  %1146 = vmatprep.subr.bf16.mxu0 0
  %1147 = vmatpush1.bf16.xpose.msra.mxu0 0
  %1148 = vmatprep.subr.bf16.mxu0 0
  %1149 = vmatpush1.bf16.xpose.msra.mxu0 0
  %1150 = vmatprep.subr.bf16.mxu0 0
  %1151 = vmatpush1.bf16.xpose.msra.mxu0 0
  %1152 = vmatprep.subr.bf16.mxu0 0
  %1153 = vmatpush1.bf16.xpose.msra.mxu0 0
  %1154 = vmatprep.subr.bf16.mxu0 0
  %1155 = vmatpush1.bf16.xpose.msra.mxu0 0
  %1156 = vmatprep.subr.bf16.mxu0 0
  %1157 = vmatpush1.bf16.xpose.msra.mxu0 0
  %1158 = vmatprep.subr.bf16.mxu0 0
  %1159 = vmatpush1.bf16.xpose.msra.mxu0 0
  %1160 = vmatprep.subr.bf16.mxu0 0
  %1161 = vmatpush1.bf16.xpose.msra.mxu0 0
  %1162 = vmatprep.mubr.bf16.mxu0 0
  %1163 = vmatmul.mubr.bf16.gmra.mrb[0].mxu0 %v405
  %v1164 = vpop.f32.mrb[0].mxu0
  %v1165 = vadd.f32 0.0, %v1164
  %v1166 = vpop.f32.mrb[0].mxu0
  %v1167 = vpop.f32.mrb[0].mxu0
  %v1168 = vadd.f32 0.0, %v1167
  %v1169 = vpop.f32.mrb[0].mxu0
  %1170 = vdwg.mxu0
  %v1172 = vsel %vm208, %v1124, 0
  %1174 = vmatprep.subr.bf16.mxu0 0
  %1175 = vmatpush1.bf16.xpose.msra.mxu0 %v1172
  %1176 = vmatprep.subr.bf16.mxu0 0
  %1177 = vmatpush1.bf16.xpose.msra.mxu0 0
  %1178 = vmatprep.subr.bf16.mxu0 0
  %1179 = vmatpush1.bf16.xpose.msra.mxu0 0
  %1180 = vmatprep.subr.bf16.mxu0 0
  %1181 = vmatpush1.bf16.xpose.msra.mxu0 0
  %1182 = vmatprep.subr.bf16.mxu0 0
  %1183 = vmatpush1.bf16.xpose.msra.mxu0 0
  %1184 = vmatprep.subr.bf16.mxu0 0
  %1185 = vmatpush1.bf16.xpose.msra.mxu0 0
  %1186 = vmatprep.subr.bf16.mxu0 0
  %1187 = vmatpush1.bf16.xpose.msra.mxu0 0
  %1188 = vmatprep.subr.bf16.mxu0 0
  %1189 = vmatpush1.bf16.xpose.msra.mxu0 0
  %1190 = vmatprep.subr.bf16.mxu0 0
  %1191 = vmatpush1.bf16.xpose.msra.mxu0 0
  %1192 = vmatprep.subr.bf16.mxu0 0
  %1193 = vmatpush1.bf16.xpose.msra.mxu0 0
  %1194 = vmatprep.subr.bf16.mxu0 0
  %1195 = vmatpush1.bf16.xpose.msra.mxu0 0
  %1196 = vmatprep.subr.bf16.mxu0 0
  %1197 = vmatpush1.bf16.xpose.msra.mxu0 0
  %1198 = vmatprep.subr.bf16.mxu0 0
  %1199 = vmatpush1.bf16.xpose.msra.mxu0 0
  %1200 = vmatprep.subr.bf16.mxu0 0
  %1201 = vmatpush1.bf16.xpose.msra.mxu0 0
  %1202 = vmatprep.subr.bf16.mxu0 0
  %1203 = vmatpush1.bf16.xpose.msra.mxu0 0
  %1204 = vmatprep.subr.bf16.mxu0 0
  %1205 = vmatpush1.bf16.xpose.msra.mxu0 0
  %1206 = vmatprep.mubr.bf16.mxu0 0
  %1207 = vmatmul.mubr.bf16.gmra.mrb[0].mxu0 %v452
  %v1208 = vpop.f32.mrb[0].mxu0
  %v1209 = vadd.f32 0.0, %v1208
  %v1210 = vpop.f32.mrb[0].mxu0
  %v1211 = vpop.f32.mrb[0].mxu0
  %v1212 = vadd.f32 0.0, %v1211
  %v1213 = vpop.f32.mrb[0].mxu0
  %1214 = vdwg.mxu0
  %v1215 = vmul.f32 %v1165, 0.35355338
  %v1216 = vmul.f32 %v1168, 0.35355338
  %v1217 = vmul.f32 %v1209, 0.35355338
  %v1218 = vmul.f32 %v1212, 0.35355338
  %v1219 = vadd.f32 %v1215, %v505
  %v1220 = vadd.f32 %v1216, %v505
  %v1221 = vadd.f32 %v1217, %v509
  %v1222 = vadd.f32 %v1218, %v509
  %v1223 = vsel %vm516, %v1219, -inf
  %1224 = vmax.xlane.f32.xlu0 %v1223
  %v1225 = vpop.xlane.xlu0 %1224
  %v1226 = vsel %vm516, %v1220, -inf
  %1227 = vmax.xlane.f32.xlu0 %v1226
  %v1228 = vpop.xlane.xlu0 %1227
  %v1229 = vsel %vm516, %v1221, -inf
  %1230 = vmax.xlane.f32.xlu0 %v1229
  %v1231 = vpop.xlane.xlu0 %1230
  %v1232 = vsel %vm516, %v1222, -inf
  %1233 = vmax.xlane.f32.xlu0 %v1232
  %v1234 = vpop.xlane.xlu0 %1233
  %v1235 = vsub.f32 %v1219, %v1225
  %v1236 = vsub.f32 %v1220, %v1228
  %v1237 = vsub.f32 %v1221, %v1231
  %v1238 = vsub.f32 %v1222, %v1234
  %v1239 = vmul.f32 %v1235, 1.442695
  %v1240 = vpow.pop %v1239
  %v1241 = vmul.f32 %v1236, 1.442695
  %v1242 = vpow.pop %v1241
  %v1243 = vmul.f32 %v1237, 1.442695
  %v1244 = vpow.pop %v1243
  %v1245 = vmul.f32 %v1238, 1.442695
  %v1246 = vpow.pop %v1245
  %v1247 = vsel %vm516, %v1240, 0.0
  %1248 = vadd.xlane.f32.xlu0 %v1247
  %v1249 = vpop.xlane.xlu0 %1248
  %v1250 = vsel %vm516, %v1242, 0.0
  %1251 = vadd.xlane.f32.xlu0 %v1250
  %v1252 = vpop.xlane.xlu0 %1251
  %v1253 = vsel %vm516, %v1244, 0.0
  %1254 = vadd.xlane.f32.xlu0 %v1253
  %v1255 = vpop.xlane.xlu0 %1254
  %v1256 = vsel %vm516, %v1246, 0.0
  %1257 = vadd.xlane.f32.xlu0 %v1256
  %v1258 = vpop.xlane.xlu0 %1257
  %v1259 = vrcp.pop %v1249
  %v1260 = vrcp.pop %v1252
  %v1261 = vrcp.pop %v1255
  %v1262 = vrcp.pop %v1258
  %v1263 = vmul.f32 %v1240, %v1259
  %v1264 = vmul.f32 %v1242, %v1260
  %v1265 = vmul.f32 %v1244, %v1261
  %v1266 = vmul.f32 %v1246, %v1262
  %v1267 = vpack.c.bf16 %v1264, %v1263
  %v1268 = vpack.c.bf16 %v1266, %v1265
  %v1270 = vsel %vm516, %v1267, 0
  %1272 = vmatprep.subr.bf16.mxu0 0
  %1273 = vmatpush1.bf16.msra.mxu0 %v1125
  %1274 = vmatprep.subr.bf16.mxu0 0
  %1275 = vmatpush1.bf16.msra.mxu0 0
  %1276 = vmatprep.subr.bf16.mxu0 0
  %1277 = vmatpush1.bf16.msra.mxu0 0
  %1278 = vmatprep.subr.bf16.mxu0 0
  %1279 = vmatpush1.bf16.msra.mxu0 0
  %1280 = vmatprep.subr.bf16.mxu0 0
  %1281 = vmatpush1.bf16.msra.mxu0 0
  %1282 = vmatprep.subr.bf16.mxu0 0
  %1283 = vmatpush1.bf16.msra.mxu0 0
  %1284 = vmatprep.subr.bf16.mxu0 0
  %1285 = vmatpush1.bf16.msra.mxu0 0
  %1286 = vmatprep.subr.bf16.mxu0 0
  %1287 = vmatpush1.bf16.msra.mxu0 0
  %1288 = vmatprep.subr.bf16.mxu0 0
  %1289 = vmatpush1.bf16.msra.mxu0 0
  %1290 = vmatprep.subr.bf16.mxu0 0
  %1291 = vmatpush1.bf16.msra.mxu0 0
  %1292 = vmatprep.subr.bf16.mxu0 0
  %1293 = vmatpush1.bf16.msra.mxu0 0
  %1294 = vmatprep.subr.bf16.mxu0 0
  %1295 = vmatpush1.bf16.msra.mxu0 0
  %1296 = vmatprep.subr.bf16.mxu0 0
  %1297 = vmatpush1.bf16.msra.mxu0 0
  %1298 = vmatprep.subr.bf16.mxu0 0
  %1299 = vmatpush1.bf16.msra.mxu0 0
  %1300 = vmatprep.subr.bf16.mxu0 0
  %1301 = vmatpush1.bf16.msra.mxu0 0
  %1302 = vmatprep.subr.bf16.mxu0 0
  %1303 = vmatpush1.bf16.msra.mxu0 0
  %1304 = vmatprep.mubr.bf16.mxu0 0
  %1305 = vmatmul.mubr.bf16.gmra.mrb[0].mxu0 %v1270
  %v1306 = vpop.f32.mrb[0].mxu0
  %v1307 = vadd.f32 0.0, %v1306
  %v1308 = vpop.f32.mrb[0].mxu0
  %v1309 = vpop.f32.mrb[0].mxu0
  %v1310 = vadd.f32 0.0, %v1309
  %v1311 = vpop.f32.mrb[0].mxu0
  %1312 = vdwg.mxu0
  %v1314 = vsel %vm516, %v1268, 0
  %1316 = vmatprep.subr.bf16.mxu0 0
  %1317 = vmatpush1.bf16.msra.mxu0 %v1126
  %1318 = vmatprep.subr.bf16.mxu0 0
  %1319 = vmatpush1.bf16.msra.mxu0 0
  %1320 = vmatprep.subr.bf16.mxu0 0
  %1321 = vmatpush1.bf16.msra.mxu0 0
  %1322 = vmatprep.subr.bf16.mxu0 0
  %1323 = vmatpush1.bf16.msra.mxu0 0
  %1324 = vmatprep.subr.bf16.mxu0 0
  %1325 = vmatpush1.bf16.msra.mxu0 0
  %1326 = vmatprep.subr.bf16.mxu0 0
  %1327 = vmatpush1.bf16.msra.mxu0 0
  %1328 = vmatprep.subr.bf16.mxu0 0
  %1329 = vmatpush1.bf16.msra.mxu0 0
  %1330 = vmatprep.subr.bf16.mxu0 0
  %1331 = vmatpush1.bf16.msra.mxu0 0
  %1332 = vmatprep.subr.bf16.mxu0 0
  %1333 = vmatpush1.bf16.msra.mxu0 0
  %1334 = vmatprep.subr.bf16.mxu0 0
  %1335 = vmatpush1.bf16.msra.mxu0 0
  %1336 = vmatprep.subr.bf16.mxu0 0
  %1337 = vmatpush1.bf16.msra.mxu0 0
  %1338 = vmatprep.subr.bf16.mxu0 0
  %1339 = vmatpush1.bf16.msra.mxu0 0
  %1340 = vmatprep.subr.bf16.mxu0 0
  %1341 = vmatpush1.bf16.msra.mxu0 0
  %1342 = vmatprep.subr.bf16.mxu0 0
  %1343 = vmatpush1.bf16.msra.mxu0 0
  %1344 = vmatprep.subr.bf16.mxu0 0
  %1345 = vmatpush1.bf16.msra.mxu0 0
  %1346 = vmatprep.subr.bf16.mxu0 0
  %1347 = vmatpush1.bf16.msra.mxu0 0
  %1348 = vmatprep.mubr.bf16.mxu0 0
  %1349 = vmatmul.mubr.bf16.gmra.mrb[0].mxu0 %v1314
  %v1350 = vpop.f32.mrb[0].mxu0
  %v1351 = vadd.f32 0.0, %v1350
  %v1352 = vpop.f32.mrb[0].mxu0
  %v1353 = vpop.f32.mrb[0].mxu0
  %v1354 = vadd.f32 0.0, %v1353
  %v1355 = vpop.f32.mrb[0].mxu0
  %1356 = vdwg.mxu0
  %v1357 = vadd.f32 %v1119, %v1307
  %v1358 = vadd.f32 %v1120, %v1310
  %v1359 = vadd.f32 %v1121, %v1351
  %v1360 = vadd.f32 %v1122, %v1354
  %v1361 = vpack.c.bf16 %v1358, %v1357
  %v1362 = vpack.c.bf16 %v1360, %v1359
  %v1363 = vlaneseq
  %v1364 = vshrl.u32 %v1363, 7
  %v1365 = vsub.s32 3, %v1364
  %v1366 = vrot.slane %v135, %v1365
  %v1371 = vunpack.c.l.b16 %v103
  %v1372 = vunpack.c.l.b16 %v104
  %v1373 = vunpack.c.l.b16 %v105
  %v1374 = vunpack.c.l.b16 %v106
  %v1375 = vpack.c.b16 %v1372, %v1371
  %v1376 = vpack.c.b16 %v1374, %v1373
  %v1380 = vsel %vm208, %v1361, 0
  %v1383 = vsel %vm208, %v1362, 0
  %1385 = vmatprep.subr.bf16.mxu0 0
  %1386 = vmatpush1.bf16.msra.mxu0 %v1375
  %1387 = vmatprep.subr.bf16.mxu0 0
  %1388 = vmatpush1.bf16.msra.mxu0 %v1376
  %1389 = vmatprep.subr.bf16.mxu0 0
  %1390 = vmatpush1.bf16.msra.mxu0 0
  %1391 = vmatprep.subr.bf16.mxu0 0
  %1392 = vmatpush1.bf16.msra.mxu0 0
  %1393 = vmatprep.subr.bf16.mxu0 0
  %1394 = vmatpush1.bf16.msra.mxu0 0
  %1395 = vmatprep.subr.bf16.mxu0 0
  %1396 = vmatpush1.bf16.msra.mxu0 0
  %1397 = vmatprep.subr.bf16.mxu0 0
  %1398 = vmatpush1.bf16.msra.mxu0 0
  %1399 = vmatprep.subr.bf16.mxu0 0
  %1400 = vmatpush1.bf16.msra.mxu0 0
  %1401 = vmatprep.subr.bf16.mxu0 0
  %1402 = vmatpush1.bf16.msra.mxu0 0
  %1403 = vmatprep.subr.bf16.mxu0 0
  %1404 = vmatpush1.bf16.msra.mxu0 0
  %1405 = vmatprep.subr.bf16.mxu0 0
  %1406 = vmatpush1.bf16.msra.mxu0 0
  %1407 = vmatprep.subr.bf16.mxu0 0
  %1408 = vmatpush1.bf16.msra.mxu0 0
  %1409 = vmatprep.subr.bf16.mxu0 0
  %1410 = vmatpush1.bf16.msra.mxu0 0
  %1411 = vmatprep.subr.bf16.mxu0 0
  %1412 = vmatpush1.bf16.msra.mxu0 0
  %1413 = vmatprep.subr.bf16.mxu0 0
  %1414 = vmatpush1.bf16.msra.mxu0 0
  %1415 = vmatprep.subr.bf16.mxu0 0
  %1416 = vmatpush1.bf16.msra.mxu0 0
  %1417 = vmatprep.mubr.bf16.mxu0 0
  %1418 = vmatmul.mubr.bf16.gmra.mrb[0].mxu0 %v1380
  %v1419 = vpop.f32.mrb[0].mxu0
  %v1420 = vadd.f32 %v1366, %v1419
  %v1421 = vpop.f32.mrb[0].mxu0
  %v1422 = vpop.f32.mrb[0].mxu0
  %v1423 = vadd.f32 %v1366, %v1422
  %v1424 = vpop.f32.mrb[0].mxu0
  %1425 = vmatprep.mubr.bf16.mxu0 0
  %1426 = vmatmul.mubr.bf16.gmra.mrb[0].mxu0 %v1383
  %v1427 = vpop.f32.mrb[0].mxu0
  %v1428 = vadd.f32 %v1366, %v1427
  %v1429 = vpop.f32.mrb[0].mxu0
  %v1430 = vpop.f32.mrb[0].mxu0
  %v1431 = vadd.f32 %v1366, %v1430
  %v1432 = vpop.f32.mrb[0].mxu0
  %1433 = vdwg.mxu0
  %v1434 = vadd.f32 %v74, %v1420
  %v1435 = vadd.f32 %v75, %v1423
  %v1436 = vadd.f32 %v76, %v1428
  %v1437 = vadd.f32 %v77, %v1431
  %v1438 = vsel %vm208, %v1434, 0.0
  %1439 = vadd.xlane.f32.xlu0 %v1438
  %v1440 = vpop.xlane.xlu0 %1439
  %v1441 = vsel %vm208, %v1435, 0.0
  %1442 = vadd.xlane.f32.xlu0 %v1441
  %v1443 = vpop.xlane.xlu0 %1442
  %v1444 = vsel %vm208, %v1436, 0.0
  %1445 = vadd.xlane.f32.xlu0 %v1444
  %v1446 = vpop.xlane.xlu0 %1445
  %v1447 = vsel %vm208, %v1437, 0.0
  %1448 = vadd.xlane.f32.xlu0 %v1447
  %v1449 = vpop.xlane.xlu0 %1448
  %v1450 = vrcp.pop 32.0
  %v1451 = vmul.f32 %v1440, %v1450
  %v1452 = vmul.f32 %v1443, %v1450
  %v1453 = vmul.f32 %v1446, %v1450
  %v1454 = vmul.f32 %v1449, %v1450
  %v1455 = vsub.f32 %v1434, %v1451
  %v1456 = vsub.f32 %v1435, %v1452
  %v1457 = vsub.f32 %v1436, %v1453
  %v1458 = vsub.f32 %v1437, %v1454
  %v1459 = vmul.f32 %v1455, %v1455
  %v1460 = vmul.f32 %v1456, %v1456
  %v1461 = vmul.f32 %v1457, %v1457
  %v1462 = vmul.f32 %v1458, %v1458
  %v1463 = vsel %vm208, %v1459, 0.0
  %1464 = vadd.xlane.f32.xlu0 %v1463
  %v1465 = vpop.xlane.xlu0 %1464
  %v1466 = vsel %vm208, %v1460, 0.0
  %1467 = vadd.xlane.f32.xlu0 %v1466
  %v1468 = vpop.xlane.xlu0 %1467
  %v1469 = vsel %vm208, %v1461, 0.0
  %1470 = vadd.xlane.f32.xlu0 %v1469
  %v1471 = vpop.xlane.xlu0 %1470
  %v1472 = vsel %vm208, %v1462, 0.0
  %1473 = vadd.xlane.f32.xlu0 %v1472
  %v1474 = vpop.xlane.xlu0 %1473
  %v1475 = vmul.f32 %v1465, %v1450
  %v1476 = vmul.f32 %v1468, %v1450
  %v1477 = vmul.f32 %v1471, %v1450
  %v1478 = vmul.f32 %v1474, %v1450
  %v1479 = vadd.f32 %v1475, 1e-05
  %v1480 = vadd.f32 %v1476, 1e-05
  %v1481 = vadd.f32 %v1477, 1e-05
  %v1482 = vadd.f32 %v1478, 1e-05
  %v1483 = vrsqrt.pop %v1479
  %v1484 = vrsqrt.pop %v1480
  %v1485 = vrsqrt.pop %v1481
  %v1486 = vrsqrt.pop %v1482
  %v1487 = vmul.f32 %v1455, %v1483
  %v1488 = vmul.f32 %v1456, %v1484
  %v1489 = vmul.f32 %v1457, %v1485
  %v1490 = vmul.f32 %v1458, %v1486
  %v1491 = vlaneseq
  %v1492 = vshrl.u32 %v1491, 7
  %v1493 = vsub.s32 1, %v1492
  %v1494 = vrot.slane %v138, %v1493
  %v1495 = vmul.f32 %v1487, %v1494
  %v1496 = vmul.f32 %v1488, %v1494
  %v1497 = vmul.f32 %v1489, %v1494
  %v1498 = vmul.f32 %v1490, %v1494
  %v1499 = vlaneseq
  %v1500 = vshrl.u32 %v1499, 7
  %v1501 = vsub.s32 2, %v1500
  %v1502 = vrot.slane %v138, %v1501
  %v1503 = vadd.f32 %v1495, %v1502
  %v1504 = vadd.f32 %v1496, %v1502
  %v1505 = vadd.f32 %v1497, %v1502
  %v1506 = vadd.f32 %v1498, %v1502
  %v1507 = vpack.c.bf16 %v1504, %v1503
  %v1508 = vpack.c.bf16 %v1506, %v1505
  %v1509 = vlaneseq
  %v1510 = vshrl.u32 %v1509, 7
  %v1511 = vsub.s32 0, %v1510
  %v1512 = vrot.slane %v137, %v1511
  %v1517 = vunpack.c.l.b16 %v111
  %v1518 = vunpack.c.l.b16 %v112
  %v1519 = vunpack.c.l.b16 %v113
  %v1520 = vunpack.c.l.b16 %v114
  %v1521 = vpack.c.b16 %v1518, %v1517
  %v1522 = vpack.c.b16 %v1520, %v1519
  %v1526 = vsel %vm208, %v1507, 0
  %v1529 = vsel %vm208, %v1508, 0
  %1531 = vmatprep.subr.bf16.mxu0 0
  %1532 = vmatpush1.bf16.msra.mxu0 %v1521
  %1533 = vmatprep.subr.bf16.mxu0 0
  %1534 = vmatpush1.bf16.msra.mxu0 %v1522
  %1535 = vmatprep.subr.bf16.mxu0 0
  %1536 = vmatpush1.bf16.msra.mxu0 0
  %1537 = vmatprep.subr.bf16.mxu0 0
  %1538 = vmatpush1.bf16.msra.mxu0 0
  %1539 = vmatprep.subr.bf16.mxu0 0
  %1540 = vmatpush1.bf16.msra.mxu0 0
  %1541 = vmatprep.subr.bf16.mxu0 0
  %1542 = vmatpush1.bf16.msra.mxu0 0
  %1543 = vmatprep.subr.bf16.mxu0 0
  %1544 = vmatpush1.bf16.msra.mxu0 0
  %1545 = vmatprep.subr.bf16.mxu0 0
  %1546 = vmatpush1.bf16.msra.mxu0 0
  %1547 = vmatprep.subr.bf16.mxu0 0
  %1548 = vmatpush1.bf16.msra.mxu0 0
  %1549 = vmatprep.subr.bf16.mxu0 0
  %1550 = vmatpush1.bf16.msra.mxu0 0
  %1551 = vmatprep.subr.bf16.mxu0 0
  %1552 = vmatpush1.bf16.msra.mxu0 0
  %1553 = vmatprep.subr.bf16.mxu0 0
  %1554 = vmatpush1.bf16.msra.mxu0 0
  %1555 = vmatprep.subr.bf16.mxu0 0
  %1556 = vmatpush1.bf16.msra.mxu0 0
  %1557 = vmatprep.subr.bf16.mxu0 0
  %1558 = vmatpush1.bf16.msra.mxu0 0
  %1559 = vmatprep.subr.bf16.mxu0 0
  %1560 = vmatpush1.bf16.msra.mxu0 0
  %1561 = vmatprep.subr.bf16.mxu0 0
  %1562 = vmatpush1.bf16.msra.mxu0 0
  %1563 = vmatprep.mubr.bf16.mxu0 0
  %1564 = vmatmul.mubr.bf16.gmra.mrb[0].mxu0 %v1526
  %v1565 = vpop.f32.mrb[0].mxu0
  %v1566 = vadd.f32 %v1512, %v1565
  %v1567 = vpop.f32.mrb[0].mxu0
  %v1568 = vpop.f32.mrb[0].mxu0
  %v1569 = vadd.f32 %v1512, %v1568
  %v1570 = vpop.f32.mrb[0].mxu0
  %1571 = vmatprep.mubr.bf16.mxu0 0
  %1572 = vmatmul.mubr.bf16.gmra.mrb[0].mxu0 %v1529
  %v1573 = vpop.f32.mrb[0].mxu0
  %v1574 = vadd.f32 %v1512, %v1573
  %v1575 = vpop.f32.mrb[0].mxu0
  %v1576 = vpop.f32.mrb[0].mxu0
  %v1577 = vadd.f32 %v1512, %v1576
  %v1578 = vpop.f32.mrb[0].mxu0
  %1579 = vdwg.mxu0
  %v1580 = vmax.f32 %v1566, 0.0
  %v1581 = vmax.f32 %v1569, 0.0
  %v1582 = vmax.f32 %v1574, 0.0
  %v1583 = vmax.f32 %v1577, 0.0
  %v1584 = vpack.c.bf16 %v1581, %v1580
  %v1585 = vpack.c.bf16 %v1583, %v1582
  %v1586 = vlaneseq
  %v1587 = vshrl.u32 %v1586, 7
  %v1588 = vsub.s32 0, %v1587
  %v1589 = vrot.slane %v138, %v1588
  %v1598 = vunpack.c.l.b16 %v119
  %v1599 = vunpack.c.l.b16 %v120
  %v1600 = vunpack.c.l.b16 %v121
  %v1601 = vunpack.c.l.b16 %v122
  %v1602 = vunpack.c.l.b16 %v123
  %v1603 = vunpack.c.l.b16 %v124
  %v1604 = vunpack.c.l.b16 %v125
  %v1605 = vunpack.c.l.b16 %v126
  %v1606 = vpack.c.b16 %v1599, %v1598
  %v1607 = vpack.c.b16 %v1601, %v1600
  %v1608 = vpack.c.b16 %v1603, %v1602
  %v1609 = vpack.c.b16 %v1605, %v1604
  %vm1614 = vcmask 523264
  %v1616 = vsel %vm1614, %v1584, 0
  %v1619 = vsel %vm1614, %v1585, 0
  %1621 = vmatprep.subr.bf16.mxu0 0
  %1622 = vmatpush1.bf16.msra.mxu0 %v1606
  %1623 = vmatprep.subr.bf16.mxu0 0
  %1624 = vmatpush1.bf16.msra.mxu0 %v1607
  %1625 = vmatprep.subr.bf16.mxu0 0
  %1626 = vmatpush1.bf16.msra.mxu0 %v1608
  %1627 = vmatprep.subr.bf16.mxu0 0
  %1628 = vmatpush1.bf16.msra.mxu0 %v1609
  %1629 = vmatprep.subr.bf16.mxu0 0
  %1630 = vmatpush1.bf16.msra.mxu0 0
  %1631 = vmatprep.subr.bf16.mxu0 0
  %1632 = vmatpush1.bf16.msra.mxu0 0
  %1633 = vmatprep.subr.bf16.mxu0 0
  %1634 = vmatpush1.bf16.msra.mxu0 0
  %1635 = vmatprep.subr.bf16.mxu0 0
  %1636 = vmatpush1.bf16.msra.mxu0 0
  %1637 = vmatprep.subr.bf16.mxu0 0
  %1638 = vmatpush1.bf16.msra.mxu0 0
  %1639 = vmatprep.subr.bf16.mxu0 0
  %1640 = vmatpush1.bf16.msra.mxu0 0
  %1641 = vmatprep.subr.bf16.mxu0 0
  %1642 = vmatpush1.bf16.msra.mxu0 0
  %1643 = vmatprep.subr.bf16.mxu0 0
  %1644 = vmatpush1.bf16.msra.mxu0 0
  %1645 = vmatprep.subr.bf16.mxu0 0
  %1646 = vmatpush1.bf16.msra.mxu0 0
  %1647 = vmatprep.subr.bf16.mxu0 0
  %1648 = vmatpush1.bf16.msra.mxu0 0
  %1649 = vmatprep.subr.bf16.mxu0 0
  %1650 = vmatpush1.bf16.msra.mxu0 0
  %1651 = vmatprep.subr.bf16.mxu0 0
  %1652 = vmatpush1.bf16.msra.mxu0 0
  %1653 = vmatprep.mubr.bf16.mxu0 0
  %1654 = vmatmul.mubr.bf16.gmra.mrb[0].mxu0 %v1616
  %v1655 = vpop.f32.mrb[0].mxu0
  %v1656 = vadd.f32 %v1589, %v1655
  %v1657 = vpop.f32.mrb[0].mxu0
  %v1658 = vpop.f32.mrb[0].mxu0
  %v1659 = vadd.f32 %v1589, %v1658
  %v1660 = vpop.f32.mrb[0].mxu0
  %1661 = vmatprep.mubr.bf16.mxu0 0
  %1662 = vmatmul.mubr.bf16.gmra.mrb[0].mxu0 %v1619
  %v1663 = vpop.f32.mrb[0].mxu0
  %v1664 = vadd.f32 %v1589, %v1663
  %v1665 = vpop.f32.mrb[0].mxu0
  %v1666 = vpop.f32.mrb[0].mxu0
  %v1667 = vadd.f32 %v1589, %v1666
  %v1668 = vpop.f32.mrb[0].mxu0
  %1669 = vdwg.mxu0
  %v1670 = vadd.f32 %v1503, %v1656
  %v1671 = vadd.f32 %v1504, %v1659
  %v1672 = vadd.f32 %v1505, %v1664
  %v1673 = vadd.f32 %v1506, %v1667
  %v1674 = vsel %vm208, %v1670, 0.0
  %1675 = vadd.xlane.f32.xlu0 %v1674
  %v1676 = vpop.xlane.xlu0 %1675
  %v1677 = vsel %vm208, %v1671, 0.0
  %1678 = vadd.xlane.f32.xlu0 %v1677
  %v1679 = vpop.xlane.xlu0 %1678
  %v1680 = vsel %vm208, %v1672, 0.0
  %1681 = vadd.xlane.f32.xlu0 %v1680
  %v1682 = vpop.xlane.xlu0 %1681
  %v1683 = vsel %vm208, %v1673, 0.0
  %1684 = vadd.xlane.f32.xlu0 %v1683
  %v1685 = vpop.xlane.xlu0 %1684
  %v1686 = vmul.f32 %v1676, %v1450
  %v1687 = vmul.f32 %v1679, %v1450
  %v1688 = vmul.f32 %v1682, %v1450
  %v1689 = vmul.f32 %v1685, %v1450
  %v1690 = vsub.f32 %v1670, %v1686
  %v1691 = vsub.f32 %v1671, %v1687
  %v1692 = vsub.f32 %v1672, %v1688
  %v1693 = vsub.f32 %v1673, %v1689
  %v1694 = vmul.f32 %v1690, %v1690
  %v1695 = vmul.f32 %v1691, %v1691
  %v1696 = vmul.f32 %v1692, %v1692
  %v1697 = vmul.f32 %v1693, %v1693
  %v1698 = vsel %vm208, %v1694, 0.0
  %1699 = vadd.xlane.f32.xlu0 %v1698
  %v1700 = vpop.xlane.xlu0 %1699
  %v1701 = vsel %vm208, %v1695, 0.0
  %1702 = vadd.xlane.f32.xlu0 %v1701
  %v1703 = vpop.xlane.xlu0 %1702
  %v1704 = vsel %vm208, %v1696, 0.0
  %1705 = vadd.xlane.f32.xlu0 %v1704
  %v1706 = vpop.xlane.xlu0 %1705
  %v1707 = vsel %vm208, %v1697, 0.0
  %1708 = vadd.xlane.f32.xlu0 %v1707
  %v1709 = vpop.xlane.xlu0 %1708
  %v1710 = vmul.f32 %v1700, %v1450
  %v1711 = vmul.f32 %v1703, %v1450
  %v1712 = vmul.f32 %v1706, %v1450
  %v1713 = vmul.f32 %v1709, %v1450
  %v1714 = vadd.f32 %v1710, 1e-05
  %v1715 = vadd.f32 %v1711, 1e-05
  %v1716 = vadd.f32 %v1712, 1e-05
  %v1717 = vadd.f32 %v1713, 1e-05
  %v1718 = vrsqrt.pop %v1714
  %v1719 = vrsqrt.pop %v1715
  %v1720 = vrsqrt.pop %v1716
  %v1721 = vrsqrt.pop %v1717
  %v1722 = vmul.f32 %v1690, %v1718
  %v1723 = vmul.f32 %v1691, %v1719
  %v1724 = vmul.f32 %v1692, %v1720
  %v1725 = vmul.f32 %v1693, %v1721
  %v1726 = vlaneseq
  %v1727 = vshrl.u32 %v1726, 7
  %v1728 = vsub.s32 3, %v1727
  %v1729 = vrot.slane %v138, %v1728
  %v1730 = vmul.f32 %v1722, %v1729
  %v1731 = vmul.f32 %v1723, %v1729
  %v1732 = vmul.f32 %v1724, %v1729
  %v1733 = vmul.f32 %v1725, %v1729
  %v1734 = vlaneseq
  %v1735 = vshrl.u32 %v1734, 7
  %v1736 = vsub.s32 4, %v1735
  %v1737 = vrot.slane %v138, %v1736
  %v1738 = vadd.f32 %v1730, %v1737
  %v1739 = vadd.f32 %v1731, %v1737
  %v1740 = vadd.f32 %v1732, %v1737
  %v1741 = vadd.f32 %v1733, %v1737
  %v1742 = vpack.c.bf16 %v1739, %v1738
  %v1743 = vpack.c.bf16 %v1741, %v1740
  %v1744 = vlaneseq
  %v1745 = vshrl.u32 %v1744, 7
  %v1746 = vsub.s32 0, %v1745
  %v1747 = vrot.slane %v136, %v1746
  %v1752 = vunpack.c.l.b16 %v83
  %v1753 = vunpack.c.l.b16 %v84
  %v1754 = vunpack.c.l.b16 %v85
  %v1755 = vunpack.c.l.b16 %v86
  %v1756 = vpack.c.b16 %v1753, %v1752
  %v1757 = vpack.c.b16 %v1755, %v1754
  %v1761 = vsel %vm208, %v1742, 0
  %v1764 = vsel %vm208, %v1743, 0
  %1766 = vmatprep.subr.bf16.mxu0 0
  %1767 = vmatpush1.bf16.msra.mxu0 %v1756
  %1768 = vmatprep.subr.bf16.mxu0 0
  %1769 = vmatpush1.bf16.msra.mxu0 %v1757
  %1770 = vmatprep.subr.bf16.mxu0 0
  %1771 = vmatpush1.bf16.msra.mxu0 0
  %1772 = vmatprep.subr.bf16.mxu0 0
  %1773 = vmatpush1.bf16.msra.mxu0 0
  %1774 = vmatprep.subr.bf16.mxu0 0
  %1775 = vmatpush1.bf16.msra.mxu0 0
  %1776 = vmatprep.subr.bf16.mxu0 0
  %1777 = vmatpush1.bf16.msra.mxu0 0
  %1778 = vmatprep.subr.bf16.mxu0 0
  %1779 = vmatpush1.bf16.msra.mxu0 0
  %1780 = vmatprep.subr.bf16.mxu0 0
  %1781 = vmatpush1.bf16.msra.mxu0 0
  %1782 = vmatprep.subr.bf16.mxu0 0
  %1783 = vmatpush1.bf16.msra.mxu0 0
  %1784 = vmatprep.subr.bf16.mxu0 0
  %1785 = vmatpush1.bf16.msra.mxu0 0
  %1786 = vmatprep.subr.bf16.mxu0 0
  %1787 = vmatpush1.bf16.msra.mxu0 0
  %1788 = vmatprep.subr.bf16.mxu0 0
  %1789 = vmatpush1.bf16.msra.mxu0 0
  %1790 = vmatprep.subr.bf16.mxu0 0
  %1791 = vmatpush1.bf16.msra.mxu0 0
  %1792 = vmatprep.subr.bf16.mxu0 0
  %1793 = vmatpush1.bf16.msra.mxu0 0
  %1794 = vmatprep.subr.bf16.mxu0 0
  %1795 = vmatpush1.bf16.msra.mxu0 0
  %1796 = vmatprep.subr.bf16.mxu0 0
  %1797 = vmatpush1.bf16.msra.mxu0 0
  %1798 = vmatprep.mubr.bf16.mxu0 0
  %1799 = vmatmul.mubr.bf16.gmra.mrb[0].mxu0 %v1761
  %v1800 = vpop.f32.mrb[0].mxu0
  %v1801 = vadd.f32 %v1747, %v1800
  %v1802 = vpop.f32.mrb[0].mxu0
  %v1803 = vpop.f32.mrb[0].mxu0
  %v1804 = vadd.f32 %v1747, %v1803
  %v1805 = vpop.f32.mrb[0].mxu0
  %1806 = vmatprep.mubr.bf16.mxu0 0
  %1807 = vmatmul.mubr.bf16.gmra.mrb[0].mxu0 %v1764
  %v1808 = vpop.f32.mrb[0].mxu0
  %v1809 = vadd.f32 %v1747, %v1808
  %v1810 = vpop.f32.mrb[0].mxu0
  %v1811 = vpop.f32.mrb[0].mxu0
  %v1812 = vadd.f32 %v1747, %v1811
  %v1813 = vpop.f32.mrb[0].mxu0
  %1814 = vdwg.mxu0
  %v1815 = vlaneseq
  %v1816 = vshrl.u32 %v1815, 7
  %v1817 = vsub.s32 1, %v1816
  %v1818 = vrot.slane %v136, %v1817
  %v1823 = vunpack.c.l.b16 %v91
  %v1824 = vunpack.c.l.b16 %v92
  %v1825 = vunpack.c.l.b16 %v93
  %v1826 = vunpack.c.l.b16 %v94
  %v1827 = vpack.c.b16 %v1824, %v1823
  %v1828 = vpack.c.b16 %v1826, %v1825
  %1831 = vmatprep.subr.bf16.mxu0 0
  %1832 = vmatpush1.bf16.msra.mxu0 %v1827
  %1833 = vmatprep.subr.bf16.mxu0 0
  %1834 = vmatpush1.bf16.msra.mxu0 %v1828
  %1835 = vmatprep.subr.bf16.mxu0 0
  %1836 = vmatpush1.bf16.msra.mxu0 0
  %1837 = vmatprep.subr.bf16.mxu0 0
  %1838 = vmatpush1.bf16.msra.mxu0 0
  %1839 = vmatprep.subr.bf16.mxu0 0
  %1840 = vmatpush1.bf16.msra.mxu0 0
  %1841 = vmatprep.subr.bf16.mxu0 0
  %1842 = vmatpush1.bf16.msra.mxu0 0
  %1843 = vmatprep.subr.bf16.mxu0 0
  %1844 = vmatpush1.bf16.msra.mxu0 0
  %1845 = vmatprep.subr.bf16.mxu0 0
  %1846 = vmatpush1.bf16.msra.mxu0 0
  %1847 = vmatprep.subr.bf16.mxu0 0
  %1848 = vmatpush1.bf16.msra.mxu0 0
  %1849 = vmatprep.subr.bf16.mxu0 0
  %1850 = vmatpush1.bf16.msra.mxu0 0
  %1851 = vmatprep.subr.bf16.mxu0 0
  %1852 = vmatpush1.bf16.msra.mxu0 0
  %1853 = vmatprep.subr.bf16.mxu0 0
  %1854 = vmatpush1.bf16.msra.mxu0 0
  %1855 = vmatprep.subr.bf16.mxu0 0
  %1856 = vmatpush1.bf16.msra.mxu0 0
  %1857 = vmatprep.subr.bf16.mxu0 0
  %1858 = vmatpush1.bf16.msra.mxu0 0
  %1859 = vmatprep.subr.bf16.mxu0 0
  %1860 = vmatpush1.bf16.msra.mxu0 0
  %1861 = vmatprep.subr.bf16.mxu0 0
  %1862 = vmatpush1.bf16.msra.mxu0 0
  %1863 = vmatprep.mubr.bf16.mxu0 0
  %1864 = vmatmul.mubr.bf16.gmra.mrb[0].mxu0 %v1761
  %v1865 = vpop.f32.mrb[0].mxu0
  %v1866 = vadd.f32 %v1818, %v1865
  %v1867 = vpop.f32.mrb[0].mxu0
  %v1868 = vpop.f32.mrb[0].mxu0
  %v1869 = vadd.f32 %v1818, %v1868
  %v1870 = vpop.f32.mrb[0].mxu0
  %1871 = vmatprep.mubr.bf16.mxu0 0
  %1872 = vmatmul.mubr.bf16.gmra.mrb[0].mxu0 %v1764
  %v1873 = vpop.f32.mrb[0].mxu0
  %v1874 = vadd.f32 %v1818, %v1873
  %v1875 = vpop.f32.mrb[0].mxu0
  %v1876 = vpop.f32.mrb[0].mxu0
  %v1877 = vadd.f32 %v1818, %v1876
  %v1878 = vpop.f32.mrb[0].mxu0
  %1879 = vdwg.mxu0
  %v1880 = vlaneseq
  %v1881 = vshrl.u32 %v1880, 7
  %v1882 = vsub.s32 2, %v1881
  %v1883 = vrot.slane %v136, %v1882
  %v1888 = vunpack.c.l.b16 %v99
  %v1889 = vunpack.c.l.b16 %v100
  %v1890 = vunpack.c.l.b16 %v101
  %v1891 = vunpack.c.l.b16 %v102
  %v1892 = vpack.c.b16 %v1889, %v1888
  %v1893 = vpack.c.b16 %v1891, %v1890
  %1896 = vmatprep.subr.bf16.mxu0 0
  %1897 = vmatpush1.bf16.msra.mxu0 %v1892
  %1898 = vmatprep.subr.bf16.mxu0 0
  %1899 = vmatpush1.bf16.msra.mxu0 %v1893
  %1900 = vmatprep.subr.bf16.mxu0 0
  %1901 = vmatpush1.bf16.msra.mxu0 0
  %1902 = vmatprep.subr.bf16.mxu0 0
  %1903 = vmatpush1.bf16.msra.mxu0 0
  %1904 = vmatprep.subr.bf16.mxu0 0
  %1905 = vmatpush1.bf16.msra.mxu0 0
  %1906 = vmatprep.subr.bf16.mxu0 0
  %1907 = vmatpush1.bf16.msra.mxu0 0
  %1908 = vmatprep.subr.bf16.mxu0 0
  %1909 = vmatpush1.bf16.msra.mxu0 0
  %1910 = vmatprep.subr.bf16.mxu0 0
  %1911 = vmatpush1.bf16.msra.mxu0 0
  %1912 = vmatprep.subr.bf16.mxu0 0
  %1913 = vmatpush1.bf16.msra.mxu0 0
  %1914 = vmatprep.subr.bf16.mxu0 0
  %1915 = vmatpush1.bf16.msra.mxu0 0
  %1916 = vmatprep.subr.bf16.mxu0 0
  %1917 = vmatpush1.bf16.msra.mxu0 0
  %1918 = vmatprep.subr.bf16.mxu0 0
  %1919 = vmatpush1.bf16.msra.mxu0 0
  %1920 = vmatprep.subr.bf16.mxu0 0
  %1921 = vmatpush1.bf16.msra.mxu0 0
  %1922 = vmatprep.subr.bf16.mxu0 0
  %1923 = vmatpush1.bf16.msra.mxu0 0
  %1924 = vmatprep.subr.bf16.mxu0 0
  %1925 = vmatpush1.bf16.msra.mxu0 0
  %1926 = vmatprep.subr.bf16.mxu0 0
  %1927 = vmatpush1.bf16.msra.mxu0 0
  %1928 = vmatprep.mubr.bf16.mxu0 0
  %1929 = vmatmul.mubr.bf16.gmra.mrb[0].mxu0 %v1761
  %v1930 = vpop.f32.mrb[0].mxu0
  %v1931 = vadd.f32 %v1883, %v1930
  %v1932 = vpop.f32.mrb[0].mxu0
  %v1933 = vpop.f32.mrb[0].mxu0
  %v1934 = vadd.f32 %v1883, %v1933
  %v1935 = vpop.f32.mrb[0].mxu0
  %1936 = vmatprep.mubr.bf16.mxu0 0
  %1937 = vmatmul.mubr.bf16.gmra.mrb[0].mxu0 %v1764
  %v1938 = vpop.f32.mrb[0].mxu0
  %v1939 = vadd.f32 %v1883, %v1938
  %v1940 = vpop.f32.mrb[0].mxu0
  %v1941 = vpop.f32.mrb[0].mxu0
  %v1942 = vadd.f32 %v1883, %v1941
  %v1943 = vpop.f32.mrb[0].mxu0
  %1944 = vdwg.mxu0
  %v1945 = vpack.c.bf16 %v1804, %v1801
  %v1946 = vpack.c.bf16 %v1812, %v1809
  %v1947 = vpack.c.bf16 %v1869, %v1866
  %v1948 = vpack.c.bf16 %v1877, %v1874
  %v1949 = vpack.c.bf16 %v1934, %v1931
  %v1950 = vpack.c.bf16 %v1942, %v1939
  %v1951 = vmul.bf16 %v1947, %v171
  %v1952 = vmul.bf16 %v1948, %v171
  %v1953 = vmul.bf16 %v1949, %v171
  %v1954 = vmul.bf16 %v1950, %v171
  %v1956 = vsel %vm208, %v1945, 0
  %v1959 = vsel %vm208, %v1951, 0
  %1961 = vmatprep.subr.bf16.mxu0 0
  %1962 = vmatpush1.bf16.xpose.msra.mxu0 %v1959
  %1963 = vmatprep.subr.bf16.mxu0 0
  %1964 = vmatpush1.bf16.xpose.msra.mxu0 0
  %1965 = vmatprep.subr.bf16.mxu0 0
  %1966 = vmatpush1.bf16.xpose.msra.mxu0 0
  %1967 = vmatprep.subr.bf16.mxu0 0
  %1968 = vmatpush1.bf16.xpose.msra.mxu0 0
  %1969 = vmatprep.subr.bf16.mxu0 0
  %1970 = vmatpush1.bf16.xpose.msra.mxu0 0
  %1971 = vmatprep.subr.bf16.mxu0 0
  %1972 = vmatpush1.bf16.xpose.msra.mxu0 0
  %1973 = vmatprep.subr.bf16.mxu0 0
  %1974 = vmatpush1.bf16.xpose.msra.mxu0 0
  %1975 = vmatprep.subr.bf16.mxu0 0
  %1976 = vmatpush1.bf16.xpose.msra.mxu0 0
  %1977 = vmatprep.subr.bf16.mxu0 0
  %1978 = vmatpush1.bf16.xpose.msra.mxu0 0
  %1979 = vmatprep.subr.bf16.mxu0 0
  %1980 = vmatpush1.bf16.xpose.msra.mxu0 0
  %1981 = vmatprep.subr.bf16.mxu0 0
  %1982 = vmatpush1.bf16.xpose.msra.mxu0 0
  %1983 = vmatprep.subr.bf16.mxu0 0
  %1984 = vmatpush1.bf16.xpose.msra.mxu0 0
  %1985 = vmatprep.subr.bf16.mxu0 0
  %1986 = vmatpush1.bf16.xpose.msra.mxu0 0
  %1987 = vmatprep.subr.bf16.mxu0 0
  %1988 = vmatpush1.bf16.xpose.msra.mxu0 0
  %1989 = vmatprep.subr.bf16.mxu0 0
  %1990 = vmatpush1.bf16.xpose.msra.mxu0 0
  %1991 = vmatprep.subr.bf16.mxu0 0
  %1992 = vmatpush1.bf16.xpose.msra.mxu0 0
  %1993 = vmatprep.mubr.bf16.mxu0 0
  %1994 = vmatmul.mubr.bf16.gmra.mrb[0].mxu0 %v1956
  %v1995 = vpop.f32.mrb[0].mxu0
  %v1996 = vadd.f32 0.0, %v1995
  %v1997 = vpop.f32.mrb[0].mxu0
  %v1998 = vpop.f32.mrb[0].mxu0
  %v1999 = vadd.f32 0.0, %v1998
  %v2000 = vpop.f32.mrb[0].mxu0
  %2001 = vdwg.mxu0
  %v2003 = vsel %vm208, %v1946, 0
  %v2006 = vsel %vm208, %v1952, 0
  %2008 = vmatprep.subr.bf16.mxu0 0
  %2009 = vmatpush1.bf16.xpose.msra.mxu0 %v2006
  %2010 = vmatprep.subr.bf16.mxu0 0
  %2011 = vmatpush1.bf16.xpose.msra.mxu0 0
  %2012 = vmatprep.subr.bf16.mxu0 0
  %2013 = vmatpush1.bf16.xpose.msra.mxu0 0
  %2014 = vmatprep.subr.bf16.mxu0 0
  %2015 = vmatpush1.bf16.xpose.msra.mxu0 0
  %2016 = vmatprep.subr.bf16.mxu0 0
  %2017 = vmatpush1.bf16.xpose.msra.mxu0 0
  %2018 = vmatprep.subr.bf16.mxu0 0
  %2019 = vmatpush1.bf16.xpose.msra.mxu0 0
  %2020 = vmatprep.subr.bf16.mxu0 0
  %2021 = vmatpush1.bf16.xpose.msra.mxu0 0
  %2022 = vmatprep.subr.bf16.mxu0 0
  %2023 = vmatpush1.bf16.xpose.msra.mxu0 0
  %2024 = vmatprep.subr.bf16.mxu0 0
  %2025 = vmatpush1.bf16.xpose.msra.mxu0 0
  %2026 = vmatprep.subr.bf16.mxu0 0
  %2027 = vmatpush1.bf16.xpose.msra.mxu0 0
  %2028 = vmatprep.subr.bf16.mxu0 0
  %2029 = vmatpush1.bf16.xpose.msra.mxu0 0
  %2030 = vmatprep.subr.bf16.mxu0 0
  %2031 = vmatpush1.bf16.xpose.msra.mxu0 0
  %2032 = vmatprep.subr.bf16.mxu0 0
  %2033 = vmatpush1.bf16.xpose.msra.mxu0 0
  %2034 = vmatprep.subr.bf16.mxu0 0
  %2035 = vmatpush1.bf16.xpose.msra.mxu0 0
  %2036 = vmatprep.subr.bf16.mxu0 0
  %2037 = vmatpush1.bf16.xpose.msra.mxu0 0
  %2038 = vmatprep.subr.bf16.mxu0 0
  %2039 = vmatpush1.bf16.xpose.msra.mxu0 0
  %2040 = vmatprep.mubr.bf16.mxu0 0
  %2041 = vmatmul.mubr.bf16.gmra.mrb[0].mxu0 %v2003
  %v2042 = vpop.f32.mrb[0].mxu0
  %v2043 = vadd.f32 0.0, %v2042
  %v2044 = vpop.f32.mrb[0].mxu0
  %v2045 = vpop.f32.mrb[0].mxu0
  %v2046 = vadd.f32 0.0, %v2045
  %v2047 = vpop.f32.mrb[0].mxu0
  %2048 = vdwg.mxu0
  %v2049 = vmul.f32 %v1996, 0.35355338
  %v2050 = vmul.f32 %v1999, 0.35355338
  %v2051 = vmul.f32 %v2043, 0.35355338
  %v2052 = vmul.f32 %v2046, 0.35355338
  %v2053 = vadd.f32 %v2049, %v505
  %v2054 = vadd.f32 %v2050, %v505
  %v2055 = vadd.f32 %v2051, %v509
  %v2056 = vadd.f32 %v2052, %v509
  %v2057 = vsel %vm516, %v2053, -inf
  %2058 = vmax.xlane.f32.xlu0 %v2057
  %v2059 = vpop.xlane.xlu0 %2058
  %v2060 = vsel %vm516, %v2054, -inf
  %2061 = vmax.xlane.f32.xlu0 %v2060
  %v2062 = vpop.xlane.xlu0 %2061
  %v2063 = vsel %vm516, %v2055, -inf
  %2064 = vmax.xlane.f32.xlu0 %v2063
  %v2065 = vpop.xlane.xlu0 %2064
  %v2066 = vsel %vm516, %v2056, -inf
  %2067 = vmax.xlane.f32.xlu0 %v2066
  %v2068 = vpop.xlane.xlu0 %2067
  %v2069 = vsub.f32 %v2053, %v2059
  %v2070 = vsub.f32 %v2054, %v2062
  %v2071 = vsub.f32 %v2055, %v2065
  %v2072 = vsub.f32 %v2056, %v2068
  %v2073 = vmul.f32 %v2069, 1.442695
  %v2074 = vpow.pop %v2073
  %v2075 = vmul.f32 %v2070, 1.442695
  %v2076 = vpow.pop %v2075
  %v2077 = vmul.f32 %v2071, 1.442695
  %v2078 = vpow.pop %v2077
  %v2079 = vmul.f32 %v2072, 1.442695
  %v2080 = vpow.pop %v2079
  %v2081 = vsel %vm516, %v2074, 0.0
  %2082 = vadd.xlane.f32.xlu0 %v2081
  %v2083 = vpop.xlane.xlu0 %2082
  %v2084 = vsel %vm516, %v2076, 0.0
  %2085 = vadd.xlane.f32.xlu0 %v2084
  %v2086 = vpop.xlane.xlu0 %2085
  %v2087 = vsel %vm516, %v2078, 0.0
  %2088 = vadd.xlane.f32.xlu0 %v2087
  %v2089 = vpop.xlane.xlu0 %2088
  %v2090 = vsel %vm516, %v2080, 0.0
  %2091 = vadd.xlane.f32.xlu0 %v2090
  %v2092 = vpop.xlane.xlu0 %2091
  %v2093 = vrcp.pop %v2083
  %v2094 = vrcp.pop %v2086
  %v2095 = vrcp.pop %v2089
  %v2096 = vrcp.pop %v2092
  %v2097 = vmul.f32 %v2074, %v2093
  %v2098 = vmul.f32 %v2076, %v2094
  %v2099 = vmul.f32 %v2078, %v2095
  %v2100 = vmul.f32 %v2080, %v2096
  %v2101 = vpack.c.bf16 %v2098, %v2097
  %v2102 = vpack.c.bf16 %v2100, %v2099
  %v2103 = vmul.bf16 %v1947, %v177
  %v2104 = vmul.bf16 %v1948, %v177
  %v2105 = vmul.bf16 %v1949, %v177
  %v2106 = vmul.bf16 %v1950, %v177
  %v2108 = vsel %vm208, %v2103, 0
  %2110 = vmatprep.subr.bf16.mxu0 0
  %2111 = vmatpush1.bf16.xpose.msra.mxu0 %v2108
  %2112 = vmatprep.subr.bf16.mxu0 0
  %2113 = vmatpush1.bf16.xpose.msra.mxu0 0
  %2114 = vmatprep.subr.bf16.mxu0 0
  %2115 = vmatpush1.bf16.xpose.msra.mxu0 0
  %2116 = vmatprep.subr.bf16.mxu0 0
  %2117 = vmatpush1.bf16.xpose.msra.mxu0 0
  %2118 = vmatprep.subr.bf16.mxu0 0
  %2119 = vmatpush1.bf16.xpose.msra.mxu0 0
  %2120 = vmatprep.subr.bf16.mxu0 0
  %2121 = vmatpush1.bf16.xpose.msra.mxu0 0
  %2122 = vmatprep.subr.bf16.mxu0 0
  %2123 = vmatpush1.bf16.xpose.msra.mxu0 0
  %2124 = vmatprep.subr.bf16.mxu0 0
  %2125 = vmatpush1.bf16.xpose.msra.mxu0 0
  %2126 = vmatprep.subr.bf16.mxu0 0
  %2127 = vmatpush1.bf16.xpose.msra.mxu0 0
  %2128 = vmatprep.subr.bf16.mxu0 0
  %2129 = vmatpush1.bf16.xpose.msra.mxu0 0
  %2130 = vmatprep.subr.bf16.mxu0 0
  %2131 = vmatpush1.bf16.xpose.msra.mxu0 0
  %2132 = vmatprep.subr.bf16.mxu0 0
  %2133 = vmatpush1.bf16.xpose.msra.mxu0 0
  %2134 = vmatprep.subr.bf16.mxu0 0
  %2135 = vmatpush1.bf16.xpose.msra.mxu0 0
  %2136 = vmatprep.subr.bf16.mxu0 0
  %2137 = vmatpush1.bf16.xpose.msra.mxu0 0
  %2138 = vmatprep.subr.bf16.mxu0 0
  %2139 = vmatpush1.bf16.xpose.msra.mxu0 0
  %2140 = vmatprep.subr.bf16.mxu0 0
  %2141 = vmatpush1.bf16.xpose.msra.mxu0 0
  %2142 = vmatprep.mubr.bf16.mxu0 0
  %2143 = vmatmul.mubr.bf16.gmra.mrb[0].mxu0 %v1956
  %v2144 = vpop.f32.mrb[0].mxu0
  %v2145 = vadd.f32 0.0, %v2144
  %v2146 = vpop.f32.mrb[0].mxu0
  %v2147 = vpop.f32.mrb[0].mxu0
  %v2148 = vadd.f32 0.0, %v2147
  %v2149 = vpop.f32.mrb[0].mxu0
  %2150 = vdwg.mxu0
  %v2152 = vsel %vm208, %v2104, 0
  %2154 = vmatprep.subr.bf16.mxu0 0
  %2155 = vmatpush1.bf16.xpose.msra.mxu0 %v2152
  %2156 = vmatprep.subr.bf16.mxu0 0
  %2157 = vmatpush1.bf16.xpose.msra.mxu0 0
  %2158 = vmatprep.subr.bf16.mxu0 0
  %2159 = vmatpush1.bf16.xpose.msra.mxu0 0
  %2160 = vmatprep.subr.bf16.mxu0 0
  %2161 = vmatpush1.bf16.xpose.msra.mxu0 0
  %2162 = vmatprep.subr.bf16.mxu0 0
  %2163 = vmatpush1.bf16.xpose.msra.mxu0 0
  %2164 = vmatprep.subr.bf16.mxu0 0
  %2165 = vmatpush1.bf16.xpose.msra.mxu0 0
  %2166 = vmatprep.subr.bf16.mxu0 0
  %2167 = vmatpush1.bf16.xpose.msra.mxu0 0
  %2168 = vmatprep.subr.bf16.mxu0 0
  %2169 = vmatpush1.bf16.xpose.msra.mxu0 0
  %2170 = vmatprep.subr.bf16.mxu0 0
  %2171 = vmatpush1.bf16.xpose.msra.mxu0 0
  %2172 = vmatprep.subr.bf16.mxu0 0
  %2173 = vmatpush1.bf16.xpose.msra.mxu0 0
  %2174 = vmatprep.subr.bf16.mxu0 0
  %2175 = vmatpush1.bf16.xpose.msra.mxu0 0
  %2176 = vmatprep.subr.bf16.mxu0 0
  %2177 = vmatpush1.bf16.xpose.msra.mxu0 0
  %2178 = vmatprep.subr.bf16.mxu0 0
  %2179 = vmatpush1.bf16.xpose.msra.mxu0 0
  %2180 = vmatprep.subr.bf16.mxu0 0
  %2181 = vmatpush1.bf16.xpose.msra.mxu0 0
  %2182 = vmatprep.subr.bf16.mxu0 0
  %2183 = vmatpush1.bf16.xpose.msra.mxu0 0
  %2184 = vmatprep.subr.bf16.mxu0 0
  %2185 = vmatpush1.bf16.xpose.msra.mxu0 0
  %2186 = vmatprep.mubr.bf16.mxu0 0
  %2187 = vmatmul.mubr.bf16.gmra.mrb[0].mxu0 %v2003
  %v2188 = vpop.f32.mrb[0].mxu0
  %v2189 = vadd.f32 0.0, %v2188
  %v2190 = vpop.f32.mrb[0].mxu0
  %v2191 = vpop.f32.mrb[0].mxu0
  %v2192 = vadd.f32 0.0, %v2191
  %v2193 = vpop.f32.mrb[0].mxu0
  %2194 = vdwg.mxu0
  %v2195 = vmul.f32 %v2145, 0.35355338
  %v2196 = vmul.f32 %v2148, 0.35355338
  %v2197 = vmul.f32 %v2189, 0.35355338
  %v2198 = vmul.f32 %v2192, 0.35355338
  %v2199 = vadd.f32 %v2195, %v505
  %v2200 = vadd.f32 %v2196, %v505
  %v2201 = vadd.f32 %v2197, %v509
  %v2202 = vadd.f32 %v2198, %v509
  %v2203 = vsel %vm516, %v2199, -inf
  %2204 = vmax.xlane.f32.xlu0 %v2203
  %v2205 = vpop.xlane.xlu0 %2204
  %v2206 = vsel %vm516, %v2200, -inf
  %2207 = vmax.xlane.f32.xlu0 %v2206
  %v2208 = vpop.xlane.xlu0 %2207
  %v2209 = vsel %vm516, %v2201, -inf
  %2210 = vmax.xlane.f32.xlu0 %v2209
  %v2211 = vpop.xlane.xlu0 %2210
  %v2212 = vsel %vm516, %v2202, -inf
  %2213 = vmax.xlane.f32.xlu0 %v2212
  %v2214 = vpop.xlane.xlu0 %2213
  %v2215 = vsub.f32 %v2199, %v2205
  %v2216 = vsub.f32 %v2200, %v2208
  %v2217 = vsub.f32 %v2201, %v2211
  %v2218 = vsub.f32 %v2202, %v2214
  %v2219 = vmul.f32 %v2215, 1.442695
  %v2220 = vpow.pop %v2219
  %v2221 = vmul.f32 %v2216, 1.442695
  %v2222 = vpow.pop %v2221
  %v2223 = vmul.f32 %v2217, 1.442695
  %v2224 = vpow.pop %v2223
  %v2225 = vmul.f32 %v2218, 1.442695
  %v2226 = vpow.pop %v2225
  %v2227 = vsel %vm516, %v2220, 0.0
  %2228 = vadd.xlane.f32.xlu0 %v2227
  %v2229 = vpop.xlane.xlu0 %2228
  %v2230 = vsel %vm516, %v2222, 0.0
  %2231 = vadd.xlane.f32.xlu0 %v2230
  %v2232 = vpop.xlane.xlu0 %2231
  %v2233 = vsel %vm516, %v2224, 0.0
  %2234 = vadd.xlane.f32.xlu0 %v2233
  %v2235 = vpop.xlane.xlu0 %2234
  %v2236 = vsel %vm516, %v2226, 0.0
  %2237 = vadd.xlane.f32.xlu0 %v2236
  %v2238 = vpop.xlane.xlu0 %2237
  %v2239 = vrcp.pop %v2229
  %v2240 = vrcp.pop %v2232
  %v2241 = vrcp.pop %v2235
  %v2242 = vrcp.pop %v2238
  %v2243 = vmul.f32 %v2220, %v2239
  %v2244 = vmul.f32 %v2222, %v2240
  %v2245 = vmul.f32 %v2224, %v2241
  %v2246 = vmul.f32 %v2226, %v2242
  %v2247 = vpack.c.bf16 %v2244, %v2243
  %v2248 = vpack.c.bf16 %v2246, %v2245
  %v2250 = vsel %vm516, %v2247, 0
  %2252 = vmatprep.subr.bf16.mxu0 0
  %2253 = vmatpush1.bf16.msra.mxu0 %v2105
  %2254 = vmatprep.subr.bf16.mxu0 0
  %2255 = vmatpush1.bf16.msra.mxu0 0
  %2256 = vmatprep.subr.bf16.mxu0 0
  %2257 = vmatpush1.bf16.msra.mxu0 0
  %2258 = vmatprep.subr.bf16.mxu0 0
  %2259 = vmatpush1.bf16.msra.mxu0 0
  %2260 = vmatprep.subr.bf16.mxu0 0
  %2261 = vmatpush1.bf16.msra.mxu0 0
  %2262 = vmatprep.subr.bf16.mxu0 0
  %2263 = vmatpush1.bf16.msra.mxu0 0
  %2264 = vmatprep.subr.bf16.mxu0 0
  %2265 = vmatpush1.bf16.msra.mxu0 0
  %2266 = vmatprep.subr.bf16.mxu0 0
  %2267 = vmatpush1.bf16.msra.mxu0 0
  %2268 = vmatprep.subr.bf16.mxu0 0
  %2269 = vmatpush1.bf16.msra.mxu0 0
  %2270 = vmatprep.subr.bf16.mxu0 0
  %2271 = vmatpush1.bf16.msra.mxu0 0
  %2272 = vmatprep.subr.bf16.mxu0 0
  %2273 = vmatpush1.bf16.msra.mxu0 0
  %2274 = vmatprep.subr.bf16.mxu0 0
  %2275 = vmatpush1.bf16.msra.mxu0 0
  %2276 = vmatprep.subr.bf16.mxu0 0
  %2277 = vmatpush1.bf16.msra.mxu0 0
  %2278 = vmatprep.subr.bf16.mxu0 0
  %2279 = vmatpush1.bf16.msra.mxu0 0
  %2280 = vmatprep.subr.bf16.mxu0 0
  %2281 = vmatpush1.bf16.msra.mxu0 0
  %2282 = vmatprep.subr.bf16.mxu0 0
  %2283 = vmatpush1.bf16.msra.mxu0 0
  %2284 = vmatprep.mubr.bf16.mxu0 0
  %2285 = vmatmul.mubr.bf16.gmra.mrb[0].mxu0 %v2250
  %v2286 = vpop.f32.mrb[0].mxu0
  %v2287 = vadd.f32 0.0, %v2286
  %v2288 = vpop.f32.mrb[0].mxu0
  %v2289 = vpop.f32.mrb[0].mxu0
  %v2290 = vadd.f32 0.0, %v2289
  %v2291 = vpop.f32.mrb[0].mxu0
  %2292 = vdwg.mxu0
  %v2294 = vsel %vm516, %v2248, 0
  %2296 = vmatprep.subr.bf16.mxu0 0
  %2297 = vmatpush1.bf16.msra.mxu0 %v2106
  %2298 = vmatprep.subr.bf16.mxu0 0
  %2299 = vmatpush1.bf16.msra.mxu0 0
  %2300 = vmatprep.subr.bf16.mxu0 0
  %2301 = vmatpush1.bf16.msra.mxu0 0
  %2302 = vmatprep.subr.bf16.mxu0 0
  %2303 = vmatpush1.bf16.msra.mxu0 0
  %2304 = vmatprep.subr.bf16.mxu0 0
  %2305 = vmatpush1.bf16.msra.mxu0 0
  %2306 = vmatprep.subr.bf16.mxu0 0
  %2307 = vmatpush1.bf16.msra.mxu0 0
  %2308 = vmatprep.subr.bf16.mxu0 0
  %2309 = vmatpush1.bf16.msra.mxu0 0
  %2310 = vmatprep.subr.bf16.mxu0 0
  %2311 = vmatpush1.bf16.msra.mxu0 0
  %2312 = vmatprep.subr.bf16.mxu0 0
  %2313 = vmatpush1.bf16.msra.mxu0 0
  %2314 = vmatprep.subr.bf16.mxu0 0
  %2315 = vmatpush1.bf16.msra.mxu0 0
  %2316 = vmatprep.subr.bf16.mxu0 0
  %2317 = vmatpush1.bf16.msra.mxu0 0
  %2318 = vmatprep.subr.bf16.mxu0 0
  %2319 = vmatpush1.bf16.msra.mxu0 0
  %2320 = vmatprep.subr.bf16.mxu0 0
  %2321 = vmatpush1.bf16.msra.mxu0 0
  %2322 = vmatprep.subr.bf16.mxu0 0
  %2323 = vmatpush1.bf16.msra.mxu0 0
  %2324 = vmatprep.subr.bf16.mxu0 0
  %2325 = vmatpush1.bf16.msra.mxu0 0
  %2326 = vmatprep.subr.bf16.mxu0 0
  %2327 = vmatpush1.bf16.msra.mxu0 0
  %2328 = vmatprep.mubr.bf16.mxu0 0
  %2329 = vmatmul.mubr.bf16.gmra.mrb[0].mxu0 %v2294
  %v2330 = vpop.f32.mrb[0].mxu0
  %v2331 = vadd.f32 0.0, %v2330
  %v2332 = vpop.f32.mrb[0].mxu0
  %v2333 = vpop.f32.mrb[0].mxu0
  %v2334 = vadd.f32 0.0, %v2333
  %v2335 = vpop.f32.mrb[0].mxu0
  %2336 = vdwg.mxu0
  %v2338 = vsel %vm516, %v2101, 0
  %2340 = vmatprep.subr.bf16.mxu0 0
  %2341 = vmatpush1.bf16.msra.mxu0 %v1953
  %2342 = vmatprep.subr.bf16.mxu0 0
  %2343 = vmatpush1.bf16.msra.mxu0 0
  %2344 = vmatprep.subr.bf16.mxu0 0
  %2345 = vmatpush1.bf16.msra.mxu0 0
  %2346 = vmatprep.subr.bf16.mxu0 0
  %2347 = vmatpush1.bf16.msra.mxu0 0
  %2348 = vmatprep.subr.bf16.mxu0 0
  %2349 = vmatpush1.bf16.msra.mxu0 0
  %2350 = vmatprep.subr.bf16.mxu0 0
  %2351 = vmatpush1.bf16.msra.mxu0 0
  %2352 = vmatprep.subr.bf16.mxu0 0
  %2353 = vmatpush1.bf16.msra.mxu0 0
  %2354 = vmatprep.subr.bf16.mxu0 0
  %2355 = vmatpush1.bf16.msra.mxu0 0
  %2356 = vmatprep.subr.bf16.mxu0 0
  %2357 = vmatpush1.bf16.msra.mxu0 0
  %2358 = vmatprep.subr.bf16.mxu0 0
  %2359 = vmatpush1.bf16.msra.mxu0 0
  %2360 = vmatprep.subr.bf16.mxu0 0
  %2361 = vmatpush1.bf16.msra.mxu0 0
  %2362 = vmatprep.subr.bf16.mxu0 0
  %2363 = vmatpush1.bf16.msra.mxu0 0
  %2364 = vmatprep.subr.bf16.mxu0 0
  %2365 = vmatpush1.bf16.msra.mxu0 0
  %2366 = vmatprep.subr.bf16.mxu0 0
  %2367 = vmatpush1.bf16.msra.mxu0 0
  %2368 = vmatprep.subr.bf16.mxu0 0
  %2369 = vmatpush1.bf16.msra.mxu0 0
  %2370 = vmatprep.subr.bf16.mxu0 0
  %2371 = vmatpush1.bf16.msra.mxu0 0
  %2372 = vmatprep.mubr.bf16.mxu0 0
  %2373 = vmatmul.mubr.bf16.gmra.mrb[0].mxu0 %v2338
  %v2374 = vpop.f32.mrb[0].mxu0
  %v2375 = vadd.f32 %v2287, %v2374
  %v2376 = vpop.f32.mrb[0].mxu0
  %v2377 = vpop.f32.mrb[0].mxu0
  %v2378 = vadd.f32 %v2290, %v2377
  %v2379 = vpop.f32.mrb[0].mxu0
  %2380 = vdwg.mxu0
  %v2382 = vsel %vm516, %v2102, 0
  %2384 = vmatprep.subr.bf16.mxu0 0
  %2385 = vmatpush1.bf16.msra.mxu0 %v1954
  %2386 = vmatprep.subr.bf16.mxu0 0
  %2387 = vmatpush1.bf16.msra.mxu0 0
  %2388 = vmatprep.subr.bf16.mxu0 0
  %2389 = vmatpush1.bf16.msra.mxu0 0
  %2390 = vmatprep.subr.bf16.mxu0 0
  %2391 = vmatpush1.bf16.msra.mxu0 0
  %2392 = vmatprep.subr.bf16.mxu0 0
  %2393 = vmatpush1.bf16.msra.mxu0 0
  %2394 = vmatprep.subr.bf16.mxu0 0
  %2395 = vmatpush1.bf16.msra.mxu0 0
  %2396 = vmatprep.subr.bf16.mxu0 0
  %2397 = vmatpush1.bf16.msra.mxu0 0
  %2398 = vmatprep.subr.bf16.mxu0 0
  %2399 = vmatpush1.bf16.msra.mxu0 0
  %2400 = vmatprep.subr.bf16.mxu0 0
  %2401 = vmatpush1.bf16.msra.mxu0 0
  %2402 = vmatprep.subr.bf16.mxu0 0
  %2403 = vmatpush1.bf16.msra.mxu0 0
  %2404 = vmatprep.subr.bf16.mxu0 0
  %2405 = vmatpush1.bf16.msra.mxu0 0
  %2406 = vmatprep.subr.bf16.mxu0 0
  %2407 = vmatpush1.bf16.msra.mxu0 0
  %2408 = vmatprep.subr.bf16.mxu0 0
  %2409 = vmatpush1.bf16.msra.mxu0 0
  %2410 = vmatprep.subr.bf16.mxu0 0
  %2411 = vmatpush1.bf16.msra.mxu0 0
  %2412 = vmatprep.subr.bf16.mxu0 0
  %2413 = vmatpush1.bf16.msra.mxu0 0
  %2414 = vmatprep.subr.bf16.mxu0 0
  %2415 = vmatpush1.bf16.msra.mxu0 0
  %2416 = vmatprep.mubr.bf16.mxu0 0
  %2417 = vmatmul.mubr.bf16.gmra.mrb[0].mxu0 %v2382
  %v2418 = vpop.f32.mrb[0].mxu0
  %v2419 = vadd.f32 %v2331, %v2418
  %v2420 = vpop.f32.mrb[0].mxu0
  %v2421 = vpop.f32.mrb[0].mxu0
  %v2422 = vadd.f32 %v2334, %v2421
  %v2423 = vpop.f32.mrb[0].mxu0
  %2424 = vdwg.mxu0
  %v2425 = vmul.bf16 %v1947, %v183
  %v2426 = vmul.bf16 %v1948, %v183
  %v2427 = vmul.bf16 %v1949, %v183
  %v2428 = vmul.bf16 %v1950, %v183
  %v2430 = vsel %vm208, %v2425, 0
  %2432 = vmatprep.subr.bf16.mxu0 0
  %2433 = vmatpush1.bf16.xpose.msra.mxu0 %v2430
  %2434 = vmatprep.subr.bf16.mxu0 0
  %2435 = vmatpush1.bf16.xpose.msra.mxu0 0
  %2436 = vmatprep.subr.bf16.mxu0 0
  %2437 = vmatpush1.bf16.xpose.msra.mxu0 0
  %2438 = vmatprep.subr.bf16.mxu0 0
  %2439 = vmatpush1.bf16.xpose.msra.mxu0 0
  %2440 = vmatprep.subr.bf16.mxu0 0
  %2441 = vmatpush1.bf16.xpose.msra.mxu0 0
  %2442 = vmatprep.subr.bf16.mxu0 0
  %2443 = vmatpush1.bf16.xpose.msra.mxu0 0
  %2444 = vmatprep.subr.bf16.mxu0 0
  %2445 = vmatpush1.bf16.xpose.msra.mxu0 0
  %2446 = vmatprep.subr.bf16.mxu0 0
  %2447 = vmatpush1.bf16.xpose.msra.mxu0 0
  %2448 = vmatprep.subr.bf16.mxu0 0
  %2449 = vmatpush1.bf16.xpose.msra.mxu0 0
  %2450 = vmatprep.subr.bf16.mxu0 0
  %2451 = vmatpush1.bf16.xpose.msra.mxu0 0
  %2452 = vmatprep.subr.bf16.mxu0 0
  %2453 = vmatpush1.bf16.xpose.msra.mxu0 0
  %2454 = vmatprep.subr.bf16.mxu0 0
  %2455 = vmatpush1.bf16.xpose.msra.mxu0 0
  %2456 = vmatprep.subr.bf16.mxu0 0
  %2457 = vmatpush1.bf16.xpose.msra.mxu0 0
  %2458 = vmatprep.subr.bf16.mxu0 0
  %2459 = vmatpush1.bf16.xpose.msra.mxu0 0
  %2460 = vmatprep.subr.bf16.mxu0 0
  %2461 = vmatpush1.bf16.xpose.msra.mxu0 0
  %2462 = vmatprep.subr.bf16.mxu0 0
  %2463 = vmatpush1.bf16.xpose.msra.mxu0 0
  %2464 = vmatprep.mubr.bf16.mxu0 0
  %2465 = vmatmul.mubr.bf16.gmra.mrb[0].mxu0 %v1956
  %v2466 = vpop.f32.mrb[0].mxu0
  %v2467 = vadd.f32 0.0, %v2466
  %v2468 = vpop.f32.mrb[0].mxu0
  %v2469 = vpop.f32.mrb[0].mxu0
  %v2470 = vadd.f32 0.0, %v2469
  %v2471 = vpop.f32.mrb[0].mxu0
  %2472 = vdwg.mxu0
  %v2474 = vsel %vm208, %v2426, 0
  %2476 = vmatprep.subr.bf16.mxu0 0
  %2477 = vmatpush1.bf16.xpose.msra.mxu0 %v2474
  %2478 = vmatprep.subr.bf16.mxu0 0
  %2479 = vmatpush1.bf16.xpose.msra.mxu0 0
  %2480 = vmatprep.subr.bf16.mxu0 0
  %2481 = vmatpush1.bf16.xpose.msra.mxu0 0
  %2482 = vmatprep.subr.bf16.mxu0 0
  %2483 = vmatpush1.bf16.xpose.msra.mxu0 0
  %2484 = vmatprep.subr.bf16.mxu0 0
  %2485 = vmatpush1.bf16.xpose.msra.mxu0 0
  %2486 = vmatprep.subr.bf16.mxu0 0
  %2487 = vmatpush1.bf16.xpose.msra.mxu0 0
  %2488 = vmatprep.subr.bf16.mxu0 0
  %2489 = vmatpush1.bf16.xpose.msra.mxu0 0
  %2490 = vmatprep.subr.bf16.mxu0 0
  %2491 = vmatpush1.bf16.xpose.msra.mxu0 0
  %2492 = vmatprep.subr.bf16.mxu0 0
  %2493 = vmatpush1.bf16.xpose.msra.mxu0 0
  %2494 = vmatprep.subr.bf16.mxu0 0
  %2495 = vmatpush1.bf16.xpose.msra.mxu0 0
  %2496 = vmatprep.subr.bf16.mxu0 0
  %2497 = vmatpush1.bf16.xpose.msra.mxu0 0
  %2498 = vmatprep.subr.bf16.mxu0 0
  %2499 = vmatpush1.bf16.xpose.msra.mxu0 0
  %2500 = vmatprep.subr.bf16.mxu0 0
  %2501 = vmatpush1.bf16.xpose.msra.mxu0 0
  %2502 = vmatprep.subr.bf16.mxu0 0
  %2503 = vmatpush1.bf16.xpose.msra.mxu0 0
  %2504 = vmatprep.subr.bf16.mxu0 0
  %2505 = vmatpush1.bf16.xpose.msra.mxu0 0
  %2506 = vmatprep.subr.bf16.mxu0 0
  %2507 = vmatpush1.bf16.xpose.msra.mxu0 0
  %2508 = vmatprep.mubr.bf16.mxu0 0
  %2509 = vmatmul.mubr.bf16.gmra.mrb[0].mxu0 %v2003
  %v2510 = vpop.f32.mrb[0].mxu0
  %v2511 = vadd.f32 0.0, %v2510
  %v2512 = vpop.f32.mrb[0].mxu0
  %v2513 = vpop.f32.mrb[0].mxu0
  %v2514 = vadd.f32 0.0, %v2513
  %v2515 = vpop.f32.mrb[0].mxu0
  %2516 = vdwg.mxu0
  %v2517 = vmul.f32 %v2467, 0.35355338
  %v2518 = vmul.f32 %v2470, 0.35355338
  %v2519 = vmul.f32 %v2511, 0.35355338
  %v2520 = vmul.f32 %v2514, 0.35355338
  %v2521 = vadd.f32 %v2517, %v505
  %v2522 = vadd.f32 %v2518, %v505
  %v2523 = vadd.f32 %v2519, %v509
  %v2524 = vadd.f32 %v2520, %v509
  %v2525 = vsel %vm516, %v2521, -inf
  %2526 = vmax.xlane.f32.xlu0 %v2525
  %v2527 = vpop.xlane.xlu0 %2526
  %v2528 = vsel %vm516, %v2522, -inf
  %2529 = vmax.xlane.f32.xlu0 %v2528
  %v2530 = vpop.xlane.xlu0 %2529
  %v2531 = vsel %vm516, %v2523, -inf
  %2532 = vmax.xlane.f32.xlu0 %v2531
  %v2533 = vpop.xlane.xlu0 %2532
  %v2534 = vsel %vm516, %v2524, -inf
  %2535 = vmax.xlane.f32.xlu0 %v2534
  %v2536 = vpop.xlane.xlu0 %2535
  %v2537 = vsub.f32 %v2521, %v2527
  %v2538 = vsub.f32 %v2522, %v2530
  %v2539 = vsub.f32 %v2523, %v2533
  %v2540 = vsub.f32 %v2524, %v2536
  %v2541 = vmul.f32 %v2537, 1.442695
  %v2542 = vpow.pop %v2541
  %v2543 = vmul.f32 %v2538, 1.442695
  %v2544 = vpow.pop %v2543
  %v2545 = vmul.f32 %v2539, 1.442695
  %v2546 = vpow.pop %v2545
  %v2547 = vmul.f32 %v2540, 1.442695
  %v2548 = vpow.pop %v2547
  %v2549 = vsel %vm516, %v2542, 0.0
  %2550 = vadd.xlane.f32.xlu0 %v2549
  %v2551 = vpop.xlane.xlu0 %2550
  %v2552 = vsel %vm516, %v2544, 0.0
  %2553 = vadd.xlane.f32.xlu0 %v2552
  %v2554 = vpop.xlane.xlu0 %2553
  %v2555 = vsel %vm516, %v2546, 0.0
  %2556 = vadd.xlane.f32.xlu0 %v2555
  %v2557 = vpop.xlane.xlu0 %2556
  %v2558 = vsel %vm516, %v2548, 0.0
  %2559 = vadd.xlane.f32.xlu0 %v2558
  %v2560 = vpop.xlane.xlu0 %2559
  %v2561 = vrcp.pop %v2551
  %v2562 = vrcp.pop %v2554
  %v2563 = vrcp.pop %v2557
  %v2564 = vrcp.pop %v2560
  %v2565 = vmul.f32 %v2542, %v2561
  %v2566 = vmul.f32 %v2544, %v2562
  %v2567 = vmul.f32 %v2546, %v2563
  %v2568 = vmul.f32 %v2548, %v2564
  %v2569 = vpack.c.bf16 %v2566, %v2565
  %v2570 = vpack.c.bf16 %v2568, %v2567
  %v2572 = vsel %vm516, %v2569, 0
  %2574 = vmatprep.subr.bf16.mxu0 0
  %2575 = vmatpush1.bf16.msra.mxu0 %v2427
  %2576 = vmatprep.subr.bf16.mxu0 0
  %2577 = vmatpush1.bf16.msra.mxu0 0
  %2578 = vmatprep.subr.bf16.mxu0 0
  %2579 = vmatpush1.bf16.msra.mxu0 0
  %2580 = vmatprep.subr.bf16.mxu0 0
  %2581 = vmatpush1.bf16.msra.mxu0 0
  %2582 = vmatprep.subr.bf16.mxu0 0
  %2583 = vmatpush1.bf16.msra.mxu0 0
  %2584 = vmatprep.subr.bf16.mxu0 0
  %2585 = vmatpush1.bf16.msra.mxu0 0
  %2586 = vmatprep.subr.bf16.mxu0 0
  %2587 = vmatpush1.bf16.msra.mxu0 0
  %2588 = vmatprep.subr.bf16.mxu0 0
  %2589 = vmatpush1.bf16.msra.mxu0 0
  %2590 = vmatprep.subr.bf16.mxu0 0
  %2591 = vmatpush1.bf16.msra.mxu0 0
  %2592 = vmatprep.subr.bf16.mxu0 0
  %2593 = vmatpush1.bf16.msra.mxu0 0
  %2594 = vmatprep.subr.bf16.mxu0 0
  %2595 = vmatpush1.bf16.msra.mxu0 0
  %2596 = vmatprep.subr.bf16.mxu0 0
  %2597 = vmatpush1.bf16.msra.mxu0 0
  %2598 = vmatprep.subr.bf16.mxu0 0
  %2599 = vmatpush1.bf16.msra.mxu0 0
  %2600 = vmatprep.subr.bf16.mxu0 0
  %2601 = vmatpush1.bf16.msra.mxu0 0
  %2602 = vmatprep.subr.bf16.mxu0 0
  %2603 = vmatpush1.bf16.msra.mxu0 0
  %2604 = vmatprep.subr.bf16.mxu0 0
  %2605 = vmatpush1.bf16.msra.mxu0 0
  %2606 = vmatprep.mubr.bf16.mxu0 0
  %2607 = vmatmul.mubr.bf16.gmra.mrb[0].mxu0 %v2572
  %v2608 = vpop.f32.mrb[0].mxu0
  %v2609 = vadd.f32 0.0, %v2608
  %v2610 = vpop.f32.mrb[0].mxu0
  %v2611 = vpop.f32.mrb[0].mxu0
  %v2612 = vadd.f32 0.0, %v2611
  %v2613 = vpop.f32.mrb[0].mxu0
  %2614 = vdwg.mxu0
  %v2616 = vsel %vm516, %v2570, 0
  %2618 = vmatprep.subr.bf16.mxu0 0
  %2619 = vmatpush1.bf16.msra.mxu0 %v2428
  %2620 = vmatprep.subr.bf16.mxu0 0
  %2621 = vmatpush1.bf16.msra.mxu0 0
  %2622 = vmatprep.subr.bf16.mxu0 0
  %2623 = vmatpush1.bf16.msra.mxu0 0
  %2624 = vmatprep.subr.bf16.mxu0 0
  %2625 = vmatpush1.bf16.msra.mxu0 0
  %2626 = vmatprep.subr.bf16.mxu0 0
  %2627 = vmatpush1.bf16.msra.mxu0 0
  %2628 = vmatprep.subr.bf16.mxu0 0
  %2629 = vmatpush1.bf16.msra.mxu0 0
  %2630 = vmatprep.subr.bf16.mxu0 0
  %2631 = vmatpush1.bf16.msra.mxu0 0
  %2632 = vmatprep.subr.bf16.mxu0 0
  %2633 = vmatpush1.bf16.msra.mxu0 0
  %2634 = vmatprep.subr.bf16.mxu0 0
  %2635 = vmatpush1.bf16.msra.mxu0 0
  %2636 = vmatprep.subr.bf16.mxu0 0
  %2637 = vmatpush1.bf16.msra.mxu0 0
  %2638 = vmatprep.subr.bf16.mxu0 0
  %2639 = vmatpush1.bf16.msra.mxu0 0
  %2640 = vmatprep.subr.bf16.mxu0 0
  %2641 = vmatpush1.bf16.msra.mxu0 0
  %2642 = vmatprep.subr.bf16.mxu0 0
  %2643 = vmatpush1.bf16.msra.mxu0 0
  %2644 = vmatprep.subr.bf16.mxu0 0
  %2645 = vmatpush1.bf16.msra.mxu0 0
  %2646 = vmatprep.subr.bf16.mxu0 0
  %2647 = vmatpush1.bf16.msra.mxu0 0
  %2648 = vmatprep.subr.bf16.mxu0 0
  %2649 = vmatpush1.bf16.msra.mxu0 0
  %2650 = vmatprep.mubr.bf16.mxu0 0
  %2651 = vmatmul.mubr.bf16.gmra.mrb[0].mxu0 %v2616
  %v2652 = vpop.f32.mrb[0].mxu0
  %v2653 = vadd.f32 0.0, %v2652
  %v2654 = vpop.f32.mrb[0].mxu0
  %v2655 = vpop.f32.mrb[0].mxu0
  %v2656 = vadd.f32 0.0, %v2655
  %v2657 = vpop.f32.mrb[0].mxu0
  %2658 = vdwg.mxu0
  %v2659 = vadd.f32 %v2375, %v2609
  %v2660 = vadd.f32 %v2378, %v2612
  %v2661 = vadd.f32 %v2419, %v2653
  %v2662 = vadd.f32 %v2422, %v2656
  %v2663 = vmul.bf16 %v1947, %v189
  %v2664 = vmul.bf16 %v1948, %v189
  %v2665 = vmul.bf16 %v1949, %v189
  %v2666 = vmul.bf16 %v1950, %v189
  %v2668 = vsel %vm208, %v2663, 0
  %2670 = vmatprep.subr.bf16.mxu0 0
  %2671 = vmatpush1.bf16.xpose.msra.mxu0 %v2668
  %2672 = vmatprep.subr.bf16.mxu0 0
  %2673 = vmatpush1.bf16.xpose.msra.mxu0 0
  %2674 = vmatprep.subr.bf16.mxu0 0
  %2675 = vmatpush1.bf16.xpose.msra.mxu0 0
  %2676 = vmatprep.subr.bf16.mxu0 0
  %2677 = vmatpush1.bf16.xpose.msra.mxu0 0
  %2678 = vmatprep.subr.bf16.mxu0 0
  %2679 = vmatpush1.bf16.xpose.msra.mxu0 0
  %2680 = vmatprep.subr.bf16.mxu0 0
  %2681 = vmatpush1.bf16.xpose.msra.mxu0 0
  %2682 = vmatprep.subr.bf16.mxu0 0
  %2683 = vmatpush1.bf16.xpose.msra.mxu0 0
  %2684 = vmatprep.subr.bf16.mxu0 0
  %2685 = vmatpush1.bf16.xpose.msra.mxu0 0
  %2686 = vmatprep.subr.bf16.mxu0 0
  %2687 = vmatpush1.bf16.xpose.msra.mxu0 0
  %2688 = vmatprep.subr.bf16.mxu0 0
  %2689 = vmatpush1.bf16.xpose.msra.mxu0 0
  %2690 = vmatprep.subr.bf16.mxu0 0
  %2691 = vmatpush1.bf16.xpose.msra.mxu0 0
  %2692 = vmatprep.subr.bf16.mxu0 0
  %2693 = vmatpush1.bf16.xpose.msra.mxu0 0
  %2694 = vmatprep.subr.bf16.mxu0 0
  %2695 = vmatpush1.bf16.xpose.msra.mxu0 0
  %2696 = vmatprep.subr.bf16.mxu0 0
  %2697 = vmatpush1.bf16.xpose.msra.mxu0 0
  %2698 = vmatprep.subr.bf16.mxu0 0
  %2699 = vmatpush1.bf16.xpose.msra.mxu0 0
  %2700 = vmatprep.subr.bf16.mxu0 0
  %2701 = vmatpush1.bf16.xpose.msra.mxu0 0
  %2702 = vmatprep.mubr.bf16.mxu0 0
  %2703 = vmatmul.mubr.bf16.gmra.mrb[0].mxu0 %v1956
  %v2704 = vpop.f32.mrb[0].mxu0
  %v2705 = vadd.f32 0.0, %v2704
  %v2706 = vpop.f32.mrb[0].mxu0
  %v2707 = vpop.f32.mrb[0].mxu0
  %v2708 = vadd.f32 0.0, %v2707
  %v2709 = vpop.f32.mrb[0].mxu0
  %2710 = vdwg.mxu0
  %v2712 = vsel %vm208, %v2664, 0
  %2714 = vmatprep.subr.bf16.mxu0 0
  %2715 = vmatpush1.bf16.xpose.msra.mxu0 %v2712
  %2716 = vmatprep.subr.bf16.mxu0 0
  %2717 = vmatpush1.bf16.xpose.msra.mxu0 0
  %2718 = vmatprep.subr.bf16.mxu0 0
  %2719 = vmatpush1.bf16.xpose.msra.mxu0 0
  %2720 = vmatprep.subr.bf16.mxu0 0
  %2721 = vmatpush1.bf16.xpose.msra.mxu0 0
  %2722 = vmatprep.subr.bf16.mxu0 0
  %2723 = vmatpush1.bf16.xpose.msra.mxu0 0
  %2724 = vmatprep.subr.bf16.mxu0 0
  %2725 = vmatpush1.bf16.xpose.msra.mxu0 0
  %2726 = vmatprep.subr.bf16.mxu0 0
  %2727 = vmatpush1.bf16.xpose.msra.mxu0 0
  %2728 = vmatprep.subr.bf16.mxu0 0
  %2729 = vmatpush1.bf16.xpose.msra.mxu0 0
  %2730 = vmatprep.subr.bf16.mxu0 0
  %2731 = vmatpush1.bf16.xpose.msra.mxu0 0
  %2732 = vmatprep.subr.bf16.mxu0 0
  %2733 = vmatpush1.bf16.xpose.msra.mxu0 0
  %2734 = vmatprep.subr.bf16.mxu0 0
  %2735 = vmatpush1.bf16.xpose.msra.mxu0 0
  %2736 = vmatprep.subr.bf16.mxu0 0
  %2737 = vmatpush1.bf16.xpose.msra.mxu0 0
  %2738 = vmatprep.subr.bf16.mxu0 0
  %2739 = vmatpush1.bf16.xpose.msra.mxu0 0
  %2740 = vmatprep.subr.bf16.mxu0 0
  %2741 = vmatpush1.bf16.xpose.msra.mxu0 0
  %2742 = vmatprep.subr.bf16.mxu0 0
  %2743 = vmatpush1.bf16.xpose.msra.mxu0 0
  %2744 = vmatprep.subr.bf16.mxu0 0
  %2745 = vmatpush1.bf16.xpose.msra.mxu0 0
  %2746 = vmatprep.mubr.bf16.mxu0 0
  %2747 = vmatmul.mubr.bf16.gmra.mrb[0].mxu0 %v2003
  %v2748 = vpop.f32.mrb[0].mxu0
  %v2749 = vadd.f32 0.0, %v2748
  %v2750 = vpop.f32.mrb[0].mxu0
  %v2751 = vpop.f32.mrb[0].mxu0
  %v2752 = vadd.f32 0.0, %v2751
  %v2753 = vpop.f32.mrb[0].mxu0
  %2754 = vdwg.mxu0
  %v2755 = vmul.f32 %v2705, 0.35355338
  %v2756 = vmul.f32 %v2708, 0.35355338
  %v2757 = vmul.f32 %v2749, 0.35355338
  %v2758 = vmul.f32 %v2752, 0.35355338
  %v2759 = vadd.f32 %v2755, %v505
  %v2760 = vadd.f32 %v2756, %v505
  %v2761 = vadd.f32 %v2757, %v509
  %v2762 = vadd.f32 %v2758, %v509
  %v2763 = vsel %vm516, %v2759, -inf
  %2764 = vmax.xlane.f32.xlu0 %v2763
  %v2765 = vpop.xlane.xlu0 %2764
  %v2766 = vsel %vm516, %v2760, -inf
  %2767 = vmax.xlane.f32.xlu0 %v2766
  %v2768 = vpop.xlane.xlu0 %2767
  %v2769 = vsel %vm516, %v2761, -inf
  %2770 = vmax.xlane.f32.xlu0 %v2769
  %v2771 = vpop.xlane.xlu0 %2770
  %v2772 = vsel %vm516, %v2762, -inf
  %2773 = vmax.xlane.f32.xlu0 %v2772
  %v2774 = vpop.xlane.xlu0 %2773
  %v2775 = vsub.f32 %v2759, %v2765
  %v2776 = vsub.f32 %v2760, %v2768
  %v2777 = vsub.f32 %v2761, %v2771
  %v2778 = vsub.f32 %v2762, %v2774
  %v2779 = vmul.f32 %v2775, 1.442695
  %v2780 = vpow.pop %v2779
  %v2781 = vmul.f32 %v2776, 1.442695
  %v2782 = vpow.pop %v2781
  %v2783 = vmul.f32 %v2777, 1.442695
  %v2784 = vpow.pop %v2783
  %v2785 = vmul.f32 %v2778, 1.442695
  %v2786 = vpow.pop %v2785
  %v2787 = vsel %vm516, %v2780, 0.0
  %2788 = vadd.xlane.f32.xlu0 %v2787
  %v2789 = vpop.xlane.xlu0 %2788
  %v2790 = vsel %vm516, %v2782, 0.0
  %2791 = vadd.xlane.f32.xlu0 %v2790
  %v2792 = vpop.xlane.xlu0 %2791
  %v2793 = vsel %vm516, %v2784, 0.0
  %2794 = vadd.xlane.f32.xlu0 %v2793
  %v2795 = vpop.xlane.xlu0 %2794
  %v2796 = vsel %vm516, %v2786, 0.0
  %2797 = vadd.xlane.f32.xlu0 %v2796
  %v2798 = vpop.xlane.xlu0 %2797
  %v2799 = vrcp.pop %v2789
  %v2800 = vrcp.pop %v2792
  %v2801 = vrcp.pop %v2795
  %v2802 = vrcp.pop %v2798
  %v2803 = vmul.f32 %v2780, %v2799
  %v2804 = vmul.f32 %v2782, %v2800
  %v2805 = vmul.f32 %v2784, %v2801
  %v2806 = vmul.f32 %v2786, %v2802
  %v2807 = vpack.c.bf16 %v2804, %v2803
  %v2808 = vpack.c.bf16 %v2806, %v2805
  %v2810 = vsel %vm516, %v2807, 0
  %2812 = vmatprep.subr.bf16.mxu0 0
  %2813 = vmatpush1.bf16.msra.mxu0 %v2665
  %2814 = vmatprep.subr.bf16.mxu0 0
  %2815 = vmatpush1.bf16.msra.mxu0 0
  %2816 = vmatprep.subr.bf16.mxu0 0
  %2817 = vmatpush1.bf16.msra.mxu0 0
  %2818 = vmatprep.subr.bf16.mxu0 0
  %2819 = vmatpush1.bf16.msra.mxu0 0
  %2820 = vmatprep.subr.bf16.mxu0 0
  %2821 = vmatpush1.bf16.msra.mxu0 0
  %2822 = vmatprep.subr.bf16.mxu0 0
  %2823 = vmatpush1.bf16.msra.mxu0 0
  %2824 = vmatprep.subr.bf16.mxu0 0
  %2825 = vmatpush1.bf16.msra.mxu0 0
  %2826 = vmatprep.subr.bf16.mxu0 0
  %2827 = vmatpush1.bf16.msra.mxu0 0
  %2828 = vmatprep.subr.bf16.mxu0 0
  %2829 = vmatpush1.bf16.msra.mxu0 0
  %2830 = vmatprep.subr.bf16.mxu0 0
  %2831 = vmatpush1.bf16.msra.mxu0 0
  %2832 = vmatprep.subr.bf16.mxu0 0
  %2833 = vmatpush1.bf16.msra.mxu0 0
  %2834 = vmatprep.subr.bf16.mxu0 0
  %2835 = vmatpush1.bf16.msra.mxu0 0
  %2836 = vmatprep.subr.bf16.mxu0 0
  %2837 = vmatpush1.bf16.msra.mxu0 0
  %2838 = vmatprep.subr.bf16.mxu0 0
  %2839 = vmatpush1.bf16.msra.mxu0 0
  %2840 = vmatprep.subr.bf16.mxu0 0
  %2841 = vmatpush1.bf16.msra.mxu0 0
  %2842 = vmatprep.subr.bf16.mxu0 0
  %2843 = vmatpush1.bf16.msra.mxu0 0
  %2844 = vmatprep.mubr.bf16.mxu0 0
  %2845 = vmatmul.mubr.bf16.gmra.mrb[0].mxu0 %v2810
  %v2846 = vpop.f32.mrb[0].mxu0
  %v2847 = vadd.f32 0.0, %v2846
  %v2848 = vpop.f32.mrb[0].mxu0
  %v2849 = vpop.f32.mrb[0].mxu0
  %v2850 = vadd.f32 0.0, %v2849
  %v2851 = vpop.f32.mrb[0].mxu0
  %2852 = vdwg.mxu0
  %v2854 = vsel %vm516, %v2808, 0
  %2856 = vmatprep.subr.bf16.mxu0 0
  %2857 = vmatpush1.bf16.msra.mxu0 %v2666
  %2858 = vmatprep.subr.bf16.mxu0 0
  %2859 = vmatpush1.bf16.msra.mxu0 0
  %2860 = vmatprep.subr.bf16.mxu0 0
  %2861 = vmatpush1.bf16.msra.mxu0 0
  %2862 = vmatprep.subr.bf16.mxu0 0
  %2863 = vmatpush1.bf16.msra.mxu0 0
  %2864 = vmatprep.subr.bf16.mxu0 0
  %2865 = vmatpush1.bf16.msra.mxu0 0
  %2866 = vmatprep.subr.bf16.mxu0 0
  %2867 = vmatpush1.bf16.msra.mxu0 0
  %2868 = vmatprep.subr.bf16.mxu0 0
  %2869 = vmatpush1.bf16.msra.mxu0 0
  %2870 = vmatprep.subr.bf16.mxu0 0
  %2871 = vmatpush1.bf16.msra.mxu0 0
  %2872 = vmatprep.subr.bf16.mxu0 0
  %2873 = vmatpush1.bf16.msra.mxu0 0
  %2874 = vmatprep.subr.bf16.mxu0 0
  %2875 = vmatpush1.bf16.msra.mxu0 0
  %2876 = vmatprep.subr.bf16.mxu0 0
  %2877 = vmatpush1.bf16.msra.mxu0 0
  %2878 = vmatprep.subr.bf16.mxu0 0
  %2879 = vmatpush1.bf16.msra.mxu0 0
  %2880 = vmatprep.subr.bf16.mxu0 0
  %2881 = vmatpush1.bf16.msra.mxu0 0
  %2882 = vmatprep.subr.bf16.mxu0 0
  %2883 = vmatpush1.bf16.msra.mxu0 0
  %2884 = vmatprep.subr.bf16.mxu0 0
  %2885 = vmatpush1.bf16.msra.mxu0 0
  %2886 = vmatprep.subr.bf16.mxu0 0
  %2887 = vmatpush1.bf16.msra.mxu0 0
  %2888 = vmatprep.mubr.bf16.mxu0 0
  %2889 = vmatmul.mubr.bf16.gmra.mrb[0].mxu0 %v2854
  %v2890 = vpop.f32.mrb[0].mxu0
  %v2891 = vadd.f32 0.0, %v2890
  %v2892 = vpop.f32.mrb[0].mxu0
  %v2893 = vpop.f32.mrb[0].mxu0
  %v2894 = vadd.f32 0.0, %v2893
  %v2895 = vpop.f32.mrb[0].mxu0
  %2896 = vdwg.mxu0
  %v2897 = vadd.f32 %v2659, %v2847
  %v2898 = vadd.f32 %v2660, %v2850
  %v2899 = vadd.f32 %v2661, %v2891
  %v2900 = vadd.f32 %v2662, %v2894
  %v2901 = vpack.c.bf16 %v2898, %v2897
  %v2902 = vpack.c.bf16 %v2900, %v2899
  %v2903 = vlaneseq
  %v2904 = vshrl.u32 %v2903, 7
  %v2905 = vsub.s32 3, %v2904
  %v2906 = vrot.slane %v136, %v2905
  %v2911 = vunpack.c.l.b16 %v107
  %v2912 = vunpack.c.l.b16 %v108
  %v2913 = vunpack.c.l.b16 %v109
  %v2914 = vunpack.c.l.b16 %v110
  %v2915 = vpack.c.b16 %v2912, %v2911
  %v2916 = vpack.c.b16 %v2914, %v2913
  %v2920 = vsel %vm208, %v2901, 0
  %v2923 = vsel %vm208, %v2902, 0
  %2925 = vmatprep.subr.bf16.mxu0 0
  %2926 = vmatpush1.bf16.msra.mxu0 %v2915
  %2927 = vmatprep.subr.bf16.mxu0 0
  %2928 = vmatpush1.bf16.msra.mxu0 %v2916
  %2929 = vmatprep.subr.bf16.mxu0 0
  %2930 = vmatpush1.bf16.msra.mxu0 0
  %2931 = vmatprep.subr.bf16.mxu0 0
  %2932 = vmatpush1.bf16.msra.mxu0 0
  %2933 = vmatprep.subr.bf16.mxu0 0
  %2934 = vmatpush1.bf16.msra.mxu0 0
  %2935 = vmatprep.subr.bf16.mxu0 0
  %2936 = vmatpush1.bf16.msra.mxu0 0
  %2937 = vmatprep.subr.bf16.mxu0 0
  %2938 = vmatpush1.bf16.msra.mxu0 0
  %2939 = vmatprep.subr.bf16.mxu0 0
  %2940 = vmatpush1.bf16.msra.mxu0 0
  %2941 = vmatprep.subr.bf16.mxu0 0
  %2942 = vmatpush1.bf16.msra.mxu0 0
  %2943 = vmatprep.subr.bf16.mxu0 0
  %2944 = vmatpush1.bf16.msra.mxu0 0
  %2945 = vmatprep.subr.bf16.mxu0 0
  %2946 = vmatpush1.bf16.msra.mxu0 0
  %2947 = vmatprep.subr.bf16.mxu0 0
  %2948 = vmatpush1.bf16.msra.mxu0 0
  %2949 = vmatprep.subr.bf16.mxu0 0
  %2950 = vmatpush1.bf16.msra.mxu0 0
  %2951 = vmatprep.subr.bf16.mxu0 0
  %2952 = vmatpush1.bf16.msra.mxu0 0
  %2953 = vmatprep.subr.bf16.mxu0 0
  %2954 = vmatpush1.bf16.msra.mxu0 0
  %2955 = vmatprep.subr.bf16.mxu0 0
  %2956 = vmatpush1.bf16.msra.mxu0 0
  %2957 = vmatprep.mubr.bf16.mxu0 0
  %2958 = vmatmul.mubr.bf16.gmra.mrb[0].mxu0 %v2920
  %v2959 = vpop.f32.mrb[0].mxu0
  %v2960 = vadd.f32 %v2906, %v2959
  %v2961 = vpop.f32.mrb[0].mxu0
  %v2962 = vpop.f32.mrb[0].mxu0
  %v2963 = vadd.f32 %v2906, %v2962
  %v2964 = vpop.f32.mrb[0].mxu0
  %2965 = vmatprep.mubr.bf16.mxu0 0
  %2966 = vmatmul.mubr.bf16.gmra.mrb[0].mxu0 %v2923
  %v2967 = vpop.f32.mrb[0].mxu0
  %v2968 = vadd.f32 %v2906, %v2967
  %v2969 = vpop.f32.mrb[0].mxu0
  %v2970 = vpop.f32.mrb[0].mxu0
  %v2971 = vadd.f32 %v2906, %v2970
  %v2972 = vpop.f32.mrb[0].mxu0
  %2973 = vdwg.mxu0
  %v2974 = vadd.f32 %v1738, %v2960
  %v2975 = vadd.f32 %v1739, %v2963
  %v2976 = vadd.f32 %v1740, %v2968
  %v2977 = vadd.f32 %v1741, %v2971
  %v2978 = vsel %vm208, %v2974, 0.0
  %2979 = vadd.xlane.f32.xlu0 %v2978
  %v2980 = vpop.xlane.xlu0 %2979
  %v2981 = vsel %vm208, %v2975, 0.0
  %2982 = vadd.xlane.f32.xlu0 %v2981
  %v2983 = vpop.xlane.xlu0 %2982
  %v2984 = vsel %vm208, %v2976, 0.0
  %2985 = vadd.xlane.f32.xlu0 %v2984
  %v2986 = vpop.xlane.xlu0 %2985
  %v2987 = vsel %vm208, %v2977, 0.0
  %2988 = vadd.xlane.f32.xlu0 %v2987
  %v2989 = vpop.xlane.xlu0 %2988
  %v2990 = vmul.f32 %v2980, %v1450
  %v2991 = vmul.f32 %v2983, %v1450
  %v2992 = vmul.f32 %v2986, %v1450
  %v2993 = vmul.f32 %v2989, %v1450
  %v2994 = vsub.f32 %v2974, %v2990
  %v2995 = vsub.f32 %v2975, %v2991
  %v2996 = vsub.f32 %v2976, %v2992
  %v2997 = vsub.f32 %v2977, %v2993
  %v2998 = vmul.f32 %v2994, %v2994
  %v2999 = vmul.f32 %v2995, %v2995
  %v3000 = vmul.f32 %v2996, %v2996
  %v3001 = vmul.f32 %v2997, %v2997
  %v3002 = vsel %vm208, %v2998, 0.0
  %3003 = vadd.xlane.f32.xlu0 %v3002
  %v3004 = vpop.xlane.xlu0 %3003
  %v3005 = vsel %vm208, %v2999, 0.0
  %3006 = vadd.xlane.f32.xlu0 %v3005
  %v3007 = vpop.xlane.xlu0 %3006
  %v3008 = vsel %vm208, %v3000, 0.0
  %3009 = vadd.xlane.f32.xlu0 %v3008
  %v3010 = vpop.xlane.xlu0 %3009
  %v3011 = vsel %vm208, %v3001, 0.0
  %3012 = vadd.xlane.f32.xlu0 %v3011
  %v3013 = vpop.xlane.xlu0 %3012
  %v3014 = vmul.f32 %v3004, %v1450
  %v3015 = vmul.f32 %v3007, %v1450
  %v3016 = vmul.f32 %v3010, %v1450
  %v3017 = vmul.f32 %v3013, %v1450
  %v3018 = vadd.f32 %v3014, 1e-05
  %v3019 = vadd.f32 %v3015, 1e-05
  %v3020 = vadd.f32 %v3016, 1e-05
  %v3021 = vadd.f32 %v3017, 1e-05
  %v3022 = vrsqrt.pop %v3018
  %v3023 = vrsqrt.pop %v3019
  %v3024 = vrsqrt.pop %v3020
  %v3025 = vrsqrt.pop %v3021
  %v3026 = vmul.f32 %v2994, %v3022
  %v3027 = vmul.f32 %v2995, %v3023
  %v3028 = vmul.f32 %v2996, %v3024
  %v3029 = vmul.f32 %v2997, %v3025
  %v3030 = vlaneseq
  %v3031 = vshrl.u32 %v3030, 7
  %v3032 = vsub.s32 1, %v3031
  %v3033 = vrot.slane %v139, %v3032
  %v3034 = vmul.f32 %v3026, %v3033
  %v3035 = vmul.f32 %v3027, %v3033
  %v3036 = vmul.f32 %v3028, %v3033
  %v3037 = vmul.f32 %v3029, %v3033
  %v3038 = vlaneseq
  %v3039 = vshrl.u32 %v3038, 7
  %v3040 = vsub.s32 2, %v3039
  %v3041 = vrot.slane %v139, %v3040
  %v3042 = vadd.f32 %v3034, %v3041
  %v3043 = vadd.f32 %v3035, %v3041
  %v3044 = vadd.f32 %v3036, %v3041
  %v3045 = vadd.f32 %v3037, %v3041
  %v3046 = vpack.c.bf16 %v3043, %v3042
  %v3047 = vpack.c.bf16 %v3045, %v3044
  %v3048 = vlaneseq
  %v3049 = vshrl.u32 %v3048, 7
  %v3050 = vsub.s32 1, %v3049
  %v3051 = vrot.slane %v137, %v3050
  %v3056 = vunpack.c.l.b16 %v115
  %v3057 = vunpack.c.l.b16 %v116
  %v3058 = vunpack.c.l.b16 %v117
  %v3059 = vunpack.c.l.b16 %v118
  %v3060 = vpack.c.b16 %v3057, %v3056
  %v3061 = vpack.c.b16 %v3059, %v3058
  %v3065 = vsel %vm208, %v3046, 0
  %v3068 = vsel %vm208, %v3047, 0
  %3070 = vmatprep.subr.bf16.mxu0 0
  %3071 = vmatpush1.bf16.msra.mxu0 %v3060
  %3072 = vmatprep.subr.bf16.mxu0 0
  %3073 = vmatpush1.bf16.msra.mxu0 %v3061
  %3074 = vmatprep.subr.bf16.mxu0 0
  %3075 = vmatpush1.bf16.msra.mxu0 0
  %3076 = vmatprep.subr.bf16.mxu0 0
  %3077 = vmatpush1.bf16.msra.mxu0 0
  %3078 = vmatprep.subr.bf16.mxu0 0
  %3079 = vmatpush1.bf16.msra.mxu0 0
  %3080 = vmatprep.subr.bf16.mxu0 0
  %3081 = vmatpush1.bf16.msra.mxu0 0
  %3082 = vmatprep.subr.bf16.mxu0 0
  %3083 = vmatpush1.bf16.msra.mxu0 0
  %3084 = vmatprep.subr.bf16.mxu0 0
  %3085 = vmatpush1.bf16.msra.mxu0 0
  %3086 = vmatprep.subr.bf16.mxu0 0
  %3087 = vmatpush1.bf16.msra.mxu0 0
  %3088 = vmatprep.subr.bf16.mxu0 0
  %3089 = vmatpush1.bf16.msra.mxu0 0
  %3090 = vmatprep.subr.bf16.mxu0 0
  %3091 = vmatpush1.bf16.msra.mxu0 0
  %3092 = vmatprep.subr.bf16.mxu0 0
  %3093 = vmatpush1.bf16.msra.mxu0 0
  %3094 = vmatprep.subr.bf16.mxu0 0
  %3095 = vmatpush1.bf16.msra.mxu0 0
  %3096 = vmatprep.subr.bf16.mxu0 0
  %3097 = vmatpush1.bf16.msra.mxu0 0
  %3098 = vmatprep.subr.bf16.mxu0 0
  %3099 = vmatpush1.bf16.msra.mxu0 0
  %3100 = vmatprep.subr.bf16.mxu0 0
  %3101 = vmatpush1.bf16.msra.mxu0 0
  %3102 = vmatprep.mubr.bf16.mxu0 0
  %3103 = vmatmul.mubr.bf16.gmra.mrb[0].mxu0 %v3065
  %v3104 = vpop.f32.mrb[0].mxu0
  %v3105 = vadd.f32 %v3051, %v3104
  %v3106 = vpop.f32.mrb[0].mxu0
  %v3107 = vpop.f32.mrb[0].mxu0
  %v3108 = vadd.f32 %v3051, %v3107
  %v3109 = vpop.f32.mrb[0].mxu0
  %3110 = vmatprep.mubr.bf16.mxu0 0
  %3111 = vmatmul.mubr.bf16.gmra.mrb[0].mxu0 %v3068
  %v3112 = vpop.f32.mrb[0].mxu0
  %v3113 = vadd.f32 %v3051, %v3112
  %v3114 = vpop.f32.mrb[0].mxu0
  %v3115 = vpop.f32.mrb[0].mxu0
  %v3116 = vadd.f32 %v3051, %v3115
  %v3117 = vpop.f32.mrb[0].mxu0
  %3118 = vdwg.mxu0
  %v3119 = vmax.f32 %v3105, 0.0
  %v3120 = vmax.f32 %v3108, 0.0
  %v3121 = vmax.f32 %v3113, 0.0
  %v3122 = vmax.f32 %v3116, 0.0
  %v3123 = vpack.c.bf16 %v3120, %v3119
  %v3124 = vpack.c.bf16 %v3122, %v3121
  %v3125 = vlaneseq
  %v3126 = vshrl.u32 %v3125, 7
  %v3127 = vsub.s32 0, %v3126
  %v3128 = vrot.slane %v139, %v3127
  %v3137 = vunpack.c.l.b16 %v127
  %v3138 = vunpack.c.l.b16 %v128
  %v3139 = vunpack.c.l.b16 %v129
  %v3140 = vunpack.c.l.b16 %v130
  %v3141 = vunpack.c.l.b16 %v131
  %v3142 = vunpack.c.l.b16 %v132
  %v3143 = vunpack.c.l.b16 %v133
  %v3144 = vunpack.c.l.b16 %v134
  %v3145 = vpack.c.b16 %v3138, %v3137
  %v3146 = vpack.c.b16 %v3140, %v3139
  %v3147 = vpack.c.b16 %v3142, %v3141
  %v3148 = vpack.c.b16 %v3144, %v3143
  %v3154 = vsel %vm1614, %v3123, 0
  %v3157 = vsel %vm1614, %v3124, 0
  %3159 = vmatprep.subr.bf16.mxu0 0
  %3160 = vmatpush1.bf16.msra.mxu0 %v3145
  %3161 = vmatprep.subr.bf16.mxu0 0
  %3162 = vmatpush1.bf16.msra.mxu0 %v3146
  %3163 = vmatprep.subr.bf16.mxu0 0
  %3164 = vmatpush1.bf16.msra.mxu0 %v3147
  %3165 = vmatprep.subr.bf16.mxu0 0
  %3166 = vmatpush1.bf16.msra.mxu0 %v3148
  %3167 = vmatprep.subr.bf16.mxu0 0
  %3168 = vmatpush1.bf16.msra.mxu0 0
  %3169 = vmatprep.subr.bf16.mxu0 0
  %3170 = vmatpush1.bf16.msra.mxu0 0
  %3171 = vmatprep.subr.bf16.mxu0 0
  %3172 = vmatpush1.bf16.msra.mxu0 0
  %3173 = vmatprep.subr.bf16.mxu0 0
  %3174 = vmatpush1.bf16.msra.mxu0 0
  %3175 = vmatprep.subr.bf16.mxu0 0
  %3176 = vmatpush1.bf16.msra.mxu0 0
  %3177 = vmatprep.subr.bf16.mxu0 0
  %3178 = vmatpush1.bf16.msra.mxu0 0
  %3179 = vmatprep.subr.bf16.mxu0 0
  %3180 = vmatpush1.bf16.msra.mxu0 0
  %3181 = vmatprep.subr.bf16.mxu0 0
  %3182 = vmatpush1.bf16.msra.mxu0 0
  %3183 = vmatprep.subr.bf16.mxu0 0
  %3184 = vmatpush1.bf16.msra.mxu0 0
  %3185 = vmatprep.subr.bf16.mxu0 0
  %3186 = vmatpush1.bf16.msra.mxu0 0
  %3187 = vmatprep.subr.bf16.mxu0 0
  %3188 = vmatpush1.bf16.msra.mxu0 0
  %3189 = vmatprep.subr.bf16.mxu0 0
  %3190 = vmatpush1.bf16.msra.mxu0 0
  %3191 = vmatprep.mubr.bf16.mxu0 0
  %3192 = vmatmul.mubr.bf16.gmra.mrb[0].mxu0 %v3154
  %v3193 = vpop.f32.mrb[0].mxu0
  %v3194 = vadd.f32 %v3128, %v3193
  %v3195 = vpop.f32.mrb[0].mxu0
  %v3196 = vpop.f32.mrb[0].mxu0
  %v3197 = vadd.f32 %v3128, %v3196
  %v3198 = vpop.f32.mrb[0].mxu0
  %3199 = vmatprep.mubr.bf16.mxu0 0
  %3200 = vmatmul.mubr.bf16.gmra.mrb[0].mxu0 %v3157
  %v3201 = vpop.f32.mrb[0].mxu0
  %v3202 = vadd.f32 %v3128, %v3201
  %v3203 = vpop.f32.mrb[0].mxu0
  %v3204 = vpop.f32.mrb[0].mxu0
  %v3205 = vadd.f32 %v3128, %v3204
  %v3206 = vpop.f32.mrb[0].mxu0
  %3207 = vdwg.mxu0
  %v3208 = vadd.f32 %v3042, %v3194
  %v3209 = vadd.f32 %v3043, %v3197
  %v3210 = vadd.f32 %v3044, %v3202
  %v3211 = vadd.f32 %v3045, %v3205
  %v3212 = vsel %vm208, %v3208, 0.0
  %3213 = vadd.xlane.f32.xlu0 %v3212
  %v3214 = vpop.xlane.xlu0 %3213
  %v3215 = vsel %vm208, %v3209, 0.0
  %3216 = vadd.xlane.f32.xlu0 %v3215
  %v3217 = vpop.xlane.xlu0 %3216
  %v3218 = vsel %vm208, %v3210, 0.0
  %3219 = vadd.xlane.f32.xlu0 %v3218
  %v3220 = vpop.xlane.xlu0 %3219
  %v3221 = vsel %vm208, %v3211, 0.0
  %3222 = vadd.xlane.f32.xlu0 %v3221
  %v3223 = vpop.xlane.xlu0 %3222
  %v3224 = vmul.f32 %v3214, %v1450
  %v3225 = vmul.f32 %v3217, %v1450
  %v3226 = vmul.f32 %v3220, %v1450
  %v3227 = vmul.f32 %v3223, %v1450
  %v3228 = vsub.f32 %v3208, %v3224
  %v3229 = vsub.f32 %v3209, %v3225
  %v3230 = vsub.f32 %v3210, %v3226
  %v3231 = vsub.f32 %v3211, %v3227
  %v3232 = vmul.f32 %v3228, %v3228
  %v3233 = vmul.f32 %v3229, %v3229
  %v3234 = vmul.f32 %v3230, %v3230
  %v3235 = vmul.f32 %v3231, %v3231
  %v3236 = vsel %vm208, %v3232, 0.0
  %3237 = vadd.xlane.f32.xlu0 %v3236
  %v3238 = vpop.xlane.xlu0 %3237
  %v3239 = vsel %vm208, %v3233, 0.0
  %3240 = vadd.xlane.f32.xlu0 %v3239
  %v3241 = vpop.xlane.xlu0 %3240
  %v3242 = vsel %vm208, %v3234, 0.0
  %3243 = vadd.xlane.f32.xlu0 %v3242
  %v3244 = vpop.xlane.xlu0 %3243
  %v3245 = vsel %vm208, %v3235, 0.0
  %3246 = vadd.xlane.f32.xlu0 %v3245
  %v3247 = vpop.xlane.xlu0 %3246
  %v3248 = vmul.f32 %v3238, %v1450
  %v3249 = vmul.f32 %v3241, %v1450
  %v3250 = vmul.f32 %v3244, %v1450
  %v3251 = vmul.f32 %v3247, %v1450
  %v3252 = vadd.f32 %v3248, 1e-05
  %v3253 = vadd.f32 %v3249, 1e-05
  %v3254 = vadd.f32 %v3250, 1e-05
  %v3255 = vadd.f32 %v3251, 1e-05
  %v3256 = vrsqrt.pop %v3252
  %v3257 = vrsqrt.pop %v3253
  %v3258 = vrsqrt.pop %v3254
  %v3259 = vrsqrt.pop %v3255
  %v3260 = vmul.f32 %v3228, %v3256
  %v3261 = vmul.f32 %v3229, %v3257
  %v3262 = vmul.f32 %v3230, %v3258
  %v3263 = vmul.f32 %v3231, %v3259
  %v3264 = vlaneseq
  %v3265 = vshrl.u32 %v3264, 7
  %v3266 = vsub.s32 3, %v3265
  %v3267 = vrot.slane %v139, %v3266
  %v3268 = vmul.f32 %v3260, %v3267
  %v3269 = vmul.f32 %v3261, %v3267
  %v3270 = vmul.f32 %v3262, %v3267
  %v3271 = vmul.f32 %v3263, %v3267
  %v3272 = vlaneseq
  %v3273 = vshrl.u32 %v3272, 7
  %v3274 = vsub.s32 4, %v3273
  %v3275 = vrot.slane %v139, %v3274
  %v3276 = vadd.f32 %v3268, %v3275
  %v3277 = vadd.f32 %v3269, %v3275
  %v3278 = vadd.f32 %v3270, %v3275
  %v3279 = vadd.f32 %v3271, %v3275
  %v3280 = vld [vmem:[%s1] sm:$0xff]
  %v3281 = vld [vmem:[%s1 + $0x8] sm:$0xff]
  %v3282 = vld [vmem:[%s1 + $0x10] sm:$0xff]
  %v3283 = vld [vmem:[%s1 + $0x18] sm:$0xff]
  %v3284 = vld [vmem:[%s2] sm:$0x3]
  %v3285 = vld [vmem:[%s12] sm:$0xff]
  %v3286 = vld [vmem:[%s12 + $0x8] sm:$0xff]
  %v3287 = vld [vmem:[%s12 + $0x10] sm:$0xff]
  %v3288 = vld [vmem:[%s12 + $0x18] sm:$0xff]
  %v3289 = vld [vmem:[%s13] sm:$0xff]
  %v3290 = vld [vmem:[%s13 + $0x8] sm:$0xff]
  %v3291 = vld [vmem:[%s13 + $0x10] sm:$0xff]
  %v3292 = vld [vmem:[%s13 + $0x18] sm:$0xff]
  %v3293 = vld [vmem:[%s14] sm:$0xff]
  %v3294 = vld [vmem:[%s14 + $0x8] sm:$0xff]
  %v3295 = vld [vmem:[%s14 + $0x10] sm:$0xff]
  %v3296 = vld [vmem:[%s14 + $0x18] sm:$0xff]
  %v3297 = vld [vmem:[%s15] sm:$0x7]
  %v3298 = vlaneseq
  %v3299 = vshrl.u32 %v3298, 7
  %v3300 = vsub.s32 0, %v3299
  %v3301 = vrot.slane %v3297, %v3300
  %v3304 = vrot.slane %v3278, 7
  %vm3305 = vcmask 1041409
  %v3306 = vsel %vm3305, %v3304, %v3276
  %v3307 = vsel %vm208, %v3306, 0
  %3309 = vmatprep.subr.mxu0 0.0
  %3310 = vmatpush1.msra.mxu0 %v3285
  %3311 = vmatprep.subr.mxu0 0.0
  %3312 = vmatpush1.msra.mxu0 %v3286
  %3313 = vmatprep.subr.mxu0 0.0
  %3314 = vmatpush1.msra.mxu0 %v3287
  %3315 = vmatprep.subr.mxu0 0.0
  %3316 = vmatpush1.msra.mxu0 %v3288
  %3317 = vmatprep.subr.mxu0 0.0
  %3318 = vmatpush1.msra.mxu0 0.0
  %3319 = vmatprep.subr.mxu0 0.0
  %3320 = vmatpush1.msra.mxu0 0.0
  %3321 = vmatprep.subr.mxu0 0.0
  %3322 = vmatpush1.msra.mxu0 0.0
  %3323 = vmatprep.subr.mxu0 0.0
  %3324 = vmatpush1.msra.mxu0 0.0
  %3325 = vmatprep.subr.mxu0 0.0
  %3326 = vmatpush1.msra.mxu0 0.0
  %3327 = vmatprep.subr.mxu0 0.0
  %3328 = vmatpush1.msra.mxu0 0.0
  %3329 = vmatprep.subr.mxu0 0.0
  %3330 = vmatpush1.msra.mxu0 0.0
  %3331 = vmatprep.subr.mxu0 0.0
  %3332 = vmatpush1.msra.mxu0 0.0
  %3333 = vmatprep.subr.mxu0 0.0
  %3334 = vmatpush1.msra.mxu0 0.0
  %3335 = vmatprep.subr.mxu0 0.0
  %3336 = vmatpush1.msra.mxu0 0.0
  %3337 = vmatprep.subr.mxu0 0.0
  %3338 = vmatpush1.msra.mxu0 0.0
  %3339 = vmatprep.subr.mxu0 0.0
  %3340 = vmatpush1.msra.mxu0 0.0
  %3341 = vmatprep.subr.mxu0 0.0
  %3342 = vmatpush1.msra.mxu0 0.0
  %3343 = vmatprep.subr.mxu0 0.0
  %3344 = vmatpush1.msra.mxu0 0.0
  %3345 = vmatprep.subr.mxu0 0.0
  %3346 = vmatpush1.msra.mxu0 0.0
  %3347 = vmatprep.subr.mxu0 0.0
  %3348 = vmatpush1.msra.mxu0 0.0
  %3349 = vmatprep.subr.mxu0 0.0
  %3350 = vmatpush1.msra.mxu0 0.0
  %3351 = vmatprep.subr.mxu0 0.0
  %3352 = vmatpush1.msra.mxu0 0.0
  %3353 = vmatprep.subr.mxu0 0.0
  %3354 = vmatpush1.msra.mxu0 0.0
  %3355 = vmatprep.subr.mxu0 0.0
  %3356 = vmatpush1.msra.mxu0 0.0
  %3357 = vmatprep.subr.mxu0 0.0
  %3358 = vmatpush1.msra.mxu0 0.0
  %3359 = vmatprep.subr.mxu0 0.0
  %3360 = vmatpush1.msra.mxu0 0.0
  %3361 = vmatprep.subr.mxu0 0.0
  %3362 = vmatpush1.msra.mxu0 0.0
  %3363 = vmatprep.subr.mxu0 0.0
  %3364 = vmatpush1.msra.mxu0 0.0
  %3365 = vmatprep.subr.mxu0 0.0
  %3366 = vmatpush1.msra.mxu0 0.0
  %3367 = vmatprep.subr.mxu0 0.0
  %3368 = vmatpush1.msra.mxu0 0.0
  %3369 = vmatprep.subr.mxu0 0.0
  %3370 = vmatpush1.msra.mxu0 0.0
  %3371 = vmatprep.subr.mxu0 0.0
  %3372 = vmatpush1.msra.mxu0 0.0
  %3373 = vmatprep.mubr.f32.mxu0 0.0
  %3374 = vmatmul.mubr.f32.gmra.mrb[0].mxu0 %v3307
  %v3375 = vpop.f32.mrb[0].mxu0
  %v3376 = vadd.f32 %v3301, %v3375
  %v3377 = vpop.f32.mrb[0].mxu0
  %3378 = vdwg.mxu0
  %v3379 = vmul.f32 %v3376, 0.17677669
  %v3380 = vlaneseq
  %v3381 = vshrl.u32 %v3380, 7
  %v3382 = vsub.s32 1, %v3381
  %v3383 = vrot.slane %v3297, %v3382
  %v3384 = vsel %vm208, %v3276, 0
  %v3387 = vsel %vm208, %v3277, 0
  %v3389 = vsel %vm208, %v3278, 0
  %v3392 = vsel %vm208, %v3279, 0
  %3394 = vmatprep.subr.mxu0 0.0
  %3395 = vmatpush1.msra.mxu0 %v3289
  %3396 = vmatprep.subr.mxu0 0.0
  %3397 = vmatpush1.msra.mxu0 %v3290
  %3398 = vmatprep.subr.mxu0 0.0
  %3399 = vmatpush1.msra.mxu0 %v3291
  %3400 = vmatprep.subr.mxu0 0.0
  %3401 = vmatpush1.msra.mxu0 %v3292
  %3402 = vmatprep.subr.mxu0 0.0
  %3403 = vmatpush1.msra.mxu0 0.0
  %3404 = vmatprep.subr.mxu0 0.0
  %3405 = vmatpush1.msra.mxu0 0.0
  %3406 = vmatprep.subr.mxu0 0.0
  %3407 = vmatpush1.msra.mxu0 0.0
  %3408 = vmatprep.subr.mxu0 0.0
  %3409 = vmatpush1.msra.mxu0 0.0
  %3410 = vmatprep.subr.mxu0 0.0
  %3411 = vmatpush1.msra.mxu0 0.0
  %3412 = vmatprep.subr.mxu0 0.0
  %3413 = vmatpush1.msra.mxu0 0.0
  %3414 = vmatprep.subr.mxu0 0.0
  %3415 = vmatpush1.msra.mxu0 0.0
  %3416 = vmatprep.subr.mxu0 0.0
  %3417 = vmatpush1.msra.mxu0 0.0
  %3418 = vmatprep.subr.mxu0 0.0
  %3419 = vmatpush1.msra.mxu0 0.0
  %3420 = vmatprep.subr.mxu0 0.0
  %3421 = vmatpush1.msra.mxu0 0.0
  %3422 = vmatprep.subr.mxu0 0.0
  %3423 = vmatpush1.msra.mxu0 0.0
  %3424 = vmatprep.subr.mxu0 0.0
  %3425 = vmatpush1.msra.mxu0 0.0
  %3426 = vmatprep.subr.mxu0 0.0
  %3427 = vmatpush1.msra.mxu0 0.0
  %3428 = vmatprep.subr.mxu0 0.0
  %3429 = vmatpush1.msra.mxu0 0.0
  %3430 = vmatprep.subr.mxu0 0.0
  %3431 = vmatpush1.msra.mxu0 0.0
  %3432 = vmatprep.subr.mxu0 0.0
  %3433 = vmatpush1.msra.mxu0 0.0
  %3434 = vmatprep.subr.mxu0 0.0
  %3435 = vmatpush1.msra.mxu0 0.0
  %3436 = vmatprep.subr.mxu0 0.0
  %3437 = vmatpush1.msra.mxu0 0.0
  %3438 = vmatprep.subr.mxu0 0.0
  %3439 = vmatpush1.msra.mxu0 0.0
  %3440 = vmatprep.subr.mxu0 0.0
  %3441 = vmatpush1.msra.mxu0 0.0
  %3442 = vmatprep.subr.mxu0 0.0
  %3443 = vmatpush1.msra.mxu0 0.0
  %3444 = vmatprep.subr.mxu0 0.0
  %3445 = vmatpush1.msra.mxu0 0.0
  %3446 = vmatprep.subr.mxu0 0.0
  %3447 = vmatpush1.msra.mxu0 0.0
  %3448 = vmatprep.subr.mxu0 0.0
  %3449 = vmatpush1.msra.mxu0 0.0
  %3450 = vmatprep.subr.mxu0 0.0
  %3451 = vmatpush1.msra.mxu0 0.0
  %3452 = vmatprep.subr.mxu0 0.0
  %3453 = vmatpush1.msra.mxu0 0.0
  %3454 = vmatprep.subr.mxu0 0.0
  %3455 = vmatpush1.msra.mxu0 0.0
  %3456 = vmatprep.subr.mxu0 0.0
  %3457 = vmatpush1.msra.mxu0 0.0
  %3458 = vmatprep.mubr.f32.mxu0 0.0
  %3459 = vmatmul.mubr.f32.gmra.mrb[0].mxu0 %v3384
  %v3460 = vpop.f32.mrb[0].mxu0
  %v3461 = vadd.f32 %v3383, %v3460
  %v3462 = vpop.f32.mrb[0].mxu0
  %3463 = vmatprep.mubr.f32.mxu0 0.0
  %3464 = vmatmul.mubr.f32.gmra.mrb[0].mxu0 %v3387
  %v3465 = vpop.f32.mrb[0].mxu0
  %v3466 = vadd.f32 %v3383, %v3465
  %v3467 = vpop.f32.mrb[0].mxu0
  %3468 = vmatprep.mubr.f32.mxu0 0.0
  %3469 = vmatmul.mubr.f32.gmra.mrb[0].mxu0 %v3389
  %v3470 = vpop.f32.mrb[0].mxu0
  %v3471 = vadd.f32 %v3383, %v3470
  %v3472 = vpop.f32.mrb[0].mxu0
  %3473 = vmatprep.mubr.f32.mxu0 0.0
  %3474 = vmatmul.mubr.f32.gmra.mrb[0].mxu0 %v3392
  %v3475 = vpop.f32.mrb[0].mxu0
  %v3476 = vadd.f32 %v3383, %v3475
  %v3477 = vpop.f32.mrb[0].mxu0
  %3478 = vdwg.mxu0
  %v3479 = vlaneseq
  %v3480 = vshrl.u32 %v3479, 7
  %v3481 = vsub.s32 2, %v3480
  %v3482 = vrot.slane %v3297, %v3481
  %3483 = vmatprep.subr.mxu0 0.0
  %3484 = vmatpush1.msra.mxu0 %v3293
  %3485 = vmatprep.subr.mxu0 0.0
  %3486 = vmatpush1.msra.mxu0 %v3294
  %3487 = vmatprep.subr.mxu0 0.0
  %3488 = vmatpush1.msra.mxu0 %v3295
  %3489 = vmatprep.subr.mxu0 0.0
  %3490 = vmatpush1.msra.mxu0 %v3296
  %3491 = vmatprep.subr.mxu0 0.0
  %3492 = vmatpush1.msra.mxu0 0.0
  %3493 = vmatprep.subr.mxu0 0.0
  %3494 = vmatpush1.msra.mxu0 0.0
  %3495 = vmatprep.subr.mxu0 0.0
  %3496 = vmatpush1.msra.mxu0 0.0
  %3497 = vmatprep.subr.mxu0 0.0
  %3498 = vmatpush1.msra.mxu0 0.0
  %3499 = vmatprep.subr.mxu0 0.0
  %3500 = vmatpush1.msra.mxu0 0.0
  %3501 = vmatprep.subr.mxu0 0.0
  %3502 = vmatpush1.msra.mxu0 0.0
  %3503 = vmatprep.subr.mxu0 0.0
  %3504 = vmatpush1.msra.mxu0 0.0
  %3505 = vmatprep.subr.mxu0 0.0
  %3506 = vmatpush1.msra.mxu0 0.0
  %3507 = vmatprep.subr.mxu0 0.0
  %3508 = vmatpush1.msra.mxu0 0.0
  %3509 = vmatprep.subr.mxu0 0.0
  %3510 = vmatpush1.msra.mxu0 0.0
  %3511 = vmatprep.subr.mxu0 0.0
  %3512 = vmatpush1.msra.mxu0 0.0
  %3513 = vmatprep.subr.mxu0 0.0
  %3514 = vmatpush1.msra.mxu0 0.0
  %3515 = vmatprep.subr.mxu0 0.0
  %3516 = vmatpush1.msra.mxu0 0.0
  %3517 = vmatprep.subr.mxu0 0.0
  %3518 = vmatpush1.msra.mxu0 0.0
  %3519 = vmatprep.subr.mxu0 0.0
  %3520 = vmatpush1.msra.mxu0 0.0
  %3521 = vmatprep.subr.mxu0 0.0
  %3522 = vmatpush1.msra.mxu0 0.0
  %3523 = vmatprep.subr.mxu0 0.0
  %3524 = vmatpush1.msra.mxu0 0.0
  %3525 = vmatprep.subr.mxu0 0.0
  %3526 = vmatpush1.msra.mxu0 0.0
  %3527 = vmatprep.subr.mxu0 0.0
  %3528 = vmatpush1.msra.mxu0 0.0
  %3529 = vmatprep.subr.mxu0 0.0
  %3530 = vmatpush1.msra.mxu0 0.0
  %3531 = vmatprep.subr.mxu0 0.0
  %3532 = vmatpush1.msra.mxu0 0.0
  %3533 = vmatprep.subr.mxu0 0.0
  %3534 = vmatpush1.msra.mxu0 0.0
  %3535 = vmatprep.subr.mxu0 0.0
  %3536 = vmatpush1.msra.mxu0 0.0
  %3537 = vmatprep.subr.mxu0 0.0
  %3538 = vmatpush1.msra.mxu0 0.0
  %3539 = vmatprep.subr.mxu0 0.0
  %3540 = vmatpush1.msra.mxu0 0.0
  %3541 = vmatprep.subr.mxu0 0.0
  %3542 = vmatpush1.msra.mxu0 0.0
  %3543 = vmatprep.subr.mxu0 0.0
  %3544 = vmatpush1.msra.mxu0 0.0
  %3545 = vmatprep.subr.mxu0 0.0
  %3546 = vmatpush1.msra.mxu0 0.0
  %3547 = vmatprep.mubr.f32.mxu0 0.0
  %3548 = vmatmul.mubr.f32.gmra.mrb[0].mxu0 %v3384
  %v3549 = vpop.f32.mrb[0].mxu0
  %v3550 = vadd.f32 %v3482, %v3549
  %v3551 = vpop.f32.mrb[0].mxu0
  %3552 = vmatprep.mubr.f32.mxu0 0.0
  %3553 = vmatmul.mubr.f32.gmra.mrb[0].mxu0 %v3387
  %v3554 = vpop.f32.mrb[0].mxu0
  %v3555 = vadd.f32 %v3482, %v3554
  %v3556 = vpop.f32.mrb[0].mxu0
  %3557 = vmatprep.mubr.f32.mxu0 0.0
  %3558 = vmatmul.mubr.f32.gmra.mrb[0].mxu0 %v3389
  %v3559 = vpop.f32.mrb[0].mxu0
  %v3560 = vadd.f32 %v3482, %v3559
  %v3561 = vpop.f32.mrb[0].mxu0
  %3562 = vmatprep.mubr.f32.mxu0 0.0
  %3563 = vmatmul.mubr.f32.gmra.mrb[0].mxu0 %v3392
  %v3564 = vpop.f32.mrb[0].mxu0
  %v3565 = vadd.f32 %v3482, %v3564
  %v3566 = vpop.f32.mrb[0].mxu0
  %3567 = vdwg.mxu0
  %vm3568 = vcmp.eq.s32.totalorder %v165, 0
  %v3569 = vsel %vm3568, 1.0, %v3284
  %v3572 = vunpack.c.l.s4 1966171168
  %v3573 = vunpack.c.0.s8 %v3572
  %v3574 = vlaneseq
  %v3575 = vshrl.u32 %v3574, 7
  %v3576 = vsub.s32 %v3573, %v3575
  %v3577 = vrot.slane %v3379, %v3576
  %v3578 = vcombine.high %v3577, %v3577
  %v3580 = vunpack.c.l.s4 1966171168
  %v3581 = vunpack.c.0.s8 %v3580
  %v3582 = vlaneseq
  %v3583 = vshrl.u32 %v3582, 7
  %v3584 = vsub.s32 %v3581, %v3583
  %v3585 = vrot.slane %v3577, %v3584
  %v3587 = vunpack.c.l.s4 1966171168
  %v3588 = vunpack.c.0.s8 %v3587
  %v3589 = vlaneseq
  %v3590 = vshrl.u32 %v3589, 7
  %v3591 = vsub.s32 %v3588, %v3590
  %v3592 = vrot.slane %v3578, %v3591
  %v3593 = vmul.f32 %v3569, -1e+09
  %v3596 = vunpack.c.l.s4 1966171168
  %v3597 = vunpack.c.0.s8 %v3596
  %v3598 = vlaneseq
  %v3599 = vshrl.u32 %v3598, 7
  %v3600 = vsub.s32 %v3597, %v3599
  %v3601 = vrot.slane %v3593, %v3600
  %v3602 = vcombine.high %v3601, %v3601
  %v3604 = vunpack.c.l.s4 1966171168
  %v3605 = vunpack.c.0.s8 %v3604
  %v3606 = vlaneseq
  %v3607 = vshrl.u32 %v3606, 7
  %v3608 = vsub.s32 %v3605, %v3607
  %v3609 = vrot.slane %v3601, %v3608
  %v3611 = vunpack.c.l.s4 1966171168
  %v3612 = vunpack.c.0.s8 %v3611
  %v3613 = vlaneseq
  %v3614 = vshrl.u32 %v3613, 7
  %v3615 = vsub.s32 %v3612, %v3614
  %v3616 = vrot.slane %v3602, %v3615
  %v3619 = vsel %vm208, %v3585, 0
  %v3622 = vsel %vm208, %v3461, 0
  %v3625 = vsel %vm208, %v3466, 0
  %3627 = vmatprep.subr.mxu0 0.0
  %3628 = vmatpush1.xpose.msra.mxu0 %v3622
  %3629 = vmatprep.subr.mxu0 0.0
  %3630 = vmatpush1.xpose.msra.mxu0 %v3625
  %3631 = vmatprep.subr.mxu0 0.0
  %3632 = vmatpush1.xpose.msra.mxu0 0.0
  %3633 = vmatprep.subr.mxu0 0.0
  %3634 = vmatpush1.xpose.msra.mxu0 0.0
  %3635 = vmatprep.subr.mxu0 0.0
  %3636 = vmatpush1.xpose.msra.mxu0 0.0
  %3637 = vmatprep.subr.mxu0 0.0
  %3638 = vmatpush1.xpose.msra.mxu0 0.0
  %3639 = vmatprep.subr.mxu0 0.0
  %3640 = vmatpush1.xpose.msra.mxu0 0.0
  %3641 = vmatprep.subr.mxu0 0.0
  %3642 = vmatpush1.xpose.msra.mxu0 0.0
  %3643 = vmatprep.subr.mxu0 0.0
  %3644 = vmatpush1.xpose.msra.mxu0 0.0
  %3645 = vmatprep.subr.mxu0 0.0
  %3646 = vmatpush1.xpose.msra.mxu0 0.0
  %3647 = vmatprep.subr.mxu0 0.0
  %3648 = vmatpush1.xpose.msra.mxu0 0.0
  %3649 = vmatprep.subr.mxu0 0.0
  %3650 = vmatpush1.xpose.msra.mxu0 0.0
  %3651 = vmatprep.subr.mxu0 0.0
  %3652 = vmatpush1.xpose.msra.mxu0 0.0
  %3653 = vmatprep.subr.mxu0 0.0
  %3654 = vmatpush1.xpose.msra.mxu0 0.0
  %3655 = vmatprep.subr.mxu0 0.0
  %3656 = vmatpush1.xpose.msra.mxu0 0.0
  %3657 = vmatprep.subr.mxu0 0.0
  %3658 = vmatpush1.xpose.msra.mxu0 0.0
  %3659 = vmatprep.subr.mxu0 0.0
  %3660 = vmatpush1.xpose.msra.mxu0 0.0
  %3661 = vmatprep.subr.mxu0 0.0
  %3662 = vmatpush1.xpose.msra.mxu0 0.0
  %3663 = vmatprep.subr.mxu0 0.0
  %3664 = vmatpush1.xpose.msra.mxu0 0.0
  %3665 = vmatprep.subr.mxu0 0.0
  %3666 = vmatpush1.xpose.msra.mxu0 0.0
  %3667 = vmatprep.subr.mxu0 0.0
  %3668 = vmatpush1.xpose.msra.mxu0 0.0
  %3669 = vmatprep.subr.mxu0 0.0
  %3670 = vmatpush1.xpose.msra.mxu0 0.0
  %3671 = vmatprep.subr.mxu0 0.0
  %3672 = vmatpush1.xpose.msra.mxu0 0.0
  %3673 = vmatprep.subr.mxu0 0.0
  %3674 = vmatpush1.xpose.msra.mxu0 0.0
  %3675 = vmatprep.subr.mxu0 0.0
  %3676 = vmatpush1.xpose.msra.mxu0 0.0
  %3677 = vmatprep.subr.mxu0 0.0
  %3678 = vmatpush1.xpose.msra.mxu0 0.0
  %3679 = vmatprep.subr.mxu0 0.0
  %3680 = vmatpush1.xpose.msra.mxu0 0.0
  %3681 = vmatprep.subr.mxu0 0.0
  %3682 = vmatpush1.xpose.msra.mxu0 0.0
  %3683 = vmatprep.subr.mxu0 0.0
  %3684 = vmatpush1.xpose.msra.mxu0 0.0
  %3685 = vmatprep.subr.mxu0 0.0
  %3686 = vmatpush1.xpose.msra.mxu0 0.0
  %3687 = vmatprep.subr.mxu0 0.0
  %3688 = vmatpush1.xpose.msra.mxu0 0.0
  %3689 = vmatprep.subr.mxu0 0.0
  %3690 = vmatpush1.xpose.msra.mxu0 0.0
  %3691 = vmatprep.mubr.f32.mxu0 0.0
  %3692 = vmatmul.mubr.f32.gmra.mrb[0].mxu0 %v3619
  %v3693 = vpop.f32.mrb[0].mxu0
  %v3694 = vadd.f32 %v3609, %v3693
  %v3695 = vpop.f32.mrb[0].mxu0
  %3696 = vdwg.mxu0
  %v3697 = vsel %vm208, %v3592, 0
  %v3700 = vsel %vm208, %v3471, 0
  %v3703 = vsel %vm208, %v3476, 0
  %3705 = vmatprep.subr.mxu0 0.0
  %3706 = vmatpush1.xpose.msra.mxu0 %v3700
  %3707 = vmatprep.subr.mxu0 0.0
  %3708 = vmatpush1.xpose.msra.mxu0 %v3703
  %3709 = vmatprep.subr.mxu0 0.0
  %3710 = vmatpush1.xpose.msra.mxu0 0.0
  %3711 = vmatprep.subr.mxu0 0.0
  %3712 = vmatpush1.xpose.msra.mxu0 0.0
  %3713 = vmatprep.subr.mxu0 0.0
  %3714 = vmatpush1.xpose.msra.mxu0 0.0
  %3715 = vmatprep.subr.mxu0 0.0
  %3716 = vmatpush1.xpose.msra.mxu0 0.0
  %3717 = vmatprep.subr.mxu0 0.0
  %3718 = vmatpush1.xpose.msra.mxu0 0.0
  %3719 = vmatprep.subr.mxu0 0.0
  %3720 = vmatpush1.xpose.msra.mxu0 0.0
  %3721 = vmatprep.subr.mxu0 0.0
  %3722 = vmatpush1.xpose.msra.mxu0 0.0
  %3723 = vmatprep.subr.mxu0 0.0
  %3724 = vmatpush1.xpose.msra.mxu0 0.0
  %3725 = vmatprep.subr.mxu0 0.0
  %3726 = vmatpush1.xpose.msra.mxu0 0.0
  %3727 = vmatprep.subr.mxu0 0.0
  %3728 = vmatpush1.xpose.msra.mxu0 0.0
  %3729 = vmatprep.subr.mxu0 0.0
  %3730 = vmatpush1.xpose.msra.mxu0 0.0
  %3731 = vmatprep.subr.mxu0 0.0
  %3732 = vmatpush1.xpose.msra.mxu0 0.0
  %3733 = vmatprep.subr.mxu0 0.0
  %3734 = vmatpush1.xpose.msra.mxu0 0.0
  %3735 = vmatprep.subr.mxu0 0.0
  %3736 = vmatpush1.xpose.msra.mxu0 0.0
  %3737 = vmatprep.subr.mxu0 0.0
  %3738 = vmatpush1.xpose.msra.mxu0 0.0
  %3739 = vmatprep.subr.mxu0 0.0
  %3740 = vmatpush1.xpose.msra.mxu0 0.0
  %3741 = vmatprep.subr.mxu0 0.0
  %3742 = vmatpush1.xpose.msra.mxu0 0.0
  %3743 = vmatprep.subr.mxu0 0.0
  %3744 = vmatpush1.xpose.msra.mxu0 0.0
  %3745 = vmatprep.subr.mxu0 0.0
  %3746 = vmatpush1.xpose.msra.mxu0 0.0
  %3747 = vmatprep.subr.mxu0 0.0
  %3748 = vmatpush1.xpose.msra.mxu0 0.0
  %3749 = vmatprep.subr.mxu0 0.0
  %3750 = vmatpush1.xpose.msra.mxu0 0.0
  %3751 = vmatprep.subr.mxu0 0.0
  %3752 = vmatpush1.xpose.msra.mxu0 0.0
  %3753 = vmatprep.subr.mxu0 0.0
  %3754 = vmatpush1.xpose.msra.mxu0 0.0
  %3755 = vmatprep.subr.mxu0 0.0
  %3756 = vmatpush1.xpose.msra.mxu0 0.0
  %3757 = vmatprep.subr.mxu0 0.0
  %3758 = vmatpush1.xpose.msra.mxu0 0.0
  %3759 = vmatprep.subr.mxu0 0.0
  %3760 = vmatpush1.xpose.msra.mxu0 0.0
  %3761 = vmatprep.subr.mxu0 0.0
  %3762 = vmatpush1.xpose.msra.mxu0 0.0
  %3763 = vmatprep.subr.mxu0 0.0
  %3764 = vmatpush1.xpose.msra.mxu0 0.0
  %3765 = vmatprep.subr.mxu0 0.0
  %3766 = vmatpush1.xpose.msra.mxu0 0.0
  %3767 = vmatprep.subr.mxu0 0.0
  %3768 = vmatpush1.xpose.msra.mxu0 0.0
  %3769 = vmatprep.mubr.f32.mxu0 0.0
  %3770 = vmatmul.mubr.f32.gmra.mrb[0].mxu0 %v3697
  %v3771 = vpop.f32.mrb[0].mxu0
  %v3772 = vadd.f32 %v3616, %v3771
  %v3773 = vpop.f32.mrb[0].mxu0
  %3774 = vdwg.mxu0
  %vm3775 = vcmask 122880
  %v3776 = vsel %vm3775, %v3694, -inf
  %3777 = vmax.xlane.f32.xlu0 %v3776
  %v3778 = vpop.xlane.xlu0 %3777
  %v3779 = vsel %vm3775, %v3772, -inf
  %3780 = vmax.xlane.f32.xlu0 %v3779
  %v3781 = vpop.xlane.xlu0 %3780
  %v3782 = vsub.f32 %v3694, %v3778
  %v3783 = vsub.f32 %v3772, %v3781
  %v3784 = vmul.f32 %v3782, 1.442695
  %v3785 = vpow.pop %v3784
  %v3786 = vmul.f32 %v3783, 1.442695
  %v3787 = vpow.pop %v3786
  %v3788 = vsel %vm3775, %v3785, 0.0
  %3789 = vadd.xlane.f32.xlu0 %v3788
  %v3790 = vpop.xlane.xlu0 %3789
  %v3791 = vsel %vm3775, %v3787, 0.0
  %3792 = vadd.xlane.f32.xlu0 %v3791
  %v3793 = vpop.xlane.xlu0 %3792
  %v3794 = vrcp.pop %v3790
  %v3795 = vrcp.pop %v3793
  %v3796 = vmul.f32 %v3785, %v3794
  %v3797 = vmul.f32 %v3787, %v3795
  %v3798 = vadd.f32 %v3550, %v3280
  %v3799 = vadd.f32 %v3555, %v3281
  %v3800 = vadd.f32 %v3560, %v3282
  %v3801 = vadd.f32 %v3565, %v3283
  %v3803 = vsel %vm516, %v3796, 0
  %3805 = vmatprep.subr.mxu0 0.0
  %3806 = vmatpush1.msra.mxu0 %v3798
  %3807 = vmatprep.subr.mxu0 0.0
  %3808 = vmatpush1.msra.mxu0 %v3799
  %3809 = vmatprep.subr.mxu0 0.0
  %3810 = vmatpush1.msra.mxu0 0.0
  %3811 = vmatprep.subr.mxu0 0.0
  %3812 = vmatpush1.msra.mxu0 0.0
  %3813 = vmatprep.subr.mxu0 0.0
  %3814 = vmatpush1.msra.mxu0 0.0
  %3815 = vmatprep.subr.mxu0 0.0
  %3816 = vmatpush1.msra.mxu0 0.0
  %3817 = vmatprep.subr.mxu0 0.0
  %3818 = vmatpush1.msra.mxu0 0.0
  %3819 = vmatprep.subr.mxu0 0.0
  %3820 = vmatpush1.msra.mxu0 0.0
  %3821 = vmatprep.subr.mxu0 0.0
  %3822 = vmatpush1.msra.mxu0 0.0
  %3823 = vmatprep.subr.mxu0 0.0
  %3824 = vmatpush1.msra.mxu0 0.0
  %3825 = vmatprep.subr.mxu0 0.0
  %3826 = vmatpush1.msra.mxu0 0.0
  %3827 = vmatprep.subr.mxu0 0.0
  %3828 = vmatpush1.msra.mxu0 0.0
  %3829 = vmatprep.subr.mxu0 0.0
  %3830 = vmatpush1.msra.mxu0 0.0
  %3831 = vmatprep.subr.mxu0 0.0
  %3832 = vmatpush1.msra.mxu0 0.0
  %3833 = vmatprep.subr.mxu0 0.0
  %3834 = vmatpush1.msra.mxu0 0.0
  %3835 = vmatprep.subr.mxu0 0.0
  %3836 = vmatpush1.msra.mxu0 0.0
  %3837 = vmatprep.subr.mxu0 0.0
  %3838 = vmatpush1.msra.mxu0 0.0
  %3839 = vmatprep.subr.mxu0 0.0
  %3840 = vmatpush1.msra.mxu0 0.0
  %3841 = vmatprep.subr.mxu0 0.0
  %3842 = vmatpush1.msra.mxu0 0.0
  %3843 = vmatprep.subr.mxu0 0.0
  %3844 = vmatpush1.msra.mxu0 0.0
  %3845 = vmatprep.subr.mxu0 0.0
  %3846 = vmatpush1.msra.mxu0 0.0
  %3847 = vmatprep.subr.mxu0 0.0
  %3848 = vmatpush1.msra.mxu0 0.0
  %3849 = vmatprep.subr.mxu0 0.0
  %3850 = vmatpush1.msra.mxu0 0.0
  %3851 = vmatprep.subr.mxu0 0.0
  %3852 = vmatpush1.msra.mxu0 0.0
  %3853 = vmatprep.subr.mxu0 0.0
  %3854 = vmatpush1.msra.mxu0 0.0
  %3855 = vmatprep.subr.mxu0 0.0
  %3856 = vmatpush1.msra.mxu0 0.0
  %3857 = vmatprep.subr.mxu0 0.0
  %3858 = vmatpush1.msra.mxu0 0.0
  %3859 = vmatprep.subr.mxu0 0.0
  %3860 = vmatpush1.msra.mxu0 0.0
  %3861 = vmatprep.subr.mxu0 0.0
  %3862 = vmatpush1.msra.mxu0 0.0
  %3863 = vmatprep.subr.mxu0 0.0
  %3864 = vmatpush1.msra.mxu0 0.0
  %3865 = vmatprep.subr.mxu0 0.0
  %3866 = vmatpush1.msra.mxu0 0.0
  %3867 = vmatprep.subr.mxu0 0.0
  %3868 = vmatpush1.msra.mxu0 0.0
  %3869 = vmatprep.mubr.f32.mxu0 0.0
  %3870 = vmatmul.mubr.f32.gmra.mrb[0].mxu0 %v3803
  %v3871 = vpop.f32.mrb[0].mxu0
  %v3872 = vadd.f32 0.0, %v3871
  %v3873 = vpop.f32.mrb[0].mxu0
  %3874 = vdwg.mxu0
  %v3876 = vsel %vm516, %v3797, 0
  %3878 = vmatprep.subr.mxu0 0.0
  %3879 = vmatpush1.msra.mxu0 %v3800
  %3880 = vmatprep.subr.mxu0 0.0
  %3881 = vmatpush1.msra.mxu0 %v3801
  %3882 = vmatprep.subr.mxu0 0.0
  %3883 = vmatpush1.msra.mxu0 0.0
  %3884 = vmatprep.subr.mxu0 0.0
  %3885 = vmatpush1.msra.mxu0 0.0
  %3886 = vmatprep.subr.mxu0 0.0
  %3887 = vmatpush1.msra.mxu0 0.0
  %3888 = vmatprep.subr.mxu0 0.0
  %3889 = vmatpush1.msra.mxu0 0.0
  %3890 = vmatprep.subr.mxu0 0.0
  %3891 = vmatpush1.msra.mxu0 0.0
  %3892 = vmatprep.subr.mxu0 0.0
  %3893 = vmatpush1.msra.mxu0 0.0
  %3894 = vmatprep.subr.mxu0 0.0
  %3895 = vmatpush1.msra.mxu0 0.0
  %3896 = vmatprep.subr.mxu0 0.0
  %3897 = vmatpush1.msra.mxu0 0.0
  %3898 = vmatprep.subr.mxu0 0.0
  %3899 = vmatpush1.msra.mxu0 0.0
  %3900 = vmatprep.subr.mxu0 0.0
  %3901 = vmatpush1.msra.mxu0 0.0
  %3902 = vmatprep.subr.mxu0 0.0
  %3903 = vmatpush1.msra.mxu0 0.0
  %3904 = vmatprep.subr.mxu0 0.0
  %3905 = vmatpush1.msra.mxu0 0.0
  %3906 = vmatprep.subr.mxu0 0.0
  %3907 = vmatpush1.msra.mxu0 0.0
  %3908 = vmatprep.subr.mxu0 0.0
  %3909 = vmatpush1.msra.mxu0 0.0
  %3910 = vmatprep.subr.mxu0 0.0
  %3911 = vmatpush1.msra.mxu0 0.0
  %3912 = vmatprep.subr.mxu0 0.0
  %3913 = vmatpush1.msra.mxu0 0.0
  %3914 = vmatprep.subr.mxu0 0.0
  %3915 = vmatpush1.msra.mxu0 0.0
  %3916 = vmatprep.subr.mxu0 0.0
  %3917 = vmatpush1.msra.mxu0 0.0
  %3918 = vmatprep.subr.mxu0 0.0
  %3919 = vmatpush1.msra.mxu0 0.0
  %3920 = vmatprep.subr.mxu0 0.0
  %3921 = vmatpush1.msra.mxu0 0.0
  %3922 = vmatprep.subr.mxu0 0.0
  %3923 = vmatpush1.msra.mxu0 0.0
  %3924 = vmatprep.subr.mxu0 0.0
  %3925 = vmatpush1.msra.mxu0 0.0
  %3926 = vmatprep.subr.mxu0 0.0
  %3927 = vmatpush1.msra.mxu0 0.0
  %3928 = vmatprep.subr.mxu0 0.0
  %3929 = vmatpush1.msra.mxu0 0.0
  %3930 = vmatprep.subr.mxu0 0.0
  %3931 = vmatpush1.msra.mxu0 0.0
  %3932 = vmatprep.subr.mxu0 0.0
  %3933 = vmatpush1.msra.mxu0 0.0
  %3934 = vmatprep.subr.mxu0 0.0
  %3935 = vmatpush1.msra.mxu0 0.0
  %3936 = vmatprep.subr.mxu0 0.0
  %3937 = vmatpush1.msra.mxu0 0.0
  %3938 = vmatprep.subr.mxu0 0.0
  %3939 = vmatpush1.msra.mxu0 0.0
  %3940 = vmatprep.subr.mxu0 0.0
  %3941 = vmatpush1.msra.mxu0 0.0
  %3942 = vmatprep.mubr.f32.mxu0 0.0
  %3943 = vmatmul.mubr.f32.gmra.mrb[0].mxu0 %v3876
  %v3944 = vpop.f32.mrb[0].mxu0
  %v3945 = vadd.f32 0.0, %v3944
  %v3946 = vpop.f32.mrb[0].mxu0
  %3947 = vdwg.mxu0
  %s3948 = scalar_lea.vmem %s0, 32
  %v3949 = vld [vmem:[%s3948] sm:$0xff]
  %v3950 = vld [vmem:[%s3948 + $0x8] sm:$0xff]
  %v3951 = vld [vmem:[%s3948 + $0x10] sm:$0xff]
  %v3952 = vld [vmem:[%s3948 + $0x18] sm:$0xff]
  %s3953 = scalar_lea.vmem %s2, 2
  %v3954 = vld [vmem:[%s3953] sm:$0x3]
  %s3955 = scalar_lea.vmem %s3, 32
  %v3956 = vld [vmem:[%s3955] sm:$0xf]
  %v3957 = vld [vmem:[%s3955 + $0x4] sm:$0xf]
  %v3958 = vld [vmem:[%s3955 + $0x8] sm:$0xf]
  %v3959 = vld [vmem:[%s3955 + $0xc] sm:$0xf]
  %v3960 = vld [vmem:[%s3955 + $0x10] sm:$0xf]
  %v3961 = vld [vmem:[%s3955 + $0x14] sm:$0xf]
  %v3962 = vld [vmem:[%s3955 + $0x18] sm:$0xf]
  %v3963 = vld [vmem:[%s3955 + $0x1c] sm:$0xf]
  %s3964 = scalar_lea.vmem %s4, 32
  %v3965 = vld [vmem:[%s3964] sm:$0xf]
  %v3966 = vld [vmem:[%s3964 + $0x4] sm:$0xf]
  %v3967 = vld [vmem:[%s3964 + $0x8] sm:$0xf]
  %v3968 = vld [vmem:[%s3964 + $0xc] sm:$0xf]
  %v3969 = vld [vmem:[%s3964 + $0x10] sm:$0xf]
  %v3970 = vld [vmem:[%s3964 + $0x14] sm:$0xf]
  %v3971 = vld [vmem:[%s3964 + $0x18] sm:$0xf]
  %v3972 = vld [vmem:[%s3964 + $0x1c] sm:$0xf]
  %s3973 = scalar_lea.vmem %s5, 32
  %v3974 = vld [vmem:[%s3973] sm:$0xf]
  %v3975 = vld [vmem:[%s3973 + $0x4] sm:$0xf]
  %v3976 = vld [vmem:[%s3973 + $0x8] sm:$0xf]
  %v3977 = vld [vmem:[%s3973 + $0xc] sm:$0xf]
  %v3978 = vld [vmem:[%s3973 + $0x10] sm:$0xf]
  %v3979 = vld [vmem:[%s3973 + $0x14] sm:$0xf]
  %v3980 = vld [vmem:[%s3973 + $0x18] sm:$0xf]
  %v3981 = vld [vmem:[%s3973 + $0x1c] sm:$0xf]
  %s3982 = scalar_lea.vmem %s6, 32
  %v3983 = vld [vmem:[%s3982] sm:$0xf]
  %v3984 = vld [vmem:[%s3982 + $0x4] sm:$0xf]
  %v3985 = vld [vmem:[%s3982 + $0x8] sm:$0xf]
  %v3986 = vld [vmem:[%s3982 + $0xc] sm:$0xf]
  %v3987 = vld [vmem:[%s3982 + $0x10] sm:$0xf]
  %v3988 = vld [vmem:[%s3982 + $0x14] sm:$0xf]
  %v3989 = vld [vmem:[%s3982 + $0x18] sm:$0xf]
  %v3990 = vld [vmem:[%s3982 + $0x1c] sm:$0xf]
  %s3991 = scalar_lea.vmem %s7, 32
  %v3992 = vld [vmem:[%s3991] sm:$0xf]
  %v3993 = vld [vmem:[%s3991 + $0x4] sm:$0xf]
  %v3994 = vld [vmem:[%s3991 + $0x8] sm:$0xf]
  %v3995 = vld [vmem:[%s3991 + $0xc] sm:$0xf]
  %v3996 = vld [vmem:[%s3991 + $0x10] sm:$0xf]
  %v3997 = vld [vmem:[%s3991 + $0x14] sm:$0xf]
  %v3998 = vld [vmem:[%s3991 + $0x18] sm:$0xf]
  %v3999 = vld [vmem:[%s3991 + $0x1c] sm:$0xf]
  %s4000 = scalar_lea.vmem %s8, 64
  %v4001 = vld [vmem:[%s4000] sm:$0xf]
  %v4002 = vld [vmem:[%s4000 + $0x4] sm:$0xf]
  %v4003 = vld [vmem:[%s4000 + $0x8] sm:$0xf]
  %v4004 = vld [vmem:[%s4000 + $0xc] sm:$0xf]
  %v4005 = vld [vmem:[%s4000 + $0x10] sm:$0xf]
  %v4006 = vld [vmem:[%s4000 + $0x14] sm:$0xf]
  %v4007 = vld [vmem:[%s4000 + $0x18] sm:$0xf]
  %v4008 = vld [vmem:[%s4000 + $0x1c] sm:$0xf]
  %v4009 = vld [vmem:[%s4000 + $0x20] sm:$0xf]
  %v4010 = vld [vmem:[%s4000 + $0x24] sm:$0xf]
  %v4011 = vld [vmem:[%s4000 + $0x28] sm:$0xf]
  %v4012 = vld [vmem:[%s4000 + $0x2c] sm:$0xf]
  %v4013 = vld [vmem:[%s4000 + $0x30] sm:$0xf]
  %v4014 = vld [vmem:[%s4000 + $0x34] sm:$0xf]
  %v4015 = vld [vmem:[%s4000 + $0x38] sm:$0xf]
  %v4016 = vld [vmem:[%s4000 + $0x3c] sm:$0xf]
  %s4017 = scalar_lea.vmem %s9, 8
  %v4018 = vld [vmem:[%s4017] sm:$0xf]
  %v4019 = vld [vmem:[%s4017 + $0x4] sm:$0xf]
  %s4020 = scalar_lea.vmem %s10, 2
  %v4021 = vld [vmem:[%s4020] sm:$0x3]
  %s4022 = scalar_lea.vmem %s11, 16
  %v4023 = vld [vmem:[%s4022] sm:$0x1f]
  %v4024 = vld [vmem:[%s4022 + $0x8] sm:$0x1f]
  %v4025 = vmul.f32 %v3954, -1e+09
  %v4028 = vunpack.c.l.s4 1966171168
  %v4029 = vunpack.c.0.s8 %v4028
  %v4030 = vlaneseq
  %v4031 = vshrl.u32 %v4030, 7
  %v4032 = vsub.s32 %v4029, %v4031
  %v4033 = vrot.slane %v4025, %v4032
  %v4034 = vcombine.high %v4033, %v4033
  %v4036 = vunpack.c.l.s4 1966171168
  %v4037 = vunpack.c.0.s8 %v4036
  %v4038 = vlaneseq
  %v4039 = vshrl.u32 %v4038, 7
  %v4040 = vsub.s32 %v4037, %v4039
  %v4041 = vrot.slane %v4033, %v4040
  %v4043 = vunpack.c.l.s4 1966171168
  %v4044 = vunpack.c.0.s8 %v4043
  %v4045 = vlaneseq
  %v4046 = vshrl.u32 %v4045, 7
  %v4047 = vsub.s32 %v4044, %v4046
  %v4048 = vrot.slane %v4034, %v4047
  %v4049 = vpack.c.bf16 %v3950, %v3949
  %v4050 = vpack.c.bf16 %v3952, %v3951
  %v4051 = vlaneseq
  %v4052 = vshrl.u32 %v4051, 7
  %v4053 = vsub.s32 0, %v4052
  %v4054 = vrot.slane %v4018, %v4053
  %v4059 = vunpack.c.l.b16 %v3956
  %v4060 = vunpack.c.l.b16 %v3957
  %v4061 = vunpack.c.l.b16 %v3958
  %v4062 = vunpack.c.l.b16 %v3959
  %v4063 = vpack.c.b16 %v4060, %v4059
  %v4064 = vpack.c.b16 %v4062, %v4061
  %v4068 = vsel %vm208, %v4049, 0
  %v4071 = vsel %vm208, %v4050, 0
  %4073 = vmatprep.subr.bf16.mxu0 0
  %4074 = vmatpush1.bf16.msra.mxu0 %v4063
  %4075 = vmatprep.subr.bf16.mxu0 0
  %4076 = vmatpush1.bf16.msra.mxu0 %v4064
  %4077 = vmatprep.subr.bf16.mxu0 0
  %4078 = vmatpush1.bf16.msra.mxu0 0
  %4079 = vmatprep.subr.bf16.mxu0 0
  %4080 = vmatpush1.bf16.msra.mxu0 0
  %4081 = vmatprep.subr.bf16.mxu0 0
  %4082 = vmatpush1.bf16.msra.mxu0 0
  %4083 = vmatprep.subr.bf16.mxu0 0
  %4084 = vmatpush1.bf16.msra.mxu0 0
  %4085 = vmatprep.subr.bf16.mxu0 0
  %4086 = vmatpush1.bf16.msra.mxu0 0
  %4087 = vmatprep.subr.bf16.mxu0 0
  %4088 = vmatpush1.bf16.msra.mxu0 0
  %4089 = vmatprep.subr.bf16.mxu0 0
  %4090 = vmatpush1.bf16.msra.mxu0 0
  %4091 = vmatprep.subr.bf16.mxu0 0
  %4092 = vmatpush1.bf16.msra.mxu0 0
  %4093 = vmatprep.subr.bf16.mxu0 0
  %4094 = vmatpush1.bf16.msra.mxu0 0
  %4095 = vmatprep.subr.bf16.mxu0 0
  %4096 = vmatpush1.bf16.msra.mxu0 0
  %4097 = vmatprep.subr.bf16.mxu0 0
  %4098 = vmatpush1.bf16.msra.mxu0 0
  %4099 = vmatprep.subr.bf16.mxu0 0
  %4100 = vmatpush1.bf16.msra.mxu0 0
  %4101 = vmatprep.subr.bf16.mxu0 0
  %4102 = vmatpush1.bf16.msra.mxu0 0
  %4103 = vmatprep.subr.bf16.mxu0 0
  %4104 = vmatpush1.bf16.msra.mxu0 0
  %4105 = vmatprep.mubr.bf16.mxu0 0
  %4106 = vmatmul.mubr.bf16.gmra.mrb[0].mxu0 %v4068
  %v4107 = vpop.f32.mrb[0].mxu0
  %v4108 = vadd.f32 %v4054, %v4107
  %v4109 = vpop.f32.mrb[0].mxu0
  %v4110 = vpop.f32.mrb[0].mxu0
  %v4111 = vadd.f32 %v4054, %v4110
  %v4112 = vpop.f32.mrb[0].mxu0
  %4113 = vmatprep.mubr.bf16.mxu0 0
  %4114 = vmatmul.mubr.bf16.gmra.mrb[0].mxu0 %v4071
  %v4115 = vpop.f32.mrb[0].mxu0
  %v4116 = vadd.f32 %v4054, %v4115
  %v4117 = vpop.f32.mrb[0].mxu0
  %v4118 = vpop.f32.mrb[0].mxu0
  %v4119 = vadd.f32 %v4054, %v4118
  %v4120 = vpop.f32.mrb[0].mxu0
  %4121 = vdwg.mxu0
  %v4122 = vlaneseq
  %v4123 = vshrl.u32 %v4122, 7
  %v4124 = vsub.s32 1, %v4123
  %v4125 = vrot.slane %v4018, %v4124
  %v4130 = vunpack.c.l.b16 %v3965
  %v4131 = vunpack.c.l.b16 %v3966
  %v4132 = vunpack.c.l.b16 %v3967
  %v4133 = vunpack.c.l.b16 %v3968
  %v4134 = vpack.c.b16 %v4131, %v4130
  %v4135 = vpack.c.b16 %v4133, %v4132
  %4138 = vmatprep.subr.bf16.mxu0 0
  %4139 = vmatpush1.bf16.msra.mxu0 %v4134
  %4140 = vmatprep.subr.bf16.mxu0 0
  %4141 = vmatpush1.bf16.msra.mxu0 %v4135
  %4142 = vmatprep.subr.bf16.mxu0 0
  %4143 = vmatpush1.bf16.msra.mxu0 0
  %4144 = vmatprep.subr.bf16.mxu0 0
  %4145 = vmatpush1.bf16.msra.mxu0 0
  %4146 = vmatprep.subr.bf16.mxu0 0
  %4147 = vmatpush1.bf16.msra.mxu0 0
  %4148 = vmatprep.subr.bf16.mxu0 0
  %4149 = vmatpush1.bf16.msra.mxu0 0
  %4150 = vmatprep.subr.bf16.mxu0 0
  %4151 = vmatpush1.bf16.msra.mxu0 0
  %4152 = vmatprep.subr.bf16.mxu0 0
  %4153 = vmatpush1.bf16.msra.mxu0 0
  %4154 = vmatprep.subr.bf16.mxu0 0
  %4155 = vmatpush1.bf16.msra.mxu0 0
  %4156 = vmatprep.subr.bf16.mxu0 0
  %4157 = vmatpush1.bf16.msra.mxu0 0
  %4158 = vmatprep.subr.bf16.mxu0 0
  %4159 = vmatpush1.bf16.msra.mxu0 0
  %4160 = vmatprep.subr.bf16.mxu0 0
  %4161 = vmatpush1.bf16.msra.mxu0 0
  %4162 = vmatprep.subr.bf16.mxu0 0
  %4163 = vmatpush1.bf16.msra.mxu0 0
  %4164 = vmatprep.subr.bf16.mxu0 0
  %4165 = vmatpush1.bf16.msra.mxu0 0
  %4166 = vmatprep.subr.bf16.mxu0 0
  %4167 = vmatpush1.bf16.msra.mxu0 0
  %4168 = vmatprep.subr.bf16.mxu0 0
  %4169 = vmatpush1.bf16.msra.mxu0 0
  %4170 = vmatprep.mubr.bf16.mxu0 0
  %4171 = vmatmul.mubr.bf16.gmra.mrb[0].mxu0 %v4068
  %v4172 = vpop.f32.mrb[0].mxu0
  %v4173 = vadd.f32 %v4125, %v4172
  %v4174 = vpop.f32.mrb[0].mxu0
  %v4175 = vpop.f32.mrb[0].mxu0
  %v4176 = vadd.f32 %v4125, %v4175
  %v4177 = vpop.f32.mrb[0].mxu0
  %4178 = vmatprep.mubr.bf16.mxu0 0
  %4179 = vmatmul.mubr.bf16.gmra.mrb[0].mxu0 %v4071
  %v4180 = vpop.f32.mrb[0].mxu0
  %v4181 = vadd.f32 %v4125, %v4180
  %v4182 = vpop.f32.mrb[0].mxu0
  %v4183 = vpop.f32.mrb[0].mxu0
  %v4184 = vadd.f32 %v4125, %v4183
  %v4185 = vpop.f32.mrb[0].mxu0
  %4186 = vdwg.mxu0
  %v4187 = vlaneseq
  %v4188 = vshrl.u32 %v4187, 7
  %v4189 = vsub.s32 2, %v4188
  %v4190 = vrot.slane %v4018, %v4189
  %v4195 = vunpack.c.l.b16 %v3974
  %v4196 = vunpack.c.l.b16 %v3975
  %v4197 = vunpack.c.l.b16 %v3976
  %v4198 = vunpack.c.l.b16 %v3977
  %v4199 = vpack.c.b16 %v4196, %v4195
  %v4200 = vpack.c.b16 %v4198, %v4197
  %4203 = vmatprep.subr.bf16.mxu0 0
  %4204 = vmatpush1.bf16.msra.mxu0 %v4199
  %4205 = vmatprep.subr.bf16.mxu0 0
  %4206 = vmatpush1.bf16.msra.mxu0 %v4200
  %4207 = vmatprep.subr.bf16.mxu0 0
  %4208 = vmatpush1.bf16.msra.mxu0 0
  %4209 = vmatprep.subr.bf16.mxu0 0
  %4210 = vmatpush1.bf16.msra.mxu0 0
  %4211 = vmatprep.subr.bf16.mxu0 0
  %4212 = vmatpush1.bf16.msra.mxu0 0
  %4213 = vmatprep.subr.bf16.mxu0 0
  %4214 = vmatpush1.bf16.msra.mxu0 0
  %4215 = vmatprep.subr.bf16.mxu0 0
  %4216 = vmatpush1.bf16.msra.mxu0 0
  %4217 = vmatprep.subr.bf16.mxu0 0
  %4218 = vmatpush1.bf16.msra.mxu0 0
  %4219 = vmatprep.subr.bf16.mxu0 0
  %4220 = vmatpush1.bf16.msra.mxu0 0
  %4221 = vmatprep.subr.bf16.mxu0 0
  %4222 = vmatpush1.bf16.msra.mxu0 0
  %4223 = vmatprep.subr.bf16.mxu0 0
  %4224 = vmatpush1.bf16.msra.mxu0 0
  %4225 = vmatprep.subr.bf16.mxu0 0
  %4226 = vmatpush1.bf16.msra.mxu0 0
  %4227 = vmatprep.subr.bf16.mxu0 0
  %4228 = vmatpush1.bf16.msra.mxu0 0
  %4229 = vmatprep.subr.bf16.mxu0 0
  %4230 = vmatpush1.bf16.msra.mxu0 0
  %4231 = vmatprep.subr.bf16.mxu0 0
  %4232 = vmatpush1.bf16.msra.mxu0 0
  %4233 = vmatprep.subr.bf16.mxu0 0
  %4234 = vmatpush1.bf16.msra.mxu0 0
  %4235 = vmatprep.mubr.bf16.mxu0 0
  %4236 = vmatmul.mubr.bf16.gmra.mrb[0].mxu0 %v4068
  %v4237 = vpop.f32.mrb[0].mxu0
  %v4238 = vadd.f32 %v4190, %v4237
  %v4239 = vpop.f32.mrb[0].mxu0
  %v4240 = vpop.f32.mrb[0].mxu0
  %v4241 = vadd.f32 %v4190, %v4240
  %v4242 = vpop.f32.mrb[0].mxu0
  %4243 = vmatprep.mubr.bf16.mxu0 0
  %4244 = vmatmul.mubr.bf16.gmra.mrb[0].mxu0 %v4071
  %v4245 = vpop.f32.mrb[0].mxu0
  %v4246 = vadd.f32 %v4190, %v4245
  %v4247 = vpop.f32.mrb[0].mxu0
  %v4248 = vpop.f32.mrb[0].mxu0
  %v4249 = vadd.f32 %v4190, %v4248
  %v4250 = vpop.f32.mrb[0].mxu0
  %4251 = vdwg.mxu0
  %v4252 = vpack.c.bf16 %v4111, %v4108
  %v4253 = vpack.c.bf16 %v4119, %v4116
  %v4254 = vpack.c.bf16 %v4176, %v4173
  %v4255 = vpack.c.bf16 %v4184, %v4181
  %v4256 = vpack.c.bf16 %v4241, %v4238
  %v4257 = vpack.c.bf16 %v4249, %v4246
  %v4258 = vmul.bf16 %v4254, %v171
  %v4259 = vmul.bf16 %v4255, %v171
  %v4260 = vmul.bf16 %v4256, %v171
  %v4261 = vmul.bf16 %v4257, %v171
  %v4263 = vsel %vm208, %v4252, 0
  %v4266 = vsel %vm208, %v4258, 0
  %4268 = vmatprep.subr.bf16.mxu0 0
  %4269 = vmatpush1.bf16.xpose.msra.mxu0 %v4266
  %4270 = vmatprep.subr.bf16.mxu0 0
  %4271 = vmatpush1.bf16.xpose.msra.mxu0 0
  %4272 = vmatprep.subr.bf16.mxu0 0
  %4273 = vmatpush1.bf16.xpose.msra.mxu0 0
  %4274 = vmatprep.subr.bf16.mxu0 0
  %4275 = vmatpush1.bf16.xpose.msra.mxu0 0
  %4276 = vmatprep.subr.bf16.mxu0 0
  %4277 = vmatpush1.bf16.xpose.msra.mxu0 0
  %4278 = vmatprep.subr.bf16.mxu0 0
  %4279 = vmatpush1.bf16.xpose.msra.mxu0 0
  %4280 = vmatprep.subr.bf16.mxu0 0
  %4281 = vmatpush1.bf16.xpose.msra.mxu0 0
  %4282 = vmatprep.subr.bf16.mxu0 0
  %4283 = vmatpush1.bf16.xpose.msra.mxu0 0
  %4284 = vmatprep.subr.bf16.mxu0 0
  %4285 = vmatpush1.bf16.xpose.msra.mxu0 0
  %4286 = vmatprep.subr.bf16.mxu0 0
  %4287 = vmatpush1.bf16.xpose.msra.mxu0 0
  %4288 = vmatprep.subr.bf16.mxu0 0
  %4289 = vmatpush1.bf16.xpose.msra.mxu0 0
  %4290 = vmatprep.subr.bf16.mxu0 0
  %4291 = vmatpush1.bf16.xpose.msra.mxu0 0
  %4292 = vmatprep.subr.bf16.mxu0 0
  %4293 = vmatpush1.bf16.xpose.msra.mxu0 0
  %4294 = vmatprep.subr.bf16.mxu0 0
  %4295 = vmatpush1.bf16.xpose.msra.mxu0 0
  %4296 = vmatprep.subr.bf16.mxu0 0
  %4297 = vmatpush1.bf16.xpose.msra.mxu0 0
  %4298 = vmatprep.subr.bf16.mxu0 0
  %4299 = vmatpush1.bf16.xpose.msra.mxu0 0
  %4300 = vmatprep.mubr.bf16.mxu0 0
  %4301 = vmatmul.mubr.bf16.gmra.mrb[0].mxu0 %v4263
  %v4302 = vpop.f32.mrb[0].mxu0
  %v4303 = vadd.f32 0.0, %v4302
  %v4304 = vpop.f32.mrb[0].mxu0
  %v4305 = vpop.f32.mrb[0].mxu0
  %v4306 = vadd.f32 0.0, %v4305
  %v4307 = vpop.f32.mrb[0].mxu0
  %4308 = vdwg.mxu0
  %v4310 = vsel %vm208, %v4253, 0
  %v4313 = vsel %vm208, %v4259, 0
  %4315 = vmatprep.subr.bf16.mxu0 0
  %4316 = vmatpush1.bf16.xpose.msra.mxu0 %v4313
  %4317 = vmatprep.subr.bf16.mxu0 0
  %4318 = vmatpush1.bf16.xpose.msra.mxu0 0
  %4319 = vmatprep.subr.bf16.mxu0 0
  %4320 = vmatpush1.bf16.xpose.msra.mxu0 0
  %4321 = vmatprep.subr.bf16.mxu0 0
  %4322 = vmatpush1.bf16.xpose.msra.mxu0 0
  %4323 = vmatprep.subr.bf16.mxu0 0
  %4324 = vmatpush1.bf16.xpose.msra.mxu0 0
  %4325 = vmatprep.subr.bf16.mxu0 0
  %4326 = vmatpush1.bf16.xpose.msra.mxu0 0
  %4327 = vmatprep.subr.bf16.mxu0 0
  %4328 = vmatpush1.bf16.xpose.msra.mxu0 0
  %4329 = vmatprep.subr.bf16.mxu0 0
  %4330 = vmatpush1.bf16.xpose.msra.mxu0 0
  %4331 = vmatprep.subr.bf16.mxu0 0
  %4332 = vmatpush1.bf16.xpose.msra.mxu0 0
  %4333 = vmatprep.subr.bf16.mxu0 0
  %4334 = vmatpush1.bf16.xpose.msra.mxu0 0
  %4335 = vmatprep.subr.bf16.mxu0 0
  %4336 = vmatpush1.bf16.xpose.msra.mxu0 0
  %4337 = vmatprep.subr.bf16.mxu0 0
  %4338 = vmatpush1.bf16.xpose.msra.mxu0 0
  %4339 = vmatprep.subr.bf16.mxu0 0
  %4340 = vmatpush1.bf16.xpose.msra.mxu0 0
  %4341 = vmatprep.subr.bf16.mxu0 0
  %4342 = vmatpush1.bf16.xpose.msra.mxu0 0
  %4343 = vmatprep.subr.bf16.mxu0 0
  %4344 = vmatpush1.bf16.xpose.msra.mxu0 0
  %4345 = vmatprep.subr.bf16.mxu0 0
  %4346 = vmatpush1.bf16.xpose.msra.mxu0 0
  %4347 = vmatprep.mubr.bf16.mxu0 0
  %4348 = vmatmul.mubr.bf16.gmra.mrb[0].mxu0 %v4310
  %v4349 = vpop.f32.mrb[0].mxu0
  %v4350 = vadd.f32 0.0, %v4349
  %v4351 = vpop.f32.mrb[0].mxu0
  %v4352 = vpop.f32.mrb[0].mxu0
  %v4353 = vadd.f32 0.0, %v4352
  %v4354 = vpop.f32.mrb[0].mxu0
  %4355 = vdwg.mxu0
  %v4356 = vmul.f32 %v4303, 0.35355338
  %v4357 = vmul.f32 %v4306, 0.35355338
  %v4358 = vmul.f32 %v4350, 0.35355338
  %v4359 = vmul.f32 %v4353, 0.35355338
  %v4360 = vlaneseq
  %v4361 = vshrl.u32 %v4360, 7
  %v4362 = vsub.s32 0, %v4361
  %v4363 = vrot.slane %v4041, %v4362
  %v4364 = vlaneseq
  %v4365 = vshrl.u32 %v4364, 7
  %v4366 = vsub.s32 0, %v4365
  %v4367 = vrot.slane %v4048, %v4366
  %v4370 = vadd.f32 %v4356, %v4363
  %v4371 = vadd.f32 %v4357, %v4363
  %v4372 = vadd.f32 %v4358, %v4367
  %v4373 = vadd.f32 %v4359, %v4367
  %v4374 = vsel %vm516, %v4370, -inf
  %4375 = vmax.xlane.f32.xlu0 %v4374
  %v4376 = vpop.xlane.xlu0 %4375
  %v4377 = vsel %vm516, %v4371, -inf
  %4378 = vmax.xlane.f32.xlu0 %v4377
  %v4379 = vpop.xlane.xlu0 %4378
  %v4380 = vsel %vm516, %v4372, -inf
  %4381 = vmax.xlane.f32.xlu0 %v4380
  %v4382 = vpop.xlane.xlu0 %4381
  %v4383 = vsel %vm516, %v4373, -inf
  %4384 = vmax.xlane.f32.xlu0 %v4383
  %v4385 = vpop.xlane.xlu0 %4384
  %v4386 = vsub.f32 %v4370, %v4376
  %v4387 = vsub.f32 %v4371, %v4379
  %v4388 = vsub.f32 %v4372, %v4382
  %v4389 = vsub.f32 %v4373, %v4385
  %v4390 = vmul.f32 %v4386, 1.442695
  %v4391 = vpow.pop %v4390
  %v4392 = vmul.f32 %v4387, 1.442695
  %v4393 = vpow.pop %v4392
  %v4394 = vmul.f32 %v4388, 1.442695
  %v4395 = vpow.pop %v4394
  %v4396 = vmul.f32 %v4389, 1.442695
  %v4397 = vpow.pop %v4396
  %v4398 = vsel %vm516, %v4391, 0.0
  %4399 = vadd.xlane.f32.xlu0 %v4398
  %v4400 = vpop.xlane.xlu0 %4399
  %v4401 = vsel %vm516, %v4393, 0.0
  %4402 = vadd.xlane.f32.xlu0 %v4401
  %v4403 = vpop.xlane.xlu0 %4402
  %v4404 = vsel %vm516, %v4395, 0.0
  %4405 = vadd.xlane.f32.xlu0 %v4404
  %v4406 = vpop.xlane.xlu0 %4405
  %v4407 = vsel %vm516, %v4397, 0.0
  %4408 = vadd.xlane.f32.xlu0 %v4407
  %v4409 = vpop.xlane.xlu0 %4408
  %v4410 = vrcp.pop %v4400
  %v4411 = vrcp.pop %v4403
  %v4412 = vrcp.pop %v4406
  %v4413 = vrcp.pop %v4409
  %v4414 = vmul.f32 %v4391, %v4410
  %v4415 = vmul.f32 %v4393, %v4411
  %v4416 = vmul.f32 %v4395, %v4412
  %v4417 = vmul.f32 %v4397, %v4413
  %v4418 = vpack.c.bf16 %v4415, %v4414
  %v4419 = vpack.c.bf16 %v4417, %v4416
  %v4420 = vmul.bf16 %v4254, %v177
  %v4421 = vmul.bf16 %v4255, %v177
  %v4422 = vmul.bf16 %v4256, %v177
  %v4423 = vmul.bf16 %v4257, %v177
  %v4425 = vsel %vm208, %v4420, 0
  %4427 = vmatprep.subr.bf16.mxu0 0
  %4428 = vmatpush1.bf16.xpose.msra.mxu0 %v4425
  %4429 = vmatprep.subr.bf16.mxu0 0
  %4430 = vmatpush1.bf16.xpose.msra.mxu0 0
  %4431 = vmatprep.subr.bf16.mxu0 0
  %4432 = vmatpush1.bf16.xpose.msra.mxu0 0
  %4433 = vmatprep.subr.bf16.mxu0 0
  %4434 = vmatpush1.bf16.xpose.msra.mxu0 0
  %4435 = vmatprep.subr.bf16.mxu0 0
  %4436 = vmatpush1.bf16.xpose.msra.mxu0 0
  %4437 = vmatprep.subr.bf16.mxu0 0
  %4438 = vmatpush1.bf16.xpose.msra.mxu0 0
  %4439 = vmatprep.subr.bf16.mxu0 0
  %4440 = vmatpush1.bf16.xpose.msra.mxu0 0
  %4441 = vmatprep.subr.bf16.mxu0 0
  %4442 = vmatpush1.bf16.xpose.msra.mxu0 0
  %4443 = vmatprep.subr.bf16.mxu0 0
  %4444 = vmatpush1.bf16.xpose.msra.mxu0 0
  %4445 = vmatprep.subr.bf16.mxu0 0
  %4446 = vmatpush1.bf16.xpose.msra.mxu0 0
  %4447 = vmatprep.subr.bf16.mxu0 0
  %4448 = vmatpush1.bf16.xpose.msra.mxu0 0
  %4449 = vmatprep.subr.bf16.mxu0 0
  %4450 = vmatpush1.bf16.xpose.msra.mxu0 0
  %4451 = vmatprep.subr.bf16.mxu0 0
  %4452 = vmatpush1.bf16.xpose.msra.mxu0 0
  %4453 = vmatprep.subr.bf16.mxu0 0
  %4454 = vmatpush1.bf16.xpose.msra.mxu0 0
  %4455 = vmatprep.subr.bf16.mxu0 0
  %4456 = vmatpush1.bf16.xpose.msra.mxu0 0
  %4457 = vmatprep.subr.bf16.mxu0 0
  %4458 = vmatpush1.bf16.xpose.msra.mxu0 0
  %4459 = vmatprep.mubr.bf16.mxu0 0
  %4460 = vmatmul.mubr.bf16.gmra.mrb[0].mxu0 %v4263
  %v4461 = vpop.f32.mrb[0].mxu0
  %v4462 = vadd.f32 0.0, %v4461
  %v4463 = vpop.f32.mrb[0].mxu0
  %v4464 = vpop.f32.mrb[0].mxu0
  %v4465 = vadd.f32 0.0, %v4464
  %v4466 = vpop.f32.mrb[0].mxu0
  %4467 = vdwg.mxu0
  %v4469 = vsel %vm208, %v4421, 0
  %4471 = vmatprep.subr.bf16.mxu0 0
  %4472 = vmatpush1.bf16.xpose.msra.mxu0 %v4469
  %4473 = vmatprep.subr.bf16.mxu0 0
  %4474 = vmatpush1.bf16.xpose.msra.mxu0 0
  %4475 = vmatprep.subr.bf16.mxu0 0
  %4476 = vmatpush1.bf16.xpose.msra.mxu0 0
  %4477 = vmatprep.subr.bf16.mxu0 0
  %4478 = vmatpush1.bf16.xpose.msra.mxu0 0
  %4479 = vmatprep.subr.bf16.mxu0 0
  %4480 = vmatpush1.bf16.xpose.msra.mxu0 0
  %4481 = vmatprep.subr.bf16.mxu0 0
  %4482 = vmatpush1.bf16.xpose.msra.mxu0 0
  %4483 = vmatprep.subr.bf16.mxu0 0
  %4484 = vmatpush1.bf16.xpose.msra.mxu0 0
  %4485 = vmatprep.subr.bf16.mxu0 0
  %4486 = vmatpush1.bf16.xpose.msra.mxu0 0
  %4487 = vmatprep.subr.bf16.mxu0 0
  %4488 = vmatpush1.bf16.xpose.msra.mxu0 0
  %4489 = vmatprep.subr.bf16.mxu0 0
  %4490 = vmatpush1.bf16.xpose.msra.mxu0 0
  %4491 = vmatprep.subr.bf16.mxu0 0
  %4492 = vmatpush1.bf16.xpose.msra.mxu0 0
  %4493 = vmatprep.subr.bf16.mxu0 0
  %4494 = vmatpush1.bf16.xpose.msra.mxu0 0
  %4495 = vmatprep.subr.bf16.mxu0 0
  %4496 = vmatpush1.bf16.xpose.msra.mxu0 0
  %4497 = vmatprep.subr.bf16.mxu0 0
  %4498 = vmatpush1.bf16.xpose.msra.mxu0 0
  %4499 = vmatprep.subr.bf16.mxu0 0
  %4500 = vmatpush1.bf16.xpose.msra.mxu0 0
  %4501 = vmatprep.subr.bf16.mxu0 0
  %4502 = vmatpush1.bf16.xpose.msra.mxu0 0
  %4503 = vmatprep.mubr.bf16.mxu0 0
  %4504 = vmatmul.mubr.bf16.gmra.mrb[0].mxu0 %v4310
  %v4505 = vpop.f32.mrb[0].mxu0
  %v4506 = vadd.f32 0.0, %v4505
  %v4507 = vpop.f32.mrb[0].mxu0
  %v4508 = vpop.f32.mrb[0].mxu0
  %v4509 = vadd.f32 0.0, %v4508
  %v4510 = vpop.f32.mrb[0].mxu0
  %4511 = vdwg.mxu0
  %v4512 = vmul.f32 %v4462, 0.35355338
  %v4513 = vmul.f32 %v4465, 0.35355338
  %v4514 = vmul.f32 %v4506, 0.35355338
  %v4515 = vmul.f32 %v4509, 0.35355338
  %v4516 = vadd.f32 %v4512, %v4363
  %v4517 = vadd.f32 %v4513, %v4363
  %v4518 = vadd.f32 %v4514, %v4367
  %v4519 = vadd.f32 %v4515, %v4367
  %v4520 = vsel %vm516, %v4516, -inf
  %4521 = vmax.xlane.f32.xlu0 %v4520
  %v4522 = vpop.xlane.xlu0 %4521
  %v4523 = vsel %vm516, %v4517, -inf
  %4524 = vmax.xlane.f32.xlu0 %v4523
  %v4525 = vpop.xlane.xlu0 %4524
  %v4526 = vsel %vm516, %v4518, -inf
  %4527 = vmax.xlane.f32.xlu0 %v4526
  %v4528 = vpop.xlane.xlu0 %4527
  %v4529 = vsel %vm516, %v4519, -inf
  %4530 = vmax.xlane.f32.xlu0 %v4529
  %v4531 = vpop.xlane.xlu0 %4530
  %v4532 = vsub.f32 %v4516, %v4522
  %v4533 = vsub.f32 %v4517, %v4525
  %v4534 = vsub.f32 %v4518, %v4528
  %v4535 = vsub.f32 %v4519, %v4531
  %v4536 = vmul.f32 %v4532, 1.442695
  %v4537 = vpow.pop %v4536
  %v4538 = vmul.f32 %v4533, 1.442695
  %v4539 = vpow.pop %v4538
  %v4540 = vmul.f32 %v4534, 1.442695
  %v4541 = vpow.pop %v4540
  %v4542 = vmul.f32 %v4535, 1.442695
  %v4543 = vpow.pop %v4542
  %v4544 = vsel %vm516, %v4537, 0.0
  %4545 = vadd.xlane.f32.xlu0 %v4544
  %v4546 = vpop.xlane.xlu0 %4545
  %v4547 = vsel %vm516, %v4539, 0.0
  %4548 = vadd.xlane.f32.xlu0 %v4547
  %v4549 = vpop.xlane.xlu0 %4548
  %v4550 = vsel %vm516, %v4541, 0.0
  %4551 = vadd.xlane.f32.xlu0 %v4550
  %v4552 = vpop.xlane.xlu0 %4551
  %v4553 = vsel %vm516, %v4543, 0.0
  %4554 = vadd.xlane.f32.xlu0 %v4553
  %v4555 = vpop.xlane.xlu0 %4554
  %v4556 = vrcp.pop %v4546
  %v4557 = vrcp.pop %v4549
  %v4558 = vrcp.pop %v4552
  %v4559 = vrcp.pop %v4555
  %v4560 = vmul.f32 %v4537, %v4556
  %v4561 = vmul.f32 %v4539, %v4557
  %v4562 = vmul.f32 %v4541, %v4558
  %v4563 = vmul.f32 %v4543, %v4559
  %v4564 = vpack.c.bf16 %v4561, %v4560
  %v4565 = vpack.c.bf16 %v4563, %v4562
  %v4567 = vsel %vm516, %v4564, 0
  %4569 = vmatprep.subr.bf16.mxu0 0
  %4570 = vmatpush1.bf16.msra.mxu0 %v4422
  %4571 = vmatprep.subr.bf16.mxu0 0
  %4572 = vmatpush1.bf16.msra.mxu0 0
  %4573 = vmatprep.subr.bf16.mxu0 0
  %4574 = vmatpush1.bf16.msra.mxu0 0
  %4575 = vmatprep.subr.bf16.mxu0 0
  %4576 = vmatpush1.bf16.msra.mxu0 0
  %4577 = vmatprep.subr.bf16.mxu0 0
  %4578 = vmatpush1.bf16.msra.mxu0 0
  %4579 = vmatprep.subr.bf16.mxu0 0
  %4580 = vmatpush1.bf16.msra.mxu0 0
  %4581 = vmatprep.subr.bf16.mxu0 0
  %4582 = vmatpush1.bf16.msra.mxu0 0
  %4583 = vmatprep.subr.bf16.mxu0 0
  %4584 = vmatpush1.bf16.msra.mxu0 0
  %4585 = vmatprep.subr.bf16.mxu0 0
  %4586 = vmatpush1.bf16.msra.mxu0 0
  %4587 = vmatprep.subr.bf16.mxu0 0
  %4588 = vmatpush1.bf16.msra.mxu0 0
  %4589 = vmatprep.subr.bf16.mxu0 0
  %4590 = vmatpush1.bf16.msra.mxu0 0
  %4591 = vmatprep.subr.bf16.mxu0 0
  %4592 = vmatpush1.bf16.msra.mxu0 0
  %4593 = vmatprep.subr.bf16.mxu0 0
  %4594 = vmatpush1.bf16.msra.mxu0 0
  %4595 = vmatprep.subr.bf16.mxu0 0
  %4596 = vmatpush1.bf16.msra.mxu0 0
  %4597 = vmatprep.subr.bf16.mxu0 0
  %4598 = vmatpush1.bf16.msra.mxu0 0
  %4599 = vmatprep.subr.bf16.mxu0 0
  %4600 = vmatpush1.bf16.msra.mxu0 0
  %4601 = vmatprep.mubr.bf16.mxu0 0
  %4602 = vmatmul.mubr.bf16.gmra.mrb[0].mxu0 %v4567
  %v4603 = vpop.f32.mrb[0].mxu0
  %v4604 = vadd.f32 0.0, %v4603
  %v4605 = vpop.f32.mrb[0].mxu0
  %v4606 = vpop.f32.mrb[0].mxu0
  %v4607 = vadd.f32 0.0, %v4606
  %v4608 = vpop.f32.mrb[0].mxu0
  %4609 = vdwg.mxu0
  %v4611 = vsel %vm516, %v4565, 0
  %4613 = vmatprep.subr.bf16.mxu0 0
  %4614 = vmatpush1.bf16.msra.mxu0 %v4423
  %4615 = vmatprep.subr.bf16.mxu0 0
  %4616 = vmatpush1.bf16.msra.mxu0 0
  %4617 = vmatprep.subr.bf16.mxu0 0
  %4618 = vmatpush1.bf16.msra.mxu0 0
  %4619 = vmatprep.subr.bf16.mxu0 0
  %4620 = vmatpush1.bf16.msra.mxu0 0
  %4621 = vmatprep.subr.bf16.mxu0 0
  %4622 = vmatpush1.bf16.msra.mxu0 0
  %4623 = vmatprep.subr.bf16.mxu0 0
  %4624 = vmatpush1.bf16.msra.mxu0 0
  %4625 = vmatprep.subr.bf16.mxu0 0
  %4626 = vmatpush1.bf16.msra.mxu0 0
  %4627 = vmatprep.subr.bf16.mxu0 0
  %4628 = vmatpush1.bf16.msra.mxu0 0
  %4629 = vmatprep.subr.bf16.mxu0 0
  %4630 = vmatpush1.bf16.msra.mxu0 0
  %4631 = vmatprep.subr.bf16.mxu0 0
  %4632 = vmatpush1.bf16.msra.mxu0 0
  %4633 = vmatprep.subr.bf16.mxu0 0
  %4634 = vmatpush1.bf16.msra.mxu0 0
  %4635 = vmatprep.subr.bf16.mxu0 0
  %4636 = vmatpush1.bf16.msra.mxu0 0
  %4637 = vmatprep.subr.bf16.mxu0 0
  %4638 = vmatpush1.bf16.msra.mxu0 0
  %4639 = vmatprep.subr.bf16.mxu0 0
  %4640 = vmatpush1.bf16.msra.mxu0 0
  %4641 = vmatprep.subr.bf16.mxu0 0
  %4642 = vmatpush1.bf16.msra.mxu0 0
  %4643 = vmatprep.subr.bf16.mxu0 0
  %4644 = vmatpush1.bf16.msra.mxu0 0
  %4645 = vmatprep.mubr.bf16.mxu0 0
  %4646 = vmatmul.mubr.bf16.gmra.mrb[0].mxu0 %v4611
  %v4647 = vpop.f32.mrb[0].mxu0
  %v4648 = vadd.f32 0.0, %v4647
  %v4649 = vpop.f32.mrb[0].mxu0
  %v4650 = vpop.f32.mrb[0].mxu0
  %v4651 = vadd.f32 0.0, %v4650
  %v4652 = vpop.f32.mrb[0].mxu0
  %4653 = vdwg.mxu0
  %v4655 = vsel %vm516, %v4418, 0
  %4657 = vmatprep.subr.bf16.mxu0 0
  %4658 = vmatpush1.bf16.msra.mxu0 %v4260
  %4659 = vmatprep.subr.bf16.mxu0 0
  %4660 = vmatpush1.bf16.msra.mxu0 0
  %4661 = vmatprep.subr.bf16.mxu0 0
  %4662 = vmatpush1.bf16.msra.mxu0 0
  %4663 = vmatprep.subr.bf16.mxu0 0
  %4664 = vmatpush1.bf16.msra.mxu0 0
  %4665 = vmatprep.subr.bf16.mxu0 0
  %4666 = vmatpush1.bf16.msra.mxu0 0
  %4667 = vmatprep.subr.bf16.mxu0 0
  %4668 = vmatpush1.bf16.msra.mxu0 0
  %4669 = vmatprep.subr.bf16.mxu0 0
  %4670 = vmatpush1.bf16.msra.mxu0 0
  %4671 = vmatprep.subr.bf16.mxu0 0
  %4672 = vmatpush1.bf16.msra.mxu0 0
  %4673 = vmatprep.subr.bf16.mxu0 0
  %4674 = vmatpush1.bf16.msra.mxu0 0
  %4675 = vmatprep.subr.bf16.mxu0 0
  %4676 = vmatpush1.bf16.msra.mxu0 0
  %4677 = vmatprep.subr.bf16.mxu0 0
  %4678 = vmatpush1.bf16.msra.mxu0 0
  %4679 = vmatprep.subr.bf16.mxu0 0
  %4680 = vmatpush1.bf16.msra.mxu0 0
  %4681 = vmatprep.subr.bf16.mxu0 0
  %4682 = vmatpush1.bf16.msra.mxu0 0
  %4683 = vmatprep.subr.bf16.mxu0 0
  %4684 = vmatpush1.bf16.msra.mxu0 0
  %4685 = vmatprep.subr.bf16.mxu0 0
  %4686 = vmatpush1.bf16.msra.mxu0 0
  %4687 = vmatprep.subr.bf16.mxu0 0
  %4688 = vmatpush1.bf16.msra.mxu0 0
  %4689 = vmatprep.mubr.bf16.mxu0 0
  %4690 = vmatmul.mubr.bf16.gmra.mrb[0].mxu0 %v4655
  %v4691 = vpop.f32.mrb[0].mxu0
  %v4692 = vadd.f32 %v4604, %v4691
  %v4693 = vpop.f32.mrb[0].mxu0
  %v4694 = vpop.f32.mrb[0].mxu0
  %v4695 = vadd.f32 %v4607, %v4694
  %v4696 = vpop.f32.mrb[0].mxu0
  %4697 = vdwg.mxu0
  %v4699 = vsel %vm516, %v4419, 0
  %4701 = vmatprep.subr.bf16.mxu0 0
  %4702 = vmatpush1.bf16.msra.mxu0 %v4261
  %4703 = vmatprep.subr.bf16.mxu0 0
  %4704 = vmatpush1.bf16.msra.mxu0 0
  %4705 = vmatprep.subr.bf16.mxu0 0
  %4706 = vmatpush1.bf16.msra.mxu0 0
  %4707 = vmatprep.subr.bf16.mxu0 0
  %4708 = vmatpush1.bf16.msra.mxu0 0
  %4709 = vmatprep.subr.bf16.mxu0 0
  %4710 = vmatpush1.bf16.msra.mxu0 0
  %4711 = vmatprep.subr.bf16.mxu0 0
  %4712 = vmatpush1.bf16.msra.mxu0 0
  %4713 = vmatprep.subr.bf16.mxu0 0
  %4714 = vmatpush1.bf16.msra.mxu0 0
  %4715 = vmatprep.subr.bf16.mxu0 0
  %4716 = vmatpush1.bf16.msra.mxu0 0
  %4717 = vmatprep.subr.bf16.mxu0 0
  %4718 = vmatpush1.bf16.msra.mxu0 0
  %4719 = vmatprep.subr.bf16.mxu0 0
  %4720 = vmatpush1.bf16.msra.mxu0 0
  %4721 = vmatprep.subr.bf16.mxu0 0
  %4722 = vmatpush1.bf16.msra.mxu0 0
  %4723 = vmatprep.subr.bf16.mxu0 0
  %4724 = vmatpush1.bf16.msra.mxu0 0
  %4725 = vmatprep.subr.bf16.mxu0 0
  %4726 = vmatpush1.bf16.msra.mxu0 0
  %4727 = vmatprep.subr.bf16.mxu0 0
  %4728 = vmatpush1.bf16.msra.mxu0 0
  %4729 = vmatprep.subr.bf16.mxu0 0
  %4730 = vmatpush1.bf16.msra.mxu0 0
  %4731 = vmatprep.subr.bf16.mxu0 0
  %4732 = vmatpush1.bf16.msra.mxu0 0
  %4733 = vmatprep.mubr.bf16.mxu0 0
  %4734 = vmatmul.mubr.bf16.gmra.mrb[0].mxu0 %v4699
  %v4735 = vpop.f32.mrb[0].mxu0
  %v4736 = vadd.f32 %v4648, %v4735
  %v4737 = vpop.f32.mrb[0].mxu0
  %v4738 = vpop.f32.mrb[0].mxu0
  %v4739 = vadd.f32 %v4651, %v4738
  %v4740 = vpop.f32.mrb[0].mxu0
  %4741 = vdwg.mxu0
  %v4742 = vmul.bf16 %v4254, %v183
  %v4743 = vmul.bf16 %v4255, %v183
  %v4744 = vmul.bf16 %v4256, %v183
  %v4745 = vmul.bf16 %v4257, %v183
  %v4747 = vsel %vm208, %v4742, 0
  %4749 = vmatprep.subr.bf16.mxu0 0
  %4750 = vmatpush1.bf16.xpose.msra.mxu0 %v4747
  %4751 = vmatprep.subr.bf16.mxu0 0
  %4752 = vmatpush1.bf16.xpose.msra.mxu0 0
  %4753 = vmatprep.subr.bf16.mxu0 0
  %4754 = vmatpush1.bf16.xpose.msra.mxu0 0
  %4755 = vmatprep.subr.bf16.mxu0 0
  %4756 = vmatpush1.bf16.xpose.msra.mxu0 0
  %4757 = vmatprep.subr.bf16.mxu0 0
  %4758 = vmatpush1.bf16.xpose.msra.mxu0 0
  %4759 = vmatprep.subr.bf16.mxu0 0
  %4760 = vmatpush1.bf16.xpose.msra.mxu0 0
  %4761 = vmatprep.subr.bf16.mxu0 0
  %4762 = vmatpush1.bf16.xpose.msra.mxu0 0
  %4763 = vmatprep.subr.bf16.mxu0 0
  %4764 = vmatpush1.bf16.xpose.msra.mxu0 0
  %4765 = vmatprep.subr.bf16.mxu0 0
  %4766 = vmatpush1.bf16.xpose.msra.mxu0 0
  %4767 = vmatprep.subr.bf16.mxu0 0
  %4768 = vmatpush1.bf16.xpose.msra.mxu0 0
  %4769 = vmatprep.subr.bf16.mxu0 0
  %4770 = vmatpush1.bf16.xpose.msra.mxu0 0
  %4771 = vmatprep.subr.bf16.mxu0 0
  %4772 = vmatpush1.bf16.xpose.msra.mxu0 0
  %4773 = vmatprep.subr.bf16.mxu0 0
  %4774 = vmatpush1.bf16.xpose.msra.mxu0 0
  %4775 = vmatprep.subr.bf16.mxu0 0
  %4776 = vmatpush1.bf16.xpose.msra.mxu0 0
  %4777 = vmatprep.subr.bf16.mxu0 0
  %4778 = vmatpush1.bf16.xpose.msra.mxu0 0
  %4779 = vmatprep.subr.bf16.mxu0 0
  %4780 = vmatpush1.bf16.xpose.msra.mxu0 0
  %4781 = vmatprep.mubr.bf16.mxu0 0
  %4782 = vmatmul.mubr.bf16.gmra.mrb[0].mxu0 %v4263
  %v4783 = vpop.f32.mrb[0].mxu0
  %v4784 = vadd.f32 0.0, %v4783
  %v4785 = vpop.f32.mrb[0].mxu0
  %v4786 = vpop.f32.mrb[0].mxu0
  %v4787 = vadd.f32 0.0, %v4786
  %v4788 = vpop.f32.mrb[0].mxu0
  %4789 = vdwg.mxu0
  %v4791 = vsel %vm208, %v4743, 0
  %4793 = vmatprep.subr.bf16.mxu0 0
  %4794 = vmatpush1.bf16.xpose.msra.mxu0 %v4791
  %4795 = vmatprep.subr.bf16.mxu0 0
  %4796 = vmatpush1.bf16.xpose.msra.mxu0 0
  %4797 = vmatprep.subr.bf16.mxu0 0
  %4798 = vmatpush1.bf16.xpose.msra.mxu0 0
  %4799 = vmatprep.subr.bf16.mxu0 0
  %4800 = vmatpush1.bf16.xpose.msra.mxu0 0
  %4801 = vmatprep.subr.bf16.mxu0 0
  %4802 = vmatpush1.bf16.xpose.msra.mxu0 0
  %4803 = vmatprep.subr.bf16.mxu0 0
  %4804 = vmatpush1.bf16.xpose.msra.mxu0 0
  %4805 = vmatprep.subr.bf16.mxu0 0
  %4806 = vmatpush1.bf16.xpose.msra.mxu0 0
  %4807 = vmatprep.subr.bf16.mxu0 0
  %4808 = vmatpush1.bf16.xpose.msra.mxu0 0
  %4809 = vmatprep.subr.bf16.mxu0 0
  %4810 = vmatpush1.bf16.xpose.msra.mxu0 0
  %4811 = vmatprep.subr.bf16.mxu0 0
  %4812 = vmatpush1.bf16.xpose.msra.mxu0 0
  %4813 = vmatprep.subr.bf16.mxu0 0
  %4814 = vmatpush1.bf16.xpose.msra.mxu0 0
  %4815 = vmatprep.subr.bf16.mxu0 0
  %4816 = vmatpush1.bf16.xpose.msra.mxu0 0
  %4817 = vmatprep.subr.bf16.mxu0 0
  %4818 = vmatpush1.bf16.xpose.msra.mxu0 0
  %4819 = vmatprep.subr.bf16.mxu0 0
  %4820 = vmatpush1.bf16.xpose.msra.mxu0 0
  %4821 = vmatprep.subr.bf16.mxu0 0
  %4822 = vmatpush1.bf16.xpose.msra.mxu0 0
  %4823 = vmatprep.subr.bf16.mxu0 0
  %4824 = vmatpush1.bf16.xpose.msra.mxu0 0
  %4825 = vmatprep.mubr.bf16.mxu0 0
  %4826 = vmatmul.mubr.bf16.gmra.mrb[0].mxu0 %v4310
  %v4827 = vpop.f32.mrb[0].mxu0
  %v4828 = vadd.f32 0.0, %v4827
  %v4829 = vpop.f32.mrb[0].mxu0
  %v4830 = vpop.f32.mrb[0].mxu0
  %v4831 = vadd.f32 0.0, %v4830
  %v4832 = vpop.f32.mrb[0].mxu0
  %4833 = vdwg.mxu0
  %v4834 = vmul.f32 %v4784, 0.35355338
  %v4835 = vmul.f32 %v4787, 0.35355338
  %v4836 = vmul.f32 %v4828, 0.35355338
  %v4837 = vmul.f32 %v4831, 0.35355338
  %v4838 = vadd.f32 %v4834, %v4363
  %v4839 = vadd.f32 %v4835, %v4363
  %v4840 = vadd.f32 %v4836, %v4367
  %v4841 = vadd.f32 %v4837, %v4367
  %v4842 = vsel %vm516, %v4838, -inf
  %4843 = vmax.xlane.f32.xlu0 %v4842
  %v4844 = vpop.xlane.xlu0 %4843
  %v4845 = vsel %vm516, %v4839, -inf
  %4846 = vmax.xlane.f32.xlu0 %v4845
  %v4847 = vpop.xlane.xlu0 %4846
  %v4848 = vsel %vm516, %v4840, -inf
  %4849 = vmax.xlane.f32.xlu0 %v4848
  %v4850 = vpop.xlane.xlu0 %4849
  %v4851 = vsel %vm516, %v4841, -inf
  %4852 = vmax.xlane.f32.xlu0 %v4851
  %v4853 = vpop.xlane.xlu0 %4852
  %v4854 = vsub.f32 %v4838, %v4844
  %v4855 = vsub.f32 %v4839, %v4847
  %v4856 = vsub.f32 %v4840, %v4850
  %v4857 = vsub.f32 %v4841, %v4853
  %v4858 = vmul.f32 %v4854, 1.442695
  %v4859 = vpow.pop %v4858
  %v4860 = vmul.f32 %v4855, 1.442695
  %v4861 = vpow.pop %v4860
  %v4862 = vmul.f32 %v4856, 1.442695
  %v4863 = vpow.pop %v4862
  %v4864 = vmul.f32 %v4857, 1.442695
  %v4865 = vpow.pop %v4864
  %v4866 = vsel %vm516, %v4859, 0.0
  %4867 = vadd.xlane.f32.xlu0 %v4866
  %v4868 = vpop.xlane.xlu0 %4867
  %v4869 = vsel %vm516, %v4861, 0.0
  %4870 = vadd.xlane.f32.xlu0 %v4869
  %v4871 = vpop.xlane.xlu0 %4870
  %v4872 = vsel %vm516, %v4863, 0.0
  %4873 = vadd.xlane.f32.xlu0 %v4872
  %v4874 = vpop.xlane.xlu0 %4873
  %v4875 = vsel %vm516, %v4865, 0.0
  %4876 = vadd.xlane.f32.xlu0 %v4875
  %v4877 = vpop.xlane.xlu0 %4876
  %v4878 = vrcp.pop %v4868
  %v4879 = vrcp.pop %v4871
  %v4880 = vrcp.pop %v4874
  %v4881 = vrcp.pop %v4877
  %v4882 = vmul.f32 %v4859, %v4878
  %v4883 = vmul.f32 %v4861, %v4879
  %v4884 = vmul.f32 %v4863, %v4880
  %v4885 = vmul.f32 %v4865, %v4881
  %v4886 = vpack.c.bf16 %v4883, %v4882
  %v4887 = vpack.c.bf16 %v4885, %v4884
  %v4889 = vsel %vm516, %v4886, 0
  %4891 = vmatprep.subr.bf16.mxu0 0
  %4892 = vmatpush1.bf16.msra.mxu0 %v4744
  %4893 = vmatprep.subr.bf16.mxu0 0
  %4894 = vmatpush1.bf16.msra.mxu0 0
  %4895 = vmatprep.subr.bf16.mxu0 0
  %4896 = vmatpush1.bf16.msra.mxu0 0
  %4897 = vmatprep.subr.bf16.mxu0 0
  %4898 = vmatpush1.bf16.msra.mxu0 0
  %4899 = vmatprep.subr.bf16.mxu0 0
  %4900 = vmatpush1.bf16.msra.mxu0 0
  %4901 = vmatprep.subr.bf16.mxu0 0
  %4902 = vmatpush1.bf16.msra.mxu0 0
  %4903 = vmatprep.subr.bf16.mxu0 0
  %4904 = vmatpush1.bf16.msra.mxu0 0
  %4905 = vmatprep.subr.bf16.mxu0 0
  %4906 = vmatpush1.bf16.msra.mxu0 0
  %4907 = vmatprep.subr.bf16.mxu0 0
  %4908 = vmatpush1.bf16.msra.mxu0 0
  %4909 = vmatprep.subr.bf16.mxu0 0
  %4910 = vmatpush1.bf16.msra.mxu0 0
  %4911 = vmatprep.subr.bf16.mxu0 0
  %4912 = vmatpush1.bf16.msra.mxu0 0
  %4913 = vmatprep.subr.bf16.mxu0 0
  %4914 = vmatpush1.bf16.msra.mxu0 0
  %4915 = vmatprep.subr.bf16.mxu0 0
  %4916 = vmatpush1.bf16.msra.mxu0 0
  %4917 = vmatprep.subr.bf16.mxu0 0
  %4918 = vmatpush1.bf16.msra.mxu0 0
  %4919 = vmatprep.subr.bf16.mxu0 0
  %4920 = vmatpush1.bf16.msra.mxu0 0
  %4921 = vmatprep.subr.bf16.mxu0 0
  %4922 = vmatpush1.bf16.msra.mxu0 0
  %4923 = vmatprep.mubr.bf16.mxu0 0
  %4924 = vmatmul.mubr.bf16.gmra.mrb[0].mxu0 %v4889
  %v4925 = vpop.f32.mrb[0].mxu0
  %v4926 = vadd.f32 0.0, %v4925
  %v4927 = vpop.f32.mrb[0].mxu0
  %v4928 = vpop.f32.mrb[0].mxu0
  %v4929 = vadd.f32 0.0, %v4928
  %v4930 = vpop.f32.mrb[0].mxu0
  %4931 = vdwg.mxu0
  %v4933 = vsel %vm516, %v4887, 0
  %4935 = vmatprep.subr.bf16.mxu0 0
  %4936 = vmatpush1.bf16.msra.mxu0 %v4745
  %4937 = vmatprep.subr.bf16.mxu0 0
  %4938 = vmatpush1.bf16.msra.mxu0 0
  %4939 = vmatprep.subr.bf16.mxu0 0
  %4940 = vmatpush1.bf16.msra.mxu0 0
  %4941 = vmatprep.subr.bf16.mxu0 0
  %4942 = vmatpush1.bf16.msra.mxu0 0
  %4943 = vmatprep.subr.bf16.mxu0 0
  %4944 = vmatpush1.bf16.msra.mxu0 0
  %4945 = vmatprep.subr.bf16.mxu0 0
  %4946 = vmatpush1.bf16.msra.mxu0 0
  %4947 = vmatprep.subr.bf16.mxu0 0
  %4948 = vmatpush1.bf16.msra.mxu0 0
  %4949 = vmatprep.subr.bf16.mxu0 0
  %4950 = vmatpush1.bf16.msra.mxu0 0
  %4951 = vmatprep.subr.bf16.mxu0 0
  %4952 = vmatpush1.bf16.msra.mxu0 0
  %4953 = vmatprep.subr.bf16.mxu0 0
  %4954 = vmatpush1.bf16.msra.mxu0 0
  %4955 = vmatprep.subr.bf16.mxu0 0
  %4956 = vmatpush1.bf16.msra.mxu0 0
  %4957 = vmatprep.subr.bf16.mxu0 0
  %4958 = vmatpush1.bf16.msra.mxu0 0
  %4959 = vmatprep.subr.bf16.mxu0 0
  %4960 = vmatpush1.bf16.msra.mxu0 0
  %4961 = vmatprep.subr.bf16.mxu0 0
  %4962 = vmatpush1.bf16.msra.mxu0 0
  %4963 = vmatprep.subr.bf16.mxu0 0
  %4964 = vmatpush1.bf16.msra.mxu0 0
  %4965 = vmatprep.subr.bf16.mxu0 0
  %4966 = vmatpush1.bf16.msra.mxu0 0
  %4967 = vmatprep.mubr.bf16.mxu0 0
  %4968 = vmatmul.mubr.bf16.gmra.mrb[0].mxu0 %v4933
  %v4969 = vpop.f32.mrb[0].mxu0
  %v4970 = vadd.f32 0.0, %v4969
  %v4971 = vpop.f32.mrb[0].mxu0
  %v4972 = vpop.f32.mrb[0].mxu0
  %v4973 = vadd.f32 0.0, %v4972
  %v4974 = vpop.f32.mrb[0].mxu0
  %4975 = vdwg.mxu0
  %v4976 = vadd.f32 %v4692, %v4926
  %v4977 = vadd.f32 %v4695, %v4929
  %v4978 = vadd.f32 %v4736, %v4970
  %v4979 = vadd.f32 %v4739, %v4973
  %v4980 = vmul.bf16 %v4254, %v189
  %v4981 = vmul.bf16 %v4255, %v189
  %v4982 = vmul.bf16 %v4256, %v189
  %v4983 = vmul.bf16 %v4257, %v189
  %v4985 = vsel %vm208, %v4980, 0
  %4987 = vmatprep.subr.bf16.mxu0 0
  %4988 = vmatpush1.bf16.xpose.msra.mxu0 %v4985
  %4989 = vmatprep.subr.bf16.mxu0 0
  %4990 = vmatpush1.bf16.xpose.msra.mxu0 0
  %4991 = vmatprep.subr.bf16.mxu0 0
  %4992 = vmatpush1.bf16.xpose.msra.mxu0 0
  %4993 = vmatprep.subr.bf16.mxu0 0
  %4994 = vmatpush1.bf16.xpose.msra.mxu0 0
  %4995 = vmatprep.subr.bf16.mxu0 0
  %4996 = vmatpush1.bf16.xpose.msra.mxu0 0
  %4997 = vmatprep.subr.bf16.mxu0 0
  %4998 = vmatpush1.bf16.xpose.msra.mxu0 0
  %4999 = vmatprep.subr.bf16.mxu0 0
  %5000 = vmatpush1.bf16.xpose.msra.mxu0 0
  %5001 = vmatprep.subr.bf16.mxu0 0
  %5002 = vmatpush1.bf16.xpose.msra.mxu0 0
  %5003 = vmatprep.subr.bf16.mxu0 0
  %5004 = vmatpush1.bf16.xpose.msra.mxu0 0
  %5005 = vmatprep.subr.bf16.mxu0 0
  %5006 = vmatpush1.bf16.xpose.msra.mxu0 0
  %5007 = vmatprep.subr.bf16.mxu0 0
  %5008 = vmatpush1.bf16.xpose.msra.mxu0 0
  %5009 = vmatprep.subr.bf16.mxu0 0
  %5010 = vmatpush1.bf16.xpose.msra.mxu0 0
  %5011 = vmatprep.subr.bf16.mxu0 0
  %5012 = vmatpush1.bf16.xpose.msra.mxu0 0
  %5013 = vmatprep.subr.bf16.mxu0 0
  %5014 = vmatpush1.bf16.xpose.msra.mxu0 0
  %5015 = vmatprep.subr.bf16.mxu0 0
  %5016 = vmatpush1.bf16.xpose.msra.mxu0 0
  %5017 = vmatprep.subr.bf16.mxu0 0
  %5018 = vmatpush1.bf16.xpose.msra.mxu0 0
  %5019 = vmatprep.mubr.bf16.mxu0 0
  %5020 = vmatmul.mubr.bf16.gmra.mrb[0].mxu0 %v4263
  %v5021 = vpop.f32.mrb[0].mxu0
  %v5022 = vadd.f32 0.0, %v5021
  %v5023 = vpop.f32.mrb[0].mxu0
  %v5024 = vpop.f32.mrb[0].mxu0
  %v5025 = vadd.f32 0.0, %v5024
  %v5026 = vpop.f32.mrb[0].mxu0
  %5027 = vdwg.mxu0
  %v5029 = vsel %vm208, %v4981, 0
  %5031 = vmatprep.subr.bf16.mxu0 0
  %5032 = vmatpush1.bf16.xpose.msra.mxu0 %v5029
  %5033 = vmatprep.subr.bf16.mxu0 0
  %5034 = vmatpush1.bf16.xpose.msra.mxu0 0
  %5035 = vmatprep.subr.bf16.mxu0 0
  %5036 = vmatpush1.bf16.xpose.msra.mxu0 0
  %5037 = vmatprep.subr.bf16.mxu0 0
  %5038 = vmatpush1.bf16.xpose.msra.mxu0 0
  %5039 = vmatprep.subr.bf16.mxu0 0
  %5040 = vmatpush1.bf16.xpose.msra.mxu0 0
  %5041 = vmatprep.subr.bf16.mxu0 0
  %5042 = vmatpush1.bf16.xpose.msra.mxu0 0
  %5043 = vmatprep.subr.bf16.mxu0 0
  %5044 = vmatpush1.bf16.xpose.msra.mxu0 0
  %5045 = vmatprep.subr.bf16.mxu0 0
  %5046 = vmatpush1.bf16.xpose.msra.mxu0 0
  %5047 = vmatprep.subr.bf16.mxu0 0
  %5048 = vmatpush1.bf16.xpose.msra.mxu0 0
  %5049 = vmatprep.subr.bf16.mxu0 0
  %5050 = vmatpush1.bf16.xpose.msra.mxu0 0
  %5051 = vmatprep.subr.bf16.mxu0 0
  %5052 = vmatpush1.bf16.xpose.msra.mxu0 0
  %5053 = vmatprep.subr.bf16.mxu0 0
  %5054 = vmatpush1.bf16.xpose.msra.mxu0 0
  %5055 = vmatprep.subr.bf16.mxu0 0
  %5056 = vmatpush1.bf16.xpose.msra.mxu0 0
  %5057 = vmatprep.subr.bf16.mxu0 0
  %5058 = vmatpush1.bf16.xpose.msra.mxu0 0
  %5059 = vmatprep.subr.bf16.mxu0 0
  %5060 = vmatpush1.bf16.xpose.msra.mxu0 0
  %5061 = vmatprep.subr.bf16.mxu0 0
  %5062 = vmatpush1.bf16.xpose.msra.mxu0 0
  %5063 = vmatprep.mubr.bf16.mxu0 0
  %5064 = vmatmul.mubr.bf16.gmra.mrb[0].mxu0 %v4310
  %v5065 = vpop.f32.mrb[0].mxu0
  %v5066 = vadd.f32 0.0, %v5065
  %v5067 = vpop.f32.mrb[0].mxu0
  %v5068 = vpop.f32.mrb[0].mxu0
  %v5069 = vadd.f32 0.0, %v5068
  %v5070 = vpop.f32.mrb[0].mxu0
  %5071 = vdwg.mxu0
  %v5072 = vmul.f32 %v5022, 0.35355338
  %v5073 = vmul.f32 %v5025, 0.35355338
  %v5074 = vmul.f32 %v5066, 0.35355338
  %v5075 = vmul.f32 %v5069, 0.35355338
  %v5076 = vadd.f32 %v5072, %v4363
  %v5077 = vadd.f32 %v5073, %v4363
  %v5078 = vadd.f32 %v5074, %v4367
  %v5079 = vadd.f32 %v5075, %v4367
  %v5080 = vsel %vm516, %v5076, -inf
  %5081 = vmax.xlane.f32.xlu0 %v5080
  %v5082 = vpop.xlane.xlu0 %5081
  %v5083 = vsel %vm516, %v5077, -inf
  %5084 = vmax.xlane.f32.xlu0 %v5083
  %v5085 = vpop.xlane.xlu0 %5084
  %v5086 = vsel %vm516, %v5078, -inf
  %5087 = vmax.xlane.f32.xlu0 %v5086
  %v5088 = vpop.xlane.xlu0 %5087
  %v5089 = vsel %vm516, %v5079, -inf
  %5090 = vmax.xlane.f32.xlu0 %v5089
  %v5091 = vpop.xlane.xlu0 %5090
  %v5092 = vsub.f32 %v5076, %v5082
  %v5093 = vsub.f32 %v5077, %v5085
  %v5094 = vsub.f32 %v5078, %v5088
  %v5095 = vsub.f32 %v5079, %v5091
  %v5096 = vmul.f32 %v5092, 1.442695
  %v5097 = vpow.pop %v5096
  %v5098 = vmul.f32 %v5093, 1.442695
  %v5099 = vpow.pop %v5098
  %v5100 = vmul.f32 %v5094, 1.442695
  %v5101 = vpow.pop %v5100
  %v5102 = vmul.f32 %v5095, 1.442695
  %v5103 = vpow.pop %v5102
  %v5104 = vsel %vm516, %v5097, 0.0
  %5105 = vadd.xlane.f32.xlu0 %v5104
  %v5106 = vpop.xlane.xlu0 %5105
  %v5107 = vsel %vm516, %v5099, 0.0
  %5108 = vadd.xlane.f32.xlu0 %v5107
  %v5109 = vpop.xlane.xlu0 %5108
  %v5110 = vsel %vm516, %v5101, 0.0
  %5111 = vadd.xlane.f32.xlu0 %v5110
  %v5112 = vpop.xlane.xlu0 %5111
  %v5113 = vsel %vm516, %v5103, 0.0
  %5114 = vadd.xlane.f32.xlu0 %v5113
  %v5115 = vpop.xlane.xlu0 %5114
  %v5116 = vrcp.pop %v5106
  %v5117 = vrcp.pop %v5109
  %v5118 = vrcp.pop %v5112
  %v5119 = vrcp.pop %v5115
  %v5120 = vmul.f32 %v5097, %v5116
  %v5121 = vmul.f32 %v5099, %v5117
  %v5122 = vmul.f32 %v5101, %v5118
  %v5123 = vmul.f32 %v5103, %v5119
  %v5124 = vpack.c.bf16 %v5121, %v5120
  %v5125 = vpack.c.bf16 %v5123, %v5122
  %v5127 = vsel %vm516, %v5124, 0
  %5129 = vmatprep.subr.bf16.mxu0 0
  %5130 = vmatpush1.bf16.msra.mxu0 %v4982
  %5131 = vmatprep.subr.bf16.mxu0 0
  %5132 = vmatpush1.bf16.msra.mxu0 0
  %5133 = vmatprep.subr.bf16.mxu0 0
  %5134 = vmatpush1.bf16.msra.mxu0 0
  %5135 = vmatprep.subr.bf16.mxu0 0
  %5136 = vmatpush1.bf16.msra.mxu0 0
  %5137 = vmatprep.subr.bf16.mxu0 0
  %5138 = vmatpush1.bf16.msra.mxu0 0
  %5139 = vmatprep.subr.bf16.mxu0 0
  %5140 = vmatpush1.bf16.msra.mxu0 0
  %5141 = vmatprep.subr.bf16.mxu0 0
  %5142 = vmatpush1.bf16.msra.mxu0 0
  %5143 = vmatprep.subr.bf16.mxu0 0
  %5144 = vmatpush1.bf16.msra.mxu0 0
  %5145 = vmatprep.subr.bf16.mxu0 0
  %5146 = vmatpush1.bf16.msra.mxu0 0
  %5147 = vmatprep.subr.bf16.mxu0 0
  %5148 = vmatpush1.bf16.msra.mxu0 0
  %5149 = vmatprep.subr.bf16.mxu0 0
  %5150 = vmatpush1.bf16.msra.mxu0 0
  %5151 = vmatprep.subr.bf16.mxu0 0
  %5152 = vmatpush1.bf16.msra.mxu0 0
  %5153 = vmatprep.subr.bf16.mxu0 0
  %5154 = vmatpush1.bf16.msra.mxu0 0
  %5155 = vmatprep.subr.bf16.mxu0 0
  %5156 = vmatpush1.bf16.msra.mxu0 0
  %5157 = vmatprep.subr.bf16.mxu0 0
  %5158 = vmatpush1.bf16.msra.mxu0 0
  %5159 = vmatprep.subr.bf16.mxu0 0
  %5160 = vmatpush1.bf16.msra.mxu0 0
  %5161 = vmatprep.mubr.bf16.mxu0 0
  %5162 = vmatmul.mubr.bf16.gmra.mrb[0].mxu0 %v5127
  %v5163 = vpop.f32.mrb[0].mxu0
  %v5164 = vadd.f32 0.0, %v5163
  %v5165 = vpop.f32.mrb[0].mxu0
  %v5166 = vpop.f32.mrb[0].mxu0
  %v5167 = vadd.f32 0.0, %v5166
  %v5168 = vpop.f32.mrb[0].mxu0
  %5169 = vdwg.mxu0
  %v5171 = vsel %vm516, %v5125, 0
  %5173 = vmatprep.subr.bf16.mxu0 0
  %5174 = vmatpush1.bf16.msra.mxu0 %v4983
  %5175 = vmatprep.subr.bf16.mxu0 0
  %5176 = vmatpush1.bf16.msra.mxu0 0
  %5177 = vmatprep.subr.bf16.mxu0 0
  %5178 = vmatpush1.bf16.msra.mxu0 0
  %5179 = vmatprep.subr.bf16.mxu0 0
  %5180 = vmatpush1.bf16.msra.mxu0 0
  %5181 = vmatprep.subr.bf16.mxu0 0
  %5182 = vmatpush1.bf16.msra.mxu0 0
  %5183 = vmatprep.subr.bf16.mxu0 0
  %5184 = vmatpush1.bf16.msra.mxu0 0
  %5185 = vmatprep.subr.bf16.mxu0 0
  %5186 = vmatpush1.bf16.msra.mxu0 0
  %5187 = vmatprep.subr.bf16.mxu0 0
  %5188 = vmatpush1.bf16.msra.mxu0 0
  %5189 = vmatprep.subr.bf16.mxu0 0
  %5190 = vmatpush1.bf16.msra.mxu0 0
  %5191 = vmatprep.subr.bf16.mxu0 0
  %5192 = vmatpush1.bf16.msra.mxu0 0
  %5193 = vmatprep.subr.bf16.mxu0 0
  %5194 = vmatpush1.bf16.msra.mxu0 0
  %5195 = vmatprep.subr.bf16.mxu0 0
  %5196 = vmatpush1.bf16.msra.mxu0 0
  %5197 = vmatprep.subr.bf16.mxu0 0
  %5198 = vmatpush1.bf16.msra.mxu0 0
  %5199 = vmatprep.subr.bf16.mxu0 0
  %5200 = vmatpush1.bf16.msra.mxu0 0
  %5201 = vmatprep.subr.bf16.mxu0 0
  %5202 = vmatpush1.bf16.msra.mxu0 0
  %5203 = vmatprep.subr.bf16.mxu0 0
  %5204 = vmatpush1.bf16.msra.mxu0 0
  %5205 = vmatprep.mubr.bf16.mxu0 0
  %5206 = vmatmul.mubr.bf16.gmra.mrb[0].mxu0 %v5171
  %v5207 = vpop.f32.mrb[0].mxu0
  %v5208 = vadd.f32 0.0, %v5207
  %v5209 = vpop.f32.mrb[0].mxu0
  %v5210 = vpop.f32.mrb[0].mxu0
  %v5211 = vadd.f32 0.0, %v5210
  %v5212 = vpop.f32.mrb[0].mxu0
  %5213 = vdwg.mxu0
  %v5214 = vadd.f32 %v4976, %v5164
  %v5215 = vadd.f32 %v4977, %v5167
  %v5216 = vadd.f32 %v4978, %v5208
  %v5217 = vadd.f32 %v4979, %v5211
  %v5218 = vpack.c.bf16 %v5215, %v5214
  %v5219 = vpack.c.bf16 %v5217, %v5216
  %v5220 = vlaneseq
  %v5221 = vshrl.u32 %v5220, 7
  %v5222 = vsub.s32 3, %v5221
  %v5223 = vrot.slane %v4018, %v5222
  %v5228 = vunpack.c.l.b16 %v3983
  %v5229 = vunpack.c.l.b16 %v3984
  %v5230 = vunpack.c.l.b16 %v3985
  %v5231 = vunpack.c.l.b16 %v3986
  %v5232 = vpack.c.b16 %v5229, %v5228
  %v5233 = vpack.c.b16 %v5231, %v5230
  %v5237 = vsel %vm208, %v5218, 0
  %v5240 = vsel %vm208, %v5219, 0
  %5242 = vmatprep.subr.bf16.mxu0 0
  %5243 = vmatpush1.bf16.msra.mxu0 %v5232
  %5244 = vmatprep.subr.bf16.mxu0 0
  %5245 = vmatpush1.bf16.msra.mxu0 %v5233
  %5246 = vmatprep.subr.bf16.mxu0 0
  %5247 = vmatpush1.bf16.msra.mxu0 0
  %5248 = vmatprep.subr.bf16.mxu0 0
  %5249 = vmatpush1.bf16.msra.mxu0 0
  %5250 = vmatprep.subr.bf16.mxu0 0
  %5251 = vmatpush1.bf16.msra.mxu0 0
  %5252 = vmatprep.subr.bf16.mxu0 0
  %5253 = vmatpush1.bf16.msra.mxu0 0
  %5254 = vmatprep.subr.bf16.mxu0 0
  %5255 = vmatpush1.bf16.msra.mxu0 0
  %5256 = vmatprep.subr.bf16.mxu0 0
  %5257 = vmatpush1.bf16.msra.mxu0 0
  %5258 = vmatprep.subr.bf16.mxu0 0
  %5259 = vmatpush1.bf16.msra.mxu0 0
  %5260 = vmatprep.subr.bf16.mxu0 0
  %5261 = vmatpush1.bf16.msra.mxu0 0
  %5262 = vmatprep.subr.bf16.mxu0 0
  %5263 = vmatpush1.bf16.msra.mxu0 0
  %5264 = vmatprep.subr.bf16.mxu0 0
  %5265 = vmatpush1.bf16.msra.mxu0 0
  %5266 = vmatprep.subr.bf16.mxu0 0
  %5267 = vmatpush1.bf16.msra.mxu0 0
  %5268 = vmatprep.subr.bf16.mxu0 0
  %5269 = vmatpush1.bf16.msra.mxu0 0
  %5270 = vmatprep.subr.bf16.mxu0 0
  %5271 = vmatpush1.bf16.msra.mxu0 0
  %5272 = vmatprep.subr.bf16.mxu0 0
  %5273 = vmatpush1.bf16.msra.mxu0 0
  %5274 = vmatprep.mubr.bf16.mxu0 0
  %5275 = vmatmul.mubr.bf16.gmra.mrb[0].mxu0 %v5237
  %v5276 = vpop.f32.mrb[0].mxu0
  %v5277 = vadd.f32 %v5223, %v5276
  %v5278 = vpop.f32.mrb[0].mxu0
  %v5279 = vpop.f32.mrb[0].mxu0
  %v5280 = vadd.f32 %v5223, %v5279
  %v5281 = vpop.f32.mrb[0].mxu0
  %5282 = vmatprep.mubr.bf16.mxu0 0
  %5283 = vmatmul.mubr.bf16.gmra.mrb[0].mxu0 %v5240
  %v5284 = vpop.f32.mrb[0].mxu0
  %v5285 = vadd.f32 %v5223, %v5284
  %v5286 = vpop.f32.mrb[0].mxu0
  %v5287 = vpop.f32.mrb[0].mxu0
  %v5288 = vadd.f32 %v5223, %v5287
  %v5289 = vpop.f32.mrb[0].mxu0
  %5290 = vdwg.mxu0
  %v5291 = vadd.f32 %v3949, %v5277
  %v5292 = vadd.f32 %v3950, %v5280
  %v5293 = vadd.f32 %v3951, %v5285
  %v5294 = vadd.f32 %v3952, %v5288
  %v5295 = vsel %vm208, %v5291, 0.0
  %5296 = vadd.xlane.f32.xlu0 %v5295
  %v5297 = vpop.xlane.xlu0 %5296
  %v5298 = vsel %vm208, %v5292, 0.0
  %5299 = vadd.xlane.f32.xlu0 %v5298
  %v5300 = vpop.xlane.xlu0 %5299
  %v5301 = vsel %vm208, %v5293, 0.0
  %5302 = vadd.xlane.f32.xlu0 %v5301
  %v5303 = vpop.xlane.xlu0 %5302
  %v5304 = vsel %vm208, %v5294, 0.0
  %5305 = vadd.xlane.f32.xlu0 %v5304
  %v5306 = vpop.xlane.xlu0 %5305
  %v5307 = vmul.f32 %v5297, %v1450
  %v5308 = vmul.f32 %v5300, %v1450
  %v5309 = vmul.f32 %v5303, %v1450
  %v5310 = vmul.f32 %v5306, %v1450
  %v5311 = vsub.f32 %v5291, %v5307
  %v5312 = vsub.f32 %v5292, %v5308
  %v5313 = vsub.f32 %v5293, %v5309
  %v5314 = vsub.f32 %v5294, %v5310
  %v5315 = vmul.f32 %v5311, %v5311
  %v5316 = vmul.f32 %v5312, %v5312
  %v5317 = vmul.f32 %v5313, %v5313
  %v5318 = vmul.f32 %v5314, %v5314
  %v5319 = vsel %vm208, %v5315, 0.0
  %5320 = vadd.xlane.f32.xlu0 %v5319
  %v5321 = vpop.xlane.xlu0 %5320
  %v5322 = vsel %vm208, %v5316, 0.0
  %5323 = vadd.xlane.f32.xlu0 %v5322
  %v5324 = vpop.xlane.xlu0 %5323
  %v5325 = vsel %vm208, %v5317, 0.0
  %5326 = vadd.xlane.f32.xlu0 %v5325
  %v5327 = vpop.xlane.xlu0 %5326
  %v5328 = vsel %vm208, %v5318, 0.0
  %5329 = vadd.xlane.f32.xlu0 %v5328
  %v5330 = vpop.xlane.xlu0 %5329
  %v5331 = vmul.f32 %v5321, %v1450
  %v5332 = vmul.f32 %v5324, %v1450
  %v5333 = vmul.f32 %v5327, %v1450
  %v5334 = vmul.f32 %v5330, %v1450
  %v5335 = vadd.f32 %v5331, 1e-05
  %v5336 = vadd.f32 %v5332, 1e-05
  %v5337 = vadd.f32 %v5333, 1e-05
  %v5338 = vadd.f32 %v5334, 1e-05
  %v5339 = vrsqrt.pop %v5335
  %v5340 = vrsqrt.pop %v5336
  %v5341 = vrsqrt.pop %v5337
  %v5342 = vrsqrt.pop %v5338
  %v5343 = vmul.f32 %v5311, %v5339
  %v5344 = vmul.f32 %v5312, %v5340
  %v5345 = vmul.f32 %v5313, %v5341
  %v5346 = vmul.f32 %v5314, %v5342
  %v5347 = vlaneseq
  %v5348 = vshrl.u32 %v5347, 7
  %v5349 = vsub.s32 1, %v5348
  %v5350 = vrot.slane %v4023, %v5349
  %v5351 = vmul.f32 %v5343, %v5350
  %v5352 = vmul.f32 %v5344, %v5350
  %v5353 = vmul.f32 %v5345, %v5350
  %v5354 = vmul.f32 %v5346, %v5350
  %v5355 = vlaneseq
  %v5356 = vshrl.u32 %v5355, 7
  %v5357 = vsub.s32 2, %v5356
  %v5358 = vrot.slane %v4023, %v5357
  %v5359 = vadd.f32 %v5351, %v5358
  %v5360 = vadd.f32 %v5352, %v5358
  %v5361 = vadd.f32 %v5353, %v5358
  %v5362 = vadd.f32 %v5354, %v5358
  %v5363 = vpack.c.bf16 %v5360, %v5359
  %v5364 = vpack.c.bf16 %v5362, %v5361
  %v5365 = vlaneseq
  %v5366 = vshrl.u32 %v5365, 7
  %v5367 = vsub.s32 0, %v5366
  %v5368 = vrot.slane %v4021, %v5367
  %v5373 = vunpack.c.l.b16 %v3992
  %v5374 = vunpack.c.l.b16 %v3993
  %v5375 = vunpack.c.l.b16 %v3994
  %v5376 = vunpack.c.l.b16 %v3995
  %v5377 = vpack.c.b16 %v5374, %v5373
  %v5378 = vpack.c.b16 %v5376, %v5375
  %v5382 = vsel %vm208, %v5363, 0
  %v5385 = vsel %vm208, %v5364, 0
  %5387 = vmatprep.subr.bf16.mxu0 0
  %5388 = vmatpush1.bf16.msra.mxu0 %v5377
  %5389 = vmatprep.subr.bf16.mxu0 0
  %5390 = vmatpush1.bf16.msra.mxu0 %v5378
  %5391 = vmatprep.subr.bf16.mxu0 0
  %5392 = vmatpush1.bf16.msra.mxu0 0
  %5393 = vmatprep.subr.bf16.mxu0 0
  %5394 = vmatpush1.bf16.msra.mxu0 0
  %5395 = vmatprep.subr.bf16.mxu0 0
  %5396 = vmatpush1.bf16.msra.mxu0 0
  %5397 = vmatprep.subr.bf16.mxu0 0
  %5398 = vmatpush1.bf16.msra.mxu0 0
  %5399 = vmatprep.subr.bf16.mxu0 0
  %5400 = vmatpush1.bf16.msra.mxu0 0
  %5401 = vmatprep.subr.bf16.mxu0 0
  %5402 = vmatpush1.bf16.msra.mxu0 0
  %5403 = vmatprep.subr.bf16.mxu0 0
  %5404 = vmatpush1.bf16.msra.mxu0 0
  %5405 = vmatprep.subr.bf16.mxu0 0
  %5406 = vmatpush1.bf16.msra.mxu0 0
  %5407 = vmatprep.subr.bf16.mxu0 0
  %5408 = vmatpush1.bf16.msra.mxu0 0
  %5409 = vmatprep.subr.bf16.mxu0 0
  %5410 = vmatpush1.bf16.msra.mxu0 0
  %5411 = vmatprep.subr.bf16.mxu0 0
  %5412 = vmatpush1.bf16.msra.mxu0 0
  %5413 = vmatprep.subr.bf16.mxu0 0
  %5414 = vmatpush1.bf16.msra.mxu0 0
  %5415 = vmatprep.subr.bf16.mxu0 0
  %5416 = vmatpush1.bf16.msra.mxu0 0
  %5417 = vmatprep.subr.bf16.mxu0 0
  %5418 = vmatpush1.bf16.msra.mxu0 0
  %5419 = vmatprep.mubr.bf16.mxu0 0
  %5420 = vmatmul.mubr.bf16.gmra.mrb[0].mxu0 %v5382
  %v5421 = vpop.f32.mrb[0].mxu0
  %v5422 = vadd.f32 %v5368, %v5421
  %v5423 = vpop.f32.mrb[0].mxu0
  %v5424 = vpop.f32.mrb[0].mxu0
  %v5425 = vadd.f32 %v5368, %v5424
  %v5426 = vpop.f32.mrb[0].mxu0
  %5427 = vmatprep.mubr.bf16.mxu0 0
  %5428 = vmatmul.mubr.bf16.gmra.mrb[0].mxu0 %v5385
  %v5429 = vpop.f32.mrb[0].mxu0
  %v5430 = vadd.f32 %v5368, %v5429
  %v5431 = vpop.f32.mrb[0].mxu0
  %v5432 = vpop.f32.mrb[0].mxu0
  %v5433 = vadd.f32 %v5368, %v5432
  %v5434 = vpop.f32.mrb[0].mxu0
  %5435 = vdwg.mxu0
  %v5436 = vmax.f32 %v5422, 0.0
  %v5437 = vmax.f32 %v5425, 0.0
  %v5438 = vmax.f32 %v5430, 0.0
  %v5439 = vmax.f32 %v5433, 0.0
  %v5440 = vpack.c.bf16 %v5437, %v5436
  %v5441 = vpack.c.bf16 %v5439, %v5438
  %v5442 = vlaneseq
  %v5443 = vshrl.u32 %v5442, 7
  %v5444 = vsub.s32 0, %v5443
  %v5445 = vrot.slane %v4023, %v5444
  %v5454 = vunpack.c.l.b16 %v4001
  %v5455 = vunpack.c.l.b16 %v4002
  %v5456 = vunpack.c.l.b16 %v4003
  %v5457 = vunpack.c.l.b16 %v4004
  %v5458 = vunpack.c.l.b16 %v4005
  %v5459 = vunpack.c.l.b16 %v4006
  %v5460 = vunpack.c.l.b16 %v4007
  %v5461 = vunpack.c.l.b16 %v4008
  %v5462 = vpack.c.b16 %v5455, %v5454
  %v5463 = vpack.c.b16 %v5457, %v5456
  %v5464 = vpack.c.b16 %v5459, %v5458
  %v5465 = vpack.c.b16 %v5461, %v5460
  %v5471 = vsel %vm1614, %v5440, 0
  %v5474 = vsel %vm1614, %v5441, 0
  %5476 = vmatprep.subr.bf16.mxu0 0
  %5477 = vmatpush1.bf16.msra.mxu0 %v5462
  %5478 = vmatprep.subr.bf16.mxu0 0
  %5479 = vmatpush1.bf16.msra.mxu0 %v5463
  %5480 = vmatprep.subr.bf16.mxu0 0
  %5481 = vmatpush1.bf16.msra.mxu0 %v5464
  %5482 = vmatprep.subr.bf16.mxu0 0
  %5483 = vmatpush1.bf16.msra.mxu0 %v5465
  %5484 = vmatprep.subr.bf16.mxu0 0
  %5485 = vmatpush1.bf16.msra.mxu0 0
  %5486 = vmatprep.subr.bf16.mxu0 0
  %5487 = vmatpush1.bf16.msra.mxu0 0
  %5488 = vmatprep.subr.bf16.mxu0 0
  %5489 = vmatpush1.bf16.msra.mxu0 0
  %5490 = vmatprep.subr.bf16.mxu0 0
  %5491 = vmatpush1.bf16.msra.mxu0 0
  %5492 = vmatprep.subr.bf16.mxu0 0
  %5493 = vmatpush1.bf16.msra.mxu0 0
  %5494 = vmatprep.subr.bf16.mxu0 0
  %5495 = vmatpush1.bf16.msra.mxu0 0
  %5496 = vmatprep.subr.bf16.mxu0 0
  %5497 = vmatpush1.bf16.msra.mxu0 0
  %5498 = vmatprep.subr.bf16.mxu0 0
  %5499 = vmatpush1.bf16.msra.mxu0 0
  %5500 = vmatprep.subr.bf16.mxu0 0
  %5501 = vmatpush1.bf16.msra.mxu0 0
  %5502 = vmatprep.subr.bf16.mxu0 0
  %5503 = vmatpush1.bf16.msra.mxu0 0
  %5504 = vmatprep.subr.bf16.mxu0 0
  %5505 = vmatpush1.bf16.msra.mxu0 0
  %5506 = vmatprep.subr.bf16.mxu0 0
  %5507 = vmatpush1.bf16.msra.mxu0 0
  %5508 = vmatprep.mubr.bf16.mxu0 0
  %5509 = vmatmul.mubr.bf16.gmra.mrb[0].mxu0 %v5471
  %v5510 = vpop.f32.mrb[0].mxu0
  %v5511 = vadd.f32 %v5445, %v5510
  %v5512 = vpop.f32.mrb[0].mxu0
  %v5513 = vpop.f32.mrb[0].mxu0
  %v5514 = vadd.f32 %v5445, %v5513
  %v5515 = vpop.f32.mrb[0].mxu0
  %5516 = vmatprep.mubr.bf16.mxu0 0
  %5517 = vmatmul.mubr.bf16.gmra.mrb[0].mxu0 %v5474
  %v5518 = vpop.f32.mrb[0].mxu0
  %v5519 = vadd.f32 %v5445, %v5518
  %v5520 = vpop.f32.mrb[0].mxu0
  %v5521 = vpop.f32.mrb[0].mxu0
  %v5522 = vadd.f32 %v5445, %v5521
  %v5523 = vpop.f32.mrb[0].mxu0
  %5524 = vdwg.mxu0
  %v5525 = vadd.f32 %v5359, %v5511
  %v5526 = vadd.f32 %v5360, %v5514
  %v5527 = vadd.f32 %v5361, %v5519
  %v5528 = vadd.f32 %v5362, %v5522
  %v5529 = vsel %vm208, %v5525, 0.0
  %5530 = vadd.xlane.f32.xlu0 %v5529
  %v5531 = vpop.xlane.xlu0 %5530
  %v5532 = vsel %vm208, %v5526, 0.0
  %5533 = vadd.xlane.f32.xlu0 %v5532
  %v5534 = vpop.xlane.xlu0 %5533
  %v5535 = vsel %vm208, %v5527, 0.0
  %5536 = vadd.xlane.f32.xlu0 %v5535
  %v5537 = vpop.xlane.xlu0 %5536
  %v5538 = vsel %vm208, %v5528, 0.0
  %5539 = vadd.xlane.f32.xlu0 %v5538
  %v5540 = vpop.xlane.xlu0 %5539
  %v5541 = vmul.f32 %v5531, %v1450
  %v5542 = vmul.f32 %v5534, %v1450
  %v5543 = vmul.f32 %v5537, %v1450
  %v5544 = vmul.f32 %v5540, %v1450
  %v5545 = vsub.f32 %v5525, %v5541
  %v5546 = vsub.f32 %v5526, %v5542
  %v5547 = vsub.f32 %v5527, %v5543
  %v5548 = vsub.f32 %v5528, %v5544
  %v5549 = vmul.f32 %v5545, %v5545
  %v5550 = vmul.f32 %v5546, %v5546
  %v5551 = vmul.f32 %v5547, %v5547
  %v5552 = vmul.f32 %v5548, %v5548
  %v5553 = vsel %vm208, %v5549, 0.0
  %5554 = vadd.xlane.f32.xlu0 %v5553
  %v5555 = vpop.xlane.xlu0 %5554
  %v5556 = vsel %vm208, %v5550, 0.0
  %5557 = vadd.xlane.f32.xlu0 %v5556
  %v5558 = vpop.xlane.xlu0 %5557
  %v5559 = vsel %vm208, %v5551, 0.0
  %5560 = vadd.xlane.f32.xlu0 %v5559
  %v5561 = vpop.xlane.xlu0 %5560
  %v5562 = vsel %vm208, %v5552, 0.0
  %5563 = vadd.xlane.f32.xlu0 %v5562
  %v5564 = vpop.xlane.xlu0 %5563
  %v5565 = vmul.f32 %v5555, %v1450
  %v5566 = vmul.f32 %v5558, %v1450
  %v5567 = vmul.f32 %v5561, %v1450
  %v5568 = vmul.f32 %v5564, %v1450
  %v5569 = vadd.f32 %v5565, 1e-05
  %v5570 = vadd.f32 %v5566, 1e-05
  %v5571 = vadd.f32 %v5567, 1e-05
  %v5572 = vadd.f32 %v5568, 1e-05
  %v5573 = vrsqrt.pop %v5569
  %v5574 = vrsqrt.pop %v5570
  %v5575 = vrsqrt.pop %v5571
  %v5576 = vrsqrt.pop %v5572
  %v5577 = vmul.f32 %v5545, %v5573
  %v5578 = vmul.f32 %v5546, %v5574
  %v5579 = vmul.f32 %v5547, %v5575
  %v5580 = vmul.f32 %v5548, %v5576
  %v5581 = vlaneseq
  %v5582 = vshrl.u32 %v5581, 7
  %v5583 = vsub.s32 3, %v5582
  %v5584 = vrot.slane %v4023, %v5583
  %v5585 = vmul.f32 %v5577, %v5584
  %v5586 = vmul.f32 %v5578, %v5584
  %v5587 = vmul.f32 %v5579, %v5584
  %v5588 = vmul.f32 %v5580, %v5584
  %v5589 = vlaneseq
  %v5590 = vshrl.u32 %v5589, 7
  %v5591 = vsub.s32 4, %v5590
  %v5592 = vrot.slane %v4023, %v5591
  %v5593 = vadd.f32 %v5585, %v5592
  %v5594 = vadd.f32 %v5586, %v5592
  %v5595 = vadd.f32 %v5587, %v5592
  %v5596 = vadd.f32 %v5588, %v5592
  %v5597 = vpack.c.bf16 %v5594, %v5593
  %v5598 = vpack.c.bf16 %v5596, %v5595
  %v5599 = vlaneseq
  %v5600 = vshrl.u32 %v5599, 7
  %v5601 = vsub.s32 0, %v5600
  %v5602 = vrot.slane %v4019, %v5601
  %v5607 = vunpack.c.l.b16 %v3960
  %v5608 = vunpack.c.l.b16 %v3961
  %v5609 = vunpack.c.l.b16 %v3962
  %v5610 = vunpack.c.l.b16 %v3963
  %v5611 = vpack.c.b16 %v5608, %v5607
  %v5612 = vpack.c.b16 %v5610, %v5609
  %v5616 = vsel %vm208, %v5597, 0
  %v5619 = vsel %vm208, %v5598, 0
  %5621 = vmatprep.subr.bf16.mxu0 0
  %5622 = vmatpush1.bf16.msra.mxu0 %v5611
  %5623 = vmatprep.subr.bf16.mxu0 0
  %5624 = vmatpush1.bf16.msra.mxu0 %v5612
  %5625 = vmatprep.subr.bf16.mxu0 0
  %5626 = vmatpush1.bf16.msra.mxu0 0
  %5627 = vmatprep.subr.bf16.mxu0 0
  %5628 = vmatpush1.bf16.msra.mxu0 0
  %5629 = vmatprep.subr.bf16.mxu0 0
  %5630 = vmatpush1.bf16.msra.mxu0 0
  %5631 = vmatprep.subr.bf16.mxu0 0
  %5632 = vmatpush1.bf16.msra.mxu0 0
  %5633 = vmatprep.subr.bf16.mxu0 0
  %5634 = vmatpush1.bf16.msra.mxu0 0
  %5635 = vmatprep.subr.bf16.mxu0 0
  %5636 = vmatpush1.bf16.msra.mxu0 0
  %5637 = vmatprep.subr.bf16.mxu0 0
  %5638 = vmatpush1.bf16.msra.mxu0 0
  %5639 = vmatprep.subr.bf16.mxu0 0
  %5640 = vmatpush1.bf16.msra.mxu0 0
  %5641 = vmatprep.subr.bf16.mxu0 0
  %5642 = vmatpush1.bf16.msra.mxu0 0
  %5643 = vmatprep.subr.bf16.mxu0 0
  %5644 = vmatpush1.bf16.msra.mxu0 0
  %5645 = vmatprep.subr.bf16.mxu0 0
  %5646 = vmatpush1.bf16.msra.mxu0 0
  %5647 = vmatprep.subr.bf16.mxu0 0
  %5648 = vmatpush1.bf16.msra.mxu0 0
  %5649 = vmatprep.subr.bf16.mxu0 0
  %5650 = vmatpush1.bf16.msra.mxu0 0
  %5651 = vmatprep.subr.bf16.mxu0 0
  %5652 = vmatpush1.bf16.msra.mxu0 0
  %5653 = vmatprep.mubr.bf16.mxu0 0
  %5654 = vmatmul.mubr.bf16.gmra.mrb[0].mxu0 %v5616
  %v5655 = vpop.f32.mrb[0].mxu0
  %v5656 = vadd.f32 %v5602, %v5655
  %v5657 = vpop.f32.mrb[0].mxu0
  %v5658 = vpop.f32.mrb[0].mxu0
  %v5659 = vadd.f32 %v5602, %v5658
  %v5660 = vpop.f32.mrb[0].mxu0
  %5661 = vmatprep.mubr.bf16.mxu0 0
  %5662 = vmatmul.mubr.bf16.gmra.mrb[0].mxu0 %v5619
  %v5663 = vpop.f32.mrb[0].mxu0
  %v5664 = vadd.f32 %v5602, %v5663
  %v5665 = vpop.f32.mrb[0].mxu0
  %v5666 = vpop.f32.mrb[0].mxu0
  %v5667 = vadd.f32 %v5602, %v5666
  %v5668 = vpop.f32.mrb[0].mxu0
  %5669 = vdwg.mxu0
  %v5670 = vlaneseq
  %v5671 = vshrl.u32 %v5670, 7
  %v5672 = vsub.s32 1, %v5671
  %v5673 = vrot.slane %v4019, %v5672
  %v5678 = vunpack.c.l.b16 %v3969
  %v5679 = vunpack.c.l.b16 %v3970
  %v5680 = vunpack.c.l.b16 %v3971
  %v5681 = vunpack.c.l.b16 %v3972
  %v5682 = vpack.c.b16 %v5679, %v5678
  %v5683 = vpack.c.b16 %v5681, %v5680
  %5686 = vmatprep.subr.bf16.mxu0 0
  %5687 = vmatpush1.bf16.msra.mxu0 %v5682
  %5688 = vmatprep.subr.bf16.mxu0 0
  %5689 = vmatpush1.bf16.msra.mxu0 %v5683
  %5690 = vmatprep.subr.bf16.mxu0 0
  %5691 = vmatpush1.bf16.msra.mxu0 0
  %5692 = vmatprep.subr.bf16.mxu0 0
  %5693 = vmatpush1.bf16.msra.mxu0 0
  %5694 = vmatprep.subr.bf16.mxu0 0
  %5695 = vmatpush1.bf16.msra.mxu0 0
  %5696 = vmatprep.subr.bf16.mxu0 0
  %5697 = vmatpush1.bf16.msra.mxu0 0
  %5698 = vmatprep.subr.bf16.mxu0 0
  %5699 = vmatpush1.bf16.msra.mxu0 0
  %5700 = vmatprep.subr.bf16.mxu0 0
  %5701 = vmatpush1.bf16.msra.mxu0 0
  %5702 = vmatprep.subr.bf16.mxu0 0
  %5703 = vmatpush1.bf16.msra.mxu0 0
  %5704 = vmatprep.subr.bf16.mxu0 0
  %5705 = vmatpush1.bf16.msra.mxu0 0
  %5706 = vmatprep.subr.bf16.mxu0 0
  %5707 = vmatpush1.bf16.msra.mxu0 0
  %5708 = vmatprep.subr.bf16.mxu0 0
  %5709 = vmatpush1.bf16.msra.mxu0 0
  %5710 = vmatprep.subr.bf16.mxu0 0
  %5711 = vmatpush1.bf16.msra.mxu0 0
  %5712 = vmatprep.subr.bf16.mxu0 0
  %5713 = vmatpush1.bf16.msra.mxu0 0
  %5714 = vmatprep.subr.bf16.mxu0 0
  %5715 = vmatpush1.bf16.msra.mxu0 0
  %5716 = vmatprep.subr.bf16.mxu0 0
  %5717 = vmatpush1.bf16.msra.mxu0 0
  %5718 = vmatprep.mubr.bf16.mxu0 0
  %5719 = vmatmul.mubr.bf16.gmra.mrb[0].mxu0 %v5616
  %v5720 = vpop.f32.mrb[0].mxu0
  %v5721 = vadd.f32 %v5673, %v5720
  %v5722 = vpop.f32.mrb[0].mxu0
  %v5723 = vpop.f32.mrb[0].mxu0
  %v5724 = vadd.f32 %v5673, %v5723
  %v5725 = vpop.f32.mrb[0].mxu0
  %5726 = vmatprep.mubr.bf16.mxu0 0
  %5727 = vmatmul.mubr.bf16.gmra.mrb[0].mxu0 %v5619
  %v5728 = vpop.f32.mrb[0].mxu0
  %v5729 = vadd.f32 %v5673, %v5728
  %v5730 = vpop.f32.mrb[0].mxu0
  %v5731 = vpop.f32.mrb[0].mxu0
  %v5732 = vadd.f32 %v5673, %v5731
  %v5733 = vpop.f32.mrb[0].mxu0
  %5734 = vdwg.mxu0
  %v5735 = vlaneseq
  %v5736 = vshrl.u32 %v5735, 7
  %v5737 = vsub.s32 2, %v5736
  %v5738 = vrot.slane %v4019, %v5737
  %v5743 = vunpack.c.l.b16 %v3978
  %v5744 = vunpack.c.l.b16 %v3979
  %v5745 = vunpack.c.l.b16 %v3980
  %v5746 = vunpack.c.l.b16 %v3981
  %v5747 = vpack.c.b16 %v5744, %v5743
  %v5748 = vpack.c.b16 %v5746, %v5745
  %5751 = vmatprep.subr.bf16.mxu0 0
  %5752 = vmatpush1.bf16.msra.mxu0 %v5747
  %5753 = vmatprep.subr.bf16.mxu0 0
  %5754 = vmatpush1.bf16.msra.mxu0 %v5748
  %5755 = vmatprep.subr.bf16.mxu0 0
  %5756 = vmatpush1.bf16.msra.mxu0 0
  %5757 = vmatprep.subr.bf16.mxu0 0
  %5758 = vmatpush1.bf16.msra.mxu0 0
  %5759 = vmatprep.subr.bf16.mxu0 0
  %5760 = vmatpush1.bf16.msra.mxu0 0
  %5761 = vmatprep.subr.bf16.mxu0 0
  %5762 = vmatpush1.bf16.msra.mxu0 0
  %5763 = vmatprep.subr.bf16.mxu0 0
  %5764 = vmatpush1.bf16.msra.mxu0 0
  %5765 = vmatprep.subr.bf16.mxu0 0
  %5766 = vmatpush1.bf16.msra.mxu0 0
  %5767 = vmatprep.subr.bf16.mxu0 0
  %5768 = vmatpush1.bf16.msra.mxu0 0
  %5769 = vmatprep.subr.bf16.mxu0 0
  %5770 = vmatpush1.bf16.msra.mxu0 0
  %5771 = vmatprep.subr.bf16.mxu0 0
  %5772 = vmatpush1.bf16.msra.mxu0 0
  %5773 = vmatprep.subr.bf16.mxu0 0
  %5774 = vmatpush1.bf16.msra.mxu0 0
  %5775 = vmatprep.subr.bf16.mxu0 0
  %5776 = vmatpush1.bf16.msra.mxu0 0
  %5777 = vmatprep.subr.bf16.mxu0 0
  %5778 = vmatpush1.bf16.msra.mxu0 0
  %5779 = vmatprep.subr.bf16.mxu0 0
  %5780 = vmatpush1.bf16.msra.mxu0 0
  %5781 = vmatprep.subr.bf16.mxu0 0
  %5782 = vmatpush1.bf16.msra.mxu0 0
  %5783 = vmatprep.mubr.bf16.mxu0 0
  %5784 = vmatmul.mubr.bf16.gmra.mrb[0].mxu0 %v5616
  %v5785 = vpop.f32.mrb[0].mxu0
  %v5786 = vadd.f32 %v5738, %v5785
  %v5787 = vpop.f32.mrb[0].mxu0
  %v5788 = vpop.f32.mrb[0].mxu0
  %v5789 = vadd.f32 %v5738, %v5788
  %v5790 = vpop.f32.mrb[0].mxu0
  %5791 = vmatprep.mubr.bf16.mxu0 0
  %5792 = vmatmul.mubr.bf16.gmra.mrb[0].mxu0 %v5619
  %v5793 = vpop.f32.mrb[0].mxu0
  %v5794 = vadd.f32 %v5738, %v5793
  %v5795 = vpop.f32.mrb[0].mxu0
  %v5796 = vpop.f32.mrb[0].mxu0
  %v5797 = vadd.f32 %v5738, %v5796
  %v5798 = vpop.f32.mrb[0].mxu0
  %5799 = vdwg.mxu0
  %v5800 = vpack.c.bf16 %v5659, %v5656
  %v5801 = vpack.c.bf16 %v5667, %v5664
  %v5802 = vpack.c.bf16 %v5724, %v5721
  %v5803 = vpack.c.bf16 %v5732, %v5729
  %v5804 = vpack.c.bf16 %v5789, %v5786
  %v5805 = vpack.c.bf16 %v5797, %v5794
  %v5806 = vmul.bf16 %v5802, %v171
  %v5807 = vmul.bf16 %v5803, %v171
  %v5808 = vmul.bf16 %v5804, %v171
  %v5809 = vmul.bf16 %v5805, %v171
  %v5811 = vsel %vm208, %v5800, 0
  %v5814 = vsel %vm208, %v5806, 0
  %5816 = vmatprep.subr.bf16.mxu0 0
  %5817 = vmatpush1.bf16.xpose.msra.mxu0 %v5814
  %5818 = vmatprep.subr.bf16.mxu0 0
  %5819 = vmatpush1.bf16.xpose.msra.mxu0 0
  %5820 = vmatprep.subr.bf16.mxu0 0
  %5821 = vmatpush1.bf16.xpose.msra.mxu0 0
  %5822 = vmatprep.subr.bf16.mxu0 0
  %5823 = vmatpush1.bf16.xpose.msra.mxu0 0
  %5824 = vmatprep.subr.bf16.mxu0 0
  %5825 = vmatpush1.bf16.xpose.msra.mxu0 0
  %5826 = vmatprep.subr.bf16.mxu0 0
  %5827 = vmatpush1.bf16.xpose.msra.mxu0 0
  %5828 = vmatprep.subr.bf16.mxu0 0
  %5829 = vmatpush1.bf16.xpose.msra.mxu0 0
  %5830 = vmatprep.subr.bf16.mxu0 0
  %5831 = vmatpush1.bf16.xpose.msra.mxu0 0
  %5832 = vmatprep.subr.bf16.mxu0 0
  %5833 = vmatpush1.bf16.xpose.msra.mxu0 0
  %5834 = vmatprep.subr.bf16.mxu0 0
  %5835 = vmatpush1.bf16.xpose.msra.mxu0 0
  %5836 = vmatprep.subr.bf16.mxu0 0
  %5837 = vmatpush1.bf16.xpose.msra.mxu0 0
  %5838 = vmatprep.subr.bf16.mxu0 0
  %5839 = vmatpush1.bf16.xpose.msra.mxu0 0
  %5840 = vmatprep.subr.bf16.mxu0 0
  %5841 = vmatpush1.bf16.xpose.msra.mxu0 0
  %5842 = vmatprep.subr.bf16.mxu0 0
  %5843 = vmatpush1.bf16.xpose.msra.mxu0 0
  %5844 = vmatprep.subr.bf16.mxu0 0
  %5845 = vmatpush1.bf16.xpose.msra.mxu0 0
  %5846 = vmatprep.subr.bf16.mxu0 0
  %5847 = vmatpush1.bf16.xpose.msra.mxu0 0
  %5848 = vmatprep.mubr.bf16.mxu0 0
  %5849 = vmatmul.mubr.bf16.gmra.mrb[0].mxu0 %v5811
  %v5850 = vpop.f32.mrb[0].mxu0
  %v5851 = vadd.f32 0.0, %v5850
  %v5852 = vpop.f32.mrb[0].mxu0
  %v5853 = vpop.f32.mrb[0].mxu0
  %v5854 = vadd.f32 0.0, %v5853
  %v5855 = vpop.f32.mrb[0].mxu0
  %5856 = vdwg.mxu0
  %v5858 = vsel %vm208, %v5801, 0
  %v5861 = vsel %vm208, %v5807, 0
  %5863 = vmatprep.subr.bf16.mxu0 0
  %5864 = vmatpush1.bf16.xpose.msra.mxu0 %v5861
  %5865 = vmatprep.subr.bf16.mxu0 0
  %5866 = vmatpush1.bf16.xpose.msra.mxu0 0
  %5867 = vmatprep.subr.bf16.mxu0 0
  %5868 = vmatpush1.bf16.xpose.msra.mxu0 0
  %5869 = vmatprep.subr.bf16.mxu0 0
  %5870 = vmatpush1.bf16.xpose.msra.mxu0 0
  %5871 = vmatprep.subr.bf16.mxu0 0
  %5872 = vmatpush1.bf16.xpose.msra.mxu0 0
  %5873 = vmatprep.subr.bf16.mxu0 0
  %5874 = vmatpush1.bf16.xpose.msra.mxu0 0
  %5875 = vmatprep.subr.bf16.mxu0 0
  %5876 = vmatpush1.bf16.xpose.msra.mxu0 0
  %5877 = vmatprep.subr.bf16.mxu0 0
  %5878 = vmatpush1.bf16.xpose.msra.mxu0 0
  %5879 = vmatprep.subr.bf16.mxu0 0
  %5880 = vmatpush1.bf16.xpose.msra.mxu0 0
  %5881 = vmatprep.subr.bf16.mxu0 0
  %5882 = vmatpush1.bf16.xpose.msra.mxu0 0
  %5883 = vmatprep.subr.bf16.mxu0 0
  %5884 = vmatpush1.bf16.xpose.msra.mxu0 0
  %5885 = vmatprep.subr.bf16.mxu0 0
  %5886 = vmatpush1.bf16.xpose.msra.mxu0 0
  %5887 = vmatprep.subr.bf16.mxu0 0
  %5888 = vmatpush1.bf16.xpose.msra.mxu0 0
  %5889 = vmatprep.subr.bf16.mxu0 0
  %5890 = vmatpush1.bf16.xpose.msra.mxu0 0
  %5891 = vmatprep.subr.bf16.mxu0 0
  %5892 = vmatpush1.bf16.xpose.msra.mxu0 0
  %5893 = vmatprep.subr.bf16.mxu0 0
  %5894 = vmatpush1.bf16.xpose.msra.mxu0 0
  %5895 = vmatprep.mubr.bf16.mxu0 0
  %5896 = vmatmul.mubr.bf16.gmra.mrb[0].mxu0 %v5858
  %v5897 = vpop.f32.mrb[0].mxu0
  %v5898 = vadd.f32 0.0, %v5897
  %v5899 = vpop.f32.mrb[0].mxu0
  %v5900 = vpop.f32.mrb[0].mxu0
  %v5901 = vadd.f32 0.0, %v5900
  %v5902 = vpop.f32.mrb[0].mxu0
  %5903 = vdwg.mxu0
  %v5904 = vmul.f32 %v5851, 0.35355338
  %v5905 = vmul.f32 %v5854, 0.35355338
  %v5906 = vmul.f32 %v5898, 0.35355338
  %v5907 = vmul.f32 %v5901, 0.35355338
  %v5908 = vadd.f32 %v5904, %v4363
  %v5909 = vadd.f32 %v5905, %v4363
  %v5910 = vadd.f32 %v5906, %v4367
  %v5911 = vadd.f32 %v5907, %v4367
  %v5912 = vsel %vm516, %v5908, -inf
  %5913 = vmax.xlane.f32.xlu0 %v5912
  %v5914 = vpop.xlane.xlu0 %5913
  %v5915 = vsel %vm516, %v5909, -inf
  %5916 = vmax.xlane.f32.xlu0 %v5915
  %v5917 = vpop.xlane.xlu0 %5916
  %v5918 = vsel %vm516, %v5910, -inf
  %5919 = vmax.xlane.f32.xlu0 %v5918
  %v5920 = vpop.xlane.xlu0 %5919
  %v5921 = vsel %vm516, %v5911, -inf
  %5922 = vmax.xlane.f32.xlu0 %v5921
  %v5923 = vpop.xlane.xlu0 %5922
  %v5924 = vsub.f32 %v5908, %v5914
  %v5925 = vsub.f32 %v5909, %v5917
  %v5926 = vsub.f32 %v5910, %v5920
  %v5927 = vsub.f32 %v5911, %v5923
  %v5928 = vmul.f32 %v5924, 1.442695
  %v5929 = vpow.pop %v5928
  %v5930 = vmul.f32 %v5925, 1.442695
  %v5931 = vpow.pop %v5930
  %v5932 = vmul.f32 %v5926, 1.442695
  %v5933 = vpow.pop %v5932
  %v5934 = vmul.f32 %v5927, 1.442695
  %v5935 = vpow.pop %v5934
  %v5936 = vsel %vm516, %v5929, 0.0
  %5937 = vadd.xlane.f32.xlu0 %v5936
  %v5938 = vpop.xlane.xlu0 %5937
  %v5939 = vsel %vm516, %v5931, 0.0
  %5940 = vadd.xlane.f32.xlu0 %v5939
  %v5941 = vpop.xlane.xlu0 %5940
  %v5942 = vsel %vm516, %v5933, 0.0
  %5943 = vadd.xlane.f32.xlu0 %v5942
  %v5944 = vpop.xlane.xlu0 %5943
  %v5945 = vsel %vm516, %v5935, 0.0
  %5946 = vadd.xlane.f32.xlu0 %v5945
  %v5947 = vpop.xlane.xlu0 %5946
  %v5948 = vrcp.pop %v5938
  %v5949 = vrcp.pop %v5941
  %v5950 = vrcp.pop %v5944
  %v5951 = vrcp.pop %v5947
  %v5952 = vmul.f32 %v5929, %v5948
  %v5953 = vmul.f32 %v5931, %v5949
  %v5954 = vmul.f32 %v5933, %v5950
  %v5955 = vmul.f32 %v5935, %v5951
  %v5956 = vpack.c.bf16 %v5953, %v5952
  %v5957 = vpack.c.bf16 %v5955, %v5954
  %v5958 = vmul.bf16 %v5802, %v177
  %v5959 = vmul.bf16 %v5803, %v177
  %v5960 = vmul.bf16 %v5804, %v177
  %v5961 = vmul.bf16 %v5805, %v177
  %v5963 = vsel %vm208, %v5958, 0
  %5965 = vmatprep.subr.bf16.mxu0 0
  %5966 = vmatpush1.bf16.xpose.msra.mxu0 %v5963
  %5967 = vmatprep.subr.bf16.mxu0 0
  %5968 = vmatpush1.bf16.xpose.msra.mxu0 0
  %5969 = vmatprep.subr.bf16.mxu0 0
  %5970 = vmatpush1.bf16.xpose.msra.mxu0 0
  %5971 = vmatprep.subr.bf16.mxu0 0
  %5972 = vmatpush1.bf16.xpose.msra.mxu0 0
  %5973 = vmatprep.subr.bf16.mxu0 0
  %5974 = vmatpush1.bf16.xpose.msra.mxu0 0
  %5975 = vmatprep.subr.bf16.mxu0 0
  %5976 = vmatpush1.bf16.xpose.msra.mxu0 0
  %5977 = vmatprep.subr.bf16.mxu0 0
  %5978 = vmatpush1.bf16.xpose.msra.mxu0 0
  %5979 = vmatprep.subr.bf16.mxu0 0
  %5980 = vmatpush1.bf16.xpose.msra.mxu0 0
  %5981 = vmatprep.subr.bf16.mxu0 0
  %5982 = vmatpush1.bf16.xpose.msra.mxu0 0
  %5983 = vmatprep.subr.bf16.mxu0 0
  %5984 = vmatpush1.bf16.xpose.msra.mxu0 0
  %5985 = vmatprep.subr.bf16.mxu0 0
  %5986 = vmatpush1.bf16.xpose.msra.mxu0 0
  %5987 = vmatprep.subr.bf16.mxu0 0
  %5988 = vmatpush1.bf16.xpose.msra.mxu0 0
  %5989 = vmatprep.subr.bf16.mxu0 0
  %5990 = vmatpush1.bf16.xpose.msra.mxu0 0
  %5991 = vmatprep.subr.bf16.mxu0 0
  %5992 = vmatpush1.bf16.xpose.msra.mxu0 0
  %5993 = vmatprep.subr.bf16.mxu0 0
  %5994 = vmatpush1.bf16.xpose.msra.mxu0 0
  %5995 = vmatprep.subr.bf16.mxu0 0
  %5996 = vmatpush1.bf16.xpose.msra.mxu0 0
  %5997 = vmatprep.mubr.bf16.mxu0 0
  %5998 = vmatmul.mubr.bf16.gmra.mrb[0].mxu0 %v5811
  %v5999 = vpop.f32.mrb[0].mxu0
  %v6000 = vadd.f32 0.0, %v5999
  %v6001 = vpop.f32.mrb[0].mxu0
  %v6002 = vpop.f32.mrb[0].mxu0
  %v6003 = vadd.f32 0.0, %v6002
  %v6004 = vpop.f32.mrb[0].mxu0
  %6005 = vdwg.mxu0
  %v6007 = vsel %vm208, %v5959, 0
  %6009 = vmatprep.subr.bf16.mxu0 0
  %6010 = vmatpush1.bf16.xpose.msra.mxu0 %v6007
  %6011 = vmatprep.subr.bf16.mxu0 0
  %6012 = vmatpush1.bf16.xpose.msra.mxu0 0
  %6013 = vmatprep.subr.bf16.mxu0 0
  %6014 = vmatpush1.bf16.xpose.msra.mxu0 0
  %6015 = vmatprep.subr.bf16.mxu0 0
  %6016 = vmatpush1.bf16.xpose.msra.mxu0 0
  %6017 = vmatprep.subr.bf16.mxu0 0
  %6018 = vmatpush1.bf16.xpose.msra.mxu0 0
  %6019 = vmatprep.subr.bf16.mxu0 0
  %6020 = vmatpush1.bf16.xpose.msra.mxu0 0
  %6021 = vmatprep.subr.bf16.mxu0 0
  %6022 = vmatpush1.bf16.xpose.msra.mxu0 0
  %6023 = vmatprep.subr.bf16.mxu0 0
  %6024 = vmatpush1.bf16.xpose.msra.mxu0 0
  %6025 = vmatprep.subr.bf16.mxu0 0
  %6026 = vmatpush1.bf16.xpose.msra.mxu0 0
  %6027 = vmatprep.subr.bf16.mxu0 0
  %6028 = vmatpush1.bf16.xpose.msra.mxu0 0
  %6029 = vmatprep.subr.bf16.mxu0 0
  %6030 = vmatpush1.bf16.xpose.msra.mxu0 0
  %6031 = vmatprep.subr.bf16.mxu0 0
  %6032 = vmatpush1.bf16.xpose.msra.mxu0 0
  %6033 = vmatprep.subr.bf16.mxu0 0
  %6034 = vmatpush1.bf16.xpose.msra.mxu0 0
  %6035 = vmatprep.subr.bf16.mxu0 0
  %6036 = vmatpush1.bf16.xpose.msra.mxu0 0
  %6037 = vmatprep.subr.bf16.mxu0 0
  %6038 = vmatpush1.bf16.xpose.msra.mxu0 0
  %6039 = vmatprep.subr.bf16.mxu0 0
  %6040 = vmatpush1.bf16.xpose.msra.mxu0 0
  %6041 = vmatprep.mubr.bf16.mxu0 0
  %6042 = vmatmul.mubr.bf16.gmra.mrb[0].mxu0 %v5858
  %v6043 = vpop.f32.mrb[0].mxu0
  %v6044 = vadd.f32 0.0, %v6043
  %v6045 = vpop.f32.mrb[0].mxu0
  %v6046 = vpop.f32.mrb[0].mxu0
  %v6047 = vadd.f32 0.0, %v6046
  %v6048 = vpop.f32.mrb[0].mxu0
  %6049 = vdwg.mxu0
  %v6050 = vmul.f32 %v6000, 0.35355338
  %v6051 = vmul.f32 %v6003, 0.35355338
  %v6052 = vmul.f32 %v6044, 0.35355338
  %v6053 = vmul.f32 %v6047, 0.35355338
  %v6054 = vadd.f32 %v6050, %v4363
  %v6055 = vadd.f32 %v6051, %v4363
  %v6056 = vadd.f32 %v6052, %v4367
  %v6057 = vadd.f32 %v6053, %v4367
  %v6058 = vsel %vm516, %v6054, -inf
  %6059 = vmax.xlane.f32.xlu0 %v6058
  %v6060 = vpop.xlane.xlu0 %6059
  %v6061 = vsel %vm516, %v6055, -inf
  %6062 = vmax.xlane.f32.xlu0 %v6061
  %v6063 = vpop.xlane.xlu0 %6062
  %v6064 = vsel %vm516, %v6056, -inf
  %6065 = vmax.xlane.f32.xlu0 %v6064
  %v6066 = vpop.xlane.xlu0 %6065
  %v6067 = vsel %vm516, %v6057, -inf
  %6068 = vmax.xlane.f32.xlu0 %v6067
  %v6069 = vpop.xlane.xlu0 %6068
  %v6070 = vsub.f32 %v6054, %v6060
  %v6071 = vsub.f32 %v6055, %v6063
  %v6072 = vsub.f32 %v6056, %v6066
  %v6073 = vsub.f32 %v6057, %v6069
  %v6074 = vmul.f32 %v6070, 1.442695
  %v6075 = vpow.pop %v6074
  %v6076 = vmul.f32 %v6071, 1.442695
  %v6077 = vpow.pop %v6076
  %v6078 = vmul.f32 %v6072, 1.442695
  %v6079 = vpow.pop %v6078
  %v6080 = vmul.f32 %v6073, 1.442695
  %v6081 = vpow.pop %v6080
  %v6082 = vsel %vm516, %v6075, 0.0
  %6083 = vadd.xlane.f32.xlu0 %v6082
  %v6084 = vpop.xlane.xlu0 %6083
  %v6085 = vsel %vm516, %v6077, 0.0
  %6086 = vadd.xlane.f32.xlu0 %v6085
  %v6087 = vpop.xlane.xlu0 %6086
  %v6088 = vsel %vm516, %v6079, 0.0
  %6089 = vadd.xlane.f32.xlu0 %v6088
  %v6090 = vpop.xlane.xlu0 %6089
  %v6091 = vsel %vm516, %v6081, 0.0
  %6092 = vadd.xlane.f32.xlu0 %v6091
  %v6093 = vpop.xlane.xlu0 %6092
  %v6094 = vrcp.pop %v6084
  %v6095 = vrcp.pop %v6087
  %v6096 = vrcp.pop %v6090
  %v6097 = vrcp.pop %v6093
  %v6098 = vmul.f32 %v6075, %v6094
  %v6099 = vmul.f32 %v6077, %v6095
  %v6100 = vmul.f32 %v6079, %v6096
  %v6101 = vmul.f32 %v6081, %v6097
  %v6102 = vpack.c.bf16 %v6099, %v6098
  %v6103 = vpack.c.bf16 %v6101, %v6100
  %v6105 = vsel %vm516, %v6102, 0
  %6107 = vmatprep.subr.bf16.mxu0 0
  %6108 = vmatpush1.bf16.msra.mxu0 %v5960
  %6109 = vmatprep.subr.bf16.mxu0 0
  %6110 = vmatpush1.bf16.msra.mxu0 0
  %6111 = vmatprep.subr.bf16.mxu0 0
  %6112 = vmatpush1.bf16.msra.mxu0 0
  %6113 = vmatprep.subr.bf16.mxu0 0
  %6114 = vmatpush1.bf16.msra.mxu0 0
  %6115 = vmatprep.subr.bf16.mxu0 0
  %6116 = vmatpush1.bf16.msra.mxu0 0
  %6117 = vmatprep.subr.bf16.mxu0 0
  %6118 = vmatpush1.bf16.msra.mxu0 0
  %6119 = vmatprep.subr.bf16.mxu0 0
  %6120 = vmatpush1.bf16.msra.mxu0 0
  %6121 = vmatprep.subr.bf16.mxu0 0
  %6122 = vmatpush1.bf16.msra.mxu0 0
  %6123 = vmatprep.subr.bf16.mxu0 0
  %6124 = vmatpush1.bf16.msra.mxu0 0
  %6125 = vmatprep.subr.bf16.mxu0 0
  %6126 = vmatpush1.bf16.msra.mxu0 0
  %6127 = vmatprep.subr.bf16.mxu0 0
  %6128 = vmatpush1.bf16.msra.mxu0 0
  %6129 = vmatprep.subr.bf16.mxu0 0
  %6130 = vmatpush1.bf16.msra.mxu0 0
  %6131 = vmatprep.subr.bf16.mxu0 0
  %6132 = vmatpush1.bf16.msra.mxu0 0
  %6133 = vmatprep.subr.bf16.mxu0 0
  %6134 = vmatpush1.bf16.msra.mxu0 0
  %6135 = vmatprep.subr.bf16.mxu0 0
  %6136 = vmatpush1.bf16.msra.mxu0 0
  %6137 = vmatprep.subr.bf16.mxu0 0
  %6138 = vmatpush1.bf16.msra.mxu0 0
  %6139 = vmatprep.mubr.bf16.mxu0 0
  %6140 = vmatmul.mubr.bf16.gmra.mrb[0].mxu0 %v6105
  %v6141 = vpop.f32.mrb[0].mxu0
  %v6142 = vadd.f32 0.0, %v6141
  %v6143 = vpop.f32.mrb[0].mxu0
  %v6144 = vpop.f32.mrb[0].mxu0
  %v6145 = vadd.f32 0.0, %v6144
  %v6146 = vpop.f32.mrb[0].mxu0
  %6147 = vdwg.mxu0
  %v6149 = vsel %vm516, %v6103, 0
  %6151 = vmatprep.subr.bf16.mxu0 0
  %6152 = vmatpush1.bf16.msra.mxu0 %v5961
  %6153 = vmatprep.subr.bf16.mxu0 0
  %6154 = vmatpush1.bf16.msra.mxu0 0
  %6155 = vmatprep.subr.bf16.mxu0 0
  %6156 = vmatpush1.bf16.msra.mxu0 0
  %6157 = vmatprep.subr.bf16.mxu0 0
  %6158 = vmatpush1.bf16.msra.mxu0 0
  %6159 = vmatprep.subr.bf16.mxu0 0
  %6160 = vmatpush1.bf16.msra.mxu0 0
  %6161 = vmatprep.subr.bf16.mxu0 0
  %6162 = vmatpush1.bf16.msra.mxu0 0
  %6163 = vmatprep.subr.bf16.mxu0 0
  %6164 = vmatpush1.bf16.msra.mxu0 0
  %6165 = vmatprep.subr.bf16.mxu0 0
  %6166 = vmatpush1.bf16.msra.mxu0 0
  %6167 = vmatprep.subr.bf16.mxu0 0
  %6168 = vmatpush1.bf16.msra.mxu0 0
  %6169 = vmatprep.subr.bf16.mxu0 0
  %6170 = vmatpush1.bf16.msra.mxu0 0
  %6171 = vmatprep.subr.bf16.mxu0 0
  %6172 = vmatpush1.bf16.msra.mxu0 0
  %6173 = vmatprep.subr.bf16.mxu0 0
  %6174 = vmatpush1.bf16.msra.mxu0 0
  %6175 = vmatprep.subr.bf16.mxu0 0
  %6176 = vmatpush1.bf16.msra.mxu0 0
  %6177 = vmatprep.subr.bf16.mxu0 0
  %6178 = vmatpush1.bf16.msra.mxu0 0
  %6179 = vmatprep.subr.bf16.mxu0 0
  %6180 = vmatpush1.bf16.msra.mxu0 0
  %6181 = vmatprep.subr.bf16.mxu0 0
  %6182 = vmatpush1.bf16.msra.mxu0 0
  %6183 = vmatprep.mubr.bf16.mxu0 0
  %6184 = vmatmul.mubr.bf16.gmra.mrb[0].mxu0 %v6149
  %v6185 = vpop.f32.mrb[0].mxu0
  %v6186 = vadd.f32 0.0, %v6185
  %v6187 = vpop.f32.mrb[0].mxu0
  %v6188 = vpop.f32.mrb[0].mxu0
  %v6189 = vadd.f32 0.0, %v6188
  %v6190 = vpop.f32.mrb[0].mxu0
  %6191 = vdwg.mxu0
  %v6193 = vsel %vm516, %v5956, 0
  %6195 = vmatprep.subr.bf16.mxu0 0
  %6196 = vmatpush1.bf16.msra.mxu0 %v5808
  %6197 = vmatprep.subr.bf16.mxu0 0
  %6198 = vmatpush1.bf16.msra.mxu0 0
  %6199 = vmatprep.subr.bf16.mxu0 0
  %6200 = vmatpush1.bf16.msra.mxu0 0
  %6201 = vmatprep.subr.bf16.mxu0 0
  %6202 = vmatpush1.bf16.msra.mxu0 0
  %6203 = vmatprep.subr.bf16.mxu0 0
  %6204 = vmatpush1.bf16.msra.mxu0 0
  %6205 = vmatprep.subr.bf16.mxu0 0
  %6206 = vmatpush1.bf16.msra.mxu0 0
  %6207 = vmatprep.subr.bf16.mxu0 0
  %6208 = vmatpush1.bf16.msra.mxu0 0
  %6209 = vmatprep.subr.bf16.mxu0 0
  %6210 = vmatpush1.bf16.msra.mxu0 0
  %6211 = vmatprep.subr.bf16.mxu0 0
  %6212 = vmatpush1.bf16.msra.mxu0 0
  %6213 = vmatprep.subr.bf16.mxu0 0
  %6214 = vmatpush1.bf16.msra.mxu0 0
  %6215 = vmatprep.subr.bf16.mxu0 0
  %6216 = vmatpush1.bf16.msra.mxu0 0
  %6217 = vmatprep.subr.bf16.mxu0 0
  %6218 = vmatpush1.bf16.msra.mxu0 0
  %6219 = vmatprep.subr.bf16.mxu0 0
  %6220 = vmatpush1.bf16.msra.mxu0 0
  %6221 = vmatprep.subr.bf16.mxu0 0
  %6222 = vmatpush1.bf16.msra.mxu0 0
  %6223 = vmatprep.subr.bf16.mxu0 0
  %6224 = vmatpush1.bf16.msra.mxu0 0
  %6225 = vmatprep.subr.bf16.mxu0 0
  %6226 = vmatpush1.bf16.msra.mxu0 0
  %6227 = vmatprep.mubr.bf16.mxu0 0
  %6228 = vmatmul.mubr.bf16.gmra.mrb[0].mxu0 %v6193
  %v6229 = vpop.f32.mrb[0].mxu0
  %v6230 = vadd.f32 %v6142, %v6229
  %v6231 = vpop.f32.mrb[0].mxu0
  %v6232 = vpop.f32.mrb[0].mxu0
  %v6233 = vadd.f32 %v6145, %v6232
  %v6234 = vpop.f32.mrb[0].mxu0
  %6235 = vdwg.mxu0
  %v6237 = vsel %vm516, %v5957, 0
  %6239 = vmatprep.subr.bf16.mxu0 0
  %6240 = vmatpush1.bf16.msra.mxu0 %v5809
  %6241 = vmatprep.subr.bf16.mxu0 0
  %6242 = vmatpush1.bf16.msra.mxu0 0
  %6243 = vmatprep.subr.bf16.mxu0 0
  %6244 = vmatpush1.bf16.msra.mxu0 0
  %6245 = vmatprep.subr.bf16.mxu0 0
  %6246 = vmatpush1.bf16.msra.mxu0 0
  %6247 = vmatprep.subr.bf16.mxu0 0
  %6248 = vmatpush1.bf16.msra.mxu0 0
  %6249 = vmatprep.subr.bf16.mxu0 0
  %6250 = vmatpush1.bf16.msra.mxu0 0
  %6251 = vmatprep.subr.bf16.mxu0 0
  %6252 = vmatpush1.bf16.msra.mxu0 0
  %6253 = vmatprep.subr.bf16.mxu0 0
  %6254 = vmatpush1.bf16.msra.mxu0 0
  %6255 = vmatprep.subr.bf16.mxu0 0
  %6256 = vmatpush1.bf16.msra.mxu0 0
  %6257 = vmatprep.subr.bf16.mxu0 0
  %6258 = vmatpush1.bf16.msra.mxu0 0
  %6259 = vmatprep.subr.bf16.mxu0 0
  %6260 = vmatpush1.bf16.msra.mxu0 0
  %6261 = vmatprep.subr.bf16.mxu0 0
  %6262 = vmatpush1.bf16.msra.mxu0 0
  %6263 = vmatprep.subr.bf16.mxu0 0
  %6264 = vmatpush1.bf16.msra.mxu0 0
  %6265 = vmatprep.subr.bf16.mxu0 0
  %6266 = vmatpush1.bf16.msra.mxu0 0
  %6267 = vmatprep.subr.bf16.mxu0 0
  %6268 = vmatpush1.bf16.msra.mxu0 0
  %6269 = vmatprep.subr.bf16.mxu0 0
  %6270 = vmatpush1.bf16.msra.mxu0 0
  %6271 = vmatprep.mubr.bf16.mxu0 0
  %6272 = vmatmul.mubr.bf16.gmra.mrb[0].mxu0 %v6237
  %v6273 = vpop.f32.mrb[0].mxu0
  %v6274 = vadd.f32 %v6186, %v6273
  %v6275 = vpop.f32.mrb[0].mxu0
  %v6276 = vpop.f32.mrb[0].mxu0
  %v6277 = vadd.f32 %v6189, %v6276
  %v6278 = vpop.f32.mrb[0].mxu0
  %6279 = vdwg.mxu0
  %v6280 = vmul.bf16 %v5802, %v183
  %v6281 = vmul.bf16 %v5803, %v183
  %v6282 = vmul.bf16 %v5804, %v183
  %v6283 = vmul.bf16 %v5805, %v183
  %v6285 = vsel %vm208, %v6280, 0
  %6287 = vmatprep.subr.bf16.mxu0 0
  %6288 = vmatpush1.bf16.xpose.msra.mxu0 %v6285
  %6289 = vmatprep.subr.bf16.mxu0 0
  %6290 = vmatpush1.bf16.xpose.msra.mxu0 0
  %6291 = vmatprep.subr.bf16.mxu0 0
  %6292 = vmatpush1.bf16.xpose.msra.mxu0 0
  %6293 = vmatprep.subr.bf16.mxu0 0
  %6294 = vmatpush1.bf16.xpose.msra.mxu0 0
  %6295 = vmatprep.subr.bf16.mxu0 0
  %6296 = vmatpush1.bf16.xpose.msra.mxu0 0
  %6297 = vmatprep.subr.bf16.mxu0 0
  %6298 = vmatpush1.bf16.xpose.msra.mxu0 0
  %6299 = vmatprep.subr.bf16.mxu0 0
  %6300 = vmatpush1.bf16.xpose.msra.mxu0 0
  %6301 = vmatprep.subr.bf16.mxu0 0
  %6302 = vmatpush1.bf16.xpose.msra.mxu0 0
  %6303 = vmatprep.subr.bf16.mxu0 0
  %6304 = vmatpush1.bf16.xpose.msra.mxu0 0
  %6305 = vmatprep.subr.bf16.mxu0 0
  %6306 = vmatpush1.bf16.xpose.msra.mxu0 0
  %6307 = vmatprep.subr.bf16.mxu0 0
  %6308 = vmatpush1.bf16.xpose.msra.mxu0 0
  %6309 = vmatprep.subr.bf16.mxu0 0
  %6310 = vmatpush1.bf16.xpose.msra.mxu0 0
  %6311 = vmatprep.subr.bf16.mxu0 0
  %6312 = vmatpush1.bf16.xpose.msra.mxu0 0
  %6313 = vmatprep.subr.bf16.mxu0 0
  %6314 = vmatpush1.bf16.xpose.msra.mxu0 0
  %6315 = vmatprep.subr.bf16.mxu0 0
  %6316 = vmatpush1.bf16.xpose.msra.mxu0 0
  %6317 = vmatprep.subr.bf16.mxu0 0
  %6318 = vmatpush1.bf16.xpose.msra.mxu0 0
  %6319 = vmatprep.mubr.bf16.mxu0 0
  %6320 = vmatmul.mubr.bf16.gmra.mrb[0].mxu0 %v5811
  %v6321 = vpop.f32.mrb[0].mxu0
  %v6322 = vadd.f32 0.0, %v6321
  %v6323 = vpop.f32.mrb[0].mxu0
  %v6324 = vpop.f32.mrb[0].mxu0
  %v6325 = vadd.f32 0.0, %v6324
  %v6326 = vpop.f32.mrb[0].mxu0
  %6327 = vdwg.mxu0
  %v6329 = vsel %vm208, %v6281, 0
  %6331 = vmatprep.subr.bf16.mxu0 0
  %6332 = vmatpush1.bf16.xpose.msra.mxu0 %v6329
  %6333 = vmatprep.subr.bf16.mxu0 0
  %6334 = vmatpush1.bf16.xpose.msra.mxu0 0
  %6335 = vmatprep.subr.bf16.mxu0 0
  %6336 = vmatpush1.bf16.xpose.msra.mxu0 0
  %6337 = vmatprep.subr.bf16.mxu0 0
  %6338 = vmatpush1.bf16.xpose.msra.mxu0 0
  %6339 = vmatprep.subr.bf16.mxu0 0
  %6340 = vmatpush1.bf16.xpose.msra.mxu0 0
  %6341 = vmatprep.subr.bf16.mxu0 0
  %6342 = vmatpush1.bf16.xpose.msra.mxu0 0
  %6343 = vmatprep.subr.bf16.mxu0 0
  %6344 = vmatpush1.bf16.xpose.msra.mxu0 0
  %6345 = vmatprep.subr.bf16.mxu0 0
  %6346 = vmatpush1.bf16.xpose.msra.mxu0 0
  %6347 = vmatprep.subr.bf16.mxu0 0
  %6348 = vmatpush1.bf16.xpose.msra.mxu0 0
  %6349 = vmatprep.subr.bf16.mxu0 0
  %6350 = vmatpush1.bf16.xpose.msra.mxu0 0
  %6351 = vmatprep.subr.bf16.mxu0 0
  %6352 = vmatpush1.bf16.xpose.msra.mxu0 0
  %6353 = vmatprep.subr.bf16.mxu0 0
  %6354 = vmatpush1.bf16.xpose.msra.mxu0 0
  %6355 = vmatprep.subr.bf16.mxu0 0
  %6356 = vmatpush1.bf16.xpose.msra.mxu0 0
  %6357 = vmatprep.subr.bf16.mxu0 0
  %6358 = vmatpush1.bf16.xpose.msra.mxu0 0
  %6359 = vmatprep.subr.bf16.mxu0 0
  %6360 = vmatpush1.bf16.xpose.msra.mxu0 0
  %6361 = vmatprep.subr.bf16.mxu0 0
  %6362 = vmatpush1.bf16.xpose.msra.mxu0 0
  %6363 = vmatprep.mubr.bf16.mxu0 0
  %6364 = vmatmul.mubr.bf16.gmra.mrb[0].mxu0 %v5858
  %v6365 = vpop.f32.mrb[0].mxu0
  %v6366 = vadd.f32 0.0, %v6365
  %v6367 = vpop.f32.mrb[0].mxu0
  %v6368 = vpop.f32.mrb[0].mxu0
  %v6369 = vadd.f32 0.0, %v6368
  %v6370 = vpop.f32.mrb[0].mxu0
  %6371 = vdwg.mxu0
  %v6372 = vmul.f32 %v6322, 0.35355338
  %v6373 = vmul.f32 %v6325, 0.35355338
  %v6374 = vmul.f32 %v6366, 0.35355338
  %v6375 = vmul.f32 %v6369, 0.35355338
  %v6376 = vadd.f32 %v6372, %v4363
  %v6377 = vadd.f32 %v6373, %v4363
  %v6378 = vadd.f32 %v6374, %v4367
  %v6379 = vadd.f32 %v6375, %v4367
  %v6380 = vsel %vm516, %v6376, -inf
  %6381 = vmax.xlane.f32.xlu0 %v6380
  %v6382 = vpop.xlane.xlu0 %6381
  %v6383 = vsel %vm516, %v6377, -inf
  %6384 = vmax.xlane.f32.xlu0 %v6383
  %v6385 = vpop.xlane.xlu0 %6384
  %v6386 = vsel %vm516, %v6378, -inf
  %6387 = vmax.xlane.f32.xlu0 %v6386
  %v6388 = vpop.xlane.xlu0 %6387
  %v6389 = vsel %vm516, %v6379, -inf
  %6390 = vmax.xlane.f32.xlu0 %v6389
  %v6391 = vpop.xlane.xlu0 %6390
  %v6392 = vsub.f32 %v6376, %v6382
  %v6393 = vsub.f32 %v6377, %v6385
  %v6394 = vsub.f32 %v6378, %v6388
  %v6395 = vsub.f32 %v6379, %v6391
  %v6396 = vmul.f32 %v6392, 1.442695
  %v6397 = vpow.pop %v6396
  %v6398 = vmul.f32 %v6393, 1.442695
  %v6399 = vpow.pop %v6398
  %v6400 = vmul.f32 %v6394, 1.442695
  %v6401 = vpow.pop %v6400
  %v6402 = vmul.f32 %v6395, 1.442695
  %v6403 = vpow.pop %v6402
  %v6404 = vsel %vm516, %v6397, 0.0
  %6405 = vadd.xlane.f32.xlu0 %v6404
  %v6406 = vpop.xlane.xlu0 %6405
  %v6407 = vsel %vm516, %v6399, 0.0
  %6408 = vadd.xlane.f32.xlu0 %v6407
  %v6409 = vpop.xlane.xlu0 %6408
  %v6410 = vsel %vm516, %v6401, 0.0
  %6411 = vadd.xlane.f32.xlu0 %v6410
  %v6412 = vpop.xlane.xlu0 %6411
  %v6413 = vsel %vm516, %v6403, 0.0
  %6414 = vadd.xlane.f32.xlu0 %v6413
  %v6415 = vpop.xlane.xlu0 %6414
  %v6416 = vrcp.pop %v6406
  %v6417 = vrcp.pop %v6409
  %v6418 = vrcp.pop %v6412
  %v6419 = vrcp.pop %v6415
  %v6420 = vmul.f32 %v6397, %v6416
  %v6421 = vmul.f32 %v6399, %v6417
  %v6422 = vmul.f32 %v6401, %v6418
  %v6423 = vmul.f32 %v6403, %v6419
  %v6424 = vpack.c.bf16 %v6421, %v6420
  %v6425 = vpack.c.bf16 %v6423, %v6422
  %v6427 = vsel %vm516, %v6424, 0
  %6429 = vmatprep.subr.bf16.mxu0 0
  %6430 = vmatpush1.bf16.msra.mxu0 %v6282
  %6431 = vmatprep.subr.bf16.mxu0 0
  %6432 = vmatpush1.bf16.msra.mxu0 0
  %6433 = vmatprep.subr.bf16.mxu0 0
  %6434 = vmatpush1.bf16.msra.mxu0 0
  %6435 = vmatprep.subr.bf16.mxu0 0
  %6436 = vmatpush1.bf16.msra.mxu0 0
  %6437 = vmatprep.subr.bf16.mxu0 0
  %6438 = vmatpush1.bf16.msra.mxu0 0
  %6439 = vmatprep.subr.bf16.mxu0 0
  %6440 = vmatpush1.bf16.msra.mxu0 0
  %6441 = vmatprep.subr.bf16.mxu0 0
  %6442 = vmatpush1.bf16.msra.mxu0 0
  %6443 = vmatprep.subr.bf16.mxu0 0
  %6444 = vmatpush1.bf16.msra.mxu0 0
  %6445 = vmatprep.subr.bf16.mxu0 0
  %6446 = vmatpush1.bf16.msra.mxu0 0
  %6447 = vmatprep.subr.bf16.mxu0 0
  %6448 = vmatpush1.bf16.msra.mxu0 0
  %6449 = vmatprep.subr.bf16.mxu0 0
  %6450 = vmatpush1.bf16.msra.mxu0 0
  %6451 = vmatprep.subr.bf16.mxu0 0
  %6452 = vmatpush1.bf16.msra.mxu0 0
  %6453 = vmatprep.subr.bf16.mxu0 0
  %6454 = vmatpush1.bf16.msra.mxu0 0
  %6455 = vmatprep.subr.bf16.mxu0 0
  %6456 = vmatpush1.bf16.msra.mxu0 0
  %6457 = vmatprep.subr.bf16.mxu0 0
  %6458 = vmatpush1.bf16.msra.mxu0 0
  %6459 = vmatprep.subr.bf16.mxu0 0
  %6460 = vmatpush1.bf16.msra.mxu0 0
  %6461 = vmatprep.mubr.bf16.mxu0 0
  %6462 = vmatmul.mubr.bf16.gmra.mrb[0].mxu0 %v6427
  %v6463 = vpop.f32.mrb[0].mxu0
  %v6464 = vadd.f32 0.0, %v6463
  %v6465 = vpop.f32.mrb[0].mxu0
  %v6466 = vpop.f32.mrb[0].mxu0
  %v6467 = vadd.f32 0.0, %v6466
  %v6468 = vpop.f32.mrb[0].mxu0
  %6469 = vdwg.mxu0
  %v6471 = vsel %vm516, %v6425, 0
  %6473 = vmatprep.subr.bf16.mxu0 0
  %6474 = vmatpush1.bf16.msra.mxu0 %v6283
  %6475 = vmatprep.subr.bf16.mxu0 0
  %6476 = vmatpush1.bf16.msra.mxu0 0
  %6477 = vmatprep.subr.bf16.mxu0 0
  %6478 = vmatpush1.bf16.msra.mxu0 0
  %6479 = vmatprep.subr.bf16.mxu0 0
  %6480 = vmatpush1.bf16.msra.mxu0 0
  %6481 = vmatprep.subr.bf16.mxu0 0
  %6482 = vmatpush1.bf16.msra.mxu0 0
  %6483 = vmatprep.subr.bf16.mxu0 0
  %6484 = vmatpush1.bf16.msra.mxu0 0
  %6485 = vmatprep.subr.bf16.mxu0 0
  %6486 = vmatpush1.bf16.msra.mxu0 0
  %6487 = vmatprep.subr.bf16.mxu0 0
  %6488 = vmatpush1.bf16.msra.mxu0 0
  %6489 = vmatprep.subr.bf16.mxu0 0
  %6490 = vmatpush1.bf16.msra.mxu0 0
  %6491 = vmatprep.subr.bf16.mxu0 0
  %6492 = vmatpush1.bf16.msra.mxu0 0
  %6493 = vmatprep.subr.bf16.mxu0 0
  %6494 = vmatpush1.bf16.msra.mxu0 0
  %6495 = vmatprep.subr.bf16.mxu0 0
  %6496 = vmatpush1.bf16.msra.mxu0 0
  %6497 = vmatprep.subr.bf16.mxu0 0
  %6498 = vmatpush1.bf16.msra.mxu0 0
  %6499 = vmatprep.subr.bf16.mxu0 0
  %6500 = vmatpush1.bf16.msra.mxu0 0
  %6501 = vmatprep.subr.bf16.mxu0 0
  %6502 = vmatpush1.bf16.msra.mxu0 0
  %6503 = vmatprep.subr.bf16.mxu0 0
  %6504 = vmatpush1.bf16.msra.mxu0 0
  %6505 = vmatprep.mubr.bf16.mxu0 0
  %6506 = vmatmul.mubr.bf16.gmra.mrb[0].mxu0 %v6471
  %v6507 = vpop.f32.mrb[0].mxu0
  %v6508 = vadd.f32 0.0, %v6507
  %v6509 = vpop.f32.mrb[0].mxu0
  %v6510 = vpop.f32.mrb[0].mxu0
  %v6511 = vadd.f32 0.0, %v6510
  %v6512 = vpop.f32.mrb[0].mxu0
  %6513 = vdwg.mxu0
  %v6514 = vadd.f32 %v6230, %v6464
  %v6515 = vadd.f32 %v6233, %v6467
  %v6516 = vadd.f32 %v6274, %v6508
  %v6517 = vadd.f32 %v6277, %v6511
  %v6518 = vmul.bf16 %v5802, %v189
  %v6519 = vmul.bf16 %v5803, %v189
  %v6520 = vmul.bf16 %v5804, %v189
  %v6521 = vmul.bf16 %v5805, %v189
  %v6523 = vsel %vm208, %v6518, 0
  %6525 = vmatprep.subr.bf16.mxu0 0
  %6526 = vmatpush1.bf16.xpose.msra.mxu0 %v6523
  %6527 = vmatprep.subr.bf16.mxu0 0
  %6528 = vmatpush1.bf16.xpose.msra.mxu0 0
  %6529 = vmatprep.subr.bf16.mxu0 0
  %6530 = vmatpush1.bf16.xpose.msra.mxu0 0
  %6531 = vmatprep.subr.bf16.mxu0 0
  %6532 = vmatpush1.bf16.xpose.msra.mxu0 0
  %6533 = vmatprep.subr.bf16.mxu0 0
  %6534 = vmatpush1.bf16.xpose.msra.mxu0 0
  %6535 = vmatprep.subr.bf16.mxu0 0
  %6536 = vmatpush1.bf16.xpose.msra.mxu0 0
  %6537 = vmatprep.subr.bf16.mxu0 0
  %6538 = vmatpush1.bf16.xpose.msra.mxu0 0
  %6539 = vmatprep.subr.bf16.mxu0 0
  %6540 = vmatpush1.bf16.xpose.msra.mxu0 0
  %6541 = vmatprep.subr.bf16.mxu0 0
  %6542 = vmatpush1.bf16.xpose.msra.mxu0 0
  %6543 = vmatprep.subr.bf16.mxu0 0
  %6544 = vmatpush1.bf16.xpose.msra.mxu0 0
  %6545 = vmatprep.subr.bf16.mxu0 0
  %6546 = vmatpush1.bf16.xpose.msra.mxu0 0
  %6547 = vmatprep.subr.bf16.mxu0 0
  %6548 = vmatpush1.bf16.xpose.msra.mxu0 0
  %6549 = vmatprep.subr.bf16.mxu0 0
  %6550 = vmatpush1.bf16.xpose.msra.mxu0 0
  %6551 = vmatprep.subr.bf16.mxu0 0
  %6552 = vmatpush1.bf16.xpose.msra.mxu0 0
  %6553 = vmatprep.subr.bf16.mxu0 0
  %6554 = vmatpush1.bf16.xpose.msra.mxu0 0
  %6555 = vmatprep.subr.bf16.mxu0 0
  %6556 = vmatpush1.bf16.xpose.msra.mxu0 0
  %6557 = vmatprep.mubr.bf16.mxu0 0
  %6558 = vmatmul.mubr.bf16.gmra.mrb[0].mxu0 %v5811
  %v6559 = vpop.f32.mrb[0].mxu0
  %v6560 = vadd.f32 0.0, %v6559
  %v6561 = vpop.f32.mrb[0].mxu0
  %v6562 = vpop.f32.mrb[0].mxu0
  %v6563 = vadd.f32 0.0, %v6562
  %v6564 = vpop.f32.mrb[0].mxu0
  %6565 = vdwg.mxu0
  %v6567 = vsel %vm208, %v6519, 0
  %6569 = vmatprep.subr.bf16.mxu0 0
  %6570 = vmatpush1.bf16.xpose.msra.mxu0 %v6567
  %6571 = vmatprep.subr.bf16.mxu0 0
  %6572 = vmatpush1.bf16.xpose.msra.mxu0 0
  %6573 = vmatprep.subr.bf16.mxu0 0
  %6574 = vmatpush1.bf16.xpose.msra.mxu0 0
  %6575 = vmatprep.subr.bf16.mxu0 0
  %6576 = vmatpush1.bf16.xpose.msra.mxu0 0
  %6577 = vmatprep.subr.bf16.mxu0 0
  %6578 = vmatpush1.bf16.xpose.msra.mxu0 0
  %6579 = vmatprep.subr.bf16.mxu0 0
  %6580 = vmatpush1.bf16.xpose.msra.mxu0 0
  %6581 = vmatprep.subr.bf16.mxu0 0
  %6582 = vmatpush1.bf16.xpose.msra.mxu0 0
  %6583 = vmatprep.subr.bf16.mxu0 0
  %6584 = vmatpush1.bf16.xpose.msra.mxu0 0
  %6585 = vmatprep.subr.bf16.mxu0 0
  %6586 = vmatpush1.bf16.xpose.msra.mxu0 0
  %6587 = vmatprep.subr.bf16.mxu0 0
  %6588 = vmatpush1.bf16.xpose.msra.mxu0 0
  %6589 = vmatprep.subr.bf16.mxu0 0
  %6590 = vmatpush1.bf16.xpose.msra.mxu0 0
  %6591 = vmatprep.subr.bf16.mxu0 0
  %6592 = vmatpush1.bf16.xpose.msra.mxu0 0
  %6593 = vmatprep.subr.bf16.mxu0 0
  %6594 = vmatpush1.bf16.xpose.msra.mxu0 0
  %6595 = vmatprep.subr.bf16.mxu0 0
  %6596 = vmatpush1.bf16.xpose.msra.mxu0 0
  %6597 = vmatprep.subr.bf16.mxu0 0
  %6598 = vmatpush1.bf16.xpose.msra.mxu0 0
  %6599 = vmatprep.subr.bf16.mxu0 0
  %6600 = vmatpush1.bf16.xpose.msra.mxu0 0
  %6601 = vmatprep.mubr.bf16.mxu0 0
  %6602 = vmatmul.mubr.bf16.gmra.mrb[0].mxu0 %v5858
  %v6603 = vpop.f32.mrb[0].mxu0
  %v6604 = vadd.f32 0.0, %v6603
  %v6605 = vpop.f32.mrb[0].mxu0
  %v6606 = vpop.f32.mrb[0].mxu0
  %v6607 = vadd.f32 0.0, %v6606
  %v6608 = vpop.f32.mrb[0].mxu0
  %6609 = vdwg.mxu0
  %v6610 = vmul.f32 %v6560, 0.35355338
  %v6611 = vmul.f32 %v6563, 0.35355338
  %v6612 = vmul.f32 %v6604, 0.35355338
  %v6613 = vmul.f32 %v6607, 0.35355338
  %v6614 = vadd.f32 %v6610, %v4363
  %v6615 = vadd.f32 %v6611, %v4363
  %v6616 = vadd.f32 %v6612, %v4367
  %v6617 = vadd.f32 %v6613, %v4367
  %v6618 = vsel %vm516, %v6614, -inf
  %6619 = vmax.xlane.f32.xlu0 %v6618
  %v6620 = vpop.xlane.xlu0 %6619
  %v6621 = vsel %vm516, %v6615, -inf
  %6622 = vmax.xlane.f32.xlu0 %v6621
  %v6623 = vpop.xlane.xlu0 %6622
  %v6624 = vsel %vm516, %v6616, -inf
  %6625 = vmax.xlane.f32.xlu0 %v6624
  %v6626 = vpop.xlane.xlu0 %6625
  %v6627 = vsel %vm516, %v6617, -inf
  %6628 = vmax.xlane.f32.xlu0 %v6627
  %v6629 = vpop.xlane.xlu0 %6628
  %v6630 = vsub.f32 %v6614, %v6620
  %v6631 = vsub.f32 %v6615, %v6623
  %v6632 = vsub.f32 %v6616, %v6626
  %v6633 = vsub.f32 %v6617, %v6629
  %v6634 = vmul.f32 %v6630, 1.442695
  %v6635 = vpow.pop %v6634
  %v6636 = vmul.f32 %v6631, 1.442695
  %v6637 = vpow.pop %v6636
  %v6638 = vmul.f32 %v6632, 1.442695
  %v6639 = vpow.pop %v6638
  %v6640 = vmul.f32 %v6633, 1.442695
  %v6641 = vpow.pop %v6640
  %v6642 = vsel %vm516, %v6635, 0.0
  %6643 = vadd.xlane.f32.xlu0 %v6642
  %v6644 = vpop.xlane.xlu0 %6643
  %v6645 = vsel %vm516, %v6637, 0.0
  %6646 = vadd.xlane.f32.xlu0 %v6645
  %v6647 = vpop.xlane.xlu0 %6646
  %v6648 = vsel %vm516, %v6639, 0.0
  %6649 = vadd.xlane.f32.xlu0 %v6648
  %v6650 = vpop.xlane.xlu0 %6649
  %v6651 = vsel %vm516, %v6641, 0.0
  %6652 = vadd.xlane.f32.xlu0 %v6651
  %v6653 = vpop.xlane.xlu0 %6652
  %v6654 = vrcp.pop %v6644
  %v6655 = vrcp.pop %v6647
  %v6656 = vrcp.pop %v6650
  %v6657 = vrcp.pop %v6653
  %v6658 = vmul.f32 %v6635, %v6654
  %v6659 = vmul.f32 %v6637, %v6655
  %v6660 = vmul.f32 %v6639, %v6656
  %v6661 = vmul.f32 %v6641, %v6657
  %v6662 = vpack.c.bf16 %v6659, %v6658
  %v6663 = vpack.c.bf16 %v6661, %v6660
  %v6665 = vsel %vm516, %v6662, 0
  %6667 = vmatprep.subr.bf16.mxu0 0
  %6668 = vmatpush1.bf16.msra.mxu0 %v6520
  %6669 = vmatprep.subr.bf16.mxu0 0
  %6670 = vmatpush1.bf16.msra.mxu0 0
  %6671 = vmatprep.subr.bf16.mxu0 0
  %6672 = vmatpush1.bf16.msra.mxu0 0
  %6673 = vmatprep.subr.bf16.mxu0 0
  %6674 = vmatpush1.bf16.msra.mxu0 0
  %6675 = vmatprep.subr.bf16.mxu0 0
  %6676 = vmatpush1.bf16.msra.mxu0 0
  %6677 = vmatprep.subr.bf16.mxu0 0
  %6678 = vmatpush1.bf16.msra.mxu0 0
  %6679 = vmatprep.subr.bf16.mxu0 0
  %6680 = vmatpush1.bf16.msra.mxu0 0
  %6681 = vmatprep.subr.bf16.mxu0 0
  %6682 = vmatpush1.bf16.msra.mxu0 0
  %6683 = vmatprep.subr.bf16.mxu0 0
  %6684 = vmatpush1.bf16.msra.mxu0 0
  %6685 = vmatprep.subr.bf16.mxu0 0
  %6686 = vmatpush1.bf16.msra.mxu0 0
  %6687 = vmatprep.subr.bf16.mxu0 0
  %6688 = vmatpush1.bf16.msra.mxu0 0
  %6689 = vmatprep.subr.bf16.mxu0 0
  %6690 = vmatpush1.bf16.msra.mxu0 0
  %6691 = vmatprep.subr.bf16.mxu0 0
  %6692 = vmatpush1.bf16.msra.mxu0 0
  %6693 = vmatprep.subr.bf16.mxu0 0
  %6694 = vmatpush1.bf16.msra.mxu0 0
  %6695 = vmatprep.subr.bf16.mxu0 0
  %6696 = vmatpush1.bf16.msra.mxu0 0
  %6697 = vmatprep.subr.bf16.mxu0 0
  %6698 = vmatpush1.bf16.msra.mxu0 0
  %6699 = vmatprep.mubr.bf16.mxu0 0
  %6700 = vmatmul.mubr.bf16.gmra.mrb[0].mxu0 %v6665
  %v6701 = vpop.f32.mrb[0].mxu0
  %v6702 = vadd.f32 0.0, %v6701
  %v6703 = vpop.f32.mrb[0].mxu0
  %v6704 = vpop.f32.mrb[0].mxu0
  %v6705 = vadd.f32 0.0, %v6704
  %v6706 = vpop.f32.mrb[0].mxu0
  %6707 = vdwg.mxu0
  %v6709 = vsel %vm516, %v6663, 0
  %6711 = vmatprep.subr.bf16.mxu0 0
  %6712 = vmatpush1.bf16.msra.mxu0 %v6521
  %6713 = vmatprep.subr.bf16.mxu0 0
  %6714 = vmatpush1.bf16.msra.mxu0 0
  %6715 = vmatprep.subr.bf16.mxu0 0
  %6716 = vmatpush1.bf16.msra.mxu0 0
  %6717 = vmatprep.subr.bf16.mxu0 0
  %6718 = vmatpush1.bf16.msra.mxu0 0
  %6719 = vmatprep.subr.bf16.mxu0 0
  %6720 = vmatpush1.bf16.msra.mxu0 0
  %6721 = vmatprep.subr.bf16.mxu0 0
  %6722 = vmatpush1.bf16.msra.mxu0 0
  %6723 = vmatprep.subr.bf16.mxu0 0
  %6724 = vmatpush1.bf16.msra.mxu0 0
  %6725 = vmatprep.subr.bf16.mxu0 0
  %6726 = vmatpush1.bf16.msra.mxu0 0
  %6727 = vmatprep.subr.bf16.mxu0 0
  %6728 = vmatpush1.bf16.msra.mxu0 0
  %6729 = vmatprep.subr.bf16.mxu0 0
  %6730 = vmatpush1.bf16.msra.mxu0 0
  %6731 = vmatprep.subr.bf16.mxu0 0
  %6732 = vmatpush1.bf16.msra.mxu0 0
  %6733 = vmatprep.subr.bf16.mxu0 0
  %6734 = vmatpush1.bf16.msra.mxu0 0
  %6735 = vmatprep.subr.bf16.mxu0 0
  %6736 = vmatpush1.bf16.msra.mxu0 0
  %6737 = vmatprep.subr.bf16.mxu0 0
  %6738 = vmatpush1.bf16.msra.mxu0 0
  %6739 = vmatprep.subr.bf16.mxu0 0
  %6740 = vmatpush1.bf16.msra.mxu0 0
  %6741 = vmatprep.subr.bf16.mxu0 0
  %6742 = vmatpush1.bf16.msra.mxu0 0
  %6743 = vmatprep.mubr.bf16.mxu0 0
  %6744 = vmatmul.mubr.bf16.gmra.mrb[0].mxu0 %v6709
  %v6745 = vpop.f32.mrb[0].mxu0
  %v6746 = vadd.f32 0.0, %v6745
  %v6747 = vpop.f32.mrb[0].mxu0
  %v6748 = vpop.f32.mrb[0].mxu0
  %v6749 = vadd.f32 0.0, %v6748
  %v6750 = vpop.f32.mrb[0].mxu0
  %6751 = vdwg.mxu0
  %v6752 = vadd.f32 %v6514, %v6702
  %v6753 = vadd.f32 %v6515, %v6705
  %v6754 = vadd.f32 %v6516, %v6746
  %v6755 = vadd.f32 %v6517, %v6749
  %v6756 = vpack.c.bf16 %v6753, %v6752
  %v6757 = vpack.c.bf16 %v6755, %v6754
  %v6758 = vlaneseq
  %v6759 = vshrl.u32 %v6758, 7
  %v6760 = vsub.s32 3, %v6759
  %v6761 = vrot.slane %v4019, %v6760
  %v6766 = vunpack.c.l.b16 %v3987
  %v6767 = vunpack.c.l.b16 %v3988
  %v6768 = vunpack.c.l.b16 %v3989
  %v6769 = vunpack.c.l.b16 %v3990
  %v6770 = vpack.c.b16 %v6767, %v6766
  %v6771 = vpack.c.b16 %v6769, %v6768
  %v6775 = vsel %vm208, %v6756, 0
  %v6778 = vsel %vm208, %v6757, 0
  %6780 = vmatprep.subr.bf16.mxu0 0
  %6781 = vmatpush1.bf16.msra.mxu0 %v6770
  %6782 = vmatprep.subr.bf16.mxu0 0
  %6783 = vmatpush1.bf16.msra.mxu0 %v6771
  %6784 = vmatprep.subr.bf16.mxu0 0
  %6785 = vmatpush1.bf16.msra.mxu0 0
  %6786 = vmatprep.subr.bf16.mxu0 0
  %6787 = vmatpush1.bf16.msra.mxu0 0
  %6788 = vmatprep.subr.bf16.mxu0 0
  %6789 = vmatpush1.bf16.msra.mxu0 0
  %6790 = vmatprep.subr.bf16.mxu0 0
  %6791 = vmatpush1.bf16.msra.mxu0 0
  %6792 = vmatprep.subr.bf16.mxu0 0
  %6793 = vmatpush1.bf16.msra.mxu0 0
  %6794 = vmatprep.subr.bf16.mxu0 0
  %6795 = vmatpush1.bf16.msra.mxu0 0
  %6796 = vmatprep.subr.bf16.mxu0 0
  %6797 = vmatpush1.bf16.msra.mxu0 0
  %6798 = vmatprep.subr.bf16.mxu0 0
  %6799 = vmatpush1.bf16.msra.mxu0 0
  %6800 = vmatprep.subr.bf16.mxu0 0
  %6801 = vmatpush1.bf16.msra.mxu0 0
  %6802 = vmatprep.subr.bf16.mxu0 0
  %6803 = vmatpush1.bf16.msra.mxu0 0
  %6804 = vmatprep.subr.bf16.mxu0 0
  %6805 = vmatpush1.bf16.msra.mxu0 0
  %6806 = vmatprep.subr.bf16.mxu0 0
  %6807 = vmatpush1.bf16.msra.mxu0 0
  %6808 = vmatprep.subr.bf16.mxu0 0
  %6809 = vmatpush1.bf16.msra.mxu0 0
  %6810 = vmatprep.subr.bf16.mxu0 0
  %6811 = vmatpush1.bf16.msra.mxu0 0
  %6812 = vmatprep.mubr.bf16.mxu0 0
  %6813 = vmatmul.mubr.bf16.gmra.mrb[0].mxu0 %v6775
  %v6814 = vpop.f32.mrb[0].mxu0
  %v6815 = vadd.f32 %v6761, %v6814
  %v6816 = vpop.f32.mrb[0].mxu0
  %v6817 = vpop.f32.mrb[0].mxu0
  %v6818 = vadd.f32 %v6761, %v6817
  %v6819 = vpop.f32.mrb[0].mxu0
  %6820 = vmatprep.mubr.bf16.mxu0 0
  %6821 = vmatmul.mubr.bf16.gmra.mrb[0].mxu0 %v6778
  %v6822 = vpop.f32.mrb[0].mxu0
  %v6823 = vadd.f32 %v6761, %v6822
  %v6824 = vpop.f32.mrb[0].mxu0
  %v6825 = vpop.f32.mrb[0].mxu0
  %v6826 = vadd.f32 %v6761, %v6825
  %v6827 = vpop.f32.mrb[0].mxu0
  %6828 = vdwg.mxu0
  %v6829 = vadd.f32 %v5593, %v6815
  %v6830 = vadd.f32 %v5594, %v6818
  %v6831 = vadd.f32 %v5595, %v6823
  %v6832 = vadd.f32 %v5596, %v6826
  %v6833 = vsel %vm208, %v6829, 0.0
  %6834 = vadd.xlane.f32.xlu0 %v6833
  %v6835 = vpop.xlane.xlu0 %6834
  %v6836 = vsel %vm208, %v6830, 0.0
  %6837 = vadd.xlane.f32.xlu0 %v6836
  %v6838 = vpop.xlane.xlu0 %6837
  %v6839 = vsel %vm208, %v6831, 0.0
  %6840 = vadd.xlane.f32.xlu0 %v6839
  %v6841 = vpop.xlane.xlu0 %6840
  %v6842 = vsel %vm208, %v6832, 0.0
  %6843 = vadd.xlane.f32.xlu0 %v6842
  %v6844 = vpop.xlane.xlu0 %6843
  %v6845 = vmul.f32 %v6835, %v1450
  %v6846 = vmul.f32 %v6838, %v1450
  %v6847 = vmul.f32 %v6841, %v1450
  %v6848 = vmul.f32 %v6844, %v1450
  %v6849 = vsub.f32 %v6829, %v6845
  %v6850 = vsub.f32 %v6830, %v6846
  %v6851 = vsub.f32 %v6831, %v6847
  %v6852 = vsub.f32 %v6832, %v6848
  %v6853 = vmul.f32 %v6849, %v6849
  %v6854 = vmul.f32 %v6850, %v6850
  %v6855 = vmul.f32 %v6851, %v6851
  %v6856 = vmul.f32 %v6852, %v6852
  %v6857 = vsel %vm208, %v6853, 0.0
  %6858 = vadd.xlane.f32.xlu0 %v6857
  %v6859 = vpop.xlane.xlu0 %6858
  %v6860 = vsel %vm208, %v6854, 0.0
  %6861 = vadd.xlane.f32.xlu0 %v6860
  %v6862 = vpop.xlane.xlu0 %6861
  %v6863 = vsel %vm208, %v6855, 0.0
  %6864 = vadd.xlane.f32.xlu0 %v6863
  %v6865 = vpop.xlane.xlu0 %6864
  %v6866 = vsel %vm208, %v6856, 0.0
  %6867 = vadd.xlane.f32.xlu0 %v6866
  %v6868 = vpop.xlane.xlu0 %6867
  %v6869 = vmul.f32 %v6859, %v1450
  %v6870 = vmul.f32 %v6862, %v1450
  %v6871 = vmul.f32 %v6865, %v1450
  %v6872 = vmul.f32 %v6868, %v1450
  %v6873 = vadd.f32 %v6869, 1e-05
  %v6874 = vadd.f32 %v6870, 1e-05
  %v6875 = vadd.f32 %v6871, 1e-05
  %v6876 = vadd.f32 %v6872, 1e-05
  %v6877 = vrsqrt.pop %v6873
  %v6878 = vrsqrt.pop %v6874
  %v6879 = vrsqrt.pop %v6875
  %v6880 = vrsqrt.pop %v6876
  %v6881 = vmul.f32 %v6849, %v6877
  %v6882 = vmul.f32 %v6850, %v6878
  %v6883 = vmul.f32 %v6851, %v6879
  %v6884 = vmul.f32 %v6852, %v6880
  %v6885 = vlaneseq
  %v6886 = vshrl.u32 %v6885, 7
  %v6887 = vsub.s32 1, %v6886
  %v6888 = vrot.slane %v4024, %v6887
  %v6889 = vmul.f32 %v6881, %v6888
  %v6890 = vmul.f32 %v6882, %v6888
  %v6891 = vmul.f32 %v6883, %v6888
  %v6892 = vmul.f32 %v6884, %v6888
  %v6893 = vlaneseq
  %v6894 = vshrl.u32 %v6893, 7
  %v6895 = vsub.s32 2, %v6894
  %v6896 = vrot.slane %v4024, %v6895
  %v6897 = vadd.f32 %v6889, %v6896
  %v6898 = vadd.f32 %v6890, %v6896
  %v6899 = vadd.f32 %v6891, %v6896
  %v6900 = vadd.f32 %v6892, %v6896
  %v6901 = vpack.c.bf16 %v6898, %v6897
  %v6902 = vpack.c.bf16 %v6900, %v6899
  %v6903 = vlaneseq
  %v6904 = vshrl.u32 %v6903, 7
  %v6905 = vsub.s32 1, %v6904
  %v6906 = vrot.slane %v4021, %v6905
  %v6911 = vunpack.c.l.b16 %v3996
  %v6912 = vunpack.c.l.b16 %v3997
  %v6913 = vunpack.c.l.b16 %v3998
  %v6914 = vunpack.c.l.b16 %v3999
  %v6915 = vpack.c.b16 %v6912, %v6911
  %v6916 = vpack.c.b16 %v6914, %v6913
  %v6920 = vsel %vm208, %v6901, 0
  %v6923 = vsel %vm208, %v6902, 0
  %6925 = vmatprep.subr.bf16.mxu0 0
  %6926 = vmatpush1.bf16.msra.mxu0 %v6915
  %6927 = vmatprep.subr.bf16.mxu0 0
  %6928 = vmatpush1.bf16.msra.mxu0 %v6916
  %6929 = vmatprep.subr.bf16.mxu0 0
  %6930 = vmatpush1.bf16.msra.mxu0 0
  %6931 = vmatprep.subr.bf16.mxu0 0
  %6932 = vmatpush1.bf16.msra.mxu0 0
  %6933 = vmatprep.subr.bf16.mxu0 0
  %6934 = vmatpush1.bf16.msra.mxu0 0
  %6935 = vmatprep.subr.bf16.mxu0 0
  %6936 = vmatpush1.bf16.msra.mxu0 0
  %6937 = vmatprep.subr.bf16.mxu0 0
  %6938 = vmatpush1.bf16.msra.mxu0 0
  %6939 = vmatprep.subr.bf16.mxu0 0
  %6940 = vmatpush1.bf16.msra.mxu0 0
  %6941 = vmatprep.subr.bf16.mxu0 0
  %6942 = vmatpush1.bf16.msra.mxu0 0
  %6943 = vmatprep.subr.bf16.mxu0 0
  %6944 = vmatpush1.bf16.msra.mxu0 0
  %6945 = vmatprep.subr.bf16.mxu0 0
  %6946 = vmatpush1.bf16.msra.mxu0 0
  %6947 = vmatprep.subr.bf16.mxu0 0
  %6948 = vmatpush1.bf16.msra.mxu0 0
  %6949 = vmatprep.subr.bf16.mxu0 0
  %6950 = vmatpush1.bf16.msra.mxu0 0
  %6951 = vmatprep.subr.bf16.mxu0 0
  %6952 = vmatpush1.bf16.msra.mxu0 0
  %6953 = vmatprep.subr.bf16.mxu0 0
  %6954 = vmatpush1.bf16.msra.mxu0 0
  %6955 = vmatprep.subr.bf16.mxu0 0
  %6956 = vmatpush1.bf16.msra.mxu0 0
  %6957 = vmatprep.mubr.bf16.mxu0 0
  %6958 = vmatmul.mubr.bf16.gmra.mrb[0].mxu0 %v6920
  %v6959 = vpop.f32.mrb[0].mxu0
  %v6960 = vadd.f32 %v6906, %v6959
  %v6961 = vpop.f32.mrb[0].mxu0
  %v6962 = vpop.f32.mrb[0].mxu0
  %v6963 = vadd.f32 %v6906, %v6962
  %v6964 = vpop.f32.mrb[0].mxu0
  %6965 = vmatprep.mubr.bf16.mxu0 0
  %6966 = vmatmul.mubr.bf16.gmra.mrb[0].mxu0 %v6923
  %v6967 = vpop.f32.mrb[0].mxu0
  %v6968 = vadd.f32 %v6906, %v6967
  %v6969 = vpop.f32.mrb[0].mxu0
  %v6970 = vpop.f32.mrb[0].mxu0
  %v6971 = vadd.f32 %v6906, %v6970
  %v6972 = vpop.f32.mrb[0].mxu0
  %6973 = vdwg.mxu0
  %v6974 = vmax.f32 %v6960, 0.0
  %v6975 = vmax.f32 %v6963, 0.0
  %v6976 = vmax.f32 %v6968, 0.0
  %v6977 = vmax.f32 %v6971, 0.0
  %v6978 = vpack.c.bf16 %v6975, %v6974
  %v6979 = vpack.c.bf16 %v6977, %v6976
  %v6980 = vlaneseq
  %v6981 = vshrl.u32 %v6980, 7
  %v6982 = vsub.s32 0, %v6981
  %v6983 = vrot.slane %v4024, %v6982
  %v6992 = vunpack.c.l.b16 %v4009
  %v6993 = vunpack.c.l.b16 %v4010
  %v6994 = vunpack.c.l.b16 %v4011
  %v6995 = vunpack.c.l.b16 %v4012
  %v6996 = vunpack.c.l.b16 %v4013
  %v6997 = vunpack.c.l.b16 %v4014
  %v6998 = vunpack.c.l.b16 %v4015
  %v6999 = vunpack.c.l.b16 %v4016
  %v7000 = vpack.c.b16 %v6993, %v6992
  %v7001 = vpack.c.b16 %v6995, %v6994
  %v7002 = vpack.c.b16 %v6997, %v6996
  %v7003 = vpack.c.b16 %v6999, %v6998
  %v7009 = vsel %vm1614, %v6978, 0
  %v7012 = vsel %vm1614, %v6979, 0
  %7014 = vmatprep.subr.bf16.mxu0 0
  %7015 = vmatpush1.bf16.msra.mxu0 %v7000
  %7016 = vmatprep.subr.bf16.mxu0 0
  %7017 = vmatpush1.bf16.msra.mxu0 %v7001
  %7018 = vmatprep.subr.bf16.mxu0 0
  %7019 = vmatpush1.bf16.msra.mxu0 %v7002
  %7020 = vmatprep.subr.bf16.mxu0 0
  %7021 = vmatpush1.bf16.msra.mxu0 %v7003
  %7022 = vmatprep.subr.bf16.mxu0 0
  %7023 = vmatpush1.bf16.msra.mxu0 0
  %7024 = vmatprep.subr.bf16.mxu0 0
  %7025 = vmatpush1.bf16.msra.mxu0 0
  %7026 = vmatprep.subr.bf16.mxu0 0
  %7027 = vmatpush1.bf16.msra.mxu0 0
  %7028 = vmatprep.subr.bf16.mxu0 0
  %7029 = vmatpush1.bf16.msra.mxu0 0
  %7030 = vmatprep.subr.bf16.mxu0 0
  %7031 = vmatpush1.bf16.msra.mxu0 0
  %7032 = vmatprep.subr.bf16.mxu0 0
  %7033 = vmatpush1.bf16.msra.mxu0 0
  %7034 = vmatprep.subr.bf16.mxu0 0
  %7035 = vmatpush1.bf16.msra.mxu0 0
  %7036 = vmatprep.subr.bf16.mxu0 0
  %7037 = vmatpush1.bf16.msra.mxu0 0
  %7038 = vmatprep.subr.bf16.mxu0 0
  %7039 = vmatpush1.bf16.msra.mxu0 0
  %7040 = vmatprep.subr.bf16.mxu0 0
  %7041 = vmatpush1.bf16.msra.mxu0 0
  %7042 = vmatprep.subr.bf16.mxu0 0
  %7043 = vmatpush1.bf16.msra.mxu0 0
  %7044 = vmatprep.subr.bf16.mxu0 0
  %7045 = vmatpush1.bf16.msra.mxu0 0
  %7046 = vmatprep.mubr.bf16.mxu0 0
  %7047 = vmatmul.mubr.bf16.gmra.mrb[0].mxu0 %v7009
  %v7048 = vpop.f32.mrb[0].mxu0
  %v7049 = vadd.f32 %v6983, %v7048
  %v7050 = vpop.f32.mrb[0].mxu0
  %v7051 = vpop.f32.mrb[0].mxu0
  %v7052 = vadd.f32 %v6983, %v7051
  %v7053 = vpop.f32.mrb[0].mxu0
  %7054 = vmatprep.mubr.bf16.mxu0 0
  %7055 = vmatmul.mubr.bf16.gmra.mrb[0].mxu0 %v7012
  %v7056 = vpop.f32.mrb[0].mxu0
  %v7057 = vadd.f32 %v6983, %v7056
  %v7058 = vpop.f32.mrb[0].mxu0
  %v7059 = vpop.f32.mrb[0].mxu0
  %v7060 = vadd.f32 %v6983, %v7059
  %v7061 = vpop.f32.mrb[0].mxu0
  %7062 = vdwg.mxu0
  %v7063 = vadd.f32 %v6897, %v7049
  %v7064 = vadd.f32 %v6898, %v7052
  %v7065 = vadd.f32 %v6899, %v7057
  %v7066 = vadd.f32 %v6900, %v7060
  %v7067 = vsel %vm208, %v7063, 0.0
  %7068 = vadd.xlane.f32.xlu0 %v7067
  %v7069 = vpop.xlane.xlu0 %7068
  %v7070 = vsel %vm208, %v7064, 0.0
  %7071 = vadd.xlane.f32.xlu0 %v7070
  %v7072 = vpop.xlane.xlu0 %7071
  %v7073 = vsel %vm208, %v7065, 0.0
  %7074 = vadd.xlane.f32.xlu0 %v7073
  %v7075 = vpop.xlane.xlu0 %7074
  %v7076 = vsel %vm208, %v7066, 0.0
  %7077 = vadd.xlane.f32.xlu0 %v7076
  %v7078 = vpop.xlane.xlu0 %7077
  %v7079 = vmul.f32 %v7069, %v1450
  %v7080 = vmul.f32 %v7072, %v1450
  %v7081 = vmul.f32 %v7075, %v1450
  %v7082 = vmul.f32 %v7078, %v1450
  %v7083 = vsub.f32 %v7063, %v7079
  %v7084 = vsub.f32 %v7064, %v7080
  %v7085 = vsub.f32 %v7065, %v7081
  %v7086 = vsub.f32 %v7066, %v7082
  %v7087 = vmul.f32 %v7083, %v7083
  %v7088 = vmul.f32 %v7084, %v7084
  %v7089 = vmul.f32 %v7085, %v7085
  %v7090 = vmul.f32 %v7086, %v7086
  %v7091 = vsel %vm208, %v7087, 0.0
  %7092 = vadd.xlane.f32.xlu0 %v7091
  %v7093 = vpop.xlane.xlu0 %7092
  %v7094 = vsel %vm208, %v7088, 0.0
  %7095 = vadd.xlane.f32.xlu0 %v7094
  %v7096 = vpop.xlane.xlu0 %7095
  %v7097 = vsel %vm208, %v7089, 0.0
  %7098 = vadd.xlane.f32.xlu0 %v7097
  %v7099 = vpop.xlane.xlu0 %7098
  %v7100 = vsel %vm208, %v7090, 0.0
  %7101 = vadd.xlane.f32.xlu0 %v7100
  %v7102 = vpop.xlane.xlu0 %7101
  %v7103 = vmul.f32 %v7093, %v1450
  %v7104 = vmul.f32 %v7096, %v1450
  %v7105 = vmul.f32 %v7099, %v1450
  %v7106 = vmul.f32 %v7102, %v1450
  %v7107 = vadd.f32 %v7103, 1e-05
  %v7108 = vadd.f32 %v7104, 1e-05
  %v7109 = vadd.f32 %v7105, 1e-05
  %v7110 = vadd.f32 %v7106, 1e-05
  %v7111 = vrsqrt.pop %v7107
  %v7112 = vrsqrt.pop %v7108
  %v7113 = vrsqrt.pop %v7109
  %v7114 = vrsqrt.pop %v7110
  %v7115 = vmul.f32 %v7083, %v7111
  %v7116 = vmul.f32 %v7084, %v7112
  %v7117 = vmul.f32 %v7085, %v7113
  %v7118 = vmul.f32 %v7086, %v7114
  %v7119 = vlaneseq
  %v7120 = vshrl.u32 %v7119, 7
  %v7121 = vsub.s32 3, %v7120
  %v7122 = vrot.slane %v4024, %v7121
  %v7123 = vmul.f32 %v7115, %v7122
  %v7124 = vmul.f32 %v7116, %v7122
  %v7125 = vmul.f32 %v7117, %v7122
  %v7126 = vmul.f32 %v7118, %v7122
  %v7127 = vlaneseq
  %v7128 = vshrl.u32 %v7127, 7
  %v7129 = vsub.s32 4, %v7128
  %v7130 = vrot.slane %v4024, %v7129
  %v7131 = vadd.f32 %v7123, %v7130
  %v7132 = vadd.f32 %v7124, %v7130
  %v7133 = vadd.f32 %v7125, %v7130
  %v7134 = vadd.f32 %v7126, %v7130
  %s7135 = scalar_lea.vmem %s1, 32
  %v7136 = vld [vmem:[%s7135] sm:$0xff]
  %v7137 = vld [vmem:[%s7135 + $0x8] sm:$0xff]
  %v7138 = vld [vmem:[%s7135 + $0x10] sm:$0xff]
  %v7139 = vld [vmem:[%s7135 + $0x18] sm:$0xff]
  %v7140 = vld [vmem:[%s3953] sm:$0x3]
  %s7141 = scalar_lea.vmem %s12, 32
  %v7142 = vld [vmem:[%s7141] sm:$0xff]
  %v7143 = vld [vmem:[%s7141 + $0x8] sm:$0xff]
  %v7144 = vld [vmem:[%s7141 + $0x10] sm:$0xff]
  %v7145 = vld [vmem:[%s7141 + $0x18] sm:$0xff]
  %s7146 = scalar_lea.vmem %s13, 32
  %v7147 = vld [vmem:[%s7146] sm:$0xff]
  %v7148 = vld [vmem:[%s7146 + $0x8] sm:$0xff]
  %v7149 = vld [vmem:[%s7146 + $0x10] sm:$0xff]
  %v7150 = vld [vmem:[%s7146 + $0x18] sm:$0xff]
  %s7151 = scalar_lea.vmem %s14, 32
  %v7152 = vld [vmem:[%s7151] sm:$0xff]
  %v7153 = vld [vmem:[%s7151 + $0x8] sm:$0xff]
  %v7154 = vld [vmem:[%s7151 + $0x10] sm:$0xff]
  %v7155 = vld [vmem:[%s7151 + $0x18] sm:$0xff]
  %s7156 = scalar_lea.vmem %s15, 4
  %v7157 = vld [vmem:[%s7156] sm:$0x7]
  %v7158 = vlaneseq
  %v7159 = vshrl.u32 %v7158, 7
  %v7160 = vsub.s32 0, %v7159
  %v7161 = vrot.slane %v7157, %v7160
  %v7164 = vrot.slane %v7133, 7
  %v7165 = vsel %vm3305, %v7164, %v7131
  %v7166 = vsel %vm208, %v7165, 0
  %7168 = vmatprep.subr.mxu0 0.0
  %7169 = vmatpush1.msra.mxu0 %v7142
  %7170 = vmatprep.subr.mxu0 0.0
  %7171 = vmatpush1.msra.mxu0 %v7143
  %7172 = vmatprep.subr.mxu0 0.0
  %7173 = vmatpush1.msra.mxu0 %v7144
  %7174 = vmatprep.subr.mxu0 0.0
  %7175 = vmatpush1.msra.mxu0 %v7145
  %7176 = vmatprep.subr.mxu0 0.0
  %7177 = vmatpush1.msra.mxu0 0.0
  %7178 = vmatprep.subr.mxu0 0.0
  %7179 = vmatpush1.msra.mxu0 0.0
  %7180 = vmatprep.subr.mxu0 0.0
  %7181 = vmatpush1.msra.mxu0 0.0
  %7182 = vmatprep.subr.mxu0 0.0
  %7183 = vmatpush1.msra.mxu0 0.0
  %7184 = vmatprep.subr.mxu0 0.0
  %7185 = vmatpush1.msra.mxu0 0.0
  %7186 = vmatprep.subr.mxu0 0.0
  %7187 = vmatpush1.msra.mxu0 0.0
  %7188 = vmatprep.subr.mxu0 0.0
  %7189 = vmatpush1.msra.mxu0 0.0
  %7190 = vmatprep.subr.mxu0 0.0
  %7191 = vmatpush1.msra.mxu0 0.0
  %7192 = vmatprep.subr.mxu0 0.0
  %7193 = vmatpush1.msra.mxu0 0.0
  %7194 = vmatprep.subr.mxu0 0.0
  %7195 = vmatpush1.msra.mxu0 0.0
  %7196 = vmatprep.subr.mxu0 0.0
  %7197 = vmatpush1.msra.mxu0 0.0
  %7198 = vmatprep.subr.mxu0 0.0
  %7199 = vmatpush1.msra.mxu0 0.0
  %7200 = vmatprep.subr.mxu0 0.0
  %7201 = vmatpush1.msra.mxu0 0.0
  %7202 = vmatprep.subr.mxu0 0.0
  %7203 = vmatpush1.msra.mxu0 0.0
  %7204 = vmatprep.subr.mxu0 0.0
  %7205 = vmatpush1.msra.mxu0 0.0
  %7206 = vmatprep.subr.mxu0 0.0
  %7207 = vmatpush1.msra.mxu0 0.0
  %7208 = vmatprep.subr.mxu0 0.0
  %7209 = vmatpush1.msra.mxu0 0.0
  %7210 = vmatprep.subr.mxu0 0.0
  %7211 = vmatpush1.msra.mxu0 0.0
  %7212 = vmatprep.subr.mxu0 0.0
  %7213 = vmatpush1.msra.mxu0 0.0
  %7214 = vmatprep.subr.mxu0 0.0
  %7215 = vmatpush1.msra.mxu0 0.0
  %7216 = vmatprep.subr.mxu0 0.0
  %7217 = vmatpush1.msra.mxu0 0.0
  %7218 = vmatprep.subr.mxu0 0.0
  %7219 = vmatpush1.msra.mxu0 0.0
  %7220 = vmatprep.subr.mxu0 0.0
  %7221 = vmatpush1.msra.mxu0 0.0
  %7222 = vmatprep.subr.mxu0 0.0
  %7223 = vmatpush1.msra.mxu0 0.0
  %7224 = vmatprep.subr.mxu0 0.0
  %7225 = vmatpush1.msra.mxu0 0.0
  %7226 = vmatprep.subr.mxu0 0.0
  %7227 = vmatpush1.msra.mxu0 0.0
  %7228 = vmatprep.subr.mxu0 0.0
  %7229 = vmatpush1.msra.mxu0 0.0
  %7230 = vmatprep.subr.mxu0 0.0
  %7231 = vmatpush1.msra.mxu0 0.0
  %7232 = vmatprep.mubr.f32.mxu0 0.0
  %7233 = vmatmul.mubr.f32.gmra.mrb[0].mxu0 %v7166
  %v7234 = vpop.f32.mrb[0].mxu0
  %v7235 = vadd.f32 %v7161, %v7234
  %v7236 = vpop.f32.mrb[0].mxu0
  %7237 = vdwg.mxu0
  %v7238 = vmul.f32 %v7235, 0.17677669
  %v7239 = vlaneseq
  %v7240 = vshrl.u32 %v7239, 7
  %v7241 = vsub.s32 1, %v7240
  %v7242 = vrot.slane %v7157, %v7241
  %v7243 = vsel %vm208, %v7131, 0
  %v7246 = vsel %vm208, %v7132, 0
  %v7248 = vsel %vm208, %v7133, 0
  %v7251 = vsel %vm208, %v7134, 0
  %7253 = vmatprep.subr.mxu0 0.0
  %7254 = vmatpush1.msra.mxu0 %v7147
  %7255 = vmatprep.subr.mxu0 0.0
  %7256 = vmatpush1.msra.mxu0 %v7148
  %7257 = vmatprep.subr.mxu0 0.0
  %7258 = vmatpush1.msra.mxu0 %v7149
  %7259 = vmatprep.subr.mxu0 0.0
  %7260 = vmatpush1.msra.mxu0 %v7150
  %7261 = vmatprep.subr.mxu0 0.0
  %7262 = vmatpush1.msra.mxu0 0.0
  %7263 = vmatprep.subr.mxu0 0.0
  %7264 = vmatpush1.msra.mxu0 0.0
  %7265 = vmatprep.subr.mxu0 0.0
  %7266 = vmatpush1.msra.mxu0 0.0
  %7267 = vmatprep.subr.mxu0 0.0
  %7268 = vmatpush1.msra.mxu0 0.0
  %7269 = vmatprep.subr.mxu0 0.0
  %7270 = vmatpush1.msra.mxu0 0.0
  %7271 = vmatprep.subr.mxu0 0.0
  %7272 = vmatpush1.msra.mxu0 0.0
  %7273 = vmatprep.subr.mxu0 0.0
  %7274 = vmatpush1.msra.mxu0 0.0
  %7275 = vmatprep.subr.mxu0 0.0
  %7276 = vmatpush1.msra.mxu0 0.0
  %7277 = vmatprep.subr.mxu0 0.0
  %7278 = vmatpush1.msra.mxu0 0.0
  %7279 = vmatprep.subr.mxu0 0.0
  %7280 = vmatpush1.msra.mxu0 0.0
  %7281 = vmatprep.subr.mxu0 0.0
  %7282 = vmatpush1.msra.mxu0 0.0
  %7283 = vmatprep.subr.mxu0 0.0
  %7284 = vmatpush1.msra.mxu0 0.0
  %7285 = vmatprep.subr.mxu0 0.0
  %7286 = vmatpush1.msra.mxu0 0.0
  %7287 = vmatprep.subr.mxu0 0.0
  %7288 = vmatpush1.msra.mxu0 0.0
  %7289 = vmatprep.subr.mxu0 0.0
  %7290 = vmatpush1.msra.mxu0 0.0
  %7291 = vmatprep.subr.mxu0 0.0
  %7292 = vmatpush1.msra.mxu0 0.0
  %7293 = vmatprep.subr.mxu0 0.0
  %7294 = vmatpush1.msra.mxu0 0.0
  %7295 = vmatprep.subr.mxu0 0.0
  %7296 = vmatpush1.msra.mxu0 0.0
  %7297 = vmatprep.subr.mxu0 0.0
  %7298 = vmatpush1.msra.mxu0 0.0
  %7299 = vmatprep.subr.mxu0 0.0
  %7300 = vmatpush1.msra.mxu0 0.0
  %7301 = vmatprep.subr.mxu0 0.0
  %7302 = vmatpush1.msra.mxu0 0.0
  %7303 = vmatprep.subr.mxu0 0.0
  %7304 = vmatpush1.msra.mxu0 0.0
  %7305 = vmatprep.subr.mxu0 0.0
  %7306 = vmatpush1.msra.mxu0 0.0
  %7307 = vmatprep.subr.mxu0 0.0
  %7308 = vmatpush1.msra.mxu0 0.0
  %7309 = vmatprep.subr.mxu0 0.0
  %7310 = vmatpush1.msra.mxu0 0.0
  %7311 = vmatprep.subr.mxu0 0.0
  %7312 = vmatpush1.msra.mxu0 0.0
  %7313 = vmatprep.subr.mxu0 0.0
  %7314 = vmatpush1.msra.mxu0 0.0
  %7315 = vmatprep.subr.mxu0 0.0
  %7316 = vmatpush1.msra.mxu0 0.0
  %7317 = vmatprep.mubr.f32.mxu0 0.0
  %7318 = vmatmul.mubr.f32.gmra.mrb[0].mxu0 %v7243
  %v7319 = vpop.f32.mrb[0].mxu0
  %v7320 = vadd.f32 %v7242, %v7319
  %v7321 = vpop.f32.mrb[0].mxu0
  %7322 = vmatprep.mubr.f32.mxu0 0.0
  %7323 = vmatmul.mubr.f32.gmra.mrb[0].mxu0 %v7246
  %v7324 = vpop.f32.mrb[0].mxu0
  %v7325 = vadd.f32 %v7242, %v7324
  %v7326 = vpop.f32.mrb[0].mxu0
  %7327 = vmatprep.mubr.f32.mxu0 0.0
  %7328 = vmatmul.mubr.f32.gmra.mrb[0].mxu0 %v7248
  %v7329 = vpop.f32.mrb[0].mxu0
  %v7330 = vadd.f32 %v7242, %v7329
  %v7331 = vpop.f32.mrb[0].mxu0
  %7332 = vmatprep.mubr.f32.mxu0 0.0
  %7333 = vmatmul.mubr.f32.gmra.mrb[0].mxu0 %v7251
  %v7334 = vpop.f32.mrb[0].mxu0
  %v7335 = vadd.f32 %v7242, %v7334
  %v7336 = vpop.f32.mrb[0].mxu0
  %7337 = vdwg.mxu0
  %v7338 = vlaneseq
  %v7339 = vshrl.u32 %v7338, 7
  %v7340 = vsub.s32 2, %v7339
  %v7341 = vrot.slane %v7157, %v7340
  %7342 = vmatprep.subr.mxu0 0.0
  %7343 = vmatpush1.msra.mxu0 %v7152
  %7344 = vmatprep.subr.mxu0 0.0
  %7345 = vmatpush1.msra.mxu0 %v7153
  %7346 = vmatprep.subr.mxu0 0.0
  %7347 = vmatpush1.msra.mxu0 %v7154
  %7348 = vmatprep.subr.mxu0 0.0
  %7349 = vmatpush1.msra.mxu0 %v7155
  %7350 = vmatprep.subr.mxu0 0.0
  %7351 = vmatpush1.msra.mxu0 0.0
  %7352 = vmatprep.subr.mxu0 0.0
  %7353 = vmatpush1.msra.mxu0 0.0
  %7354 = vmatprep.subr.mxu0 0.0
  %7355 = vmatpush1.msra.mxu0 0.0
  %7356 = vmatprep.subr.mxu0 0.0
  %7357 = vmatpush1.msra.mxu0 0.0
  %7358 = vmatprep.subr.mxu0 0.0
  %7359 = vmatpush1.msra.mxu0 0.0
  %7360 = vmatprep.subr.mxu0 0.0
  %7361 = vmatpush1.msra.mxu0 0.0
  %7362 = vmatprep.subr.mxu0 0.0
  %7363 = vmatpush1.msra.mxu0 0.0
  %7364 = vmatprep.subr.mxu0 0.0
  %7365 = vmatpush1.msra.mxu0 0.0
  %7366 = vmatprep.subr.mxu0 0.0
  %7367 = vmatpush1.msra.mxu0 0.0
  %7368 = vmatprep.subr.mxu0 0.0
  %7369 = vmatpush1.msra.mxu0 0.0
  %7370 = vmatprep.subr.mxu0 0.0
  %7371 = vmatpush1.msra.mxu0 0.0
  %7372 = vmatprep.subr.mxu0 0.0
  %7373 = vmatpush1.msra.mxu0 0.0
  %7374 = vmatprep.subr.mxu0 0.0
  %7375 = vmatpush1.msra.mxu0 0.0
  %7376 = vmatprep.subr.mxu0 0.0
  %7377 = vmatpush1.msra.mxu0 0.0
  %7378 = vmatprep.subr.mxu0 0.0
  %7379 = vmatpush1.msra.mxu0 0.0
  %7380 = vmatprep.subr.mxu0 0.0
  %7381 = vmatpush1.msra.mxu0 0.0
  %7382 = vmatprep.subr.mxu0 0.0
  %7383 = vmatpush1.msra.mxu0 0.0
  %7384 = vmatprep.subr.mxu0 0.0
  %7385 = vmatpush1.msra.mxu0 0.0
  %7386 = vmatprep.subr.mxu0 0.0
  %7387 = vmatpush1.msra.mxu0 0.0
  %7388 = vmatprep.subr.mxu0 0.0
  %7389 = vmatpush1.msra.mxu0 0.0
  %7390 = vmatprep.subr.mxu0 0.0
  %7391 = vmatpush1.msra.mxu0 0.0
  %7392 = vmatprep.subr.mxu0 0.0
  %7393 = vmatpush1.msra.mxu0 0.0
  %7394 = vmatprep.subr.mxu0 0.0
  %7395 = vmatpush1.msra.mxu0 0.0
  %7396 = vmatprep.subr.mxu0 0.0
  %7397 = vmatpush1.msra.mxu0 0.0
  %7398 = vmatprep.subr.mxu0 0.0
  %7399 = vmatpush1.msra.mxu0 0.0
  %7400 = vmatprep.subr.mxu0 0.0
  %7401 = vmatpush1.msra.mxu0 0.0
  %7402 = vmatprep.subr.mxu0 0.0
  %7403 = vmatpush1.msra.mxu0 0.0
  %7404 = vmatprep.subr.mxu0 0.0
  %7405 = vmatpush1.msra.mxu0 0.0
  %7406 = vmatprep.mubr.f32.mxu0 0.0
  %7407 = vmatmul.mubr.f32.gmra.mrb[0].mxu0 %v7243
  %v7408 = vpop.f32.mrb[0].mxu0
  %v7409 = vadd.f32 %v7341, %v7408
  %v7410 = vpop.f32.mrb[0].mxu0
  %7411 = vmatprep.mubr.f32.mxu0 0.0
  %7412 = vmatmul.mubr.f32.gmra.mrb[0].mxu0 %v7246
  %v7413 = vpop.f32.mrb[0].mxu0
  %v7414 = vadd.f32 %v7341, %v7413
  %v7415 = vpop.f32.mrb[0].mxu0
  %7416 = vmatprep.mubr.f32.mxu0 0.0
  %7417 = vmatmul.mubr.f32.gmra.mrb[0].mxu0 %v7248
  %v7418 = vpop.f32.mrb[0].mxu0
  %v7419 = vadd.f32 %v7341, %v7418
  %v7420 = vpop.f32.mrb[0].mxu0
  %7421 = vmatprep.mubr.f32.mxu0 0.0
  %7422 = vmatmul.mubr.f32.gmra.mrb[0].mxu0 %v7251
  %v7423 = vpop.f32.mrb[0].mxu0
  %v7424 = vadd.f32 %v7341, %v7423
  %v7425 = vpop.f32.mrb[0].mxu0
  %7426 = vdwg.mxu0
  %v7427 = vsel %vm3568, 1.0, %v7140
  %v7430 = vunpack.c.l.s4 1966171168
  %v7431 = vunpack.c.0.s8 %v7430
  %v7432 = vlaneseq
  %v7433 = vshrl.u32 %v7432, 7
  %v7434 = vsub.s32 %v7431, %v7433
  %v7435 = vrot.slane %v7238, %v7434
  %v7436 = vcombine.high %v7435, %v7435
  %v7438 = vunpack.c.l.s4 1966171168
  %v7439 = vunpack.c.0.s8 %v7438
  %v7440 = vlaneseq
  %v7441 = vshrl.u32 %v7440, 7
  %v7442 = vsub.s32 %v7439, %v7441
  %v7443 = vrot.slane %v7435, %v7442
  %v7445 = vunpack.c.l.s4 1966171168
  %v7446 = vunpack.c.0.s8 %v7445
  %v7447 = vlaneseq
  %v7448 = vshrl.u32 %v7447, 7
  %v7449 = vsub.s32 %v7446, %v7448
  %v7450 = vrot.slane %v7436, %v7449
  %v7451 = vmul.f32 %v7427, -1e+09
  %v7454 = vunpack.c.l.s4 1966171168
  %v7455 = vunpack.c.0.s8 %v7454
  %v7456 = vlaneseq
  %v7457 = vshrl.u32 %v7456, 7
  %v7458 = vsub.s32 %v7455, %v7457
  %v7459 = vrot.slane %v7451, %v7458
  %v7460 = vcombine.high %v7459, %v7459
  %v7462 = vunpack.c.l.s4 1966171168
  %v7463 = vunpack.c.0.s8 %v7462
  %v7464 = vlaneseq
  %v7465 = vshrl.u32 %v7464, 7
  %v7466 = vsub.s32 %v7463, %v7465
  %v7467 = vrot.slane %v7459, %v7466
  %v7469 = vunpack.c.l.s4 1966171168
  %v7470 = vunpack.c.0.s8 %v7469
  %v7471 = vlaneseq
  %v7472 = vshrl.u32 %v7471, 7
  %v7473 = vsub.s32 %v7470, %v7472
  %v7474 = vrot.slane %v7460, %v7473
  %v7477 = vsel %vm208, %v7443, 0
  %v7480 = vsel %vm208, %v7320, 0
  %v7483 = vsel %vm208, %v7325, 0
  %7485 = vmatprep.subr.mxu0 0.0
  %7486 = vmatpush1.xpose.msra.mxu0 %v7480
  %7487 = vmatprep.subr.mxu0 0.0
  %7488 = vmatpush1.xpose.msra.mxu0 %v7483
  %7489 = vmatprep.subr.mxu0 0.0
  %7490 = vmatpush1.xpose.msra.mxu0 0.0
  %7491 = vmatprep.subr.mxu0 0.0
  %7492 = vmatpush1.xpose.msra.mxu0 0.0
  %7493 = vmatprep.subr.mxu0 0.0
  %7494 = vmatpush1.xpose.msra.mxu0 0.0
  %7495 = vmatprep.subr.mxu0 0.0
  %7496 = vmatpush1.xpose.msra.mxu0 0.0
  %7497 = vmatprep.subr.mxu0 0.0
  %7498 = vmatpush1.xpose.msra.mxu0 0.0
  %7499 = vmatprep.subr.mxu0 0.0
  %7500 = vmatpush1.xpose.msra.mxu0 0.0
  %7501 = vmatprep.subr.mxu0 0.0
  %7502 = vmatpush1.xpose.msra.mxu0 0.0
  %7503 = vmatprep.subr.mxu0 0.0
  %7504 = vmatpush1.xpose.msra.mxu0 0.0
  %7505 = vmatprep.subr.mxu0 0.0
  %7506 = vmatpush1.xpose.msra.mxu0 0.0
  %7507 = vmatprep.subr.mxu0 0.0
  %7508 = vmatpush1.xpose.msra.mxu0 0.0
  %7509 = vmatprep.subr.mxu0 0.0
  %7510 = vmatpush1.xpose.msra.mxu0 0.0
  %7511 = vmatprep.subr.mxu0 0.0
  %7512 = vmatpush1.xpose.msra.mxu0 0.0
  %7513 = vmatprep.subr.mxu0 0.0
  %7514 = vmatpush1.xpose.msra.mxu0 0.0
  %7515 = vmatprep.subr.mxu0 0.0
  %7516 = vmatpush1.xpose.msra.mxu0 0.0
  %7517 = vmatprep.subr.mxu0 0.0
  %7518 = vmatpush1.xpose.msra.mxu0 0.0
  %7519 = vmatprep.subr.mxu0 0.0
  %7520 = vmatpush1.xpose.msra.mxu0 0.0
  %7521 = vmatprep.subr.mxu0 0.0
  %7522 = vmatpush1.xpose.msra.mxu0 0.0
  %7523 = vmatprep.subr.mxu0 0.0
  %7524 = vmatpush1.xpose.msra.mxu0 0.0
  %7525 = vmatprep.subr.mxu0 0.0
  %7526 = vmatpush1.xpose.msra.mxu0 0.0
  %7527 = vmatprep.subr.mxu0 0.0
  %7528 = vmatpush1.xpose.msra.mxu0 0.0
  %7529 = vmatprep.subr.mxu0 0.0
  %7530 = vmatpush1.xpose.msra.mxu0 0.0
  %7531 = vmatprep.subr.mxu0 0.0
  %7532 = vmatpush1.xpose.msra.mxu0 0.0
  %7533 = vmatprep.subr.mxu0 0.0
  %7534 = vmatpush1.xpose.msra.mxu0 0.0
  %7535 = vmatprep.subr.mxu0 0.0
  %7536 = vmatpush1.xpose.msra.mxu0 0.0
  %7537 = vmatprep.subr.mxu0 0.0
  %7538 = vmatpush1.xpose.msra.mxu0 0.0
  %7539 = vmatprep.subr.mxu0 0.0
  %7540 = vmatpush1.xpose.msra.mxu0 0.0
  %7541 = vmatprep.subr.mxu0 0.0
  %7542 = vmatpush1.xpose.msra.mxu0 0.0
  %7543 = vmatprep.subr.mxu0 0.0
  %7544 = vmatpush1.xpose.msra.mxu0 0.0
  %7545 = vmatprep.subr.mxu0 0.0
  %7546 = vmatpush1.xpose.msra.mxu0 0.0
  %7547 = vmatprep.subr.mxu0 0.0
  %7548 = vmatpush1.xpose.msra.mxu0 0.0
  %7549 = vmatprep.mubr.f32.mxu0 0.0
  %7550 = vmatmul.mubr.f32.gmra.mrb[0].mxu0 %v7477
  %v7551 = vpop.f32.mrb[0].mxu0
  %v7552 = vadd.f32 %v7467, %v7551
  %v7553 = vpop.f32.mrb[0].mxu0
  %7554 = vdwg.mxu0
  %v7555 = vsel %vm208, %v7450, 0
  %v7558 = vsel %vm208, %v7330, 0
  %v7561 = vsel %vm208, %v7335, 0
  %7563 = vmatprep.subr.mxu0 0.0
  %7564 = vmatpush1.xpose.msra.mxu0 %v7558
  %7565 = vmatprep.subr.mxu0 0.0
  %7566 = vmatpush1.xpose.msra.mxu0 %v7561
  %7567 = vmatprep.subr.mxu0 0.0
  %7568 = vmatpush1.xpose.msra.mxu0 0.0
  %7569 = vmatprep.subr.mxu0 0.0
  %7570 = vmatpush1.xpose.msra.mxu0 0.0
  %7571 = vmatprep.subr.mxu0 0.0
  %7572 = vmatpush1.xpose.msra.mxu0 0.0
  %7573 = vmatprep.subr.mxu0 0.0
  %7574 = vmatpush1.xpose.msra.mxu0 0.0
  %7575 = vmatprep.subr.mxu0 0.0
  %7576 = vmatpush1.xpose.msra.mxu0 0.0
  %7577 = vmatprep.subr.mxu0 0.0
  %7578 = vmatpush1.xpose.msra.mxu0 0.0
  %7579 = vmatprep.subr.mxu0 0.0
  %7580 = vmatpush1.xpose.msra.mxu0 0.0
  %7581 = vmatprep.subr.mxu0 0.0
  %7582 = vmatpush1.xpose.msra.mxu0 0.0
  %7583 = vmatprep.subr.mxu0 0.0
  %7584 = vmatpush1.xpose.msra.mxu0 0.0
  %7585 = vmatprep.subr.mxu0 0.0
  %7586 = vmatpush1.xpose.msra.mxu0 0.0
  %7587 = vmatprep.subr.mxu0 0.0
  %7588 = vmatpush1.xpose.msra.mxu0 0.0
  %7589 = vmatprep.subr.mxu0 0.0
  %7590 = vmatpush1.xpose.msra.mxu0 0.0
  %7591 = vmatprep.subr.mxu0 0.0
  %7592 = vmatpush1.xpose.msra.mxu0 0.0
  %7593 = vmatprep.subr.mxu0 0.0
  %7594 = vmatpush1.xpose.msra.mxu0 0.0
  %7595 = vmatprep.subr.mxu0 0.0
  %7596 = vmatpush1.xpose.msra.mxu0 0.0
  %7597 = vmatprep.subr.mxu0 0.0
  %7598 = vmatpush1.xpose.msra.mxu0 0.0
  %7599 = vmatprep.subr.mxu0 0.0
  %7600 = vmatpush1.xpose.msra.mxu0 0.0
  %7601 = vmatprep.subr.mxu0 0.0
  %7602 = vmatpush1.xpose.msra.mxu0 0.0
  %7603 = vmatprep.subr.mxu0 0.0
  %7604 = vmatpush1.xpose.msra.mxu0 0.0
  %7605 = vmatprep.subr.mxu0 0.0
  %7606 = vmatpush1.xpose.msra.mxu0 0.0
  %7607 = vmatprep.subr.mxu0 0.0
  %7608 = vmatpush1.xpose.msra.mxu0 0.0
  %7609 = vmatprep.subr.mxu0 0.0
  %7610 = vmatpush1.xpose.msra.mxu0 0.0
  %7611 = vmatprep.subr.mxu0 0.0
  %7612 = vmatpush1.xpose.msra.mxu0 0.0
  %7613 = vmatprep.subr.mxu0 0.0
  %7614 = vmatpush1.xpose.msra.mxu0 0.0
  %7615 = vmatprep.subr.mxu0 0.0
  %7616 = vmatpush1.xpose.msra.mxu0 0.0
  %7617 = vmatprep.subr.mxu0 0.0
  %7618 = vmatpush1.xpose.msra.mxu0 0.0
  %7619 = vmatprep.subr.mxu0 0.0
  %7620 = vmatpush1.xpose.msra.mxu0 0.0
  %7621 = vmatprep.subr.mxu0 0.0
  %7622 = vmatpush1.xpose.msra.mxu0 0.0
  %7623 = vmatprep.subr.mxu0 0.0
  %7624 = vmatpush1.xpose.msra.mxu0 0.0
  %7625 = vmatprep.subr.mxu0 0.0
  %7626 = vmatpush1.xpose.msra.mxu0 0.0
  %7627 = vmatprep.mubr.f32.mxu0 0.0
  %7628 = vmatmul.mubr.f32.gmra.mrb[0].mxu0 %v7555
  %v7629 = vpop.f32.mrb[0].mxu0
  %v7630 = vadd.f32 %v7474, %v7629
  %v7631 = vpop.f32.mrb[0].mxu0
  %7632 = vdwg.mxu0
  %v7633 = vsel %vm3775, %v7552, -inf
  %7634 = vmax.xlane.f32.xlu0 %v7633
  %v7635 = vpop.xlane.xlu0 %7634
  %v7636 = vsel %vm3775, %v7630, -inf
  %7637 = vmax.xlane.f32.xlu0 %v7636
  %v7638 = vpop.xlane.xlu0 %7637
  %v7639 = vsub.f32 %v7552, %v7635
  %v7640 = vsub.f32 %v7630, %v7638
  %v7641 = vmul.f32 %v7639, 1.442695
  %v7642 = vpow.pop %v7641
  %v7643 = vmul.f32 %v7640, 1.442695
  %v7644 = vpow.pop %v7643
  %v7645 = vsel %vm3775, %v7642, 0.0
  %7646 = vadd.xlane.f32.xlu0 %v7645
  %v7647 = vpop.xlane.xlu0 %7646
  %v7648 = vsel %vm3775, %v7644, 0.0
  %7649 = vadd.xlane.f32.xlu0 %v7648
  %v7650 = vpop.xlane.xlu0 %7649
  %v7651 = vrcp.pop %v7647
  %v7652 = vrcp.pop %v7650
  %v7653 = vmul.f32 %v7642, %v7651
  %v7654 = vmul.f32 %v7644, %v7652
  %v7655 = vadd.f32 %v7409, %v7136
  %v7656 = vadd.f32 %v7414, %v7137
  %v7657 = vadd.f32 %v7419, %v7138
  %v7658 = vadd.f32 %v7424, %v7139
  %v7660 = vsel %vm516, %v7653, 0
  %7662 = vmatprep.subr.mxu0 0.0
  %7663 = vmatpush1.msra.mxu0 %v7655
  %7664 = vmatprep.subr.mxu0 0.0
  %7665 = vmatpush1.msra.mxu0 %v7656
  %7666 = vmatprep.subr.mxu0 0.0
  %7667 = vmatpush1.msra.mxu0 0.0
  %7668 = vmatprep.subr.mxu0 0.0
  %7669 = vmatpush1.msra.mxu0 0.0
  %7670 = vmatprep.subr.mxu0 0.0
  %7671 = vmatpush1.msra.mxu0 0.0
  %7672 = vmatprep.subr.mxu0 0.0
  %7673 = vmatpush1.msra.mxu0 0.0
  %7674 = vmatprep.subr.mxu0 0.0
  %7675 = vmatpush1.msra.mxu0 0.0
  %7676 = vmatprep.subr.mxu0 0.0
  %7677 = vmatpush1.msra.mxu0 0.0
  %7678 = vmatprep.subr.mxu0 0.0
  %7679 = vmatpush1.msra.mxu0 0.0
  %7680 = vmatprep.subr.mxu0 0.0
  %7681 = vmatpush1.msra.mxu0 0.0
  %7682 = vmatprep.subr.mxu0 0.0
  %7683 = vmatpush1.msra.mxu0 0.0
  %7684 = vmatprep.subr.mxu0 0.0
  %7685 = vmatpush1.msra.mxu0 0.0
  %7686 = vmatprep.subr.mxu0 0.0
  %7687 = vmatpush1.msra.mxu0 0.0
  %7688 = vmatprep.subr.mxu0 0.0
  %7689 = vmatpush1.msra.mxu0 0.0
  %7690 = vmatprep.subr.mxu0 0.0
  %7691 = vmatpush1.msra.mxu0 0.0
  %7692 = vmatprep.subr.mxu0 0.0
  %7693 = vmatpush1.msra.mxu0 0.0
  %7694 = vmatprep.subr.mxu0 0.0
  %7695 = vmatpush1.msra.mxu0 0.0
  %7696 = vmatprep.subr.mxu0 0.0
  %7697 = vmatpush1.msra.mxu0 0.0
  %7698 = vmatprep.subr.mxu0 0.0
  %7699 = vmatpush1.msra.mxu0 0.0
  %7700 = vmatprep.subr.mxu0 0.0
  %7701 = vmatpush1.msra.mxu0 0.0
  %7702 = vmatprep.subr.mxu0 0.0
  %7703 = vmatpush1.msra.mxu0 0.0
  %7704 = vmatprep.subr.mxu0 0.0
  %7705 = vmatpush1.msra.mxu0 0.0
  %7706 = vmatprep.subr.mxu0 0.0
  %7707 = vmatpush1.msra.mxu0 0.0
  %7708 = vmatprep.subr.mxu0 0.0
  %7709 = vmatpush1.msra.mxu0 0.0
  %7710 = vmatprep.subr.mxu0 0.0
  %7711 = vmatpush1.msra.mxu0 0.0
  %7712 = vmatprep.subr.mxu0 0.0
  %7713 = vmatpush1.msra.mxu0 0.0
  %7714 = vmatprep.subr.mxu0 0.0
  %7715 = vmatpush1.msra.mxu0 0.0
  %7716 = vmatprep.subr.mxu0 0.0
  %7717 = vmatpush1.msra.mxu0 0.0
  %7718 = vmatprep.subr.mxu0 0.0
  %7719 = vmatpush1.msra.mxu0 0.0
  %7720 = vmatprep.subr.mxu0 0.0
  %7721 = vmatpush1.msra.mxu0 0.0
  %7722 = vmatprep.subr.mxu0 0.0
  %7723 = vmatpush1.msra.mxu0 0.0
  %7724 = vmatprep.subr.mxu0 0.0
  %7725 = vmatpush1.msra.mxu0 0.0
  %7726 = vmatprep.mubr.f32.mxu0 0.0
  %7727 = vmatmul.mubr.f32.gmra.mrb[0].mxu0 %v7660
  %v7728 = vpop.f32.mrb[0].mxu0
  %v7729 = vadd.f32 0.0, %v7728
  %v7730 = vpop.f32.mrb[0].mxu0
  %7731 = vdwg.mxu0
  %v7733 = vsel %vm516, %v7654, 0
  %7735 = vmatprep.subr.mxu0 0.0
  %7736 = vmatpush1.msra.mxu0 %v7657
  %7737 = vmatprep.subr.mxu0 0.0
  %7738 = vmatpush1.msra.mxu0 %v7658
  %7739 = vmatprep.subr.mxu0 0.0
  %7740 = vmatpush1.msra.mxu0 0.0
  %7741 = vmatprep.subr.mxu0 0.0
  %7742 = vmatpush1.msra.mxu0 0.0
  %7743 = vmatprep.subr.mxu0 0.0
  %7744 = vmatpush1.msra.mxu0 0.0
  %7745 = vmatprep.subr.mxu0 0.0
  %7746 = vmatpush1.msra.mxu0 0.0
  %7747 = vmatprep.subr.mxu0 0.0
  %7748 = vmatpush1.msra.mxu0 0.0
  %7749 = vmatprep.subr.mxu0 0.0
  %7750 = vmatpush1.msra.mxu0 0.0
  %7751 = vmatprep.subr.mxu0 0.0
  %7752 = vmatpush1.msra.mxu0 0.0
  %7753 = vmatprep.subr.mxu0 0.0
  %7754 = vmatpush1.msra.mxu0 0.0
  %7755 = vmatprep.subr.mxu0 0.0
  %7756 = vmatpush1.msra.mxu0 0.0
  %7757 = vmatprep.subr.mxu0 0.0
  %7758 = vmatpush1.msra.mxu0 0.0
  %7759 = vmatprep.subr.mxu0 0.0
  %7760 = vmatpush1.msra.mxu0 0.0
  %7761 = vmatprep.subr.mxu0 0.0
  %7762 = vmatpush1.msra.mxu0 0.0
  %7763 = vmatprep.subr.mxu0 0.0
  %7764 = vmatpush1.msra.mxu0 0.0
  %7765 = vmatprep.subr.mxu0 0.0
  %7766 = vmatpush1.msra.mxu0 0.0
  %7767 = vmatprep.subr.mxu0 0.0
  %7768 = vmatpush1.msra.mxu0 0.0
  %7769 = vmatprep.subr.mxu0 0.0
  %7770 = vmatpush1.msra.mxu0 0.0
  %7771 = vmatprep.subr.mxu0 0.0
  %7772 = vmatpush1.msra.mxu0 0.0
  %7773 = vmatprep.subr.mxu0 0.0
  %7774 = vmatpush1.msra.mxu0 0.0
  %7775 = vmatprep.subr.mxu0 0.0
  %7776 = vmatpush1.msra.mxu0 0.0
  %7777 = vmatprep.subr.mxu0 0.0
  %7778 = vmatpush1.msra.mxu0 0.0
  %7779 = vmatprep.subr.mxu0 0.0
  %7780 = vmatpush1.msra.mxu0 0.0
  %7781 = vmatprep.subr.mxu0 0.0
  %7782 = vmatpush1.msra.mxu0 0.0
  %7783 = vmatprep.subr.mxu0 0.0
  %7784 = vmatpush1.msra.mxu0 0.0
  %7785 = vmatprep.subr.mxu0 0.0
  %7786 = vmatpush1.msra.mxu0 0.0
  %7787 = vmatprep.subr.mxu0 0.0
  %7788 = vmatpush1.msra.mxu0 0.0
  %7789 = vmatprep.subr.mxu0 0.0
  %7790 = vmatpush1.msra.mxu0 0.0
  %7791 = vmatprep.subr.mxu0 0.0
  %7792 = vmatpush1.msra.mxu0 0.0
  %7793 = vmatprep.subr.mxu0 0.0
  %7794 = vmatpush1.msra.mxu0 0.0
  %7795 = vmatprep.subr.mxu0 0.0
  %7796 = vmatpush1.msra.mxu0 0.0
  %7797 = vmatprep.subr.mxu0 0.0
  %7798 = vmatpush1.msra.mxu0 0.0
  %7799 = vmatprep.mubr.f32.mxu0 0.0
  %7800 = vmatmul.mubr.f32.gmra.mrb[0].mxu0 %v7733
  %v7801 = vpop.f32.mrb[0].mxu0
  %v7802 = vadd.f32 0.0, %v7801
  %v7803 = vpop.f32.mrb[0].mxu0
  %7804 = vdwg.mxu0
  %v7805 = vld [vmem:[%s16] sm:$0xff]
  %v7806 = vld [vmem:[%s16 + $0x8] sm:$0xff]
  %v7807 = vld [vmem:[%s16 + $0x10] sm:$0xff]
  %v7808 = vld [vmem:[%s16 + $0x18] sm:$0xff]
  %v7809 = vld [vmem:[%s17] sm:$0x1]
  %v7810 = vld [vmem:[%s18] sm:$0xff]
  %v7811 = vld [vmem:[%s18 + $0x8] sm:$0xff]
  %v7812 = vld [vmem:[%s18 + $0x10] sm:$0xff]
  %v7813 = vld [vmem:[%s18 + $0x18] sm:$0xff]
  %v7814 = vld [vmem:[%s19] sm:$0x1]
  %v7815 = vld [vmem:[%s20] sm:$0xff]
  %v7816 = vld [vmem:[%s20 + $0x8] sm:$0xff]
  %v7817 = vld [vmem:[%s20 + $0x10] sm:$0xff]
  %v7818 = vld [vmem:[%s20 + $0x18] sm:$0xff]
  %v7819 = vld [vmem:[#allocation2] sm:$0x1]
  %v7821 = vlaneseq
  %v7822 = vshrl.u32 %v7821, 7
  %v7823 = vsub.s32 0, %v7822
  %v7824 = vrot.slane %v7809, %v7823
  %v7828 = vrot.slane %v3945, 7
  %v7829 = vsel %vm3305, %v7828, %v3872
  %v7830 = vsel %vm208, %v7829, 0
  %7832 = vmatprep.subr.mxu0 0.0
  %7833 = vmatpush1.msra.mxu0 %v7805
  %7834 = vmatprep.subr.mxu0 0.0
  %7835 = vmatpush1.msra.mxu0 %v7806
  %7836 = vmatprep.subr.mxu0 0.0
  %7837 = vmatpush1.msra.mxu0 %v7807
  %7838 = vmatprep.subr.mxu0 0.0
  %7839 = vmatpush1.msra.mxu0 %v7808
  %7840 = vmatprep.subr.mxu0 0.0
  %7841 = vmatpush1.msra.mxu0 0.0
  %7842 = vmatprep.subr.mxu0 0.0
  %7843 = vmatpush1.msra.mxu0 0.0
  %7844 = vmatprep.subr.mxu0 0.0
  %7845 = vmatpush1.msra.mxu0 0.0
  %7846 = vmatprep.subr.mxu0 0.0
  %7847 = vmatpush1.msra.mxu0 0.0
  %7848 = vmatprep.subr.mxu0 0.0
  %7849 = vmatpush1.msra.mxu0 0.0
  %7850 = vmatprep.subr.mxu0 0.0
  %7851 = vmatpush1.msra.mxu0 0.0
  %7852 = vmatprep.subr.mxu0 0.0
  %7853 = vmatpush1.msra.mxu0 0.0
  %7854 = vmatprep.subr.mxu0 0.0
  %7855 = vmatpush1.msra.mxu0 0.0
  %7856 = vmatprep.subr.mxu0 0.0
  %7857 = vmatpush1.msra.mxu0 0.0
  %7858 = vmatprep.subr.mxu0 0.0
  %7859 = vmatpush1.msra.mxu0 0.0
  %7860 = vmatprep.subr.mxu0 0.0
  %7861 = vmatpush1.msra.mxu0 0.0
  %7862 = vmatprep.subr.mxu0 0.0
  %7863 = vmatpush1.msra.mxu0 0.0
  %7864 = vmatprep.subr.mxu0 0.0
  %7865 = vmatpush1.msra.mxu0 0.0
  %7866 = vmatprep.subr.mxu0 0.0
  %7867 = vmatpush1.msra.mxu0 0.0
  %7868 = vmatprep.subr.mxu0 0.0
  %7869 = vmatpush1.msra.mxu0 0.0
  %7870 = vmatprep.subr.mxu0 0.0
  %7871 = vmatpush1.msra.mxu0 0.0
  %7872 = vmatprep.subr.mxu0 0.0
  %7873 = vmatpush1.msra.mxu0 0.0
  %7874 = vmatprep.subr.mxu0 0.0
  %7875 = vmatpush1.msra.mxu0 0.0
  %7876 = vmatprep.subr.mxu0 0.0
  %7877 = vmatpush1.msra.mxu0 0.0
  %7878 = vmatprep.subr.mxu0 0.0
  %7879 = vmatpush1.msra.mxu0 0.0
  %7880 = vmatprep.subr.mxu0 0.0
  %7881 = vmatpush1.msra.mxu0 0.0
  %7882 = vmatprep.subr.mxu0 0.0
  %7883 = vmatpush1.msra.mxu0 0.0
  %7884 = vmatprep.subr.mxu0 0.0
  %7885 = vmatpush1.msra.mxu0 0.0
  %7886 = vmatprep.subr.mxu0 0.0
  %7887 = vmatpush1.msra.mxu0 0.0
  %7888 = vmatprep.subr.mxu0 0.0
  %7889 = vmatpush1.msra.mxu0 0.0
  %7890 = vmatprep.subr.mxu0 0.0
  %7891 = vmatpush1.msra.mxu0 0.0
  %7892 = vmatprep.subr.mxu0 0.0
  %7893 = vmatpush1.msra.mxu0 0.0
  %7894 = vmatprep.subr.mxu0 0.0
  %7895 = vmatpush1.msra.mxu0 0.0
  %7896 = vmatprep.mubr.f32.mxu0 0.0
  %7897 = vmatmul.mubr.f32.gmra.mrb[0].mxu0 %v7830
  %v7898 = vpop.f32.mrb[0].mxu0
  %v7899 = vadd.f32 %v7824, %v7898
  %v7900 = vpop.f32.mrb[0].mxu0
  %7901 = vdwg.mxu0
  %v7904 = vrot.slane %v7802, 7
  %v7905 = vsel %vm3305, %v7904, %v7729
  %v7907 = vsel %vm208, %v7899, 0
  %v7909 = vsel %vm208, %v7905, 0
  %7911 = vmatprep.subr.mxu0 0.0
  %7912 = vmatpush1.xpose.msra.mxu0 %v7909
  %7913 = vmatprep.subr.mxu0 0.0
  %7914 = vmatpush1.xpose.msra.mxu0 0.0
  %7915 = vmatprep.subr.mxu0 0.0
  %7916 = vmatpush1.xpose.msra.mxu0 0.0
  %7917 = vmatprep.subr.mxu0 0.0
  %7918 = vmatpush1.xpose.msra.mxu0 0.0
  %7919 = vmatprep.subr.mxu0 0.0
  %7920 = vmatpush1.xpose.msra.mxu0 0.0
  %7921 = vmatprep.subr.mxu0 0.0
  %7922 = vmatpush1.xpose.msra.mxu0 0.0
  %7923 = vmatprep.subr.mxu0 0.0
  %7924 = vmatpush1.xpose.msra.mxu0 0.0
  %7925 = vmatprep.subr.mxu0 0.0
  %7926 = vmatpush1.xpose.msra.mxu0 0.0
  %7927 = vmatprep.subr.mxu0 0.0
  %7928 = vmatpush1.xpose.msra.mxu0 0.0
  %7929 = vmatprep.subr.mxu0 0.0
  %7930 = vmatpush1.xpose.msra.mxu0 0.0
  %7931 = vmatprep.subr.mxu0 0.0
  %7932 = vmatpush1.xpose.msra.mxu0 0.0
  %7933 = vmatprep.subr.mxu0 0.0
  %7934 = vmatpush1.xpose.msra.mxu0 0.0
  %7935 = vmatprep.subr.mxu0 0.0
  %7936 = vmatpush1.xpose.msra.mxu0 0.0
  %7937 = vmatprep.subr.mxu0 0.0
  %7938 = vmatpush1.xpose.msra.mxu0 0.0
  %7939 = vmatprep.subr.mxu0 0.0
  %7940 = vmatpush1.xpose.msra.mxu0 0.0
  %7941 = vmatprep.subr.mxu0 0.0
  %7942 = vmatpush1.xpose.msra.mxu0 0.0
  %7943 = vmatprep.subr.mxu0 0.0
  %7944 = vmatpush1.xpose.msra.mxu0 0.0
  %7945 = vmatprep.subr.mxu0 0.0
  %7946 = vmatpush1.xpose.msra.mxu0 0.0
  %7947 = vmatprep.subr.mxu0 0.0
  %7948 = vmatpush1.xpose.msra.mxu0 0.0
  %7949 = vmatprep.subr.mxu0 0.0
  %7950 = vmatpush1.xpose.msra.mxu0 0.0
  %7951 = vmatprep.subr.mxu0 0.0
  %7952 = vmatpush1.xpose.msra.mxu0 0.0
  %7953 = vmatprep.subr.mxu0 0.0
  %7954 = vmatpush1.xpose.msra.mxu0 0.0
  %7955 = vmatprep.subr.mxu0 0.0
  %7956 = vmatpush1.xpose.msra.mxu0 0.0
  %7957 = vmatprep.subr.mxu0 0.0
  %7958 = vmatpush1.xpose.msra.mxu0 0.0
  %7959 = vmatprep.subr.mxu0 0.0
  %7960 = vmatpush1.xpose.msra.mxu0 0.0
  %7961 = vmatprep.subr.mxu0 0.0
  %7962 = vmatpush1.xpose.msra.mxu0 0.0
  %7963 = vmatprep.subr.mxu0 0.0
  %7964 = vmatpush1.xpose.msra.mxu0 0.0
  %7965 = vmatprep.subr.mxu0 0.0
  %7966 = vmatpush1.xpose.msra.mxu0 0.0
  %7967 = vmatprep.subr.mxu0 0.0
  %7968 = vmatpush1.xpose.msra.mxu0 0.0
  %7969 = vmatprep.subr.mxu0 0.0
  %7970 = vmatpush1.xpose.msra.mxu0 0.0
  %7971 = vmatprep.subr.mxu0 0.0
  %7972 = vmatpush1.xpose.msra.mxu0 0.0
  %7973 = vmatprep.subr.mxu0 0.0
  %7974 = vmatpush1.xpose.msra.mxu0 0.0
  %7975 = vmatprep.mubr.f32.mxu0 0.0
  %7976 = vmatmul.mubr.f32.gmra.mrb[0].mxu0 %v7907
  %v7977 = vpop.f32.mrb[0].mxu0
  %v7978 = vadd.f32 0.0, %v7977
  %v7979 = vpop.f32.mrb[0].mxu0
  %7980 = vdwg.mxu0
  %v7982 = vlaneseq
  %v7983 = vshrl.u32 %v7982, 7
  %v7984 = vsub.s32 0, %v7983
  %v7985 = vrot.slane %v7814, %v7984
  %7987 = vmatprep.subr.mxu0 0.0
  %7988 = vmatpush1.msra.mxu0 %v7810
  %7989 = vmatprep.subr.mxu0 0.0
  %7990 = vmatpush1.msra.mxu0 %v7811
  %7991 = vmatprep.subr.mxu0 0.0
  %7992 = vmatpush1.msra.mxu0 %v7812
  %7993 = vmatprep.subr.mxu0 0.0
  %7994 = vmatpush1.msra.mxu0 %v7813
  %7995 = vmatprep.subr.mxu0 0.0
  %7996 = vmatpush1.msra.mxu0 0.0
  %7997 = vmatprep.subr.mxu0 0.0
  %7998 = vmatpush1.msra.mxu0 0.0
  %7999 = vmatprep.subr.mxu0 0.0
  %8000 = vmatpush1.msra.mxu0 0.0
  %8001 = vmatprep.subr.mxu0 0.0
  %8002 = vmatpush1.msra.mxu0 0.0
  %8003 = vmatprep.subr.mxu0 0.0
  %8004 = vmatpush1.msra.mxu0 0.0
  %8005 = vmatprep.subr.mxu0 0.0
  %8006 = vmatpush1.msra.mxu0 0.0
  %8007 = vmatprep.subr.mxu0 0.0
  %8008 = vmatpush1.msra.mxu0 0.0
  %8009 = vmatprep.subr.mxu0 0.0
  %8010 = vmatpush1.msra.mxu0 0.0
  %8011 = vmatprep.subr.mxu0 0.0
  %8012 = vmatpush1.msra.mxu0 0.0
  %8013 = vmatprep.subr.mxu0 0.0
  %8014 = vmatpush1.msra.mxu0 0.0
  %8015 = vmatprep.subr.mxu0 0.0
  %8016 = vmatpush1.msra.mxu0 0.0
  %8017 = vmatprep.subr.mxu0 0.0
  %8018 = vmatpush1.msra.mxu0 0.0
  %8019 = vmatprep.subr.mxu0 0.0
  %8020 = vmatpush1.msra.mxu0 0.0
  %8021 = vmatprep.subr.mxu0 0.0
  %8022 = vmatpush1.msra.mxu0 0.0
  %8023 = vmatprep.subr.mxu0 0.0
  %8024 = vmatpush1.msra.mxu0 0.0
  %8025 = vmatprep.subr.mxu0 0.0
  %8026 = vmatpush1.msra.mxu0 0.0
  %8027 = vmatprep.subr.mxu0 0.0
  %8028 = vmatpush1.msra.mxu0 0.0
  %8029 = vmatprep.subr.mxu0 0.0
  %8030 = vmatpush1.msra.mxu0 0.0
  %8031 = vmatprep.subr.mxu0 0.0
  %8032 = vmatpush1.msra.mxu0 0.0
  %8033 = vmatprep.subr.mxu0 0.0
  %8034 = vmatpush1.msra.mxu0 0.0
  %8035 = vmatprep.subr.mxu0 0.0
  %8036 = vmatpush1.msra.mxu0 0.0
  %8037 = vmatprep.subr.mxu0 0.0
  %8038 = vmatpush1.msra.mxu0 0.0
  %8039 = vmatprep.subr.mxu0 0.0
  %8040 = vmatpush1.msra.mxu0 0.0
  %8041 = vmatprep.subr.mxu0 0.0
  %8042 = vmatpush1.msra.mxu0 0.0
  %8043 = vmatprep.subr.mxu0 0.0
  %8044 = vmatpush1.msra.mxu0 0.0
  %8045 = vmatprep.subr.mxu0 0.0
  %8046 = vmatpush1.msra.mxu0 0.0
  %8047 = vmatprep.subr.mxu0 0.0
  %8048 = vmatpush1.msra.mxu0 0.0
  %8049 = vmatprep.subr.mxu0 0.0
  %8050 = vmatpush1.msra.mxu0 0.0
  %8051 = vmatprep.mubr.f32.mxu0 0.0
  %8052 = vmatmul.mubr.f32.gmra.mrb[0].mxu0 %v3307
  %v8053 = vpop.f32.mrb[0].mxu0
  %v8054 = vadd.f32 %v7985, %v8053
  %v8055 = vpop.f32.mrb[0].mxu0
  %8056 = vdwg.mxu0
  %v8057 = vtanh.pop %v8054
  %v8059 = vlaneseq
  %v8060 = vshrl.u32 %v8059, 7
  %v8061 = vsub.s32 0, %v8060
  %v8062 = vrot.slane %v7819, %v8061
  %v8065 = vsel %vm208, %v8057, 0
  %8067 = vmatprep.subr.mxu0 0.0
  %8068 = vmatpush1.msra.mxu0 %v7815
  %8069 = vmatprep.subr.mxu0 0.0
  %8070 = vmatpush1.msra.mxu0 %v7816
  %8071 = vmatprep.subr.mxu0 0.0
  %8072 = vmatpush1.msra.mxu0 %v7817
  %8073 = vmatprep.subr.mxu0 0.0
  %8074 = vmatpush1.msra.mxu0 %v7818
  %8075 = vmatprep.subr.mxu0 0.0
  %8076 = vmatpush1.msra.mxu0 0.0
  %8077 = vmatprep.subr.mxu0 0.0
  %8078 = vmatpush1.msra.mxu0 0.0
  %8079 = vmatprep.subr.mxu0 0.0
  %8080 = vmatpush1.msra.mxu0 0.0
  %8081 = vmatprep.subr.mxu0 0.0
  %8082 = vmatpush1.msra.mxu0 0.0
  %8083 = vmatprep.subr.mxu0 0.0
  %8084 = vmatpush1.msra.mxu0 0.0
  %8085 = vmatprep.subr.mxu0 0.0
  %8086 = vmatpush1.msra.mxu0 0.0
  %8087 = vmatprep.subr.mxu0 0.0
  %8088 = vmatpush1.msra.mxu0 0.0
  %8089 = vmatprep.subr.mxu0 0.0
  %8090 = vmatpush1.msra.mxu0 0.0
  %8091 = vmatprep.subr.mxu0 0.0
  %8092 = vmatpush1.msra.mxu0 0.0
  %8093 = vmatprep.subr.mxu0 0.0
  %8094 = vmatpush1.msra.mxu0 0.0
  %8095 = vmatprep.subr.mxu0 0.0
  %8096 = vmatpush1.msra.mxu0 0.0
  %8097 = vmatprep.subr.mxu0 0.0
  %8098 = vmatpush1.msra.mxu0 0.0
  %8099 = vmatprep.subr.mxu0 0.0
  %8100 = vmatpush1.msra.mxu0 0.0
  %8101 = vmatprep.subr.mxu0 0.0
  %8102 = vmatpush1.msra.mxu0 0.0
  %8103 = vmatprep.subr.mxu0 0.0
  %8104 = vmatpush1.msra.mxu0 0.0
  %8105 = vmatprep.subr.mxu0 0.0
  %8106 = vmatpush1.msra.mxu0 0.0
  %8107 = vmatprep.subr.mxu0 0.0
  %8108 = vmatpush1.msra.mxu0 0.0
  %8109 = vmatprep.subr.mxu0 0.0
  %8110 = vmatpush1.msra.mxu0 0.0
  %8111 = vmatprep.subr.mxu0 0.0
  %8112 = vmatpush1.msra.mxu0 0.0
  %8113 = vmatprep.subr.mxu0 0.0
  %8114 = vmatpush1.msra.mxu0 0.0
  %8115 = vmatprep.subr.mxu0 0.0
  %8116 = vmatpush1.msra.mxu0 0.0
  %8117 = vmatprep.subr.mxu0 0.0
  %8118 = vmatpush1.msra.mxu0 0.0
  %8119 = vmatprep.subr.mxu0 0.0
  %8120 = vmatpush1.msra.mxu0 0.0
  %8121 = vmatprep.subr.mxu0 0.0
  %8122 = vmatpush1.msra.mxu0 0.0
  %8123 = vmatprep.subr.mxu0 0.0
  %8124 = vmatpush1.msra.mxu0 0.0
  %8125 = vmatprep.subr.mxu0 0.0
  %8126 = vmatpush1.msra.mxu0 0.0
  %8127 = vmatprep.subr.mxu0 0.0
  %8128 = vmatpush1.msra.mxu0 0.0
  %8129 = vmatprep.subr.mxu0 0.0
  %8130 = vmatpush1.msra.mxu0 0.0
  %8131 = vmatprep.mubr.f32.mxu0 0.0
  %8132 = vmatmul.mubr.f32.gmra.mrb[0].mxu0 %v8065
  %v8133 = vpop.f32.mrb[0].mxu0
  %v8134 = vadd.f32 %v8062, %v8133
  %v8135 = vpop.f32.mrb[0].mxu0
  %8136 = vdwg.mxu0
  %vm8137 = vcmask 9216
  %v8138 = vsel %vm8137, %v7978, 0.0
  %8139 = vadd.xlane.f32.xlu0 %v8138
  %v8140 = vpop.xlane.xlu0 %8139
  %v8141 = vrcp.pop 2.0
  %v8142 = vmul.f32 %v8140, %v8141
  %v8143 = vsub.f32 %v8134, %v8142
  %v8144 = vmul.f32 %v8143, %v8143
  %vm8145 = vcmask 1024
  %v8146 = vsel %vm8145, %v8144, 0.0
  %8147 = vadd.xlane.f32.xlu0 %v8146
  %v8148 = vpop.xlane.xlu0 %8147
  %v8149 = vrot.slane %v8148, 4
  %v8150 = vadd.f32 %v8148, %v8149
  %v8151 = vrot.slane %v8150, 2
  %v8152 = vadd.f32 %v8150, %v8151
  %v8153 = vrot.slane %v8152, 1
  %v8154 = vadd.f32 %v8152, %v8153
  %s8155 = vtos %v8154
  %v8156 = vrcp.pop 2.0
  %s8157 = vtos %v8156
  %s8158 = smul.f32 %s8155, %s8157
  %v8159 = vsel %vm8137, %v7978, -inf
  %8160 = vmax.xlane.f32.xlu0 %v8159
  %v8161 = vpop.xlane.xlu0 %8160
  %v8162 = vsub.f32 %v7978, %v8161
  %v8163 = vmul.f32 %v8162, 1.442695
  %v8164 = vpow.pop %v8163
  %v8165 = vsel %vm8137, %v8164, 0.0
  %8166 = vadd.xlane.f32.xlu0 %v8165
  %v8167 = vpop.xlane.xlu0 %8166
  %v8168 = vlog2.pop %v8167
  %v8169 = vmul.f32 %v8168, 0.6931472
  %v8170 = vadd.f32 %v8161, %v8169
  %v8171 = vsub.f32 %v7978, %v8170
  %v8172 = vlaneseq
  %v8173 = vshrl.u32 %v8172, 7
  %vm8174 = vcmp.eq.s32.totalorder %v165, %v8173
  %v8175 = vsel %vm8174, %v8171, 0.0
  %v8176 = vsel %vm8137, %v8175, 0.0
  %8177 = vadd.xlane.f32.xlu0 %v8176
  %v8178 = vpop.xlane.xlu0 %8177
  %v8179 = vsub.f32 0.0, %v8178
  %v8180 = vsel %vm8137, %v8171, 0.0
  %8181 = vadd.xlane.f32.xlu0 %v8180
  %v8182 = vpop.xlane.xlu0 %8181
  %v8183 = vsub.f32 0.0, %v8182
  %v8184 = vmul.f32 %v8179, 0.9
  %v8185 = vmul.f32 %v8183, 0.05
  %v8186 = vadd.f32 %v8184, %v8185
  %v8187 = vsel %vm8145, %v8186, 0.0
  %8188 = vadd.xlane.f32.xlu0 %v8187
  %v8189 = vpop.xlane.xlu0 %8188
  %v8190 = vrot.slane %v8189, 4
  %v8191 = vadd.f32 %v8189, %v8190
  %v8192 = vrot.slane %v8191, 2
  %v8193 = vadd.f32 %v8191, %v8192
  %v8194 = vrot.slane %v8193, 1
  %v8195 = vadd.f32 %v8193, %v8194
  %s8196 = vtos %v8195
  %v8197 = vrcp.pop 2.0
  %s8198 = vtos %v8197
  %s8199 = smul.f32 %s8196, %s8198
  %s8200 = sadd.f32 %s8199, %s8158
  %v8201 = vsel %vm8137, %v8171, -inf
  %8202 = vmax.xlane.f32.xlu0 %v8201
  %v8203 = vpop.xlane.xlu0 %8202
  %vm8204 = vcmp.ge.f32.partialorder %v8171, %v8203
  %v8205 = vsel %vm8204, %v165, 2
  %v8206 = vsel %vm8137, %v8205, 2147483647
  %v8207 = vand.u32 %v8206, 65535
  %v8208 = vshra.s32 %v8206, 16
  %v8209 = vcvt.s32.f32 %v8207
  %v8210 = vcvt.s32.f32 %v8208
  %8211 = vmin.xlane.f32.xlu0 %v8210
  %v8212 = vpop.xlane.xlu0 %8211
  %vm8213 = vcmp.eq.f32.partialorder %v8210, %v8212
  %v8214 = vsel %vm8213, %v8209, inf
  %8215 = vmin.xlane.f32.xlu0 %v8214
  %v8216 = vpop.xlane.xlu0 %8215
  %v8217 = vcvt.f32.s32 %v8216
  %v8218 = vcvt.f32.s32 %v8212
  %v8219 = vshll.u32 %v8218, 16
  %v8220 = vadd.s32 %v8219, %v8217
  %vm8221 = vcmp.eq.s32.totalorder %v8220, %v8173
  %v8222 = vsel %vm8221, 1, 0
  %v8223 = vcvt.s32.f32 %v8222
  %v8224 = vsel %vm8145, %v8223, 0.0
  %8225 = vadd.xlane.f32.xlu0 %v8224
  %v8226 = vpop.xlane.xlu0 %8225
  %v8227 = vrot.slane %v8226, 4
  %v8228 = vadd.f32 %v8226, %v8227
  %v8229 = vrot.slane %v8228, 2
  %v8230 = vadd.f32 %v8228, %v8229
  %v8231 = vrot.slane %v8230, 1
  %v8232 = vadd.f32 %v8230, %v8231
  %s8233 = vtos %v8232
  %v8234 = vrcp.pop 2.0
  %s8235 = vtos %v8234
  %s8236 = smul.f32 %s8233, %s8235
  %vm8237 = vcmp.eq.s32.totalorder %v165, 1
  %v8238 = vstv %s8236
  %v8239 = vsel %vm8237, %v8238, 0.0
  %v8240 = vstv %s8200
  %v8241 = vsel %vm3568, %v8240, %v8239
  %8242 = vst [vmem:[%s22] sm:$0x1] %v8241
  // Predicated region
  $region90: #{ranker_forward.1} parent=0 // pred_check
    _
  $region91: #{ranker_forward.1} parent=0 // pred_check_branch
    %8244 = sbr.rel (0) target = $region93
  $region92: #{ranker_forward.1} parent=0 // pred_region
    _
  $region93: #{ranker_forward.1} parent=0 // pred_fallthru
    _
  // Predicated region
  $region94: #{ranker_forward.1} parent=0 // pred_check
    _
  $region95: #{ranker_forward.1} parent=0 // pred_check_branch
    %8246 = sbr.rel (0) target = $region97
  $region96: #{ranker_forward.1} parent=0 // pred_region
    _
  $region97: #{ranker_forward.1} parent=0 // pred_fallthru
    _

</llo_original>
